<compile_context>
chip_gen: v7x
topology: tpu7x:2x2x1
jax: 0.10.0
libtpu: 0.0.40
codegen_flags: <defaults>
</compile_context>

<pallas_src>
import math

import numpy as np
import jax
import jax.numpy as jnp
from jax.experimental import pallas as pl
from jax.experimental.pallas import tpu as pltpu


_CHANNELS = [1, 8, 16, 32, 64]      # Conv4_3D channel progression
_EPS = 1e-5                         # BatchNorm3d default eps


def _layer_dims(spatial):
    """Static per-layer dims: the spatial extent halves after every layer."""
    dims, s = [], spatial
    for li in range(4):
        dims.append(dict(D=s, H=s, W=s,
                         Cin=_CHANNELS[li], Cout=_CHANNELS[li + 1],
                         pool='avg2' if li < 3 else 'global'))
        s //= 2
    return dims


# ----------------------------------------------------------------------------
# Parameter initialisation (matches the PyTorch module's init).
# ----------------------------------------------------------------------------
def init_params(key):
    params, keys = [], jax.random.split(key, 4)
    for li in range(4):
        cin, cout = _CHANNELS[li], _CHANNELS[li + 1]
        n = 3 * 3 * 3 * cout
        std = math.sqrt(2.0 / n)
        w = std * jax.random.normal(keys[li], (3, 3, 3, cin, cout), jnp.float32)
        gamma = jnp.ones((cout,), jnp.float32)
        beta = jnp.zeros((cout,), jnp.float32)
        params.append((w, gamma, beta))
    return params


# ----------------------------------------------------------------------------
# Weight preprocessing: the dense matrices the fused kernel consumes.
# (Runs once, outside the jitted forward.)
# ----------------------------------------------------------------------------
def _build_band9(wgt, W, Cin, Cout):
    """(9, Wp*Cin, W*Cout): folds the kw taps into a banded matmul, one band
    per (kd, kh) tap pair (layers 2-4)."""
    Wp = W + 2
    band = np.zeros((9, Wp * Cin, W * Cout), np.float32)
    for kd in range(3):
        for kh in range(3):
            t = kd * 3 + kh
            for w in range(W):
                for kw in range(3):
                    band[t, (w + kw) * Cin:(w + kw + 1) * Cin,
                         w * Cout:(w + 1) * Cout] = wgt[kd, kh, kw]
    return band


def _build_band_l1(wgt, W, Cin, Cout):
    """(9*Wp*Cin, W*Cout): ALL 27 taps folded into a single band matrix for
    layer 1; the nine (kd,kh)-shifted padded-W rows are concatenated along the
    lane (contraction) axis."""
    Wp = W + 2
    band = np.zeros((9 * Wp * Cin, W * Cout), np.float32)
    for kd in range(3):
        for kh in range(3):
            t = kd * 3 + kh
            for w in range(W):
                for kw in range(3):
                    r0 = (t * Wp + w + kw) * Cin
                    band[r0:r0 + Cin, w * Cout:(w + 1) * Cout] = wgt[kd, kh, kw]
    return band


def _build_gather_cat(B, D, H):
    """(9*B*D*H, B*Dp*Hp): vertically stacked 0/1 row-gather matrices for all
    nine (kd, kh) shifts of the padded, row-flattened activation volume
    (one MXU matmul instead of nine)."""
    Dp, Hp = D + 2, H + 2
    BDH = B * D * H
    G = np.zeros((9 * BDH, B * Dp * Hp), np.float32)
    for kd in range(3):
        for kh in range(3):
            t = kd * 3 + kh
            for b in range(B):
                for d in range(D):
                    for h in range(H):
                        G[t * BDH + (b * D + d) * H + h,
                          (b * Dp + d + kd) * Hp + (h + kh)] = 1.0
    return G


def _build_chan_sum(W, Cout):
    """(W*Cout, W*Cout): sums every channel over the W lane groups and
    broadcasts the per-channel total back to each group (BatchNorm stats)."""
    return np.tile(np.eye(Cout, dtype=np.float32), (W, W))


def _build_pool_avg2(B, D, H, W, Cout):
    """AvgPool3d(2) fused with the next layer's zero padding:
       Xp_next = L @ Z @ R,  Z of shape (B*D*H, W*Cout)."""
    D2, H2, W2 = D // 2, H // 2, W // 2
    Dp2, Hp2, Wp2 = D2 + 2, H2 + 2, W2 + 2
    L = np.zeros((B * Dp2 * Hp2, B * D * H), np.float32)
    for b in range(B):
        for d in range(D):
            for h in range(H):
                L[(b * Dp2 + d // 2 + 1) * Hp2 + (h // 2 + 1),
                  (b * D + d) * H + h] = 0.125
    R = np.zeros((W * Cout, Wp2 * Cout), np.float32)
    for w in range(W):
        for c in range(Cout):
            R[w * Cout + c, (w // 2 + 1) * Cout + c] = 1.0
    return L, R


def _build_pool_global(B, D, H, W, Cout):
    """AdaptiveAvgPool3d(1) + Flatten:  (B*D*H, W*Cout) -> (B, Cout)."""
    L = np.zeros((B, B * D * H), np.float32)
    inv = 1.0 / float(D * H * W)
    for b in range(B):
        for d in range(D):
            for h in range(H):
                L[b, (b * D + d) * H + h] = inv
    R = np.zeros((W * Cout, Cout), np.float32)
    for w in range(W):
        for c in range(Cout):
            R[w * Cout + c, c] = 1.0
    return L, R


def prepare_kernel_params(params, B, spatial):
    """Repackage (conv weight, gamma, beta) into the matrices the fused kernel
    consumes.  Pure weight preprocessing."""
    dims = _layer_dims(spatial)
    flat = []
    for li, (cfg, (w, gamma, beta)) in enumerate(zip(dims, params)):
        D, H, W = cfg['D'], cfg['H'], cfg['W']
        Cin, Cout = cfg['Cin'], cfg['Cout']
        wnp = np.asarray(w, np.float32)
        gnp = np.asarray(gamma, np.float32)
        bnp = np.asarray(beta, np.float32)
        if li == 0:
            flat.append(jnp.asarray(_build_band_l1(wnp, W, Cin, Cout)))
        else:
            flat.append(jnp.asarray(_build_gather_cat(B, D, H)))
            flat.append(jnp.asarray(_build_band9(wnp, W, Cin, Cout)))
        flat.append(jnp.asarray(_build_chan_sum(W, Cout)))
        flat.append(jnp.asarray(np.tile(gnp, W)[None, :]))   # gamma, lane layout
        flat.append(jnp.asarray(np.tile(bnp, W)[None, :]))   # beta,  lane layout
        if cfg['pool'] == 'avg2':
            L, R = _build_pool_avg2(B, D, H, W, Cout)
        else:
            L, R = _build_pool_global(B, D, H, W, Cout)
        flat.append(jnp.asarray(L))
        flat.append(jnp.asarray(R))
    return tuple(flat), dims


# ----------------------------------------------------------------------------
# The fused Pallas kernel: all four (conv + BN + ReLU + pool) layers.
# ----------------------------------------------------------------------------
def _make_kernel(dims, B, eps=_EPS):
    def kernel(*refs):
        x1_ref = refs[0]          # (B*D0*H0, 9*Wp0*Cin0): layer-1 lhs
        out_ref = refs[-1]        # (B, 64)
        it = iter(refs[1:-1])
        f32 = jnp.float32

        x = None                  # padded, row-flattened activation (VMEM/vregs)
        for li, cfg in enumerate(dims):
            D, H, W, Cout = cfg['D'], cfg['H'], cfg['W'], cfg['Cout']
            BDH = B * D * H

            # -- Conv3d(3x3x3, stride 1, pad 1, no bias) on the MXU ----------
            if li == 0:
                band1_ref = next(it)
                # single matmul: all 27 taps folded into one band matrix
                y = jnp.dot(x1_ref[...], band1_ref[...],
                            preferred_element_type=f32)       # (BDH, W*Cout)
            else:
                gcat_ref = next(it)
                band_ref = next(it)
                # one merged row-gather matmul for all nine (kd, kh) shifts
                lhs_all = jnp.dot(gcat_ref[...], x,
                                  preferred_element_type=f32)  # (9*BDH, Wp*Cin)
                y = jnp.dot(lhs_all[0:BDH, :], band_ref[0],
                            preferred_element_type=f32)
                for t in range(1, 9):
                    y = y + jnp.dot(lhs_all[t * BDH:(t + 1) * BDH, :],
                                    band_ref[t], preferred_element_type=f32)

            P_ref = next(it)
            g_ref = next(it)
            b_ref = next(it)
            L_ref = next(it)
            R_ref = next(it)

            # -- BatchNorm3d (training-mode batch stats, biased var) + ReLU --
            n = float(BDH * W)
            s = jnp.sum(y, axis=0, keepdims=True)              # (1, W*Cout)
            mean = jnp.dot(s, P_ref[...], preferred_element_type=f32) * (1.0 / n)
            yc = y - mean
            q = jnp.sum(yc * yc, axis=0, keepdims=True)
            var = jnp.dot(q, P_ref[...], preferred_element_type=f32) * (1.0 / n)
            scale = g_ref[...] * jax.lax.rsqrt(var + eps)
            shift = b_ref[...] - mean * scale
            z = jnp.maximum(y * scale + shift, 0.0)

            # -- AvgPool3d(2) + next layer's zero padding (or global pool) ---
            x = jnp.dot(L_ref[...],
                        jnp.dot(z, R_ref[...], preferred_element_type=f32),
                        preferred_element_type=f32)

        out_ref[...] = x          # (B, 64)

    return kernel


def make_forward(dims, B):
    cfg0 = dims[0]
    D0, H0, W0, Cin0 = cfg0['D'], cfg0['H'], cfg0['W'], cfg0['Cin']
    Wp0 = W0 + 2
    Cout_last = dims[-1]['Cout']
    kernel = _make_kernel(dims, B)

    @jax.jit
    def forward(x, kernel_params):
        # x: (B, Cin0, D, H, W) -- PyTorch NCDHW convention.
        xc = jnp.transpose(x, (0, 2, 3, 4, 1))                        # NDHWC
        xp = jnp.pad(xc, ((0, 0), (1, 1), (1, 1), (1, 1), (0, 0)))
        # Layer-1 lhs: nine (kd, kh)-shifted padded-W rows concatenated along
        # the lane axis -> one lane-dense (B*D*H, 9*Wp*Cin) matrix.  This is
        # the only XLA glue in the forward (one small fusion, same byte count
        # as the raw nine-window stack).
        wins = [xp[:, kd:kd + D0, kh:kh + H0].reshape(B, D0, H0, Wp0 * Cin0)
                for kd in range(3) for kh in range(3)]
        x1 = jnp.concatenate(wins, axis=-1).reshape(B * D0 * H0,
                                                    9 * Wp0 * Cin0)
        return pl.pallas_call(
            kernel,
            out_shape=jax.ShapeDtypeStruct((B, Cout_last), jnp.float32),
            compiler_params=pltpu.CompilerParams(
                vmem_limit_bytes=32 * 1024 * 1024),
        )(x1, *kernel_params)

    return forward


# ----------------------------------------------------------------------------
# Pure-JAX reference (mirrors the PyTorch module in training mode).
# ----------------------------------------------------------------------------
def reference_forward(x, params, eps=_EPS):
    h = x
    for li, (w, gamma, beta) in enumerate(params):
        h = jax.lax.conv_general_dilated(
            h, w, window_strides=(1, 1, 1),
            padding=((1, 1), (1, 1), (1, 1)),
            dimension_numbers=('NCDHW', 'DHWIO', 'NCDHW'),
            precision=jax.lax.Precision.HIGHEST)
        mean = jnp.mean(h, axis=(0, 2, 3, 4), keepdims=True)
        var = jnp.mean(jnp.square(h - mean), axis=(0, 2, 3, 4), keepdims=True)
        h = (h - mean) * jax.lax.rsqrt(var + eps)
        h = h * gamma.reshape(1, -1, 1, 1, 1) + beta.reshape(1, -1, 1, 1, 1)
        h = jnp.maximum(h, 0.0)
        if li < 3:
            Bn, Cn, Dn, Hn, Wn = h.shape
            h = h.reshape(Bn, Cn, Dn // 2, 2, Hn // 2, 2, Wn // 2, 2)
            h = h.mean(axis=(3, 5, 7))
        else:
            h = jnp.mean(h, axis=(2, 3, 4))
    return h


if __name__ == "__main__":
    key = jax.random.PRNGKey(0)
    kx, kp = jax.random.split(key)

    B, C, D, H, W = 2, 1, 16, 16, 16
    x = jax.random.normal(kx, (B, C, D, H, W), dtype=jnp.float32)     # NCDHW

    params = init_params(kp)
    kernel_params, dims = prepare_kernel_params(params, B, D)
    forward = make_forward(dims, B)

    out = jax.block_until_ready(forward(x, kernel_params))
    assert out.shape == (B, 64), out.shape
    assert bool(jnp.all(jnp.isfinite(out)))

    ref = jax.block_until_ready(reference_forward(x, params))
    err = float(jnp.max(jnp.abs(out - ref)))
    # Loose bound: tolerant of MXU f32 emulation differences, but a structural
    # bug (wrong gather / band / pool) would miss by O(0.1-1).
    assert err < 5e-2, f"max abs diff vs pure-JAX reference = {err}"

    print("KERNEL_OK")
</pallas_src>

<mosaic_0001>
module attributes {stable_mosaic.version = 11 : i64} {
  func.func @kernel(%arg0: memref<512x162xf32, #tpu.memory_space<vmem>>, %arg1: memref<162x128xf32, #tpu.memory_space<vmem>>, %arg2: memref<128x128xf32, #tpu.memory_space<vmem>>, %arg3: memref<1x128xf32, #tpu.memory_space<vmem>>, %arg4: memref<1x128xf32, #tpu.memory_space<vmem>>, %arg5: memref<200x512xf32, #tpu.memory_space<vmem>>, %arg6: memref<128x80xf32, #tpu.memory_space<vmem>>, %arg7: memref<1152x200xf32, #tpu.memory_space<vmem>>, %arg8: memref<9x80x128xf32, #tpu.memory_space<vmem>>, %arg9: memref<128x128xf32, #tpu.memory_space<vmem>>, %arg10: memref<1x128xf32, #tpu.memory_space<vmem>>, %arg11: memref<1x128xf32, #tpu.memory_space<vmem>>, %arg12: memref<72x128xf32, #tpu.memory_space<vmem>>, %arg13: memref<128x96xf32, #tpu.memory_space<vmem>>, %arg14: memref<288x72xf32, #tpu.memory_space<vmem>>, %arg15: memref<9x96x128xf32, #tpu.memory_space<vmem>>, %arg16: memref<128x128xf32, #tpu.memory_space<vmem>>, %arg17: memref<1x128xf32, #tpu.memory_space<vmem>>, %arg18: memref<1x128xf32, #tpu.memory_space<vmem>>, %arg19: memref<32x32xf32, #tpu.memory_space<vmem>>, %arg20: memref<128x128xf32, #tpu.memory_space<vmem>>, %arg21: memref<72x32xf32, #tpu.memory_space<vmem>>, %arg22: memref<9x128x128xf32, #tpu.memory_space<vmem>>, %arg23: memref<128x128xf32, #tpu.memory_space<vmem>>, %arg24: memref<1x128xf32, #tpu.memory_space<vmem>>, %arg25: memref<1x128xf32, #tpu.memory_space<vmem>>, %arg26: memref<2x8xf32, #tpu.memory_space<vmem>>, %arg27: memref<128x64xf32, #tpu.memory_space<vmem>>, %arg28: memref<2x64xf32, #tpu.memory_space<vmem>>) attributes {dimension_semantics = [], scalar_prefetch = 0 : i64, scratch_operands = 0 : i64, tpu.core_type = #tpu.core_type<tc>} {
    %c0 = arith.constant 0 : index
    %c0_0 = arith.constant 0 : index
    %0 = vector.load %arg0[%c0, %c0_0] : memref<512x162xf32, #tpu.memory_space<vmem>>, vector<512x162xf32>
    %c0_1 = arith.constant 0 : index
    %c0_2 = arith.constant 0 : index
    %1 = vector.load %arg1[%c0_1, %c0_2] : memref<162x128xf32, #tpu.memory_space<vmem>>, vector<162x128xf32>
    %cst = arith.constant dense<0.000000e+00> : vector<512x128xf32>
    %2 = tpu.matmul %0, %1, %cst {dimension_numbers = #tpu.dot_dimension_numbers<[1], [0], [0], [1], [0, 0, 1, 1], [], []>} : vector<512x162xf32>, vector<162x128xf32>, vector<512x128xf32> -> vector<512x128xf32>
    %cst_3 = arith.constant dense<0.000000e+00> : vector<128xf32>
    %3 = vector.multi_reduction <add>, %2, %cst_3 [0] : vector<512x128xf32> to vector<128xf32>
    %4 = vector.shape_cast %3 : vector<128xf32> to vector<1x128xf32>
    %c0_4 = arith.constant 0 : index
    %c0_5 = arith.constant 0 : index
    %5 = vector.load %arg2[%c0_4, %c0_5] : memref<128x128xf32, #tpu.memory_space<vmem>>, vector<128x128xf32>
    %cst_6 = arith.constant dense<0.000000e+00> : vector<1x128xf32>
    %6 = tpu.matmul %4, %5, %cst_6 {dimension_numbers = #tpu.dot_dimension_numbers<[1], [0], [0], [1], [0, 0, 1, 1], [], []>} : vector<1x128xf32>, vector<128x128xf32>, vector<1x128xf32> -> vector<1x128xf32>
    %cst_7 = arith.constant 1.22070313E-4 : f32
    %7 = vector.broadcast %cst_7 : f32 to vector<1x128xf32>
    %8 = arith.mulf %6, %7 : vector<1x128xf32>
    %9 = vector.broadcast %8 : vector<1x128xf32> to vector<512x128xf32>
    %10 = arith.subf %2, %9 : vector<512x128xf32>
    %11 = arith.mulf %10, %10 : vector<512x128xf32>
    %cst_8 = arith.constant dense<0.000000e+00> : vector<128xf32>
    %12 = vector.multi_reduction <add>, %11, %cst_8 [0] : vector<512x128xf32> to vector<128xf32>
    %13 = vector.shape_cast %12 : vector<128xf32> to vector<1x128xf32>
    %c0_9 = arith.constant 0 : index
    %c0_10 = arith.constant 0 : index
    %14 = vector.load %arg2[%c0_9, %c0_10] : memref<128x128xf32, #tpu.memory_space<vmem>>, vector<128x128xf32>
    %cst_11 = arith.constant dense<0.000000e+00> : vector<1x128xf32>
    %15 = tpu.matmul %13, %14, %cst_11 {dimension_numbers = #tpu.dot_dimension_numbers<[1], [0], [0], [1], [0, 0, 1, 1], [], []>} : vector<1x128xf32>, vector<128x128xf32>, vector<1x128xf32> -> vector<1x128xf32>
    %cst_12 = arith.constant 1.22070313E-4 : f32
    %16 = vector.broadcast %cst_12 : f32 to vector<1x128xf32>
    %17 = arith.mulf %15, %16 : vector<1x128xf32>
    %c0_13 = arith.constant 0 : index
    %c0_14 = arith.constant 0 : index
    %18 = vector.load %arg3[%c0_13, %c0_14] : memref<1x128xf32, #tpu.memory_space<vmem>>, vector<1x128xf32>
    %cst_15 = arith.constant 9.99999974E-6 : f32
    %19 = vector.broadcast %cst_15 : f32 to vector<1x128xf32>
    %20 = arith.addf %17, %19 : vector<1x128xf32>
    %21 = math.rsqrt %20 : vector<1x128xf32>
    %22 = arith.mulf %18, %21 : vector<1x128xf32>
    %c0_16 = arith.constant 0 : index
    %c0_17 = arith.constant 0 : index
    %23 = vector.load %arg4[%c0_16, %c0_17] : memref<1x128xf32, #tpu.memory_space<vmem>>, vector<1x128xf32>
    %24 = arith.mulf %8, %22 : vector<1x128xf32>
    %25 = arith.subf %23, %24 : vector<1x128xf32>
    %26 = vector.broadcast %22 : vector<1x128xf32> to vector<512x128xf32>
    %27 = arith.mulf %2, %26 : vector<512x128xf32>
    %28 = vector.broadcast %25 : vector<1x128xf32> to vector<512x128xf32>
    %29 = arith.addf %27, %28 : vector<512x128xf32>
    %cst_18 = arith.constant 0.000000e+00 : f32
    %30 = vector.broadcast %cst_18 : f32 to vector<512x128xf32>
    %31 = arith.maximumf %29, %30 : vector<512x128xf32>
    %c0_19 = arith.constant 0 : index
    %c0_20 = arith.constant 0 : index
    %32 = vector.load %arg5[%c0_19, %c0_20] : memref<200x512xf32, #tpu.memory_space<vmem>>, vector<200x512xf32>
    %c0_21 = arith.constant 0 : index
    %c0_22 = arith.constant 0 : index
    %33 = vector.load %arg6[%c0_21, %c0_22] : memref<128x80xf32, #tpu.memory_space<vmem>>, vector<128x80xf32>
    %cst_23 = arith.constant dense<0.000000e+00> : vector<512x80xf32>
    %34 = tpu.matmul %31, %33, %cst_23 {dimension_numbers = #tpu.dot_dimension_numbers<[1], [0], [0], [1], [0, 0, 1, 1], [], []>} : vector<512x128xf32>, vector<128x80xf32>, vector<512x80xf32> -> vector<512x80xf32>
    %cst_24 = arith.constant dense<0.000000e+00> : vector<200x80xf32>
    %35 = tpu.matmul %32, %34, %cst_24 {dimension_numbers = #tpu.dot_dimension_numbers<[1], [0], [0], [1], [0, 0, 1, 1], [], []>} : vector<200x512xf32>, vector<512x80xf32>, vector<200x80xf32> -> vector<200x80xf32>
    %c0_25 = arith.constant 0 : index
    %c0_26 = arith.constant 0 : index
    %36 = vector.load %arg7[%c0_25, %c0_26] : memref<1152x200xf32, #tpu.memory_space<vmem>>, vector<1152x200xf32>
    %cst_27 = arith.constant dense<0.000000e+00> : vector<1152x80xf32>
    %37 = tpu.matmul %36, %35, %cst_27 {dimension_numbers = #tpu.dot_dimension_numbers<[1], [0], [0], [1], [0, 0, 1, 1], [], []>} : vector<1152x200xf32>, vector<200x80xf32>, vector<1152x80xf32> -> vector<1152x80xf32>
    %38 = vector.extract_strided_slice %37 {offsets = [0, 0], sizes = [128, 80], strides = [1, 1]} : vector<1152x80xf32> to vector<128x80xf32>
    %c0_28 = arith.constant 0 : index
    %c0_29 = arith.constant 0 : index
    %c0_30 = arith.constant 0 : index
    %39 = vector.load %arg8[%c0_28, %c0_29, %c0_30] : memref<9x80x128xf32, #tpu.memory_space<vmem>>, vector<1x80x128xf32>
    %40 = vector.shape_cast %39 : vector<1x80x128xf32> to vector<80x128xf32>
    %cst_31 = arith.constant dense<0.000000e+00> : vector<128x128xf32>
    %41 = tpu.matmul %38, %40, %cst_31 {dimension_numbers = #tpu.dot_dimension_numbers<[1], [0], [0], [1], [0, 0, 1, 1], [], []>} : vector<128x80xf32>, vector<80x128xf32>, vector<128x128xf32> -> vector<128x128xf32>
    %42 = vector.extract_strided_slice %37 {offsets = [128, 0], sizes = [128, 80], strides = [1, 1]} : vector<1152x80xf32> to vector<128x80xf32>
    %c1 = arith.constant 1 : index
    %c0_32 = arith.constant 0 : index
    %c0_33 = arith.constant 0 : index
    %43 = vector.load %arg8[%c1, %c0_32, %c0_33] : memref<9x80x128xf32, #tpu.memory_space<vmem>>, vector<1x80x128xf32>
    %44 = vector.shape_cast %43 : vector<1x80x128xf32> to vector<80x128xf32>
    %cst_34 = arith.constant dense<0.000000e+00> : vector<128x128xf32>
    %45 = tpu.matmul %42, %44, %cst_34 {dimension_numbers = #tpu.dot_dimension_numbers<[1], [0], [0], [1], [0, 0, 1, 1], [], []>} : vector<128x80xf32>, vector<80x128xf32>, vector<128x128xf32> -> vector<128x128xf32>
    %46 = arith.addf %41, %45 : vector<128x128xf32>
    %47 = vector.extract_strided_slice %37 {offsets = [256, 0], sizes = [128, 80], strides = [1, 1]} : vector<1152x80xf32> to vector<128x80xf32>
    %c2 = arith.constant 2 : index
    %c0_35 = arith.constant 0 : index
    %c0_36 = arith.constant 0 : index
    %48 = vector.load %arg8[%c2, %c0_35, %c0_36] : memref<9x80x128xf32, #tpu.memory_space<vmem>>, vector<1x80x128xf32>
    %49 = vector.shape_cast %48 : vector<1x80x128xf32> to vector<80x128xf32>
    %cst_37 = arith.constant dense<0.000000e+00> : vector<128x128xf32>
    %50 = tpu.matmul %47, %49, %cst_37 {dimension_numbers = #tpu.dot_dimension_numbers<[1], [0], [0], [1], [0, 0, 1, 1], [], []>} : vector<128x80xf32>, vector<80x128xf32>, vector<128x128xf32> -> vector<128x128xf32>
    %51 = arith.addf %46, %50 : vector<128x128xf32>
    %52 = vector.extract_strided_slice %37 {offsets = [384, 0], sizes = [128, 80], strides = [1, 1]} : vector<1152x80xf32> to vector<128x80xf32>
    %c3 = arith.constant 3 : index
    %c0_38 = arith.constant 0 : index
    %c0_39 = arith.constant 0 : index
    %53 = vector.load %arg8[%c3, %c0_38, %c0_39] : memref<9x80x128xf32, #tpu.memory_space<vmem>>, vector<1x80x128xf32>
    %54 = vector.shape_cast %53 : vector<1x80x128xf32> to vector<80x128xf32>
    %cst_40 = arith.constant dense<0.000000e+00> : vector<128x128xf32>
    %55 = tpu.matmul %52, %54, %cst_40 {dimension_numbers = #tpu.dot_dimension_numbers<[1], [0], [0], [1], [0, 0, 1, 1], [], []>} : vector<128x80xf32>, vector<80x128xf32>, vector<128x128xf32> -> vector<128x128xf32>
    %56 = arith.addf %51, %55 : vector<128x128xf32>
    %57 = vector.extract_strided_slice %37 {offsets = [512, 0], sizes = [128, 80], strides = [1, 1]} : vector<1152x80xf32> to vector<128x80xf32>
    %c4 = arith.constant 4 : index
    %c0_41 = arith.constant 0 : index
    %c0_42 = arith.constant 0 : index
    %58 = vector.load %arg8[%c4, %c0_41, %c0_42] : memref<9x80x128xf32, #tpu.memory_space<vmem>>, vector<1x80x128xf32>
    %59 = vector.shape_cast %58 : vector<1x80x128xf32> to vector<80x128xf32>
    %cst_43 = arith.constant dense<0.000000e+00> : vector<128x128xf32>
    %60 = tpu.matmul %57, %59, %cst_43 {dimension_numbers = #tpu.dot_dimension_numbers<[1], [0], [0], [1], [0, 0, 1, 1], [], []>} : vector<128x80xf32>, vector<80x128xf32>, vector<128x128xf32> -> vector<128x128xf32>
    %61 = arith.addf %56, %60 : vector<128x128xf32>
    %62 = vector.extract_strided_slice %37 {offsets = [640, 0], sizes = [128, 80], strides = [1, 1]} : vector<1152x80xf32> to vector<128x80xf32>
    %c5 = arith.constant 5 : index
    %c0_44 = arith.constant 0 : index
    %c0_45 = arith.constant 0 : index
    %63 = vector.load %arg8[%c5, %c0_44, %c0_45] : memref<9x80x128xf32, #tpu.memory_space<vmem>>, vector<1x80x128xf32>
    %64 = vector.shape_cast %63 : vector<1x80x128xf32> to vector<80x128xf32>
    %cst_46 = arith.constant dense<0.000000e+00> : vector<128x128xf32>
    %65 = tpu.matmul %62, %64, %cst_46 {dimension_numbers = #tpu.dot_dimension_numbers<[1], [0], [0], [1], [0, 0, 1, 1], [], []>} : vector<128x80xf32>, vector<80x128xf32>, vector<128x128xf32> -> vector<128x128xf32>
    %66 = arith.addf %61, %65 : vector<128x128xf32>
    %67 = vector.extract_strided_slice %37 {offsets = [768, 0], sizes = [128, 80], strides = [1, 1]} : vector<1152x80xf32> to vector<128x80xf32>
    %c6 = arith.constant 6 : index
    %c0_47 = arith.constant 0 : index
    %c0_48 = arith.constant 0 : index
    %68 = vector.load %arg8[%c6, %c0_47, %c0_48] : memref<9x80x128xf32, #tpu.memory_space<vmem>>, vector<1x80x128xf32>
    %69 = vector.shape_cast %68 : vector<1x80x128xf32> to vector<80x128xf32>
    %cst_49 = arith.constant dense<0.000000e+00> : vector<128x128xf32>
    %70 = tpu.matmul %67, %69, %cst_49 {dimension_numbers = #tpu.dot_dimension_numbers<[1], [0], [0], [1], [0, 0, 1, 1], [], []>} : vector<128x80xf32>, vector<80x128xf32>, vector<128x128xf32> -> vector<128x128xf32>
    %71 = arith.addf %66, %70 : vector<128x128xf32>
    %72 = vector.extract_strided_slice %37 {offsets = [896, 0], sizes = [128, 80], strides = [1, 1]} : vector<1152x80xf32> to vector<128x80xf32>
    %c7 = arith.constant 7 : index
    %c0_50 = arith.constant 0 : index
    %c0_51 = arith.constant 0 : index
    %73 = vector.load %arg8[%c7, %c0_50, %c0_51] : memref<9x80x128xf32, #tpu.memory_space<vmem>>, vector<1x80x128xf32>
    %74 = vector.shape_cast %73 : vector<1x80x128xf32> to vector<80x128xf32>
    %cst_52 = arith.constant dense<0.000000e+00> : vector<128x128xf32>
    %75 = tpu.matmul %72, %74, %cst_52 {dimension_numbers = #tpu.dot_dimension_numbers<[1], [0], [0], [1], [0, 0, 1, 1], [], []>} : vector<128x80xf32>, vector<80x128xf32>, vector<128x128xf32> -> vector<128x128xf32>
    %76 = arith.addf %71, %75 : vector<128x128xf32>
    %77 = vector.extract_strided_slice %37 {offsets = [1024, 0], sizes = [128, 80], strides = [1, 1]} : vector<1152x80xf32> to vector<128x80xf32>
    %c8 = arith.constant 8 : index
    %c0_53 = arith.constant 0 : index
    %c0_54 = arith.constant 0 : index
    %78 = vector.load %arg8[%c8, %c0_53, %c0_54] : memref<9x80x128xf32, #tpu.memory_space<vmem>>, vector<1x80x128xf32>
    %79 = vector.shape_cast %78 : vector<1x80x128xf32> to vector<80x128xf32>
    %cst_55 = arith.constant dense<0.000000e+00> : vector<128x128xf32>
    %80 = tpu.matmul %77, %79, %cst_55 {dimension_numbers = #tpu.dot_dimension_numbers<[1], [0], [0], [1], [0, 0, 1, 1], [], []>} : vector<128x80xf32>, vector<80x128xf32>, vector<128x128xf32> -> vector<128x128xf32>
    %81 = arith.addf %76, %80 : vector<128x128xf32>
    %cst_56 = arith.constant dense<0.000000e+00> : vector<128xf32>
    %82 = vector.multi_reduction <add>, %81, %cst_56 [0] : vector<128x128xf32> to vector<128xf32>
    %83 = vector.shape_cast %82 : vector<128xf32> to vector<1x128xf32>
    %c0_57 = arith.constant 0 : index
    %c0_58 = arith.constant 0 : index
    %84 = vector.load %arg9[%c0_57, %c0_58] : memref<128x128xf32, #tpu.memory_space<vmem>>, vector<128x128xf32>
    %cst_59 = arith.constant dense<0.000000e+00> : vector<1x128xf32>
    %85 = tpu.matmul %83, %84, %cst_59 {dimension_numbers = #tpu.dot_dimension_numbers<[1], [0], [0], [1], [0, 0, 1, 1], [], []>} : vector<1x128xf32>, vector<128x128xf32>, vector<1x128xf32> -> vector<1x128xf32>
    %cst_60 = arith.constant 9.765625E-4 : f32
    %86 = vector.broadcast %cst_60 : f32 to vector<1x128xf32>
    %87 = arith.mulf %85, %86 : vector<1x128xf32>
    %88 = vector.broadcast %87 : vector<1x128xf32> to vector<128x128xf32>
    %89 = arith.subf %81, %88 : vector<128x128xf32>
    %90 = arith.mulf %89, %89 : vector<128x128xf32>
    %cst_61 = arith.constant dense<0.000000e+00> : vector<128xf32>
    %91 = vector.multi_reduction <add>, %90, %cst_61 [0] : vector<128x128xf32> to vector<128xf32>
    %92 = vector.shape_cast %91 : vector<128xf32> to vector<1x128xf32>
    %c0_62 = arith.constant 0 : index
    %c0_63 = arith.constant 0 : index
    %93 = vector.load %arg9[%c0_62, %c0_63] : memref<128x128xf32, #tpu.memory_space<vmem>>, vector<128x128xf32>
    %cst_64 = arith.constant dense<0.000000e+00> : vector<1x128xf32>
    %94 = tpu.matmul %92, %93, %cst_64 {dimension_numbers = #tpu.dot_dimension_numbers<[1], [0], [0], [1], [0, 0, 1, 1], [], []>} : vector<1x128xf32>, vector<128x128xf32>, vector<1x128xf32> -> vector<1x128xf32>
    %cst_65 = arith.constant 9.765625E-4 : f32
    %95 = vector.broadcast %cst_65 : f32 to vector<1x128xf32>
    %96 = arith.mulf %94, %95 : vector<1x128xf32>
    %c0_66 = arith.constant 0 : index
    %c0_67 = arith.constant 0 : index
    %97 = vector.load %arg10[%c0_66, %c0_67] : memref<1x128xf32, #tpu.memory_space<vmem>>, vector<1x128xf32>
    %cst_68 = arith.constant 9.99999974E-6 : f32
    %98 = vector.broadcast %cst_68 : f32 to vector<1x128xf32>
    %99 = arith.addf %96, %98 : vector<1x128xf32>
    %100 = math.rsqrt %99 : vector<1x128xf32>
    %101 = arith.mulf %97, %100 : vector<1x128xf32>
    %c0_69 = arith.constant 0 : index
    %c0_70 = arith.constant 0 : index
    %102 = vector.load %arg11[%c0_69, %c0_70] : memref<1x128xf32, #tpu.memory_space<vmem>>, vector<1x128xf32>
    %103 = arith.mulf %87, %101 : vector<1x128xf32>
    %104 = arith.subf %102, %103 : vector<1x128xf32>
    %105 = vector.broadcast %101 : vector<1x128xf32> to vector<128x128xf32>
    %106 = arith.mulf %81, %105 : vector<128x128xf32>
    %107 = vector.broadcast %104 : vector<1x128xf32> to vector<128x128xf32>
    %108 = arith.addf %106, %107 : vector<128x128xf32>
    %cst_71 = arith.constant 0.000000e+00 : f32
    %109 = vector.broadcast %cst_71 : f32 to vector<128x128xf32>
    %110 = arith.maximumf %108, %109 : vector<128x128xf32>
    %c0_72 = arith.constant 0 : index
    %c0_73 = arith.constant 0 : index
    %111 = vector.load %arg12[%c0_72, %c0_73] : memref<72x128xf32, #tpu.memory_space<vmem>>, vector<72x128xf32>
    %c0_74 = arith.constant 0 : index
    %c0_75 = arith.constant 0 : index
    %112 = vector.load %arg13[%c0_74, %c0_75] : memref<128x96xf32, #tpu.memory_space<vmem>>, vector<128x96xf32>
    %cst_76 = arith.constant dense<0.000000e+00> : vector<128x96xf32>
    %113 = tpu.matmul %110, %112, %cst_76 {dimension_numbers = #tpu.dot_dimension_numbers<[1], [0], [0], [1], [0, 0, 1, 1], [], []>} : vector<128x128xf32>, vector<128x96xf32>, vector<128x96xf32> -> vector<128x96xf32>
    %cst_77 = arith.constant dense<0.000000e+00> : vector<72x96xf32>
    %114 = tpu.matmul %111, %113, %cst_77 {dimension_numbers = #tpu.dot_dimension_numbers<[1], [0], [0], [1], [0, 0, 1, 1], [], []>} : vector<72x128xf32>, vector<128x96xf32>, vector<72x96xf32> -> vector<72x96xf32>
    %c0_78 = arith.constant 0 : index
    %c0_79 = arith.constant 0 : index
    %115 = vector.load %arg14[%c0_78, %c0_79] : memref<288x72xf32, #tpu.memory_space<vmem>>, vector<288x72xf32>
    %cst_80 = arith.constant dense<0.000000e+00> : vector<288x96xf32>
    %116 = tpu.matmul %115, %114, %cst_80 {dimension_numbers = #tpu.dot_dimension_numbers<[1], [0], [0], [1], [0, 0, 1, 1], [], []>} : vector<288x72xf32>, vector<72x96xf32>, vector<288x96xf32> -> vector<288x96xf32>
    %117 = vector.extract_strided_slice %116 {offsets = [0, 0], sizes = [32, 96], strides = [1, 1]} : vector<288x96xf32> to vector<32x96xf32>
    %c0_81 = arith.constant 0 : index
    %c0_82 = arith.constant 0 : index
    %c0_83 = arith.constant 0 : index
    %118 = vector.load %arg15[%c0_81, %c0_82, %c0_83] : memref<9x96x128xf32, #tpu.memory_space<vmem>>, vector<1x96x128xf32>
    %119 = vector.shape_cast %118 : vector<1x96x128xf32> to vector<96x128xf32>
    %cst_84 = arith.constant dense<0.000000e+00> : vector<32x128xf32>
    %120 = tpu.matmul %117, %119, %cst_84 {dimension_numbers = #tpu.dot_dimension_numbers<[1], [0], [0], [1], [0, 0, 1, 1], [], []>} : vector<32x96xf32>, vector<96x128xf32>, vector<32x128xf32> -> vector<32x128xf32>
    %121 = vector.extract_strided_slice %116 {offsets = [32, 0], sizes = [32, 96], strides = [1, 1]} : vector<288x96xf32> to vector<32x96xf32>
    %c1_85 = arith.constant 1 : index
    %c0_86 = arith.constant 0 : index
    %c0_87 = arith.constant 0 : index
    %122 = vector.load %arg15[%c1_85, %c0_86, %c0_87] : memref<9x96x128xf32, #tpu.memory_space<vmem>>, vector<1x96x128xf32>
    %123 = vector.shape_cast %122 : vector<1x96x128xf32> to vector<96x128xf32>
    %cst_88 = arith.constant dense<0.000000e+00> : vector<32x128xf32>
    %124 = tpu.matmul %121, %123, %cst_88 {dimension_numbers = #tpu.dot_dimension_numbers<[1], [0], [0], [1], [0, 0, 1, 1], [], []>} : vector<32x96xf32>, vector<96x128xf32>, vector<32x128xf32> -> vector<32x128xf32>
    %125 = arith.addf %120, %124 : vector<32x128xf32>
    %126 = vector.extract_strided_slice %116 {offsets = [64, 0], sizes = [32, 96], strides = [1, 1]} : vector<288x96xf32> to vector<32x96xf32>
    %c2_89 = arith.constant 2 : index
    %c0_90 = arith.constant 0 : index
    %c0_91 = arith.constant 0 : index
    %127 = vector.load %arg15[%c2_89, %c0_90, %c0_91] : memref<9x96x128xf32, #tpu.memory_space<vmem>>, vector<1x96x128xf32>
    %128 = vector.shape_cast %127 : vector<1x96x128xf32> to vector<96x128xf32>
    %cst_92 = arith.constant dense<0.000000e+00> : vector<32x128xf32>
    %129 = tpu.matmul %126, %128, %cst_92 {dimension_numbers = #tpu.dot_dimension_numbers<[1], [0], [0], [1], [0, 0, 1, 1], [], []>} : vector<32x96xf32>, vector<96x128xf32>, vector<32x128xf32> -> vector<32x128xf32>
    %130 = arith.addf %125, %129 : vector<32x128xf32>
    %131 = vector.extract_strided_slice %116 {offsets = [96, 0], sizes = [32, 96], strides = [1, 1]} : vector<288x96xf32> to vector<32x96xf32>
    %c3_93 = arith.constant 3 : index
    %c0_94 = arith.constant 0 : index
    %c0_95 = arith.constant 0 : index
    %132 = vector.load %arg15[%c3_93, %c0_94, %c0_95] : memref<9x96x128xf32, #tpu.memory_space<vmem>>, vector<1x96x128xf32>
    %133 = vector.shape_cast %132 : vector<1x96x128xf32> to vector<96x128xf32>
    %cst_96 = arith.constant dense<0.000000e+00> : vector<32x128xf32>
    %134 = tpu.matmul %131, %133, %cst_96 {dimension_numbers = #tpu.dot_dimension_numbers<[1], [0], [0], [1], [0, 0, 1, 1], [], []>} : vector<32x96xf32>, vector<96x128xf32>, vector<32x128xf32> -> vector<32x128xf32>
    %135 = arith.addf %130, %134 : vector<32x128xf32>
    %136 = vector.extract_strided_slice %116 {offsets = [128, 0], sizes = [32, 96], strides = [1, 1]} : vector<288x96xf32> to vector<32x96xf32>
    %c4_97 = arith.constant 4 : index
    %c0_98 = arith.constant 0 : index
    %c0_99 = arith.constant 0 : index
    %137 = vector.load %arg15[%c4_97, %c0_98, %c0_99] : memref<9x96x128xf32, #tpu.memory_space<vmem>>, vector<1x96x128xf32>
    %138 = vector.shape_cast %137 : vector<1x96x128xf32> to vector<96x128xf32>
    %cst_100 = arith.constant dense<0.000000e+00> : vector<32x128xf32>
    %139 = tpu.matmul %136, %138, %cst_100 {dimension_numbers = #tpu.dot_dimension_numbers<[1], [0], [0], [1], [0, 0, 1, 1], [], []>} : vector<32x96xf32>, vector<96x128xf32>, vector<32x128xf32> -> vector<32x128xf32>
    %140 = arith.addf %135, %139 : vector<32x128xf32>
    %141 = vector.extract_strided_slice %116 {offsets = [160, 0], sizes = [32, 96], strides = [1, 1]} : vector<288x96xf32> to vector<32x96xf32>
    %c5_101 = arith.constant 5 : index
    %c0_102 = arith.constant 0 : index
    %c0_103 = arith.constant 0 : index
    %142 = vector.load %arg15[%c5_101, %c0_102, %c0_103] : memref<9x96x128xf32, #tpu.memory_space<vmem>>, vector<1x96x128xf32>
    %143 = vector.shape_cast %142 : vector<1x96x128xf32> to vector<96x128xf32>
    %cst_104 = arith.constant dense<0.000000e+00> : vector<32x128xf32>
    %144 = tpu.matmul %141, %143, %cst_104 {dimension_numbers = #tpu.dot_dimension_numbers<[1], [0], [0], [1], [0, 0, 1, 1], [], []>} : vector<32x96xf32>, vector<96x128xf32>, vector<32x128xf32> -> vector<32x128xf32>
    %145 = arith.addf %140, %144 : vector<32x128xf32>
    %146 = vector.extract_strided_slice %116 {offsets = [192, 0], sizes = [32, 96], strides = [1, 1]} : vector<288x96xf32> to vector<32x96xf32>
    %c6_105 = arith.constant 6 : index
    %c0_106 = arith.constant 0 : index
    %c0_107 = arith.constant 0 : index
    %147 = vector.load %arg15[%c6_105, %c0_106, %c0_107] : memref<9x96x128xf32, #tpu.memory_space<vmem>>, vector<1x96x128xf32>
    %148 = vector.shape_cast %147 : vector<1x96x128xf32> to vector<96x128xf32>
    %cst_108 = arith.constant dense<0.000000e+00> : vector<32x128xf32>
    %149 = tpu.matmul %146, %148, %cst_108 {dimension_numbers = #tpu.dot_dimension_numbers<[1], [0], [0], [1], [0, 0, 1, 1], [], []>} : vector<32x96xf32>, vector<96x128xf32>, vector<32x128xf32> -> vector<32x128xf32>
    %150 = arith.addf %145, %149 : vector<32x128xf32>
    %151 = vector.extract_strided_slice %116 {offsets = [224, 0], sizes = [32, 96], strides = [1, 1]} : vector<288x96xf32> to vector<32x96xf32>
    %c7_109 = arith.constant 7 : index
    %c0_110 = arith.constant 0 : index
    %c0_111 = arith.constant 0 : index
    %152 = vector.load %arg15[%c7_109, %c0_110, %c0_111] : memref<9x96x128xf32, #tpu.memory_space<vmem>>, vector<1x96x128xf32>
    %153 = vector.shape_cast %152 : vector<1x96x128xf32> to vector<96x128xf32>
    %cst_112 = arith.constant dense<0.000000e+00> : vector<32x128xf32>
    %154 = tpu.matmul %151, %153, %cst_112 {dimension_numbers = #tpu.dot_dimension_numbers<[1], [0], [0], [1], [0, 0, 1, 1], [], []>} : vector<32x96xf32>, vector<96x128xf32>, vector<32x128xf32> -> vector<32x128xf32>
    %155 = arith.addf %150, %154 : vector<32x128xf32>
    %156 = vector.extract_strided_slice %116 {offsets = [256, 0], sizes = [32, 96], strides = [1, 1]} : vector<288x96xf32> to vector<32x96xf32>
    %c8_113 = arith.constant 8 : index
    %c0_114 = arith.constant 0 : index
    %c0_115 = arith.constant 0 : index
    %157 = vector.load %arg15[%c8_113, %c0_114, %c0_115] : memref<9x96x128xf32, #tpu.memory_space<vmem>>, vector<1x96x128xf32>
    %158 = vector.shape_cast %157 : vector<1x96x128xf32> to vector<96x128xf32>
    %cst_116 = arith.constant dense<0.000000e+00> : vector<32x128xf32>
    %159 = tpu.matmul %156, %158, %cst_116 {dimension_numbers = #tpu.dot_dimension_numbers<[1], [0], [0], [1], [0, 0, 1, 1], [], []>} : vector<32x96xf32>, vector<96x128xf32>, vector<32x128xf32> -> vector<32x128xf32>
    %160 = arith.addf %155, %159 : vector<32x128xf32>
    %cst_117 = arith.constant dense<0.000000e+00> : vector<128xf32>
    %161 = vector.multi_reduction <add>, %160, %cst_117 [0] : vector<32x128xf32> to vector<128xf32>
    %162 = vector.shape_cast %161 : vector<128xf32> to vector<1x128xf32>
    %c0_118 = arith.constant 0 : index
    %c0_119 = arith.constant 0 : index
    %163 = vector.load %arg16[%c0_118, %c0_119] : memref<128x128xf32, #tpu.memory_space<vmem>>, vector<128x128xf32>
    %cst_120 = arith.constant dense<0.000000e+00> : vector<1x128xf32>
    %164 = tpu.matmul %162, %163, %cst_120 {dimension_numbers = #tpu.dot_dimension_numbers<[1], [0], [0], [1], [0, 0, 1, 1], [], []>} : vector<1x128xf32>, vector<128x128xf32>, vector<1x128xf32> -> vector<1x128xf32>
    %cst_121 = arith.constant 7.812500e-03 : f32
    %165 = vector.broadcast %cst_121 : f32 to vector<1x128xf32>
    %166 = arith.mulf %164, %165 : vector<1x128xf32>
    %167 = vector.broadcast %166 : vector<1x128xf32> to vector<32x128xf32>
    %168 = arith.subf %160, %167 : vector<32x128xf32>
    %169 = arith.mulf %168, %168 : vector<32x128xf32>
    %cst_122 = arith.constant dense<0.000000e+00> : vector<128xf32>
    %170 = vector.multi_reduction <add>, %169, %cst_122 [0] : vector<32x128xf32> to vector<128xf32>
    %171 = vector.shape_cast %170 : vector<128xf32> to vector<1x128xf32>
    %c0_123 = arith.constant 0 : index
    %c0_124 = arith.constant 0 : index
    %172 = vector.load %arg16[%c0_123, %c0_124] : memref<128x128xf32, #tpu.memory_space<vmem>>, vector<128x128xf32>
    %cst_125 = arith.constant dense<0.000000e+00> : vector<1x128xf32>
    %173 = tpu.matmul %171, %172, %cst_125 {dimension_numbers = #tpu.dot_dimension_numbers<[1], [0], [0], [1], [0, 0, 1, 1], [], []>} : vector<1x128xf32>, vector<128x128xf32>, vector<1x128xf32> -> vector<1x128xf32>
    %cst_126 = arith.constant 7.812500e-03 : f32
    %174 = vector.broadcast %cst_126 : f32 to vector<1x128xf32>
    %175 = arith.mulf %173, %174 : vector<1x128xf32>
    %c0_127 = arith.constant 0 : index
    %c0_128 = arith.constant 0 : index
    %176 = vector.load %arg17[%c0_127, %c0_128] : memref<1x128xf32, #tpu.memory_space<vmem>>, vector<1x128xf32>
    %cst_129 = arith.constant 9.99999974E-6 : f32
    %177 = vector.broadcast %cst_129 : f32 to vector<1x128xf32>
    %178 = arith.addf %175, %177 : vector<1x128xf32>
    %179 = math.rsqrt %178 : vector<1x128xf32>
    %180 = arith.mulf %176, %179 : vector<1x128xf32>
    %c0_130 = arith.constant 0 : index
    %c0_131 = arith.constant 0 : index
    %181 = vector.load %arg18[%c0_130, %c0_131] : memref<1x128xf32, #tpu.memory_space<vmem>>, vector<1x128xf32>
    %182 = arith.mulf %166, %180 : vector<1x128xf32>
    %183 = arith.subf %181, %182 : vector<1x128xf32>
    %184 = vector.broadcast %180 : vector<1x128xf32> to vector<32x128xf32>
    %185 = arith.mulf %160, %184 : vector<32x128xf32>
    %186 = vector.broadcast %183 : vector<1x128xf32> to vector<32x128xf32>
    %187 = arith.addf %185, %186 : vector<32x128xf32>
    %cst_132 = arith.constant 0.000000e+00 : f32
    %188 = vector.broadcast %cst_132 : f32 to vector<32x128xf32>
    %189 = arith.maximumf %187, %188 : vector<32x128xf32>
    %c0_133 = arith.constant 0 : index
    %c0_134 = arith.constant 0 : index
    %190 = vector.load %arg19[%c0_133, %c0_134] : memref<32x32xf32, #tpu.memory_space<vmem>>, vector<32x32xf32>
    %c0_135 = arith.constant 0 : index
    %c0_136 = arith.constant 0 : index
    %191 = vector.load %arg20[%c0_135, %c0_136] : memref<128x128xf32, #tpu.memory_space<vmem>>, vector<128x128xf32>
    %cst_137 = arith.constant dense<0.000000e+00> : vector<32x128xf32>
    %192 = tpu.matmul %189, %191, %cst_137 {dimension_numbers = #tpu.dot_dimension_numbers<[1], [0], [0], [1], [0, 0, 1, 1], [], []>} : vector<32x128xf32>, vector<128x128xf32>, vector<32x128xf32> -> vector<32x128xf32>
    %cst_138 = arith.constant dense<0.000000e+00> : vector<32x128xf32>
    %193 = tpu.matmul %190, %192, %cst_138 {dimension_numbers = #tpu.dot_dimension_numbers<[1], [0], [0], [1], [0, 0, 1, 1], [], []>} : vector<32x32xf32>, vector<32x128xf32>, vector<32x128xf32> -> vector<32x128xf32>
    %c0_139 = arith.constant 0 : index
    %c0_140 = arith.constant 0 : index
    %194 = vector.load %arg21[%c0_139, %c0_140] : memref<72x32xf32, #tpu.memory_space<vmem>>, vector<72x32xf32>
    %cst_141 = arith.constant dense<0.000000e+00> : vector<72x128xf32>
    %195 = tpu.matmul %194, %193, %cst_141 {dimension_numbers = #tpu.dot_dimension_numbers<[1], [0], [0], [1], [0, 0, 1, 1], [], []>} : vector<72x32xf32>, vector<32x128xf32>, vector<72x128xf32> -> vector<72x128xf32>
    %196 = vector.extract_strided_slice %195 {offsets = [0, 0], sizes = [8, 128], strides = [1, 1]} : vector<72x128xf32> to vector<8x128xf32>
    %c0_142 = arith.constant 0 : index
    %c0_143 = arith.constant 0 : index
    %c0_144 = arith.constant 0 : index
    %197 = vector.load %arg22[%c0_142, %c0_143, %c0_144] : memref<9x128x128xf32, #tpu.memory_space<vmem>>, vector<1x128x128xf32>
    %198 = vector.shape_cast %197 : vector<1x128x128xf32> to vector<128x128xf32>
    %cst_145 = arith.constant dense<0.000000e+00> : vector<8x128xf32>
    %199 = tpu.matmul %196, %198, %cst_145 {dimension_numbers = #tpu.dot_dimension_numbers<[1], [0], [0], [1], [0, 0, 1, 1], [], []>} : vector<8x128xf32>, vector<128x128xf32>, vector<8x128xf32> -> vector<8x128xf32>
    %200 = vector.extract_strided_slice %195 {offsets = [8, 0], sizes = [8, 128], strides = [1, 1]} : vector<72x128xf32> to vector<8x128xf32>
    %c1_146 = arith.constant 1 : index
    %c0_147 = arith.constant 0 : index
    %c0_148 = arith.constant 0 : index
    %201 = vector.load %arg22[%c1_146, %c0_147, %c0_148] : memref<9x128x128xf32, #tpu.memory_space<vmem>>, vector<1x128x128xf32>
    %202 = vector.shape_cast %201 : vector<1x128x128xf32> to vector<128x128xf32>
    %cst_149 = arith.constant dense<0.000000e+00> : vector<8x128xf32>
    %203 = tpu.matmul %200, %202, %cst_149 {dimension_numbers = #tpu.dot_dimension_numbers<[1], [0], [0], [1], [0, 0, 1, 1], [], []>} : vector<8x128xf32>, vector<128x128xf32>, vector<8x128xf32> -> vector<8x128xf32>
    %204 = arith.addf %199, %203 : vector<8x128xf32>
    %205 = vector.extract_strided_slice %195 {offsets = [16, 0], sizes = [8, 128], strides = [1, 1]} : vector<72x128xf32> to vector<8x128xf32>
    %c2_150 = arith.constant 2 : index
    %c0_151 = arith.constant 0 : index
    %c0_152 = arith.constant 0 : index
    %206 = vector.load %arg22[%c2_150, %c0_151, %c0_152] : memref<9x128x128xf32, #tpu.memory_space<vmem>>, vector<1x128x128xf32>
    %207 = vector.shape_cast %206 : vector<1x128x128xf32> to vector<128x128xf32>
    %cst_153 = arith.constant dense<0.000000e+00> : vector<8x128xf32>
    %208 = tpu.matmul %205, %207, %cst_153 {dimension_numbers = #tpu.dot_dimension_numbers<[1], [0], [0], [1], [0, 0, 1, 1], [], []>} : vector<8x128xf32>, vector<128x128xf32>, vector<8x128xf32> -> vector<8x128xf32>
    %209 = arith.addf %204, %208 : vector<8x128xf32>
    %210 = vector.extract_strided_slice %195 {offsets = [24, 0], sizes = [8, 128], strides = [1, 1]} : vector<72x128xf32> to vector<8x128xf32>
    %c3_154 = arith.constant 3 : index
    %c0_155 = arith.constant 0 : index
    %c0_156 = arith.constant 0 : index
    %211 = vector.load %arg22[%c3_154, %c0_155, %c0_156] : memref<9x128x128xf32, #tpu.memory_space<vmem>>, vector<1x128x128xf32>
    %212 = vector.shape_cast %211 : vector<1x128x128xf32> to vector<128x128xf32>
    %cst_157 = arith.constant dense<0.000000e+00> : vector<8x128xf32>
    %213 = tpu.matmul %210, %212, %cst_157 {dimension_numbers = #tpu.dot_dimension_numbers<[1], [0], [0], [1], [0, 0, 1, 1], [], []>} : vector<8x128xf32>, vector<128x128xf32>, vector<8x128xf32> -> vector<8x128xf32>
    %214 = arith.addf %209, %213 : vector<8x128xf32>
    %215 = vector.extract_strided_slice %195 {offsets = [32, 0], sizes = [8, 128], strides = [1, 1]} : vector<72x128xf32> to vector<8x128xf32>
    %c4_158 = arith.constant 4 : index
    %c0_159 = arith.constant 0 : index
    %c0_160 = arith.constant 0 : index
    %216 = vector.load %arg22[%c4_158, %c0_159, %c0_160] : memref<9x128x128xf32, #tpu.memory_space<vmem>>, vector<1x128x128xf32>
    %217 = vector.shape_cast %216 : vector<1x128x128xf32> to vector<128x128xf32>
    %cst_161 = arith.constant dense<0.000000e+00> : vector<8x128xf32>
    %218 = tpu.matmul %215, %217, %cst_161 {dimension_numbers = #tpu.dot_dimension_numbers<[1], [0], [0], [1], [0, 0, 1, 1], [], []>} : vector<8x128xf32>, vector<128x128xf32>, vector<8x128xf32> -> vector<8x128xf32>
    %219 = arith.addf %214, %218 : vector<8x128xf32>
    %220 = vector.extract_strided_slice %195 {offsets = [40, 0], sizes = [8, 128], strides = [1, 1]} : vector<72x128xf32> to vector<8x128xf32>
    %c5_162 = arith.constant 5 : index
    %c0_163 = arith.constant 0 : index
    %c0_164 = arith.constant 0 : index
    %221 = vector.load %arg22[%c5_162, %c0_163, %c0_164] : memref<9x128x128xf32, #tpu.memory_space<vmem>>, vector<1x128x128xf32>
    %222 = vector.shape_cast %221 : vector<1x128x128xf32> to vector<128x128xf32>
    %cst_165 = arith.constant dense<0.000000e+00> : vector<8x128xf32>
    %223 = tpu.matmul %220, %222, %cst_165 {dimension_numbers = #tpu.dot_dimension_numbers<[1], [0], [0], [1], [0, 0, 1, 1], [], []>} : vector<8x128xf32>, vector<128x128xf32>, vector<8x128xf32> -> vector<8x128xf32>
    %224 = arith.addf %219, %223 : vector<8x128xf32>
    %225 = vector.extract_strided_slice %195 {offsets = [48, 0], sizes = [8, 128], strides = [1, 1]} : vector<72x128xf32> to vector<8x128xf32>
    %c6_166 = arith.constant 6 : index
    %c0_167 = arith.constant 0 : index
    %c0_168 = arith.constant 0 : index
    %226 = vector.load %arg22[%c6_166, %c0_167, %c0_168] : memref<9x128x128xf32, #tpu.memory_space<vmem>>, vector<1x128x128xf32>
    %227 = vector.shape_cast %226 : vector<1x128x128xf32> to vector<128x128xf32>
    %cst_169 = arith.constant dense<0.000000e+00> : vector<8x128xf32>
    %228 = tpu.matmul %225, %227, %cst_169 {dimension_numbers = #tpu.dot_dimension_numbers<[1], [0], [0], [1], [0, 0, 1, 1], [], []>} : vector<8x128xf32>, vector<128x128xf32>, vector<8x128xf32> -> vector<8x128xf32>
    %229 = arith.addf %224, %228 : vector<8x128xf32>
    %230 = vector.extract_strided_slice %195 {offsets = [56, 0], sizes = [8, 128], strides = [1, 1]} : vector<72x128xf32> to vector<8x128xf32>
    %c7_170 = arith.constant 7 : index
    %c0_171 = arith.constant 0 : index
    %c0_172 = arith.constant 0 : index
    %231 = vector.load %arg22[%c7_170, %c0_171, %c0_172] : memref<9x128x128xf32, #tpu.memory_space<vmem>>, vector<1x128x128xf32>
    %232 = vector.shape_cast %231 : vector<1x128x128xf32> to vector<128x128xf32>
    %cst_173 = arith.constant dense<0.000000e+00> : vector<8x128xf32>
    %233 = tpu.matmul %230, %232, %cst_173 {dimension_numbers = #tpu.dot_dimension_numbers<[1], [0], [0], [1], [0, 0, 1, 1], [], []>} : vector<8x128xf32>, vector<128x128xf32>, vector<8x128xf32> -> vector<8x128xf32>
    %234 = arith.addf %229, %233 : vector<8x128xf32>
    %235 = vector.extract_strided_slice %195 {offsets = [64, 0], sizes = [8, 128], strides = [1, 1]} : vector<72x128xf32> to vector<8x128xf32>
    %c8_174 = arith.constant 8 : index
    %c0_175 = arith.constant 0 : index
    %c0_176 = arith.constant 0 : index
    %236 = vector.load %arg22[%c8_174, %c0_175, %c0_176] : memref<9x128x128xf32, #tpu.memory_space<vmem>>, vector<1x128x128xf32>
    %237 = vector.shape_cast %236 : vector<1x128x128xf32> to vector<128x128xf32>
    %cst_177 = arith.constant dense<0.000000e+00> : vector<8x128xf32>
    %238 = tpu.matmul %235, %237, %cst_177 {dimension_numbers = #tpu.dot_dimension_numbers<[1], [0], [0], [1], [0, 0, 1, 1], [], []>} : vector<8x128xf32>, vector<128x128xf32>, vector<8x128xf32> -> vector<8x128xf32>
    %239 = arith.addf %234, %238 : vector<8x128xf32>
    %cst_178 = arith.constant dense<0.000000e+00> : vector<128xf32>
    %240 = vector.multi_reduction <add>, %239, %cst_178 [0] : vector<8x128xf32> to vector<128xf32>
    %241 = vector.shape_cast %240 : vector<128xf32> to vector<1x128xf32>
    %c0_179 = arith.constant 0 : index
    %c0_180 = arith.constant 0 : index
    %242 = vector.load %arg23[%c0_179, %c0_180] : memref<128x128xf32, #tpu.memory_space<vmem>>, vector<128x128xf32>
    %cst_181 = arith.constant dense<0.000000e+00> : vector<1x128xf32>
    %243 = tpu.matmul %241, %242, %cst_181 {dimension_numbers = #tpu.dot_dimension_numbers<[1], [0], [0], [1], [0, 0, 1, 1], [], []>} : vector<1x128xf32>, vector<128x128xf32>, vector<1x128xf32> -> vector<1x128xf32>
    %cst_182 = arith.constant 6.250000e-02 : f32
    %244 = vector.broadcast %cst_182 : f32 to vector<1x128xf32>
    %245 = arith.mulf %243, %244 : vector<1x128xf32>
    %246 = vector.broadcast %245 : vector<1x128xf32> to vector<8x128xf32>
    %247 = arith.subf %239, %246 : vector<8x128xf32>
    %248 = arith.mulf %247, %247 : vector<8x128xf32>
    %cst_183 = arith.constant dense<0.000000e+00> : vector<128xf32>
    %249 = vector.multi_reduction <add>, %248, %cst_183 [0] : vector<8x128xf32> to vector<128xf32>
    %250 = vector.shape_cast %249 : vector<128xf32> to vector<1x128xf32>
    %c0_184 = arith.constant 0 : index
    %c0_185 = arith.constant 0 : index
    %251 = vector.load %arg23[%c0_184, %c0_185] : memref<128x128xf32, #tpu.memory_space<vmem>>, vector<128x128xf32>
    %cst_186 = arith.constant dense<0.000000e+00> : vector<1x128xf32>
    %252 = tpu.matmul %250, %251, %cst_186 {dimension_numbers = #tpu.dot_dimension_numbers<[1], [0], [0], [1], [0, 0, 1, 1], [], []>} : vector<1x128xf32>, vector<128x128xf32>, vector<1x128xf32> -> vector<1x128xf32>
    %cst_187 = arith.constant 6.250000e-02 : f32
    %253 = vector.broadcast %cst_187 : f32 to vector<1x128xf32>
    %254 = arith.mulf %252, %253 : vector<1x128xf32>
    %c0_188 = arith.constant 0 : index
    %c0_189 = arith.constant 0 : index
    %255 = vector.load %arg24[%c0_188, %c0_189] : memref<1x128xf32, #tpu.memory_space<vmem>>, vector<1x128xf32>
    %cst_190 = arith.constant 9.99999974E-6 : f32
    %256 = vector.broadcast %cst_190 : f32 to vector<1x128xf32>
    %257 = arith.addf %254, %256 : vector<1x128xf32>
    %258 = math.rsqrt %257 : vector<1x128xf32>
    %259 = arith.mulf %255, %258 : vector<1x128xf32>
    %c0_191 = arith.constant 0 : index
    %c0_192 = arith.constant 0 : index
    %260 = vector.load %arg25[%c0_191, %c0_192] : memref<1x128xf32, #tpu.memory_space<vmem>>, vector<1x128xf32>
    %261 = arith.mulf %245, %259 : vector<1x128xf32>
    %262 = arith.subf %260, %261 : vector<1x128xf32>
    %263 = vector.broadcast %259 : vector<1x128xf32> to vector<8x128xf32>
    %264 = arith.mulf %239, %263 : vector<8x128xf32>
    %265 = vector.broadcast %262 : vector<1x128xf32> to vector<8x128xf32>
    %266 = arith.addf %264, %265 : vector<8x128xf32>
    %cst_193 = arith.constant 0.000000e+00 : f32
    %267 = vector.broadcast %cst_193 : f32 to vector<8x128xf32>
    %268 = arith.maximumf %266, %267 : vector<8x128xf32>
    %c0_194 = arith.constant 0 : index
    %c0_195 = arith.constant 0 : index
    %269 = vector.load %arg26[%c0_194, %c0_195] : memref<2x8xf32, #tpu.memory_space<vmem>>, vector<2x8xf32>
    %c0_196 = arith.constant 0 : index
    %c0_197 = arith.constant 0 : index
    %270 = vector.load %arg27[%c0_196, %c0_197] : memref<128x64xf32, #tpu.memory_space<vmem>>, vector<128x64xf32>
    %cst_198 = arith.constant dense<0.000000e+00> : vector<8x64xf32>
    %271 = tpu.matmul %268, %270, %cst_198 {dimension_numbers = #tpu.dot_dimension_numbers<[1], [0], [0], [1], [0, 0, 1, 1], [], []>} : vector<8x128xf32>, vector<128x64xf32>, vector<8x64xf32> -> vector<8x64xf32>
    %cst_199 = arith.constant dense<0.000000e+00> : vector<2x64xf32>
    %272 = tpu.matmul %269, %271, %cst_199 {dimension_numbers = #tpu.dot_dimension_numbers<[1], [0], [0], [1], [0, 0, 1, 1], [], []>} : vector<2x8xf32>, vector<8x64xf32>, vector<2x64xf32> -> vector<2x64xf32>
    %c0_200 = arith.constant 0 : index
    %c0_201 = arith.constant 0 : index
    %273 = vector.load %arg28[%c0_200, %c0_201] : memref<2x64xf32, #tpu.memory_space<vmem>>, vector<2x64xf32>
    tpu.vector_store %arg28[%c0_200, %c0_201], %272 {strides = array<i32>} : memref<2x64xf32, #tpu.memory_space<vmem>>, vector<2x64xf32>,
    return
  }
}

</mosaic_0001>

<llo_original>
// kernel: forward.1
$region0: #{forward.1}
  #allocation0 [shape = 'u32[]', space=smem, size = 0x4, offset = 0x4, fixed_abs, tag = 'smem constant byte address 0x4 - core index']
  #allocation1 [shape = 'u32[144,128]{1,0:T(1,128)}', space=vmem, size = 0x12000, scoped, tag = 'internal scratch']
  %s0 = inlined_call_operand.vmem [shape: f32[512,162], index: 0, kind: input, shape index: {}]
  %s1 = inlined_call_operand.vmem [shape: f32[162,128], index: 1, kind: input, shape index: {}]
  %s2 = inlined_call_operand.vmem [shape: f32[128,128], index: 2, kind: input, shape index: {}]
  %s3 = inlined_call_operand.vmem [shape: f32[1,128], index: 3, kind: input, shape index: {}]
  %s4 = inlined_call_operand.vmem [shape: f32[1,128], index: 4, kind: input, shape index: {}]
  %s5 = inlined_call_operand.vmem [shape: f32[200,512], index: 5, kind: input, shape index: {}]
  %s6 = inlined_call_operand.vmem [shape: f32[128,80], index: 6, kind: input, shape index: {}]
  %s7 = inlined_call_operand.vmem [shape: f32[1152,200], index: 7, kind: input, shape index: {}]
  %s8 = inlined_call_operand.vmem [shape: f32[9,80,128], index: 8, kind: input, shape index: {}]
  %s9 = inlined_call_operand.vmem [shape: f32[128,128], index: 9, kind: input, shape index: {}]
  %s10 = inlined_call_operand.vmem [shape: f32[1,128], index: 10, kind: input, shape index: {}]
  %s11 = inlined_call_operand.vmem [shape: f32[1,128], index: 11, kind: input, shape index: {}]
  %s12 = inlined_call_operand.vmem [shape: f32[72,128], index: 12, kind: input, shape index: {}]
  %s13 = inlined_call_operand.vmem [shape: f32[128,96], index: 13, kind: input, shape index: {}]
  %s14 = inlined_call_operand.vmem [shape: f32[288,72], index: 14, kind: input, shape index: {}]
  %s15 = inlined_call_operand.vmem [shape: f32[9,96,128], index: 15, kind: input, shape index: {}]
  %s16 = inlined_call_operand.vmem [shape: f32[128,128], index: 16, kind: input, shape index: {}]
  %s17 = inlined_call_operand.vmem [shape: f32[1,128], index: 17, kind: input, shape index: {}]
  %s18 = inlined_call_operand.vmem [shape: f32[1,128], index: 18, kind: input, shape index: {}]
  %s19 = inlined_call_operand.vmem [shape: f32[32,32], index: 19, kind: input, shape index: {}]
  %s20 = inlined_call_operand.vmem [shape: f32[128,128], index: 20, kind: input, shape index: {}]
  %s21 = inlined_call_operand.vmem [shape: f32[72,32], index: 21, kind: input, shape index: {}]
  %s22 = inlined_call_operand.vmem [shape: f32[9,128,128], index: 22, kind: input, shape index: {}]
  %s23 = inlined_call_operand.vmem [shape: f32[128,128], index: 23, kind: input, shape index: {}]
  %s24 = inlined_call_operand.vmem [shape: f32[1,128], index: 24, kind: input, shape index: {}]
  %s25 = inlined_call_operand.vmem [shape: f32[1,128], index: 25, kind: input, shape index: {}]
  %s26 = inlined_call_operand.vmem [shape: f32[2,8], index: 26, kind: input, shape index: {}]
  %s27 = inlined_call_operand.vmem [shape: f32[128,64], index: 27, kind: input, shape index: {}]
  %s28 = inlined_call_operand.hbm [shape: f32[2,64], index: 28, kind: output, shape index: {}]
  %s29 = sld [smem:[#allocation0]]
  $region122: #{forward.1} parent=0
    _
  %s31 = ssub.s32 1, %s29
  %s32 = scalar_select 0, %s31, %s29
  $region1: #{forward.1} parent=0
    #allocation2 [shape = 'u8[1024]{0}', space=vmem, size = 0x400, scoped, tag = 'output window, operand 0, single buffered']
    #allocation3 [shape = 's32[1]{0}', space=sflag, size = 0x4, scoped, tag = 'scoped memory for forward.1']
    %33 = vsyncpa [#allocation3], 0
    // Predicated region
    $region2: #{forward.1} parent=1 // pred_check
      _
    $region3: #{forward.1} parent=1 // pred_check_branch
      %35 = sbr.rel (0) target = $region5
    $region4: #{forward.1} parent=1 // pred_region
      _
    $region5: #{forward.1} parent=1 // pred_fallthru
      _
    // Predicated region
    $region6: #{forward.1} parent=1 // pred_check
      _
    $region7: #{forward.1} parent=1 // pred_check_branch
      %37 = sbr.rel (0) target = $region9
    $region8: #{forward.1} parent=1 // pred_region
      _
    $region9: #{forward.1} parent=1 // pred_fallthru
      _
    // Predicated region
    $region10: #{forward.1} parent=1 // pred_check
      _
    $region11: #{forward.1} parent=1 // pred_check_branch
      %39 = sbr.rel (0) target = $region13
    $region12: #{forward.1} parent=1 // pred_region
      _
    $region13: #{forward.1} parent=1 // pred_fallthru
      _
    // Predicated region
    $region14: #{forward.1} parent=1 // pred_check
      _
    $region15: #{forward.1} parent=1 // pred_check_branch
      %41 = sbr.rel (0) target = $region17
    $region16: #{forward.1} parent=1 // pred_region
      _
    $region17: #{forward.1} parent=1 // pred_fallthru
      _
    // Predicated region
    $region18: #{forward.1} parent=1 // pred_check
      _
    $region19: #{forward.1} parent=1 // pred_check_branch
      %43 = sbr.rel (0) target = $region21
    $region20: #{forward.1} parent=1 // pred_region
      _
    $region21: #{forward.1} parent=1 // pred_fallthru
      _
    // Predicated region
    $region22: #{forward.1} parent=1 // pred_check
      _
    $region23: #{forward.1} parent=1 // pred_check_branch
      %45 = sbr.rel (0) target = $region25
    $region24: #{forward.1} parent=1 // pred_region
      _
    $region25: #{forward.1} parent=1 // pred_fallthru
      _
    // Predicated region
    $region26: #{forward.1} parent=1 // pred_check
      _
    $region27: #{forward.1} parent=1 // pred_check_branch
      %47 = sbr.rel (0) target = $region29
    $region28: #{forward.1} parent=1 // pred_region
      _
    $region29: #{forward.1} parent=1 // pred_fallthru
      _
    // Predicated region
    $region30: #{forward.1} parent=1 // pred_check
      _
    $region31: #{forward.1} parent=1 // pred_check_branch
      %49 = sbr.rel (0) target = $region33
    $region32: #{forward.1} parent=1 // pred_region
      _
    $region33: #{forward.1} parent=1 // pred_fallthru
      _
    // Predicated region
    $region34: #{forward.1} parent=1 // pred_check
      _
    $region35: #{forward.1} parent=1 // pred_check_branch
      %51 = sbr.rel (0) target = $region37
    $region36: #{forward.1} parent=1 // pred_region
      _
    $region37: #{forward.1} parent=1 // pred_fallthru
      _
    // Predicated region
    $region38: #{forward.1} parent=1 // pred_check
      _
    $region39: #{forward.1} parent=1 // pred_check_branch
      %53 = sbr.rel (0) target = $region41
    $region40: #{forward.1} parent=1 // pred_region
      _
    $region41: #{forward.1} parent=1 // pred_fallthru
      _
    // Predicated region
    $region42: #{forward.1} parent=1 // pred_check
      _
    $region43: #{forward.1} parent=1 // pred_check_branch
      %55 = sbr.rel (0) target = $region45
    $region44: #{forward.1} parent=1 // pred_region
      _
    $region45: #{forward.1} parent=1 // pred_fallthru
      _
    // Predicated region
    $region46: #{forward.1} parent=1 // pred_check
      _
    $region47: #{forward.1} parent=1 // pred_check_branch
      %57 = sbr.rel (0) target = $region49
    $region48: #{forward.1} parent=1 // pred_region
      _
    $region49: #{forward.1} parent=1 // pred_fallthru
      _
    // Predicated region
    $region50: #{forward.1} parent=1 // pred_check
      _
    $region51: #{forward.1} parent=1 // pred_check_branch
      %59 = sbr.rel (0) target = $region53
    $region52: #{forward.1} parent=1 // pred_region
      _
    $region53: #{forward.1} parent=1 // pred_fallthru
      _
    // Predicated region
    $region54: #{forward.1} parent=1 // pred_check
      _
    $region55: #{forward.1} parent=1 // pred_check_branch
      %61 = sbr.rel (0) target = $region57
    $region56: #{forward.1} parent=1 // pred_region
      _
    $region57: #{forward.1} parent=1 // pred_fallthru
      _
    // Predicated region
    $region58: #{forward.1} parent=1 // pred_check
      _
    $region59: #{forward.1} parent=1 // pred_check_branch
      %63 = sbr.rel (0) target = $region61
    $region60: #{forward.1} parent=1 // pred_region
      _
    $region61: #{forward.1} parent=1 // pred_fallthru
      _
    // Predicated region
    $region62: #{forward.1} parent=1 // pred_check
      _
    $region63: #{forward.1} parent=1 // pred_check_branch
      %65 = sbr.rel (0) target = $region65
    $region64: #{forward.1} parent=1 // pred_region
      _
    $region65: #{forward.1} parent=1 // pred_fallthru
      _
    // Predicated region
    $region66: #{forward.1} parent=1 // pred_check
      _
    $region67: #{forward.1} parent=1 // pred_check_branch
      %67 = sbr.rel (0) target = $region69
    $region68: #{forward.1} parent=1 // pred_region
      _
    $region69: #{forward.1} parent=1 // pred_fallthru
      _
    // Predicated region
    $region70: #{forward.1} parent=1 // pred_check
      _
    $region71: #{forward.1} parent=1 // pred_check_branch
      %69 = sbr.rel (0) target = $region73
    $region72: #{forward.1} parent=1 // pred_region
      _
    $region73: #{forward.1} parent=1 // pred_fallthru
      _
    // Predicated region
    $region74: #{forward.1} parent=1 // pred_check
      _
    $region75: #{forward.1} parent=1 // pred_check_branch
      %71 = sbr.rel (0) target = $region77
    $region76: #{forward.1} parent=1 // pred_region
      _
    $region77: #{forward.1} parent=1 // pred_fallthru
      _
    // Predicated region
    $region78: #{forward.1} parent=1 // pred_check
      _
    $region79: #{forward.1} parent=1 // pred_check_branch
      %73 = sbr.rel (0) target = $region81
    $region80: #{forward.1} parent=1 // pred_region
      _
    $region81: #{forward.1} parent=1 // pred_fallthru
      _
    // Predicated region
    $region82: #{forward.1} parent=1 // pred_check
      _
    $region83: #{forward.1} parent=1 // pred_check_branch
      %75 = sbr.rel (0) target = $region85
    $region84: #{forward.1} parent=1 // pred_region
      _
    $region85: #{forward.1} parent=1 // pred_fallthru
      _
    // Predicated region
    $region86: #{forward.1} parent=1 // pred_check
      _
    $region87: #{forward.1} parent=1 // pred_check_branch
      %77 = sbr.rel (0) target = $region89
    $region88: #{forward.1} parent=1 // pred_region
      _
    $region89: #{forward.1} parent=1 // pred_fallthru
      _
    // Predicated region
    $region90: #{forward.1} parent=1 // pred_check
      _
    $region91: #{forward.1} parent=1 // pred_check_branch
      %79 = sbr.rel (0) target = $region93
    $region92: #{forward.1} parent=1 // pred_region
      _
    $region93: #{forward.1} parent=1 // pred_fallthru
      _
    // Predicated region
    $region94: #{forward.1} parent=1 // pred_check
      _
    $region95: #{forward.1} parent=1 // pred_check_branch
      %81 = sbr.rel (0) target = $region97
    $region96: #{forward.1} parent=1 // pred_region
      _
    $region97: #{forward.1} parent=1 // pred_fallthru
      _
    // Predicated region
    $region98: #{forward.1} parent=1 // pred_check
      _
    $region99: #{forward.1} parent=1 // pred_check_branch
      %83 = sbr.rel (0) target = $region101
    $region100: #{forward.1} parent=1 // pred_region
      _
    $region101: #{forward.1} parent=1 // pred_fallthru
      _
    // Predicated region
    $region102: #{forward.1} parent=1 // pred_check
      _
    $region103: #{forward.1} parent=1 // pred_check_branch
      %85 = sbr.rel (0) target = $region105
    $region104: #{forward.1} parent=1 // pred_region
      _
    $region105: #{forward.1} parent=1 // pred_fallthru
      _
    // Predicated region
    $region106: #{forward.1} parent=1 // pred_check
      _
    $region107: #{forward.1} parent=1 // pred_check_branch
      %87 = sbr.rel (0) target = $region109
    $region108: #{forward.1} parent=1 // pred_region
      _
    $region109: #{forward.1} parent=1 // pred_fallthru
      _
    // Predicated region
    $region110: #{forward.1} parent=1 // pred_check
      _
    $region111: #{forward.1} parent=1 // pred_check_branch
      %89 = sbr.rel (0) target = $region113
    $region112: #{forward.1} parent=1 // pred_region
      _
    $region113: #{forward.1} parent=1 // pred_fallthru
      _
    %v90 = vld [vmem:[%s0] sm:$0xff]
    %v91 = vld [vmem:[%s0 + $0x8] sm:$0xff]
    %v92 = vld [vmem:[%s0 + $0x10] sm:$0xff]
    %v93 = vld [vmem:[%s0 + $0x18] sm:$0xff]
    %v94 = vld [vmem:[%s0 + $0x20] sm:$0xff]
    %v95 = vld [vmem:[%s0 + $0x28] sm:$0xff]
    %v96 = vld [vmem:[%s0 + $0x30] sm:$0xff]
    %v97 = vld [vmem:[%s0 + $0x38] sm:$0xff]
    %v98 = vld [vmem:[%s0 + $0x40] sm:$0xff]
    %v99 = vld [vmem:[%s0 + $0x48] sm:$0xff]
    %v100 = vld [vmem:[%s0 + $0x50] sm:$0xff]
    %v101 = vld [vmem:[%s0 + $0x58] sm:$0xff]
    %v102 = vld [vmem:[%s0 + $0x60] sm:$0xff]
    %v103 = vld [vmem:[%s0 + $0x68] sm:$0xff]
    %v104 = vld [vmem:[%s0 + $0x70] sm:$0xff]
    %v105 = vld [vmem:[%s0 + $0x78] sm:$0xff]
    %v106 = vld [vmem:[%s0 + $0x80] sm:$0xff]
    %v107 = vld [vmem:[%s0 + $0x88] sm:$0xff]
    %v108 = vld [vmem:[%s0 + $0x90] sm:$0xff]
    %v109 = vld [vmem:[%s0 + $0x98] sm:$0xff]
    %v110 = vld [vmem:[%s0 + $0xa0] sm:$0xff]
    %v111 = vld [vmem:[%s0 + $0xa8] sm:$0xff]
    %v112 = vld [vmem:[%s0 + $0xb0] sm:$0xff]
    %v113 = vld [vmem:[%s0 + $0xb8] sm:$0xff]
    %v114 = vld [vmem:[%s0 + $0xc0] sm:$0xff]
    %v115 = vld [vmem:[%s0 + $0xc8] sm:$0xff]
    %v116 = vld [vmem:[%s0 + $0xd0] sm:$0xff]
    %v117 = vld [vmem:[%s0 + $0xd8] sm:$0xff]
    %v118 = vld [vmem:[%s0 + $0xe0] sm:$0xff]
    %v119 = vld [vmem:[%s0 + $0xe8] sm:$0xff]
    %v120 = vld [vmem:[%s0 + $0xf0] sm:$0xff]
    %v121 = vld [vmem:[%s0 + $0xf8] sm:$0xff]
    %v122 = vld [vmem:[%s0 + $0x100] sm:$0xff]
    %v123 = vld [vmem:[%s0 + $0x108] sm:$0xff]
    %v124 = vld [vmem:[%s0 + $0x110] sm:$0xff]
    %v125 = vld [vmem:[%s0 + $0x118] sm:$0xff]
    %v126 = vld [vmem:[%s0 + $0x120] sm:$0xff]
    %v127 = vld [vmem:[%s0 + $0x128] sm:$0xff]
    %v128 = vld [vmem:[%s0 + $0x130] sm:$0xff]
    %v129 = vld [vmem:[%s0 + $0x138] sm:$0xff]
    %v130 = vld [vmem:[%s0 + $0x140] sm:$0xff]
    %v131 = vld [vmem:[%s0 + $0x148] sm:$0xff]
    %v132 = vld [vmem:[%s0 + $0x150] sm:$0xff]
    %v133 = vld [vmem:[%s0 + $0x158] sm:$0xff]
    %v134 = vld [vmem:[%s0 + $0x160] sm:$0xff]
    %v135 = vld [vmem:[%s0 + $0x168] sm:$0xff]
    %v136 = vld [vmem:[%s0 + $0x170] sm:$0xff]
    %v137 = vld [vmem:[%s0 + $0x178] sm:$0xff]
    %v138 = vld [vmem:[%s0 + $0x180] sm:$0xff]
    %v139 = vld [vmem:[%s0 + $0x188] sm:$0xff]
    %v140 = vld [vmem:[%s0 + $0x190] sm:$0xff]
    %v141 = vld [vmem:[%s0 + $0x198] sm:$0xff]
    %v142 = vld [vmem:[%s0 + $0x1a0] sm:$0xff]
    %v143 = vld [vmem:[%s0 + $0x1a8] sm:$0xff]
    %v144 = vld [vmem:[%s0 + $0x1b0] sm:$0xff]
    %v145 = vld [vmem:[%s0 + $0x1b8] sm:$0xff]
    %v146 = vld [vmem:[%s0 + $0x1c0] sm:$0xff]
    %v147 = vld [vmem:[%s0 + $0x1c8] sm:$0xff]
    %v148 = vld [vmem:[%s0 + $0x1d0] sm:$0xff]
    %v149 = vld [vmem:[%s0 + $0x1d8] sm:$0xff]
    %v150 = vld [vmem:[%s0 + $0x1e0] sm:$0xff]
    %v151 = vld [vmem:[%s0 + $0x1e8] sm:$0xff]
    %v152 = vld [vmem:[%s0 + $0x1f0] sm:$0xff]
    %v153 = vld [vmem:[%s0 + $0x1f8] sm:$0xff]
    %v154 = vld [vmem:[%s0 + $0x200] sm:$0xff]
    %v155 = vld [vmem:[%s0 + $0x208] sm:$0xff]
    %v156 = vld [vmem:[%s0 + $0x210] sm:$0xff]
    %v157 = vld [vmem:[%s0 + $0x218] sm:$0xff]
    %v158 = vld [vmem:[%s0 + $0x220] sm:$0xff]
    %v159 = vld [vmem:[%s0 + $0x228] sm:$0xff]
    %v160 = vld [vmem:[%s0 + $0x230] sm:$0xff]
    %v161 = vld [vmem:[%s0 + $0x238] sm:$0xff]
    %v162 = vld [vmem:[%s0 + $0x240] sm:$0xff]
    %v163 = vld [vmem:[%s0 + $0x248] sm:$0xff]
    %v164 = vld [vmem:[%s0 + $0x250] sm:$0xff]
    %v165 = vld [vmem:[%s0 + $0x258] sm:$0xff]
    %v166 = vld [vmem:[%s0 + $0x260] sm:$0xff]
    %v167 = vld [vmem:[%s0 + $0x268] sm:$0xff]
    %v168 = vld [vmem:[%s0 + $0x270] sm:$0xff]
    %v169 = vld [vmem:[%s0 + $0x278] sm:$0xff]
    %v170 = vld [vmem:[%s0 + $0x280] sm:$0xff]
    %v171 = vld [vmem:[%s0 + $0x288] sm:$0xff]
    %v172 = vld [vmem:[%s0 + $0x290] sm:$0xff]
    %v173 = vld [vmem:[%s0 + $0x298] sm:$0xff]
    %v174 = vld [vmem:[%s0 + $0x2a0] sm:$0xff]
    %v175 = vld [vmem:[%s0 + $0x2a8] sm:$0xff]
    %v176 = vld [vmem:[%s0 + $0x2b0] sm:$0xff]
    %v177 = vld [vmem:[%s0 + $0x2b8] sm:$0xff]
    %v178 = vld [vmem:[%s0 + $0x2c0] sm:$0xff]
    %v179 = vld [vmem:[%s0 + $0x2c8] sm:$0xff]
    %v180 = vld [vmem:[%s0 + $0x2d0] sm:$0xff]
    %v181 = vld [vmem:[%s0 + $0x2d8] sm:$0xff]
    %v182 = vld [vmem:[%s0 + $0x2e0] sm:$0xff]
    %v183 = vld [vmem:[%s0 + $0x2e8] sm:$0xff]
    %v184 = vld [vmem:[%s0 + $0x2f0] sm:$0xff]
    %v185 = vld [vmem:[%s0 + $0x2f8] sm:$0xff]
    %v186 = vld [vmem:[%s0 + $0x300] sm:$0xff]
    %v187 = vld [vmem:[%s0 + $0x308] sm:$0xff]
    %v188 = vld [vmem:[%s0 + $0x310] sm:$0xff]
    %v189 = vld [vmem:[%s0 + $0x318] sm:$0xff]
    %v190 = vld [vmem:[%s0 + $0x320] sm:$0xff]
    %v191 = vld [vmem:[%s0 + $0x328] sm:$0xff]
    %v192 = vld [vmem:[%s0 + $0x330] sm:$0xff]
    %v193 = vld [vmem:[%s0 + $0x338] sm:$0xff]
    %v194 = vld [vmem:[%s0 + $0x340] sm:$0xff]
    %v195 = vld [vmem:[%s0 + $0x348] sm:$0xff]
    %v196 = vld [vmem:[%s0 + $0x350] sm:$0xff]
    %v197 = vld [vmem:[%s0 + $0x358] sm:$0xff]
    %v198 = vld [vmem:[%s0 + $0x360] sm:$0xff]
    %v199 = vld [vmem:[%s0 + $0x368] sm:$0xff]
    %v200 = vld [vmem:[%s0 + $0x370] sm:$0xff]
    %v201 = vld [vmem:[%s0 + $0x378] sm:$0xff]
    %v202 = vld [vmem:[%s0 + $0x380] sm:$0xff]
    %v203 = vld [vmem:[%s0 + $0x388] sm:$0xff]
    %v204 = vld [vmem:[%s0 + $0x390] sm:$0xff]
    %v205 = vld [vmem:[%s0 + $0x398] sm:$0xff]
    %v206 = vld [vmem:[%s0 + $0x3a0] sm:$0xff]
    %v207 = vld [vmem:[%s0 + $0x3a8] sm:$0xff]
    %v208 = vld [vmem:[%s0 + $0x3b0] sm:$0xff]
    %v209 = vld [vmem:[%s0 + $0x3b8] sm:$0xff]
    %v210 = vld [vmem:[%s0 + $0x3c0] sm:$0xff]
    %v211 = vld [vmem:[%s0 + $0x3c8] sm:$0xff]
    %v212 = vld [vmem:[%s0 + $0x3d0] sm:$0xff]
    %v213 = vld [vmem:[%s0 + $0x3d8] sm:$0xff]
    %v214 = vld [vmem:[%s0 + $0x3e0] sm:$0xff]
    %v215 = vld [vmem:[%s0 + $0x3e8] sm:$0xff]
    %v216 = vld [vmem:[%s0 + $0x3f0] sm:$0xff]
    %v217 = vld [vmem:[%s0 + $0x3f8] sm:$0xff]
    %v218 = vld [vmem:[%s1] sm:$0xff]
    %v219 = vld [vmem:[%s1 + $0x8] sm:$0xff]
    %v220 = vld [vmem:[%s1 + $0x10] sm:$0xff]
    %v221 = vld [vmem:[%s1 + $0x18] sm:$0xff]
    %v222 = vld [vmem:[%s1 + $0x20] sm:$0xff]
    %v223 = vld [vmem:[%s1 + $0x28] sm:$0xff]
    %v224 = vld [vmem:[%s1 + $0x30] sm:$0xff]
    %v225 = vld [vmem:[%s1 + $0x38] sm:$0xff]
    %v226 = vld [vmem:[%s1 + $0x40] sm:$0xff]
    %v227 = vld [vmem:[%s1 + $0x48] sm:$0xff]
    %v228 = vld [vmem:[%s1 + $0x50] sm:$0xff]
    %v229 = vld [vmem:[%s1 + $0x58] sm:$0xff]
    %v230 = vld [vmem:[%s1 + $0x60] sm:$0xff]
    %v231 = vld [vmem:[%s1 + $0x68] sm:$0xff]
    %v232 = vld [vmem:[%s1 + $0x70] sm:$0xff]
    %v233 = vld [vmem:[%s1 + $0x78] sm:$0xff]
    %v234 = vld [vmem:[%s1 + $0x80] sm:$0xff]
    %v235 = vld [vmem:[%s1 + $0x88] sm:$0xff]
    %v236 = vld [vmem:[%s1 + $0x90] sm:$0xff]
    %v237 = vld [vmem:[%s1 + $0x98] sm:$0xff]
    %v238 = vld [vmem:[%s1 + $0xa0] sm:$0x3]
    %vm239 = vcmask 277504
    %v241 = vsel %vm239, %v91, 0
    %v244 = vsel %vm239, %v93, 0
    %v247 = vsel %vm239, %v95, 0
    %v250 = vsel %vm239, %v97, 0
    %v253 = vsel %vm239, %v99, 0
    %v256 = vsel %vm239, %v101, 0
    %v259 = vsel %vm239, %v103, 0
    %v262 = vsel %vm239, %v105, 0
    %v265 = vsel %vm239, %v107, 0
    %v268 = vsel %vm239, %v109, 0
    %v271 = vsel %vm239, %v111, 0
    %v274 = vsel %vm239, %v113, 0
    %v277 = vsel %vm239, %v115, 0
    %v280 = vsel %vm239, %v117, 0
    %v283 = vsel %vm239, %v119, 0
    %v286 = vsel %vm239, %v121, 0
    %v289 = vsel %vm239, %v123, 0
    %v292 = vsel %vm239, %v125, 0
    %v295 = vsel %vm239, %v127, 0
    %v298 = vsel %vm239, %v129, 0
    %v301 = vsel %vm239, %v131, 0
    %v304 = vsel %vm239, %v133, 0
    %v307 = vsel %vm239, %v135, 0
    %v310 = vsel %vm239, %v137, 0
    %v313 = vsel %vm239, %v139, 0
    %v316 = vsel %vm239, %v141, 0
    %v319 = vsel %vm239, %v143, 0
    %v322 = vsel %vm239, %v145, 0
    %v325 = vsel %vm239, %v147, 0
    %v328 = vsel %vm239, %v149, 0
    %v331 = vsel %vm239, %v151, 0
    %v334 = vsel %vm239, %v153, 0
    %v337 = vsel %vm239, %v155, 0
    %v340 = vsel %vm239, %v157, 0
    %v343 = vsel %vm239, %v159, 0
    %v346 = vsel %vm239, %v161, 0
    %v349 = vsel %vm239, %v163, 0
    %v352 = vsel %vm239, %v165, 0
    %v355 = vsel %vm239, %v167, 0
    %v358 = vsel %vm239, %v169, 0
    %v361 = vsel %vm239, %v171, 0
    %v364 = vsel %vm239, %v173, 0
    %v367 = vsel %vm239, %v175, 0
    %v370 = vsel %vm239, %v177, 0
    %v373 = vsel %vm239, %v179, 0
    %v376 = vsel %vm239, %v181, 0
    %v379 = vsel %vm239, %v183, 0
    %v382 = vsel %vm239, %v185, 0
    %v385 = vsel %vm239, %v187, 0
    %v388 = vsel %vm239, %v189, 0
    %v391 = vsel %vm239, %v191, 0
    %v394 = vsel %vm239, %v193, 0
    %v397 = vsel %vm239, %v195, 0
    %v400 = vsel %vm239, %v197, 0
    %v403 = vsel %vm239, %v199, 0
    %v406 = vsel %vm239, %v201, 0
    %v409 = vsel %vm239, %v203, 0
    %v412 = vsel %vm239, %v205, 0
    %v415 = vsel %vm239, %v207, 0
    %v418 = vsel %vm239, %v209, 0
    %v421 = vsel %vm239, %v211, 0
    %v424 = vsel %vm239, %v213, 0
    %v427 = vsel %vm239, %v215, 0
    %v430 = vsel %vm239, %v217, 0
    %vm432 = vcmask 1041408
    %v434 = vsel %vm432, %v238, 0
    %436 = vmatprep.subr.mxu0 0.0
    %437 = vmatpush1.msra.mxu0 %v218
    %438 = vmatprep.subr.mxu0 0.0
    %439 = vmatpush1.msra.mxu0 %v219
    %440 = vmatprep.subr.mxu0 0.0
    %441 = vmatpush1.msra.mxu0 %v220
    %442 = vmatprep.subr.mxu0 0.0
    %443 = vmatpush1.msra.mxu0 %v221
    %444 = vmatprep.subr.mxu0 0.0
    %445 = vmatpush1.msra.mxu0 %v222
    %446 = vmatprep.subr.mxu0 0.0
    %447 = vmatpush1.msra.mxu0 %v223
    %448 = vmatprep.subr.mxu0 0.0
    %449 = vmatpush1.msra.mxu0 %v224
    %450 = vmatprep.subr.mxu0 0.0
    %451 = vmatpush1.msra.mxu0 %v225
    %452 = vmatprep.subr.mxu0 0.0
    %453 = vmatpush1.msra.mxu0 %v226
    %454 = vmatprep.subr.mxu0 0.0
    %455 = vmatpush1.msra.mxu0 %v227
    %456 = vmatprep.subr.mxu0 0.0
    %457 = vmatpush1.msra.mxu0 %v228
    %458 = vmatprep.subr.mxu0 0.0
    %459 = vmatpush1.msra.mxu0 %v229
    %460 = vmatprep.subr.mxu0 0.0
    %461 = vmatpush1.msra.mxu0 %v230
    %462 = vmatprep.subr.mxu0 0.0
    %463 = vmatpush1.msra.mxu0 %v231
    %464 = vmatprep.subr.mxu0 0.0
    %465 = vmatpush1.msra.mxu0 %v232
    %466 = vmatprep.subr.mxu0 0.0
    %467 = vmatpush1.msra.mxu0 %v233
    %468 = vmatprep.subr.mxu0 0.0
    %469 = vmatpush1.msra.mxu0 %v234
    %470 = vmatprep.subr.mxu0 0.0
    %471 = vmatpush1.msra.mxu0 %v235
    %472 = vmatprep.subr.mxu0 0.0
    %473 = vmatpush1.msra.mxu0 %v236
    %474 = vmatprep.subr.mxu0 0.0
    %475 = vmatpush1.msra.mxu0 %v237
    %476 = vmatprep.subr.mxu0 0.0
    %477 = vmatpush1.msra.mxu0 %v434
    %478 = vmatprep.subr.mxu0 0.0
    %479 = vmatpush1.msra.mxu0 0.0
    %480 = vmatprep.subr.mxu0 0.0
    %481 = vmatpush1.msra.mxu0 0.0
    %482 = vmatprep.subr.mxu0 0.0
    %483 = vmatpush1.msra.mxu0 0.0
    %484 = vmatprep.subr.mxu0 0.0
    %485 = vmatpush1.msra.mxu0 0.0
    %486 = vmatprep.subr.mxu0 0.0
    %487 = vmatpush1.msra.mxu0 0.0
    %488 = vmatprep.subr.mxu0 0.0
    %489 = vmatpush1.msra.mxu0 0.0
    %490 = vmatprep.subr.mxu0 0.0
    %491 = vmatpush1.msra.mxu0 0.0
    %492 = vmatprep.subr.mxu0 0.0
    %493 = vmatpush1.msra.mxu0 0.0
    %494 = vmatprep.subr.mxu0 0.0
    %495 = vmatpush1.msra.mxu0 0.0
    %496 = vmatprep.subr.mxu0 0.0
    %497 = vmatpush1.msra.mxu0 0.0
    %498 = vmatprep.subr.mxu0 0.0
    %499 = vmatpush1.msra.mxu0 0.0
    %500 = vmatprep.mubr.f32.mxu0 %v241
    %501 = vmatmul.mubr.f32.gmra.mrb[0].mxu0 %v90
    %v502 = vpop.f32.mrb[0].mxu0
    %v503 = vadd.f32 0.0, %v502
    %v504 = vpop.f32.mrb[0].mxu0
    %505 = vmatprep.mubr.f32.mxu0 %v244
    %506 = vmatmul.mubr.f32.gmra.mrb[0].mxu0 %v92
    %v507 = vpop.f32.mrb[0].mxu0
    %v508 = vadd.f32 0.0, %v507
    %v509 = vpop.f32.mrb[0].mxu0
    %510 = vmatprep.mubr.f32.mxu0 %v247
    %511 = vmatmul.mubr.f32.gmra.mrb[0].mxu0 %v94
    %v512 = vpop.f32.mrb[0].mxu0
    %v513 = vadd.f32 0.0, %v512
    %v514 = vpop.f32.mrb[0].mxu0
    %515 = vmatprep.mubr.f32.mxu0 %v250
    %516 = vmatmul.mubr.f32.gmra.mrb[0].mxu0 %v96
    %v517 = vpop.f32.mrb[0].mxu0
    %v518 = vadd.f32 0.0, %v517
    %v519 = vpop.f32.mrb[0].mxu0
    %520 = vmatprep.mubr.f32.mxu0 %v253
    %521 = vmatmul.mubr.f32.gmra.mrb[0].mxu0 %v98
    %v522 = vpop.f32.mrb[0].mxu0
    %v523 = vadd.f32 0.0, %v522
    %v524 = vpop.f32.mrb[0].mxu0
    %525 = vmatprep.mubr.f32.mxu0 %v256
    %526 = vmatmul.mubr.f32.gmra.mrb[0].mxu0 %v100
    %v527 = vpop.f32.mrb[0].mxu0
    %v528 = vadd.f32 0.0, %v527
    %v529 = vpop.f32.mrb[0].mxu0
    %530 = vmatprep.mubr.f32.mxu0 %v259
    %531 = vmatmul.mubr.f32.gmra.mrb[0].mxu0 %v102
    %v532 = vpop.f32.mrb[0].mxu0
    %v533 = vadd.f32 0.0, %v532
    %v534 = vpop.f32.mrb[0].mxu0
    %535 = vmatprep.mubr.f32.mxu0 %v262
    %536 = vmatmul.mubr.f32.gmra.mrb[0].mxu0 %v104
    %v537 = vpop.f32.mrb[0].mxu0
    %v538 = vadd.f32 0.0, %v537
    %v539 = vpop.f32.mrb[0].mxu0
    %540 = vmatprep.mubr.f32.mxu0 %v265
    %541 = vmatmul.mubr.f32.gmra.mrb[0].mxu0 %v106
    %v542 = vpop.f32.mrb[0].mxu0
    %v543 = vadd.f32 0.0, %v542
    %v544 = vpop.f32.mrb[0].mxu0
    %545 = vmatprep.mubr.f32.mxu0 %v268
    %546 = vmatmul.mubr.f32.gmra.mrb[0].mxu0 %v108
    %v547 = vpop.f32.mrb[0].mxu0
    %v548 = vadd.f32 0.0, %v547
    %v549 = vpop.f32.mrb[0].mxu0
    %550 = vmatprep.mubr.f32.mxu0 %v271
    %551 = vmatmul.mubr.f32.gmra.mrb[0].mxu0 %v110
    %v552 = vpop.f32.mrb[0].mxu0
    %v553 = vadd.f32 0.0, %v552
    %v554 = vpop.f32.mrb[0].mxu0
    %555 = vmatprep.mubr.f32.mxu0 %v274
    %556 = vmatmul.mubr.f32.gmra.mrb[0].mxu0 %v112
    %v557 = vpop.f32.mrb[0].mxu0
    %v558 = vadd.f32 0.0, %v557
    %v559 = vpop.f32.mrb[0].mxu0
    %560 = vmatprep.mubr.f32.mxu0 %v277
    %561 = vmatmul.mubr.f32.gmra.mrb[0].mxu0 %v114
    %v562 = vpop.f32.mrb[0].mxu0
    %v563 = vadd.f32 0.0, %v562
    %v564 = vpop.f32.mrb[0].mxu0
    %565 = vmatprep.mubr.f32.mxu0 %v280
    %566 = vmatmul.mubr.f32.gmra.mrb[0].mxu0 %v116
    %v567 = vpop.f32.mrb[0].mxu0
    %v568 = vadd.f32 0.0, %v567
    %v569 = vpop.f32.mrb[0].mxu0
    %570 = vmatprep.mubr.f32.mxu0 %v283
    %571 = vmatmul.mubr.f32.gmra.mrb[0].mxu0 %v118
    %v572 = vpop.f32.mrb[0].mxu0
    %v573 = vadd.f32 0.0, %v572
    %v574 = vpop.f32.mrb[0].mxu0
    %575 = vmatprep.mubr.f32.mxu0 %v286
    %576 = vmatmul.mubr.f32.gmra.mrb[0].mxu0 %v120
    %v577 = vpop.f32.mrb[0].mxu0
    %v578 = vadd.f32 0.0, %v577
    %v579 = vpop.f32.mrb[0].mxu0
    %580 = vmatprep.mubr.f32.mxu0 %v289
    %581 = vmatmul.mubr.f32.gmra.mrb[0].mxu0 %v122
    %v582 = vpop.f32.mrb[0].mxu0
    %v583 = vadd.f32 0.0, %v582
    %v584 = vpop.f32.mrb[0].mxu0
    %585 = vmatprep.mubr.f32.mxu0 %v292
    %586 = vmatmul.mubr.f32.gmra.mrb[0].mxu0 %v124
    %v587 = vpop.f32.mrb[0].mxu0
    %v588 = vadd.f32 0.0, %v587
    %v589 = vpop.f32.mrb[0].mxu0
    %590 = vmatprep.mubr.f32.mxu0 %v295
    %591 = vmatmul.mubr.f32.gmra.mrb[0].mxu0 %v126
    %v592 = vpop.f32.mrb[0].mxu0
    %v593 = vadd.f32 0.0, %v592
    %v594 = vpop.f32.mrb[0].mxu0
    %595 = vmatprep.mubr.f32.mxu0 %v298
    %596 = vmatmul.mubr.f32.gmra.mrb[0].mxu0 %v128
    %v597 = vpop.f32.mrb[0].mxu0
    %v598 = vadd.f32 0.0, %v597
    %v599 = vpop.f32.mrb[0].mxu0
    %600 = vmatprep.mubr.f32.mxu0 %v301
    %601 = vmatmul.mubr.f32.gmra.mrb[0].mxu0 %v130
    %v602 = vpop.f32.mrb[0].mxu0
    %v603 = vadd.f32 0.0, %v602
    %v604 = vpop.f32.mrb[0].mxu0
    %605 = vmatprep.mubr.f32.mxu0 %v304
    %606 = vmatmul.mubr.f32.gmra.mrb[0].mxu0 %v132
    %v607 = vpop.f32.mrb[0].mxu0
    %v608 = vadd.f32 0.0, %v607
    %v609 = vpop.f32.mrb[0].mxu0
    %610 = vmatprep.mubr.f32.mxu0 %v307
    %611 = vmatmul.mubr.f32.gmra.mrb[0].mxu0 %v134
    %v612 = vpop.f32.mrb[0].mxu0
    %v613 = vadd.f32 0.0, %v612
    %v614 = vpop.f32.mrb[0].mxu0
    %615 = vmatprep.mubr.f32.mxu0 %v310
    %616 = vmatmul.mubr.f32.gmra.mrb[0].mxu0 %v136
    %v617 = vpop.f32.mrb[0].mxu0
    %v618 = vadd.f32 0.0, %v617
    %v619 = vpop.f32.mrb[0].mxu0
    %620 = vmatprep.mubr.f32.mxu0 %v313
    %621 = vmatmul.mubr.f32.gmra.mrb[0].mxu0 %v138
    %v622 = vpop.f32.mrb[0].mxu0
    %v623 = vadd.f32 0.0, %v622
    %v624 = vpop.f32.mrb[0].mxu0
    %625 = vmatprep.mubr.f32.mxu0 %v316
    %626 = vmatmul.mubr.f32.gmra.mrb[0].mxu0 %v140
    %v627 = vpop.f32.mrb[0].mxu0
    %v628 = vadd.f32 0.0, %v627
    %v629 = vpop.f32.mrb[0].mxu0
    %630 = vmatprep.mubr.f32.mxu0 %v319
    %631 = vmatmul.mubr.f32.gmra.mrb[0].mxu0 %v142
    %v632 = vpop.f32.mrb[0].mxu0
    %v633 = vadd.f32 0.0, %v632
    %v634 = vpop.f32.mrb[0].mxu0
    %635 = vmatprep.mubr.f32.mxu0 %v322
    %636 = vmatmul.mubr.f32.gmra.mrb[0].mxu0 %v144
    %v637 = vpop.f32.mrb[0].mxu0
    %v638 = vadd.f32 0.0, %v637
    %v639 = vpop.f32.mrb[0].mxu0
    %640 = vmatprep.mubr.f32.mxu0 %v325
    %641 = vmatmul.mubr.f32.gmra.mrb[0].mxu0 %v146
    %v642 = vpop.f32.mrb[0].mxu0
    %v643 = vadd.f32 0.0, %v642
    %v644 = vpop.f32.mrb[0].mxu0
    %645 = vmatprep.mubr.f32.mxu0 %v328
    %646 = vmatmul.mubr.f32.gmra.mrb[0].mxu0 %v148
    %v647 = vpop.f32.mrb[0].mxu0
    %v648 = vadd.f32 0.0, %v647
    %v649 = vpop.f32.mrb[0].mxu0
    %650 = vmatprep.mubr.f32.mxu0 %v331
    %651 = vmatmul.mubr.f32.gmra.mrb[0].mxu0 %v150
    %v652 = vpop.f32.mrb[0].mxu0
    %v653 = vadd.f32 0.0, %v652
    %v654 = vpop.f32.mrb[0].mxu0
    %655 = vmatprep.mubr.f32.mxu0 %v334
    %656 = vmatmul.mubr.f32.gmra.mrb[0].mxu0 %v152
    %v657 = vpop.f32.mrb[0].mxu0
    %v658 = vadd.f32 0.0, %v657
    %v659 = vpop.f32.mrb[0].mxu0
    %660 = vmatprep.mubr.f32.mxu0 %v337
    %661 = vmatmul.mubr.f32.gmra.mrb[0].mxu0 %v154
    %v662 = vpop.f32.mrb[0].mxu0
    %v663 = vadd.f32 0.0, %v662
    %v664 = vpop.f32.mrb[0].mxu0
    %665 = vmatprep.mubr.f32.mxu0 %v340
    %666 = vmatmul.mubr.f32.gmra.mrb[0].mxu0 %v156
    %v667 = vpop.f32.mrb[0].mxu0
    %v668 = vadd.f32 0.0, %v667
    %v669 = vpop.f32.mrb[0].mxu0
    %670 = vmatprep.mubr.f32.mxu0 %v343
    %671 = vmatmul.mubr.f32.gmra.mrb[0].mxu0 %v158
    %v672 = vpop.f32.mrb[0].mxu0
    %v673 = vadd.f32 0.0, %v672
    %v674 = vpop.f32.mrb[0].mxu0
    %675 = vmatprep.mubr.f32.mxu0 %v346
    %676 = vmatmul.mubr.f32.gmra.mrb[0].mxu0 %v160
    %v677 = vpop.f32.mrb[0].mxu0
    %v678 = vadd.f32 0.0, %v677
    %v679 = vpop.f32.mrb[0].mxu0
    %680 = vmatprep.mubr.f32.mxu0 %v349
    %681 = vmatmul.mubr.f32.gmra.mrb[0].mxu0 %v162
    %v682 = vpop.f32.mrb[0].mxu0
    %v683 = vadd.f32 0.0, %v682
    %v684 = vpop.f32.mrb[0].mxu0
    %685 = vmatprep.mubr.f32.mxu0 %v352
    %686 = vmatmul.mubr.f32.gmra.mrb[0].mxu0 %v164
    %v687 = vpop.f32.mrb[0].mxu0
    %v688 = vadd.f32 0.0, %v687
    %v689 = vpop.f32.mrb[0].mxu0
    %690 = vmatprep.mubr.f32.mxu0 %v355
    %691 = vmatmul.mubr.f32.gmra.mrb[0].mxu0 %v166
    %v692 = vpop.f32.mrb[0].mxu0
    %v693 = vadd.f32 0.0, %v692
    %v694 = vpop.f32.mrb[0].mxu0
    %695 = vmatprep.mubr.f32.mxu0 %v358
    %696 = vmatmul.mubr.f32.gmra.mrb[0].mxu0 %v168
    %v697 = vpop.f32.mrb[0].mxu0
    %v698 = vadd.f32 0.0, %v697
    %v699 = vpop.f32.mrb[0].mxu0
    %700 = vmatprep.mubr.f32.mxu0 %v361
    %701 = vmatmul.mubr.f32.gmra.mrb[0].mxu0 %v170
    %v702 = vpop.f32.mrb[0].mxu0
    %v703 = vadd.f32 0.0, %v702
    %v704 = vpop.f32.mrb[0].mxu0
    %705 = vmatprep.mubr.f32.mxu0 %v364
    %706 = vmatmul.mubr.f32.gmra.mrb[0].mxu0 %v172
    %v707 = vpop.f32.mrb[0].mxu0
    %v708 = vadd.f32 0.0, %v707
    %v709 = vpop.f32.mrb[0].mxu0
    %710 = vmatprep.mubr.f32.mxu0 %v367
    %711 = vmatmul.mubr.f32.gmra.mrb[0].mxu0 %v174
    %v712 = vpop.f32.mrb[0].mxu0
    %v713 = vadd.f32 0.0, %v712
    %v714 = vpop.f32.mrb[0].mxu0
    %715 = vmatprep.mubr.f32.mxu0 %v370
    %716 = vmatmul.mubr.f32.gmra.mrb[0].mxu0 %v176
    %v717 = vpop.f32.mrb[0].mxu0
    %v718 = vadd.f32 0.0, %v717
    %v719 = vpop.f32.mrb[0].mxu0
    %720 = vmatprep.mubr.f32.mxu0 %v373
    %721 = vmatmul.mubr.f32.gmra.mrb[0].mxu0 %v178
    %v722 = vpop.f32.mrb[0].mxu0
    %v723 = vadd.f32 0.0, %v722
    %v724 = vpop.f32.mrb[0].mxu0
    %725 = vmatprep.mubr.f32.mxu0 %v376
    %726 = vmatmul.mubr.f32.gmra.mrb[0].mxu0 %v180
    %v727 = vpop.f32.mrb[0].mxu0
    %v728 = vadd.f32 0.0, %v727
    %v729 = vpop.f32.mrb[0].mxu0
    %730 = vmatprep.mubr.f32.mxu0 %v379
    %731 = vmatmul.mubr.f32.gmra.mrb[0].mxu0 %v182
    %v732 = vpop.f32.mrb[0].mxu0
    %v733 = vadd.f32 0.0, %v732
    %v734 = vpop.f32.mrb[0].mxu0
    %735 = vmatprep.mubr.f32.mxu0 %v382
    %736 = vmatmul.mubr.f32.gmra.mrb[0].mxu0 %v184
    %v737 = vpop.f32.mrb[0].mxu0
    %v738 = vadd.f32 0.0, %v737
    %v739 = vpop.f32.mrb[0].mxu0
    %740 = vmatprep.mubr.f32.mxu0 %v385
    %741 = vmatmul.mubr.f32.gmra.mrb[0].mxu0 %v186
    %v742 = vpop.f32.mrb[0].mxu0
    %v743 = vadd.f32 0.0, %v742
    %v744 = vpop.f32.mrb[0].mxu0
    %745 = vmatprep.mubr.f32.mxu0 %v388
    %746 = vmatmul.mubr.f32.gmra.mrb[0].mxu0 %v188
    %v747 = vpop.f32.mrb[0].mxu0
    %v748 = vadd.f32 0.0, %v747
    %v749 = vpop.f32.mrb[0].mxu0
    %750 = vmatprep.mubr.f32.mxu0 %v391
    %751 = vmatmul.mubr.f32.gmra.mrb[0].mxu0 %v190
    %v752 = vpop.f32.mrb[0].mxu0
    %v753 = vadd.f32 0.0, %v752
    %v754 = vpop.f32.mrb[0].mxu0
    %755 = vmatprep.mubr.f32.mxu0 %v394
    %756 = vmatmul.mubr.f32.gmra.mrb[0].mxu0 %v192
    %v757 = vpop.f32.mrb[0].mxu0
    %v758 = vadd.f32 0.0, %v757
    %v759 = vpop.f32.mrb[0].mxu0
    %760 = vmatprep.mubr.f32.mxu0 %v397
    %761 = vmatmul.mubr.f32.gmra.mrb[0].mxu0 %v194
    %v762 = vpop.f32.mrb[0].mxu0
    %v763 = vadd.f32 0.0, %v762
    %v764 = vpop.f32.mrb[0].mxu0
    %765 = vmatprep.mubr.f32.mxu0 %v400
    %766 = vmatmul.mubr.f32.gmra.mrb[0].mxu0 %v196
    %v767 = vpop.f32.mrb[0].mxu0
    %v768 = vadd.f32 0.0, %v767
    %v769 = vpop.f32.mrb[0].mxu0
    %770 = vmatprep.mubr.f32.mxu0 %v403
    %771 = vmatmul.mubr.f32.gmra.mrb[0].mxu0 %v198
    %v772 = vpop.f32.mrb[0].mxu0
    %v773 = vadd.f32 0.0, %v772
    %v774 = vpop.f32.mrb[0].mxu0
    %775 = vmatprep.mubr.f32.mxu0 %v406
    %776 = vmatmul.mubr.f32.gmra.mrb[0].mxu0 %v200
    %v777 = vpop.f32.mrb[0].mxu0
    %v778 = vadd.f32 0.0, %v777
    %v779 = vpop.f32.mrb[0].mxu0
    %780 = vmatprep.mubr.f32.mxu0 %v409
    %781 = vmatmul.mubr.f32.gmra.mrb[0].mxu0 %v202
    %v782 = vpop.f32.mrb[0].mxu0
    %v783 = vadd.f32 0.0, %v782
    %v784 = vpop.f32.mrb[0].mxu0
    %785 = vmatprep.mubr.f32.mxu0 %v412
    %786 = vmatmul.mubr.f32.gmra.mrb[0].mxu0 %v204
    %v787 = vpop.f32.mrb[0].mxu0
    %v788 = vadd.f32 0.0, %v787
    %v789 = vpop.f32.mrb[0].mxu0
    %790 = vmatprep.mubr.f32.mxu0 %v415
    %791 = vmatmul.mubr.f32.gmra.mrb[0].mxu0 %v206
    %v792 = vpop.f32.mrb[0].mxu0
    %v793 = vadd.f32 0.0, %v792
    %v794 = vpop.f32.mrb[0].mxu0
    %795 = vmatprep.mubr.f32.mxu0 %v418
    %796 = vmatmul.mubr.f32.gmra.mrb[0].mxu0 %v208
    %v797 = vpop.f32.mrb[0].mxu0
    %v798 = vadd.f32 0.0, %v797
    %v799 = vpop.f32.mrb[0].mxu0
    %800 = vmatprep.mubr.f32.mxu0 %v421
    %801 = vmatmul.mubr.f32.gmra.mrb[0].mxu0 %v210
    %v802 = vpop.f32.mrb[0].mxu0
    %v803 = vadd.f32 0.0, %v802
    %v804 = vpop.f32.mrb[0].mxu0
    %805 = vmatprep.mubr.f32.mxu0 %v424
    %806 = vmatmul.mubr.f32.gmra.mrb[0].mxu0 %v212
    %v807 = vpop.f32.mrb[0].mxu0
    %v808 = vadd.f32 0.0, %v807
    %v809 = vpop.f32.mrb[0].mxu0
    %810 = vmatprep.mubr.f32.mxu0 %v427
    %811 = vmatmul.mubr.f32.gmra.mrb[0].mxu0 %v214
    %v812 = vpop.f32.mrb[0].mxu0
    %v813 = vadd.f32 0.0, %v812
    %v814 = vpop.f32.mrb[0].mxu0
    %815 = vmatprep.mubr.f32.mxu0 %v430
    %816 = vmatmul.mubr.f32.gmra.mrb[0].mxu0 %v216
    %v817 = vpop.f32.mrb[0].mxu0
    %v818 = vadd.f32 0.0, %v817
    %v819 = vpop.f32.mrb[0].mxu0
    %820 = vdwg.mxu0
    %v821 = vadd.f32 %v503, %v508
    %v822 = vadd.f32 %v821, %v513
    %v823 = vadd.f32 %v822, %v518
    %v824 = vadd.f32 %v823, %v523
    %v825 = vadd.f32 %v824, %v528
    %v826 = vadd.f32 %v825, %v533
    %v827 = vadd.f32 %v826, %v538
    %v828 = vadd.f32 %v827, %v543
    %v829 = vadd.f32 %v828, %v548
    %v830 = vadd.f32 %v829, %v553
    %v831 = vadd.f32 %v830, %v558
    %v832 = vadd.f32 %v831, %v563
    %v833 = vadd.f32 %v832, %v568
    %v834 = vadd.f32 %v833, %v573
    %v835 = vadd.f32 %v834, %v578
    %v836 = vadd.f32 %v835, %v583
    %v837 = vadd.f32 %v836, %v588
    %v838 = vadd.f32 %v837, %v593
    %v839 = vadd.f32 %v838, %v598
    %v840 = vadd.f32 %v839, %v603
    %v841 = vadd.f32 %v840, %v608
    %v842 = vadd.f32 %v841, %v613
    %v843 = vadd.f32 %v842, %v618
    %v844 = vadd.f32 %v843, %v623
    %v845 = vadd.f32 %v844, %v628
    %v846 = vadd.f32 %v845, %v633
    %v847 = vadd.f32 %v846, %v638
    %v848 = vadd.f32 %v847, %v643
    %v849 = vadd.f32 %v848, %v648
    %v850 = vadd.f32 %v849, %v653
    %v851 = vadd.f32 %v850, %v658
    %v852 = vadd.f32 %v851, %v663
    %v853 = vadd.f32 %v852, %v668
    %v854 = vadd.f32 %v853, %v673
    %v855 = vadd.f32 %v854, %v678
    %v856 = vadd.f32 %v855, %v683
    %v857 = vadd.f32 %v856, %v688
    %v858 = vadd.f32 %v857, %v693
    %v859 = vadd.f32 %v858, %v698
    %v860 = vadd.f32 %v859, %v703
    %v861 = vadd.f32 %v860, %v708
    %v862 = vadd.f32 %v861, %v713
    %v863 = vadd.f32 %v862, %v718
    %v864 = vadd.f32 %v863, %v723
    %v865 = vadd.f32 %v864, %v728
    %v866 = vadd.f32 %v865, %v733
    %v867 = vadd.f32 %v866, %v738
    %v868 = vadd.f32 %v867, %v743
    %v869 = vadd.f32 %v868, %v748
    %v870 = vadd.f32 %v869, %v753
    %v871 = vadd.f32 %v870, %v758
    %v872 = vadd.f32 %v871, %v763
    %v873 = vadd.f32 %v872, %v768
    %v874 = vadd.f32 %v873, %v773
    %v875 = vadd.f32 %v874, %v778
    %v876 = vadd.f32 %v875, %v783
    %v877 = vadd.f32 %v876, %v788
    %v878 = vadd.f32 %v877, %v793
    %v879 = vadd.f32 %v878, %v798
    %v880 = vadd.f32 %v879, %v803
    %v881 = vadd.f32 %v880, %v808
    %v882 = vadd.f32 %v881, %v813
    %v883 = vadd.f32 %v882, %v818
    %v884 = vrot.slane %v883, 4
    %v885 = vadd.f32 %v883, %v884
    %v886 = vrot.slane %v885, 2
    %v887 = vadd.f32 %v885, %v886
    %v888 = vrot.slane %v887, 1
    %v889 = vadd.f32 %v887, %v888
    %v890 = vld [vmem:[%s2] sm:$0xff]
    %v891 = vld [vmem:[%s2 + $0x8] sm:$0xff]
    %v892 = vld [vmem:[%s2 + $0x10] sm:$0xff]
    %v893 = vld [vmem:[%s2 + $0x18] sm:$0xff]
    %v894 = vld [vmem:[%s2 + $0x20] sm:$0xff]
    %v895 = vld [vmem:[%s2 + $0x28] sm:$0xff]
    %v896 = vld [vmem:[%s2 + $0x30] sm:$0xff]
    %v897 = vld [vmem:[%s2 + $0x38] sm:$0xff]
    %v898 = vld [vmem:[%s2 + $0x40] sm:$0xff]
    %v899 = vld [vmem:[%s2 + $0x48] sm:$0xff]
    %v900 = vld [vmem:[%s2 + $0x50] sm:$0xff]
    %v901 = vld [vmem:[%s2 + $0x58] sm:$0xff]
    %v902 = vld [vmem:[%s2 + $0x60] sm:$0xff]
    %v903 = vld [vmem:[%s2 + $0x68] sm:$0xff]
    %v904 = vld [vmem:[%s2 + $0x70] sm:$0xff]
    %v905 = vld [vmem:[%s2 + $0x78] sm:$0xff]
    %906 = vmatprep.subr.mxu0 0.0
    %907 = vmatpush1.msra.mxu0 %v890
    %908 = vmatprep.subr.mxu0 0.0
    %909 = vmatpush1.msra.mxu0 %v891
    %910 = vmatprep.subr.mxu0 0.0
    %911 = vmatpush1.msra.mxu0 %v892
    %912 = vmatprep.subr.mxu0 0.0
    %913 = vmatpush1.msra.mxu0 %v893
    %914 = vmatprep.subr.mxu0 0.0
    %915 = vmatpush1.msra.mxu0 %v894
    %916 = vmatprep.subr.mxu0 0.0
    %917 = vmatpush1.msra.mxu0 %v895
    %918 = vmatprep.subr.mxu0 0.0
    %919 = vmatpush1.msra.mxu0 %v896
    %920 = vmatprep.subr.mxu0 0.0
    %921 = vmatpush1.msra.mxu0 %v897
    %922 = vmatprep.subr.mxu0 0.0
    %923 = vmatpush1.msra.mxu0 %v898
    %924 = vmatprep.subr.mxu0 0.0
    %925 = vmatpush1.msra.mxu0 %v899
    %926 = vmatprep.subr.mxu0 0.0
    %927 = vmatpush1.msra.mxu0 %v900
    %928 = vmatprep.subr.mxu0 0.0
    %929 = vmatpush1.msra.mxu0 %v901
    %930 = vmatprep.subr.mxu0 0.0
    %931 = vmatpush1.msra.mxu0 %v902
    %932 = vmatprep.subr.mxu0 0.0
    %933 = vmatpush1.msra.mxu0 %v903
    %934 = vmatprep.subr.mxu0 0.0
    %935 = vmatpush1.msra.mxu0 %v904
    %936 = vmatprep.subr.mxu0 0.0
    %937 = vmatpush1.msra.mxu0 %v905
    %938 = vmatprep.subr.mxu0 0.0
    %939 = vmatpush1.msra.mxu0 0.0
    %940 = vmatprep.subr.mxu0 0.0
    %941 = vmatpush1.msra.mxu0 0.0
    %942 = vmatprep.subr.mxu0 0.0
    %943 = vmatpush1.msra.mxu0 0.0
    %944 = vmatprep.subr.mxu0 0.0
    %945 = vmatpush1.msra.mxu0 0.0
    %946 = vmatprep.subr.mxu0 0.0
    %947 = vmatpush1.msra.mxu0 0.0
    %948 = vmatprep.subr.mxu0 0.0
    %949 = vmatpush1.msra.mxu0 0.0
    %950 = vmatprep.subr.mxu0 0.0
    %951 = vmatpush1.msra.mxu0 0.0
    %952 = vmatprep.subr.mxu0 0.0
    %953 = vmatpush1.msra.mxu0 0.0
    %954 = vmatprep.subr.mxu0 0.0
    %955 = vmatpush1.msra.mxu0 0.0
    %956 = vmatprep.subr.mxu0 0.0
    %957 = vmatpush1.msra.mxu0 0.0
    %958 = vmatprep.subr.mxu0 0.0
    %959 = vmatpush1.msra.mxu0 0.0
    %960 = vmatprep.subr.mxu0 0.0
    %961 = vmatpush1.msra.mxu0 0.0
    %962 = vmatprep.subr.mxu0 0.0
    %963 = vmatpush1.msra.mxu0 0.0
    %964 = vmatprep.subr.mxu0 0.0
    %965 = vmatpush1.msra.mxu0 0.0
    %966 = vmatprep.subr.mxu0 0.0
    %967 = vmatpush1.msra.mxu0 0.0
    %968 = vmatprep.subr.mxu0 0.0
    %969 = vmatpush1.msra.mxu0 0.0
    %970 = vmatprep.mubr.f32.mxu0 0.0
    %971 = vmatmul.mubr.f32.gmra.mrb[0].mxu0 %v889
    %v972 = vpop.f32.mrb[0].mxu0
    %v973 = vadd.f32 0.0, %v972
    %v974 = vpop.f32.mrb[0].mxu0
    %975 = vdwg.mxu0
    %v976 = vmul.f32 %v973, 0.00012207031
    %v977 = vlaneseq
    %v978 = vshrl.u32 %v977, 7
    %v979 = vsub.s32 0, %v978
    %v980 = vrot.slane %v976, %v979
    %v981 = vsub.f32 %v503, %v980
    %v982 = vsub.f32 %v508, %v980
    %v983 = vsub.f32 %v513, %v980
    %v984 = vsub.f32 %v518, %v980
    %v985 = vsub.f32 %v523, %v980
    %v986 = vsub.f32 %v528, %v980
    %v987 = vsub.f32 %v533, %v980
    %v988 = vsub.f32 %v538, %v980
    %v989 = vsub.f32 %v543, %v980
    %v990 = vsub.f32 %v548, %v980
    %v991 = vsub.f32 %v553, %v980
    %v992 = vsub.f32 %v558, %v980
    %v993 = vsub.f32 %v563, %v980
    %v994 = vsub.f32 %v568, %v980
    %v995 = vsub.f32 %v573, %v980
    %v996 = vsub.f32 %v578, %v980
    %v997 = vsub.f32 %v583, %v980
    %v998 = vsub.f32 %v588, %v980
    %v999 = vsub.f32 %v593, %v980
    %v1000 = vsub.f32 %v598, %v980
    %v1001 = vsub.f32 %v603, %v980
    %v1002 = vsub.f32 %v608, %v980
    %v1003 = vsub.f32 %v613, %v980
    %v1004 = vsub.f32 %v618, %v980
    %v1005 = vsub.f32 %v623, %v980
    %v1006 = vsub.f32 %v628, %v980
    %v1007 = vsub.f32 %v633, %v980
    %v1008 = vsub.f32 %v638, %v980
    %v1009 = vsub.f32 %v643, %v980
    %v1010 = vsub.f32 %v648, %v980
    %v1011 = vsub.f32 %v653, %v980
    %v1012 = vsub.f32 %v658, %v980
    %v1013 = vsub.f32 %v663, %v980
    %v1014 = vsub.f32 %v668, %v980
    %v1015 = vsub.f32 %v673, %v980
    %v1016 = vsub.f32 %v678, %v980
    %v1017 = vsub.f32 %v683, %v980
    %v1018 = vsub.f32 %v688, %v980
    %v1019 = vsub.f32 %v693, %v980
    %v1020 = vsub.f32 %v698, %v980
    %v1021 = vsub.f32 %v703, %v980
    %v1022 = vsub.f32 %v708, %v980
    %v1023 = vsub.f32 %v713, %v980
    %v1024 = vsub.f32 %v718, %v980
    %v1025 = vsub.f32 %v723, %v980
    %v1026 = vsub.f32 %v728, %v980
    %v1027 = vsub.f32 %v733, %v980
    %v1028 = vsub.f32 %v738, %v980
    %v1029 = vsub.f32 %v743, %v980
    %v1030 = vsub.f32 %v748, %v980
    %v1031 = vsub.f32 %v753, %v980
    %v1032 = vsub.f32 %v758, %v980
    %v1033 = vsub.f32 %v763, %v980
    %v1034 = vsub.f32 %v768, %v980
    %v1035 = vsub.f32 %v773, %v980
    %v1036 = vsub.f32 %v778, %v980
    %v1037 = vsub.f32 %v783, %v980
    %v1038 = vsub.f32 %v788, %v980
    %v1039 = vsub.f32 %v793, %v980
    %v1040 = vsub.f32 %v798, %v980
    %v1041 = vsub.f32 %v803, %v980
    %v1042 = vsub.f32 %v808, %v980
    %v1043 = vsub.f32 %v813, %v980
    %v1044 = vsub.f32 %v818, %v980
    %v1045 = vmul.f32 %v981, %v981
    %v1046 = vmul.f32 %v982, %v982
    %v1047 = vmul.f32 %v983, %v983
    %v1048 = vmul.f32 %v984, %v984
    %v1049 = vmul.f32 %v985, %v985
    %v1050 = vmul.f32 %v986, %v986
    %v1051 = vmul.f32 %v987, %v987
    %v1052 = vmul.f32 %v988, %v988
    %v1053 = vmul.f32 %v989, %v989
    %v1054 = vmul.f32 %v990, %v990
    %v1055 = vmul.f32 %v991, %v991
    %v1056 = vmul.f32 %v992, %v992
    %v1057 = vmul.f32 %v993, %v993
    %v1058 = vmul.f32 %v994, %v994
    %v1059 = vmul.f32 %v995, %v995
    %v1060 = vmul.f32 %v996, %v996
    %v1061 = vmul.f32 %v997, %v997
    %v1062 = vmul.f32 %v998, %v998
    %v1063 = vmul.f32 %v999, %v999
    %v1064 = vmul.f32 %v1000, %v1000
    %v1065 = vmul.f32 %v1001, %v1001
    %v1066 = vmul.f32 %v1002, %v1002
    %v1067 = vmul.f32 %v1003, %v1003
    %v1068 = vmul.f32 %v1004, %v1004
    %v1069 = vmul.f32 %v1005, %v1005
    %v1070 = vmul.f32 %v1006, %v1006
    %v1071 = vmul.f32 %v1007, %v1007
    %v1072 = vmul.f32 %v1008, %v1008
    %v1073 = vmul.f32 %v1009, %v1009
    %v1074 = vmul.f32 %v1010, %v1010
    %v1075 = vmul.f32 %v1011, %v1011
    %v1076 = vmul.f32 %v1012, %v1012
    %v1077 = vmul.f32 %v1013, %v1013
    %v1078 = vmul.f32 %v1014, %v1014
    %v1079 = vmul.f32 %v1015, %v1015
    %v1080 = vmul.f32 %v1016, %v1016
    %v1081 = vmul.f32 %v1017, %v1017
    %v1082 = vmul.f32 %v1018, %v1018
    %v1083 = vmul.f32 %v1019, %v1019
    %v1084 = vmul.f32 %v1020, %v1020
    %v1085 = vmul.f32 %v1021, %v1021
    %v1086 = vmul.f32 %v1022, %v1022
    %v1087 = vmul.f32 %v1023, %v1023
    %v1088 = vmul.f32 %v1024, %v1024
    %v1089 = vmul.f32 %v1025, %v1025
    %v1090 = vmul.f32 %v1026, %v1026
    %v1091 = vmul.f32 %v1027, %v1027
    %v1092 = vmul.f32 %v1028, %v1028
    %v1093 = vmul.f32 %v1029, %v1029
    %v1094 = vmul.f32 %v1030, %v1030
    %v1095 = vmul.f32 %v1031, %v1031
    %v1096 = vmul.f32 %v1032, %v1032
    %v1097 = vmul.f32 %v1033, %v1033
    %v1098 = vmul.f32 %v1034, %v1034
    %v1099 = vmul.f32 %v1035, %v1035
    %v1100 = vmul.f32 %v1036, %v1036
    %v1101 = vmul.f32 %v1037, %v1037
    %v1102 = vmul.f32 %v1038, %v1038
    %v1103 = vmul.f32 %v1039, %v1039
    %v1104 = vmul.f32 %v1040, %v1040
    %v1105 = vmul.f32 %v1041, %v1041
    %v1106 = vmul.f32 %v1042, %v1042
    %v1107 = vmul.f32 %v1043, %v1043
    %v1108 = vmul.f32 %v1044, %v1044
    %v1109 = vadd.f32 %v1045, %v1046
    %v1110 = vadd.f32 %v1109, %v1047
    %v1111 = vadd.f32 %v1110, %v1048
    %v1112 = vadd.f32 %v1111, %v1049
    %v1113 = vadd.f32 %v1112, %v1050
    %v1114 = vadd.f32 %v1113, %v1051
    %v1115 = vadd.f32 %v1114, %v1052
    %v1116 = vadd.f32 %v1115, %v1053
    %v1117 = vadd.f32 %v1116, %v1054
    %v1118 = vadd.f32 %v1117, %v1055
    %v1119 = vadd.f32 %v1118, %v1056
    %v1120 = vadd.f32 %v1119, %v1057
    %v1121 = vadd.f32 %v1120, %v1058
    %v1122 = vadd.f32 %v1121, %v1059
    %v1123 = vadd.f32 %v1122, %v1060
    %v1124 = vadd.f32 %v1123, %v1061
    %v1125 = vadd.f32 %v1124, %v1062
    %v1126 = vadd.f32 %v1125, %v1063
    %v1127 = vadd.f32 %v1126, %v1064
    %v1128 = vadd.f32 %v1127, %v1065
    %v1129 = vadd.f32 %v1128, %v1066
    %v1130 = vadd.f32 %v1129, %v1067
    %v1131 = vadd.f32 %v1130, %v1068
    %v1132 = vadd.f32 %v1131, %v1069
    %v1133 = vadd.f32 %v1132, %v1070
    %v1134 = vadd.f32 %v1133, %v1071
    %v1135 = vadd.f32 %v1134, %v1072
    %v1136 = vadd.f32 %v1135, %v1073
    %v1137 = vadd.f32 %v1136, %v1074
    %v1138 = vadd.f32 %v1137, %v1075
    %v1139 = vadd.f32 %v1138, %v1076
    %v1140 = vadd.f32 %v1139, %v1077
    %v1141 = vadd.f32 %v1140, %v1078
    %v1142 = vadd.f32 %v1141, %v1079
    %v1143 = vadd.f32 %v1142, %v1080
    %v1144 = vadd.f32 %v1143, %v1081
    %v1145 = vadd.f32 %v1144, %v1082
    %v1146 = vadd.f32 %v1145, %v1083
    %v1147 = vadd.f32 %v1146, %v1084
    %v1148 = vadd.f32 %v1147, %v1085
    %v1149 = vadd.f32 %v1148, %v1086
    %v1150 = vadd.f32 %v1149, %v1087
    %v1151 = vadd.f32 %v1150, %v1088
    %v1152 = vadd.f32 %v1151, %v1089
    %v1153 = vadd.f32 %v1152, %v1090
    %v1154 = vadd.f32 %v1153, %v1091
    %v1155 = vadd.f32 %v1154, %v1092
    %v1156 = vadd.f32 %v1155, %v1093
    %v1157 = vadd.f32 %v1156, %v1094
    %v1158 = vadd.f32 %v1157, %v1095
    %v1159 = vadd.f32 %v1158, %v1096
    %v1160 = vadd.f32 %v1159, %v1097
    %v1161 = vadd.f32 %v1160, %v1098
    %v1162 = vadd.f32 %v1161, %v1099
    %v1163 = vadd.f32 %v1162, %v1100
    %v1164 = vadd.f32 %v1163, %v1101
    %v1165 = vadd.f32 %v1164, %v1102
    %v1166 = vadd.f32 %v1165, %v1103
    %v1167 = vadd.f32 %v1166, %v1104
    %v1168 = vadd.f32 %v1167, %v1105
    %v1169 = vadd.f32 %v1168, %v1106
    %v1170 = vadd.f32 %v1169, %v1107
    %v1171 = vadd.f32 %v1170, %v1108
    %v1172 = vrot.slane %v1171, 4
    %v1173 = vadd.f32 %v1171, %v1172
    %v1174 = vrot.slane %v1173, 2
    %v1175 = vadd.f32 %v1173, %v1174
    %v1176 = vrot.slane %v1175, 1
    %v1177 = vadd.f32 %v1175, %v1176
    %1178 = vmatprep.subr.mxu0 0.0
    %1179 = vmatpush1.msra.mxu0 %v890
    %1180 = vmatprep.subr.mxu0 0.0
    %1181 = vmatpush1.msra.mxu0 %v891
    %1182 = vmatprep.subr.mxu0 0.0
    %1183 = vmatpush1.msra.mxu0 %v892
    %1184 = vmatprep.subr.mxu0 0.0
    %1185 = vmatpush1.msra.mxu0 %v893
    %1186 = vmatprep.subr.mxu0 0.0
    %1187 = vmatpush1.msra.mxu0 %v894
    %1188 = vmatprep.subr.mxu0 0.0
    %1189 = vmatpush1.msra.mxu0 %v895
    %1190 = vmatprep.subr.mxu0 0.0
    %1191 = vmatpush1.msra.mxu0 %v896
    %1192 = vmatprep.subr.mxu0 0.0
    %1193 = vmatpush1.msra.mxu0 %v897
    %1194 = vmatprep.subr.mxu0 0.0
    %1195 = vmatpush1.msra.mxu0 %v898
    %1196 = vmatprep.subr.mxu0 0.0
    %1197 = vmatpush1.msra.mxu0 %v899
    %1198 = vmatprep.subr.mxu0 0.0
    %1199 = vmatpush1.msra.mxu0 %v900
    %1200 = vmatprep.subr.mxu0 0.0
    %1201 = vmatpush1.msra.mxu0 %v901
    %1202 = vmatprep.subr.mxu0 0.0
    %1203 = vmatpush1.msra.mxu0 %v902
    %1204 = vmatprep.subr.mxu0 0.0
    %1205 = vmatpush1.msra.mxu0 %v903
    %1206 = vmatprep.subr.mxu0 0.0
    %1207 = vmatpush1.msra.mxu0 %v904
    %1208 = vmatprep.subr.mxu0 0.0
    %1209 = vmatpush1.msra.mxu0 %v905
    %1210 = vmatprep.subr.mxu0 0.0
    %1211 = vmatpush1.msra.mxu0 0.0
    %1212 = vmatprep.subr.mxu0 0.0
    %1213 = vmatpush1.msra.mxu0 0.0
    %1214 = vmatprep.subr.mxu0 0.0
    %1215 = vmatpush1.msra.mxu0 0.0
    %1216 = vmatprep.subr.mxu0 0.0
    %1217 = vmatpush1.msra.mxu0 0.0
    %1218 = vmatprep.subr.mxu0 0.0
    %1219 = vmatpush1.msra.mxu0 0.0
    %1220 = vmatprep.subr.mxu0 0.0
    %1221 = vmatpush1.msra.mxu0 0.0
    %1222 = vmatprep.subr.mxu0 0.0
    %1223 = vmatpush1.msra.mxu0 0.0
    %1224 = vmatprep.subr.mxu0 0.0
    %1225 = vmatpush1.msra.mxu0 0.0
    %1226 = vmatprep.subr.mxu0 0.0
    %1227 = vmatpush1.msra.mxu0 0.0
    %1228 = vmatprep.subr.mxu0 0.0
    %1229 = vmatpush1.msra.mxu0 0.0
    %1230 = vmatprep.subr.mxu0 0.0
    %1231 = vmatpush1.msra.mxu0 0.0
    %1232 = vmatprep.subr.mxu0 0.0
    %1233 = vmatpush1.msra.mxu0 0.0
    %1234 = vmatprep.subr.mxu0 0.0
    %1235 = vmatpush1.msra.mxu0 0.0
    %1236 = vmatprep.subr.mxu0 0.0
    %1237 = vmatpush1.msra.mxu0 0.0
    %1238 = vmatprep.subr.mxu0 0.0
    %1239 = vmatpush1.msra.mxu0 0.0
    %1240 = vmatprep.subr.mxu0 0.0
    %1241 = vmatpush1.msra.mxu0 0.0
    %1242 = vmatprep.mubr.f32.mxu0 0.0
    %1243 = vmatmul.mubr.f32.gmra.mrb[0].mxu0 %v1177
    %v1244 = vpop.f32.mrb[0].mxu0
    %v1245 = vadd.f32 0.0, %v1244
    %v1246 = vpop.f32.mrb[0].mxu0
    %1247 = vdwg.mxu0
    %v1248 = vmul.f32 %v1245, 0.00012207031
    %v1249 = vld [vmem:[%s3] sm:$0x1]
    %v1250 = vadd.f32 %v1248, 1e-05
    %v1251 = vrsqrt.pop %v1250
    %v1252 = vmul.f32 %v1249, %v1251
    %v1253 = vld [vmem:[%s4] sm:$0x1]
    %v1254 = vmul.f32 %v976, %v1252
    %v1255 = vsub.f32 %v1253, %v1254
    %v1257 = vlaneseq
    %v1258 = vshrl.u32 %v1257, 7
    %v1259 = vsub.s32 0, %v1258
    %v1260 = vrot.slane %v1252, %v1259
    %v1262 = vmul.f32 %v503, %v1260
    %v1263 = vmul.f32 %v508, %v1260
    %v1264 = vmul.f32 %v513, %v1260
    %v1265 = vmul.f32 %v518, %v1260
    %v1266 = vmul.f32 %v523, %v1260
    %v1267 = vmul.f32 %v528, %v1260
    %v1268 = vmul.f32 %v533, %v1260
    %v1269 = vmul.f32 %v538, %v1260
    %v1270 = vmul.f32 %v543, %v1260
    %v1271 = vmul.f32 %v548, %v1260
    %v1272 = vmul.f32 %v553, %v1260
    %v1273 = vmul.f32 %v558, %v1260
    %v1274 = vmul.f32 %v563, %v1260
    %v1275 = vmul.f32 %v568, %v1260
    %v1276 = vmul.f32 %v573, %v1260
    %v1277 = vmul.f32 %v578, %v1260
    %v1278 = vmul.f32 %v583, %v1260
    %v1279 = vmul.f32 %v588, %v1260
    %v1280 = vmul.f32 %v593, %v1260
    %v1281 = vmul.f32 %v598, %v1260
    %v1282 = vmul.f32 %v603, %v1260
    %v1283 = vmul.f32 %v608, %v1260
    %v1284 = vmul.f32 %v613, %v1260
    %v1285 = vmul.f32 %v618, %v1260
    %v1286 = vmul.f32 %v623, %v1260
    %v1287 = vmul.f32 %v628, %v1260
    %v1288 = vmul.f32 %v633, %v1260
    %v1289 = vmul.f32 %v638, %v1260
    %v1290 = vmul.f32 %v643, %v1260
    %v1291 = vmul.f32 %v648, %v1260
    %v1292 = vmul.f32 %v653, %v1260
    %v1293 = vmul.f32 %v658, %v1260
    %v1294 = vmul.f32 %v663, %v1260
    %v1295 = vmul.f32 %v668, %v1260
    %v1296 = vmul.f32 %v673, %v1260
    %v1297 = vmul.f32 %v678, %v1260
    %v1298 = vmul.f32 %v683, %v1260
    %v1299 = vmul.f32 %v688, %v1260
    %v1300 = vmul.f32 %v693, %v1260
    %v1301 = vmul.f32 %v698, %v1260
    %v1302 = vmul.f32 %v703, %v1260
    %v1303 = vmul.f32 %v708, %v1260
    %v1304 = vmul.f32 %v713, %v1260
    %v1305 = vmul.f32 %v718, %v1260
    %v1306 = vmul.f32 %v723, %v1260
    %v1307 = vmul.f32 %v728, %v1260
    %v1308 = vmul.f32 %v733, %v1260
    %v1309 = vmul.f32 %v738, %v1260
    %v1310 = vmul.f32 %v743, %v1260
    %v1311 = vmul.f32 %v748, %v1260
    %v1312 = vmul.f32 %v753, %v1260
    %v1313 = vmul.f32 %v758, %v1260
    %v1314 = vmul.f32 %v763, %v1260
    %v1315 = vmul.f32 %v768, %v1260
    %v1316 = vmul.f32 %v773, %v1260
    %v1317 = vmul.f32 %v778, %v1260
    %v1318 = vmul.f32 %v783, %v1260
    %v1319 = vmul.f32 %v788, %v1260
    %v1320 = vmul.f32 %v793, %v1260
    %v1321 = vmul.f32 %v798, %v1260
    %v1322 = vmul.f32 %v803, %v1260
    %v1323 = vmul.f32 %v808, %v1260
    %v1324 = vmul.f32 %v813, %v1260
    %v1325 = vmul.f32 %v818, %v1260
    %v1327 = vlaneseq
    %v1328 = vshrl.u32 %v1327, 7
    %v1329 = vsub.s32 0, %v1328
    %v1330 = vrot.slane %v1255, %v1329
    %v1332 = vadd.f32 %v1262, %v1330
    %v1333 = vadd.f32 %v1263, %v1330
    %v1334 = vadd.f32 %v1264, %v1330
    %v1335 = vadd.f32 %v1265, %v1330
    %v1336 = vadd.f32 %v1266, %v1330
    %v1337 = vadd.f32 %v1267, %v1330
    %v1338 = vadd.f32 %v1268, %v1330
    %v1339 = vadd.f32 %v1269, %v1330
    %v1340 = vadd.f32 %v1270, %v1330
    %v1341 = vadd.f32 %v1271, %v1330
    %v1342 = vadd.f32 %v1272, %v1330
    %v1343 = vadd.f32 %v1273, %v1330
    %v1344 = vadd.f32 %v1274, %v1330
    %v1345 = vadd.f32 %v1275, %v1330
    %v1346 = vadd.f32 %v1276, %v1330
    %v1347 = vadd.f32 %v1277, %v1330
    %v1348 = vadd.f32 %v1278, %v1330
    %v1349 = vadd.f32 %v1279, %v1330
    %v1350 = vadd.f32 %v1280, %v1330
    %v1351 = vadd.f32 %v1281, %v1330
    %v1352 = vadd.f32 %v1282, %v1330
    %v1353 = vadd.f32 %v1283, %v1330
    %v1354 = vadd.f32 %v1284, %v1330
    %v1355 = vadd.f32 %v1285, %v1330
    %v1356 = vadd.f32 %v1286, %v1330
    %v1357 = vadd.f32 %v1287, %v1330
    %v1358 = vadd.f32 %v1288, %v1330
    %v1359 = vadd.f32 %v1289, %v1330
    %v1360 = vadd.f32 %v1290, %v1330
    %v1361 = vadd.f32 %v1291, %v1330
    %v1362 = vadd.f32 %v1292, %v1330
    %v1363 = vadd.f32 %v1293, %v1330
    %v1364 = vadd.f32 %v1294, %v1330
    %v1365 = vadd.f32 %v1295, %v1330
    %v1366 = vadd.f32 %v1296, %v1330
    %v1367 = vadd.f32 %v1297, %v1330
    %v1368 = vadd.f32 %v1298, %v1330
    %v1369 = vadd.f32 %v1299, %v1330
    %v1370 = vadd.f32 %v1300, %v1330
    %v1371 = vadd.f32 %v1301, %v1330
    %v1372 = vadd.f32 %v1302, %v1330
    %v1373 = vadd.f32 %v1303, %v1330
    %v1374 = vadd.f32 %v1304, %v1330
    %v1375 = vadd.f32 %v1305, %v1330
    %v1376 = vadd.f32 %v1306, %v1330
    %v1377 = vadd.f32 %v1307, %v1330
    %v1378 = vadd.f32 %v1308, %v1330
    %v1379 = vadd.f32 %v1309, %v1330
    %v1380 = vadd.f32 %v1310, %v1330
    %v1381 = vadd.f32 %v1311, %v1330
    %v1382 = vadd.f32 %v1312, %v1330
    %v1383 = vadd.f32 %v1313, %v1330
    %v1384 = vadd.f32 %v1314, %v1330
    %v1385 = vadd.f32 %v1315, %v1330
    %v1386 = vadd.f32 %v1316, %v1330
    %v1387 = vadd.f32 %v1317, %v1330
    %v1388 = vadd.f32 %v1318, %v1330
    %v1389 = vadd.f32 %v1319, %v1330
    %v1390 = vadd.f32 %v1320, %v1330
    %v1391 = vadd.f32 %v1321, %v1330
    %v1392 = vadd.f32 %v1322, %v1330
    %v1393 = vadd.f32 %v1323, %v1330
    %v1394 = vadd.f32 %v1324, %v1330
    %v1395 = vadd.f32 %v1325, %v1330
    %v1396 = vmax.f32 %v1332, 0.0
    %v1397 = vmax.f32 %v1333, 0.0
    %v1398 = vmax.f32 %v1334, 0.0
    %v1399 = vmax.f32 %v1335, 0.0
    %v1400 = vmax.f32 %v1336, 0.0
    %v1401 = vmax.f32 %v1337, 0.0
    %v1402 = vmax.f32 %v1338, 0.0
    %v1403 = vmax.f32 %v1339, 0.0
    %v1404 = vmax.f32 %v1340, 0.0
    %v1405 = vmax.f32 %v1341, 0.0
    %v1406 = vmax.f32 %v1342, 0.0
    %v1407 = vmax.f32 %v1343, 0.0
    %v1408 = vmax.f32 %v1344, 0.0
    %v1409 = vmax.f32 %v1345, 0.0
    %v1410 = vmax.f32 %v1346, 0.0
    %v1411 = vmax.f32 %v1347, 0.0
    %v1412 = vmax.f32 %v1348, 0.0
    %v1413 = vmax.f32 %v1349, 0.0
    %v1414 = vmax.f32 %v1350, 0.0
    %v1415 = vmax.f32 %v1351, 0.0
    %v1416 = vmax.f32 %v1352, 0.0
    %v1417 = vmax.f32 %v1353, 0.0
    %v1418 = vmax.f32 %v1354, 0.0
    %v1419 = vmax.f32 %v1355, 0.0
    %v1420 = vmax.f32 %v1356, 0.0
    %v1421 = vmax.f32 %v1357, 0.0
    %v1422 = vmax.f32 %v1358, 0.0
    %v1423 = vmax.f32 %v1359, 0.0
    %v1424 = vmax.f32 %v1360, 0.0
    %v1425 = vmax.f32 %v1361, 0.0
    %v1426 = vmax.f32 %v1362, 0.0
    %v1427 = vmax.f32 %v1363, 0.0
    %v1428 = vmax.f32 %v1364, 0.0
    %v1429 = vmax.f32 %v1365, 0.0
    %v1430 = vmax.f32 %v1366, 0.0
    %v1431 = vmax.f32 %v1367, 0.0
    %v1432 = vmax.f32 %v1368, 0.0
    %v1433 = vmax.f32 %v1369, 0.0
    %v1434 = vmax.f32 %v1370, 0.0
    %v1435 = vmax.f32 %v1371, 0.0
    %v1436 = vmax.f32 %v1372, 0.0
    %v1437 = vmax.f32 %v1373, 0.0
    %v1438 = vmax.f32 %v1374, 0.0
    %v1439 = vmax.f32 %v1375, 0.0
    %v1440 = vmax.f32 %v1376, 0.0
    %v1441 = vmax.f32 %v1377, 0.0
    %v1442 = vmax.f32 %v1378, 0.0
    %v1443 = vmax.f32 %v1379, 0.0
    %v1444 = vmax.f32 %v1380, 0.0
    %v1445 = vmax.f32 %v1381, 0.0
    %v1446 = vmax.f32 %v1382, 0.0
    %v1447 = vmax.f32 %v1383, 0.0
    %v1448 = vmax.f32 %v1384, 0.0
    %v1449 = vmax.f32 %v1385, 0.0
    %v1450 = vmax.f32 %v1386, 0.0
    %v1451 = vmax.f32 %v1387, 0.0
    %v1452 = vmax.f32 %v1388, 0.0
    %v1453 = vmax.f32 %v1389, 0.0
    %v1454 = vmax.f32 %v1390, 0.0
    %v1455 = vmax.f32 %v1391, 0.0
    %v1456 = vmax.f32 %v1392, 0.0
    %v1457 = vmax.f32 %v1393, 0.0
    %v1458 = vmax.f32 %v1394, 0.0
    %v1459 = vmax.f32 %v1395, 0.0
    %v1460 = vld [vmem:[%s5] sm:$0xff]
    %v1461 = vld [vmem:[%s5 + $0x8] sm:$0xff]
    %v1462 = vld [vmem:[%s5 + $0x10] sm:$0xff]
    %v1463 = vld [vmem:[%s5 + $0x18] sm:$0xff]
    %v1464 = vld [vmem:[%s5 + $0x20] sm:$0xff]
    %v1465 = vld [vmem:[%s5 + $0x28] sm:$0xff]
    %v1466 = vld [vmem:[%s5 + $0x30] sm:$0xff]
    %v1467 = vld [vmem:[%s5 + $0x38] sm:$0xff]
    %v1468 = vld [vmem:[%s5 + $0x40] sm:$0xff]
    %v1469 = vld [vmem:[%s5 + $0x48] sm:$0xff]
    %v1470 = vld [vmem:[%s5 + $0x50] sm:$0xff]
    %v1471 = vld [vmem:[%s5 + $0x58] sm:$0xff]
    %v1472 = vld [vmem:[%s5 + $0x60] sm:$0xff]
    %v1473 = vld [vmem:[%s5 + $0x68] sm:$0xff]
    %v1474 = vld [vmem:[%s5 + $0x70] sm:$0xff]
    %v1475 = vld [vmem:[%s5 + $0x78] sm:$0xff]
    %v1476 = vld [vmem:[%s5 + $0x80] sm:$0xff]
    %v1477 = vld [vmem:[%s5 + $0x88] sm:$0xff]
    %v1478 = vld [vmem:[%s5 + $0x90] sm:$0xff]
    %v1479 = vld [vmem:[%s5 + $0x98] sm:$0xff]
    %v1480 = vld [vmem:[%s5 + $0xa0] sm:$0xff]
    %v1481 = vld [vmem:[%s5 + $0xa8] sm:$0xff]
    %v1482 = vld [vmem:[%s5 + $0xb0] sm:$0xff]
    %v1483 = vld [vmem:[%s5 + $0xb8] sm:$0xff]
    %v1484 = vld [vmem:[%s5 + $0xc0] sm:$0xff]
    %v1485 = vld [vmem:[%s5 + $0xc8] sm:$0xff]
    %v1486 = vld [vmem:[%s5 + $0xd0] sm:$0xff]
    %v1487 = vld [vmem:[%s5 + $0xd8] sm:$0xff]
    %v1488 = vld [vmem:[%s5 + $0xe0] sm:$0xff]
    %v1489 = vld [vmem:[%s5 + $0xe8] sm:$0xff]
    %v1490 = vld [vmem:[%s5 + $0xf0] sm:$0xff]
    %v1491 = vld [vmem:[%s5 + $0xf8] sm:$0xff]
    %v1492 = vld [vmem:[%s5 + $0x100] sm:$0xff]
    %v1493 = vld [vmem:[%s5 + $0x108] sm:$0xff]
    %v1494 = vld [vmem:[%s5 + $0x110] sm:$0xff]
    %v1495 = vld [vmem:[%s5 + $0x118] sm:$0xff]
    %v1496 = vld [vmem:[%s5 + $0x120] sm:$0xff]
    %v1497 = vld [vmem:[%s5 + $0x128] sm:$0xff]
    %v1498 = vld [vmem:[%s5 + $0x130] sm:$0xff]
    %v1499 = vld [vmem:[%s5 + $0x138] sm:$0xff]
    %v1500 = vld [vmem:[%s5 + $0x140] sm:$0xff]
    %v1501 = vld [vmem:[%s5 + $0x148] sm:$0xff]
    %v1502 = vld [vmem:[%s5 + $0x150] sm:$0xff]
    %v1503 = vld [vmem:[%s5 + $0x158] sm:$0xff]
    %v1504 = vld [vmem:[%s5 + $0x160] sm:$0xff]
    %v1505 = vld [vmem:[%s5 + $0x168] sm:$0xff]
    %v1506 = vld [vmem:[%s5 + $0x170] sm:$0xff]
    %v1507 = vld [vmem:[%s5 + $0x178] sm:$0xff]
    %v1508 = vld [vmem:[%s5 + $0x180] sm:$0xff]
    %v1509 = vld [vmem:[%s5 + $0x188] sm:$0xff]
    %v1510 = vld [vmem:[%s5 + $0x190] sm:$0xff]
    %v1511 = vld [vmem:[%s5 + $0x198] sm:$0xff]
    %v1512 = vld [vmem:[%s5 + $0x1a0] sm:$0xff]
    %v1513 = vld [vmem:[%s5 + $0x1a8] sm:$0xff]
    %v1514 = vld [vmem:[%s5 + $0x1b0] sm:$0xff]
    %v1515 = vld [vmem:[%s5 + $0x1b8] sm:$0xff]
    %v1516 = vld [vmem:[%s5 + $0x1c0] sm:$0xff]
    %v1517 = vld [vmem:[%s5 + $0x1c8] sm:$0xff]
    %v1518 = vld [vmem:[%s5 + $0x1d0] sm:$0xff]
    %v1519 = vld [vmem:[%s5 + $0x1d8] sm:$0xff]
    %v1520 = vld [vmem:[%s5 + $0x1e0] sm:$0xff]
    %v1521 = vld [vmem:[%s5 + $0x1e8] sm:$0xff]
    %v1522 = vld [vmem:[%s5 + $0x1f0] sm:$0xff]
    %v1523 = vld [vmem:[%s5 + $0x1f8] sm:$0xff]
    %v1524 = vld [vmem:[%s5 + $0x200] sm:$0xff]
    %v1525 = vld [vmem:[%s5 + $0x208] sm:$0xff]
    %v1526 = vld [vmem:[%s5 + $0x210] sm:$0xff]
    %v1527 = vld [vmem:[%s5 + $0x218] sm:$0xff]
    %v1528 = vld [vmem:[%s5 + $0x220] sm:$0xff]
    %v1529 = vld [vmem:[%s5 + $0x228] sm:$0xff]
    %v1530 = vld [vmem:[%s5 + $0x230] sm:$0xff]
    %v1531 = vld [vmem:[%s5 + $0x238] sm:$0xff]
    %v1532 = vld [vmem:[%s5 + $0x240] sm:$0xff]
    %v1533 = vld [vmem:[%s5 + $0x248] sm:$0xff]
    %v1534 = vld [vmem:[%s5 + $0x250] sm:$0xff]
    %v1535 = vld [vmem:[%s5 + $0x258] sm:$0xff]
    %v1536 = vld [vmem:[%s5 + $0x260] sm:$0xff]
    %v1537 = vld [vmem:[%s5 + $0x268] sm:$0xff]
    %v1538 = vld [vmem:[%s5 + $0x270] sm:$0xff]
    %v1539 = vld [vmem:[%s5 + $0x278] sm:$0xff]
    %v1540 = vld [vmem:[%s5 + $0x280] sm:$0xff]
    %v1541 = vld [vmem:[%s5 + $0x288] sm:$0xff]
    %v1542 = vld [vmem:[%s5 + $0x290] sm:$0xff]
    %v1543 = vld [vmem:[%s5 + $0x298] sm:$0xff]
    %v1544 = vld [vmem:[%s5 + $0x2a0] sm:$0xff]
    %v1545 = vld [vmem:[%s5 + $0x2a8] sm:$0xff]
    %v1546 = vld [vmem:[%s5 + $0x2b0] sm:$0xff]
    %v1547 = vld [vmem:[%s5 + $0x2b8] sm:$0xff]
    %v1548 = vld [vmem:[%s5 + $0x2c0] sm:$0xff]
    %v1549 = vld [vmem:[%s5 + $0x2c8] sm:$0xff]
    %v1550 = vld [vmem:[%s5 + $0x2d0] sm:$0xff]
    %v1551 = vld [vmem:[%s5 + $0x2d8] sm:$0xff]
    %v1552 = vld [vmem:[%s5 + $0x2e0] sm:$0xff]
    %v1553 = vld [vmem:[%s5 + $0x2e8] sm:$0xff]
    %v1554 = vld [vmem:[%s5 + $0x2f0] sm:$0xff]
    %v1555 = vld [vmem:[%s5 + $0x2f8] sm:$0xff]
    %v1556 = vld [vmem:[%s5 + $0x300] sm:$0xff]
    %v1557 = vld [vmem:[%s5 + $0x308] sm:$0xff]
    %v1558 = vld [vmem:[%s5 + $0x310] sm:$0xff]
    %v1559 = vld [vmem:[%s5 + $0x318] sm:$0xff]
    %v1560 = vld [vmem:[%s6] sm:$0xff]
    %v1561 = vld [vmem:[%s6 + $0x8] sm:$0xff]
    %v1562 = vld [vmem:[%s6 + $0x10] sm:$0xff]
    %v1563 = vld [vmem:[%s6 + $0x18] sm:$0xff]
    %v1564 = vld [vmem:[%s6 + $0x20] sm:$0xff]
    %v1565 = vld [vmem:[%s6 + $0x28] sm:$0xff]
    %v1566 = vld [vmem:[%s6 + $0x30] sm:$0xff]
    %v1567 = vld [vmem:[%s6 + $0x38] sm:$0xff]
    %v1568 = vld [vmem:[%s6 + $0x40] sm:$0xff]
    %v1569 = vld [vmem:[%s6 + $0x48] sm:$0xff]
    %v1570 = vld [vmem:[%s6 + $0x50] sm:$0xff]
    %v1571 = vld [vmem:[%s6 + $0x58] sm:$0xff]
    %v1572 = vld [vmem:[%s6 + $0x60] sm:$0xff]
    %v1573 = vld [vmem:[%s6 + $0x68] sm:$0xff]
    %v1574 = vld [vmem:[%s6 + $0x70] sm:$0xff]
    %v1575 = vld [vmem:[%s6 + $0x78] sm:$0xff]
    %1576 = vmatprep.subr.mxu0 0.0
    %1577 = vmatpush1.msra.mxu0 %v1560
    %1578 = vmatprep.subr.mxu0 0.0
    %1579 = vmatpush1.msra.mxu0 %v1561
    %1580 = vmatprep.subr.mxu0 0.0
    %1581 = vmatpush1.msra.mxu0 %v1562
    %1582 = vmatprep.subr.mxu0 0.0
    %1583 = vmatpush1.msra.mxu0 %v1563
    %1584 = vmatprep.subr.mxu0 0.0
    %1585 = vmatpush1.msra.mxu0 %v1564
    %1586 = vmatprep.subr.mxu0 0.0
    %1587 = vmatpush1.msra.mxu0 %v1565
    %1588 = vmatprep.subr.mxu0 0.0
    %1589 = vmatpush1.msra.mxu0 %v1566
    %1590 = vmatprep.subr.mxu0 0.0
    %1591 = vmatpush1.msra.mxu0 %v1567
    %1592 = vmatprep.subr.mxu0 0.0
    %1593 = vmatpush1.msra.mxu0 %v1568
    %1594 = vmatprep.subr.mxu0 0.0
    %1595 = vmatpush1.msra.mxu0 %v1569
    %1596 = vmatprep.subr.mxu0 0.0
    %1597 = vmatpush1.msra.mxu0 %v1570
    %1598 = vmatprep.subr.mxu0 0.0
    %1599 = vmatpush1.msra.mxu0 %v1571
    %1600 = vmatprep.subr.mxu0 0.0
    %1601 = vmatpush1.msra.mxu0 %v1572
    %1602 = vmatprep.subr.mxu0 0.0
    %1603 = vmatpush1.msra.mxu0 %v1573
    %1604 = vmatprep.subr.mxu0 0.0
    %1605 = vmatpush1.msra.mxu0 %v1574
    %1606 = vmatprep.subr.mxu0 0.0
    %1607 = vmatpush1.msra.mxu0 %v1575
    %1608 = vmatprep.subr.mxu0 0.0
    %1609 = vmatpush1.msra.mxu0 0.0
    %1610 = vmatprep.subr.mxu0 0.0
    %1611 = vmatpush1.msra.mxu0 0.0
    %1612 = vmatprep.subr.mxu0 0.0
    %1613 = vmatpush1.msra.mxu0 0.0
    %1614 = vmatprep.subr.mxu0 0.0
    %1615 = vmatpush1.msra.mxu0 0.0
    %1616 = vmatprep.subr.mxu0 0.0
    %1617 = vmatpush1.msra.mxu0 0.0
    %1618 = vmatprep.subr.mxu0 0.0
    %1619 = vmatpush1.msra.mxu0 0.0
    %1620 = vmatprep.subr.mxu0 0.0
    %1621 = vmatpush1.msra.mxu0 0.0
    %1622 = vmatprep.subr.mxu0 0.0
    %1623 = vmatpush1.msra.mxu0 0.0
    %1624 = vmatprep.subr.mxu0 0.0
    %1625 = vmatpush1.msra.mxu0 0.0
    %1626 = vmatprep.subr.mxu0 0.0
    %1627 = vmatpush1.msra.mxu0 0.0
    %1628 = vmatprep.subr.mxu0 0.0
    %1629 = vmatpush1.msra.mxu0 0.0
    %1630 = vmatprep.subr.mxu0 0.0
    %1631 = vmatpush1.msra.mxu0 0.0
    %1632 = vmatprep.subr.mxu0 0.0
    %1633 = vmatpush1.msra.mxu0 0.0
    %1634 = vmatprep.subr.mxu0 0.0
    %1635 = vmatpush1.msra.mxu0 0.0
    %1636 = vmatprep.subr.mxu0 0.0
    %1637 = vmatpush1.msra.mxu0 0.0
    %1638 = vmatprep.subr.mxu0 0.0
    %1639 = vmatpush1.msra.mxu0 0.0
    %1640 = vmatprep.mubr.f32.mxu0 0.0
    %1641 = vmatmul.mubr.f32.gmra.mrb[0].mxu0 %v1396
    %v1642 = vpop.f32.mrb[0].mxu0
    %v1643 = vadd.f32 0.0, %v1642
    %v1644 = vpop.f32.mrb[0].mxu0
    %1645 = vmatprep.mubr.f32.mxu0 0.0
    %1646 = vmatmul.mubr.f32.gmra.mrb[0].mxu0 %v1397
    %v1647 = vpop.f32.mrb[0].mxu0
    %v1648 = vadd.f32 0.0, %v1647
    %v1649 = vpop.f32.mrb[0].mxu0
    %1650 = vmatprep.mubr.f32.mxu0 0.0
    %1651 = vmatmul.mubr.f32.gmra.mrb[0].mxu0 %v1398
    %v1652 = vpop.f32.mrb[0].mxu0
    %v1653 = vadd.f32 0.0, %v1652
    %v1654 = vpop.f32.mrb[0].mxu0
    %1655 = vmatprep.mubr.f32.mxu0 0.0
    %1656 = vmatmul.mubr.f32.gmra.mrb[0].mxu0 %v1399
    %v1657 = vpop.f32.mrb[0].mxu0
    %v1658 = vadd.f32 0.0, %v1657
    %v1659 = vpop.f32.mrb[0].mxu0
    %1660 = vmatprep.mubr.f32.mxu0 0.0
    %1661 = vmatmul.mubr.f32.gmra.mrb[0].mxu0 %v1400
    %v1662 = vpop.f32.mrb[0].mxu0
    %v1663 = vadd.f32 0.0, %v1662
    %v1664 = vpop.f32.mrb[0].mxu0
    %1665 = vmatprep.mubr.f32.mxu0 0.0
    %1666 = vmatmul.mubr.f32.gmra.mrb[0].mxu0 %v1401
    %v1667 = vpop.f32.mrb[0].mxu0
    %v1668 = vadd.f32 0.0, %v1667
    %v1669 = vpop.f32.mrb[0].mxu0
    %1670 = vmatprep.mubr.f32.mxu0 0.0
    %1671 = vmatmul.mubr.f32.gmra.mrb[0].mxu0 %v1402
    %v1672 = vpop.f32.mrb[0].mxu0
    %v1673 = vadd.f32 0.0, %v1672
    %v1674 = vpop.f32.mrb[0].mxu0
    %1675 = vmatprep.mubr.f32.mxu0 0.0
    %1676 = vmatmul.mubr.f32.gmra.mrb[0].mxu0 %v1403
    %v1677 = vpop.f32.mrb[0].mxu0
    %v1678 = vadd.f32 0.0, %v1677
    %v1679 = vpop.f32.mrb[0].mxu0
    %1680 = vmatprep.mubr.f32.mxu0 0.0
    %1681 = vmatmul.mubr.f32.gmra.mrb[0].mxu0 %v1404
    %v1682 = vpop.f32.mrb[0].mxu0
    %v1683 = vadd.f32 0.0, %v1682
    %v1684 = vpop.f32.mrb[0].mxu0
    %1685 = vmatprep.mubr.f32.mxu0 0.0
    %1686 = vmatmul.mubr.f32.gmra.mrb[0].mxu0 %v1405
    %v1687 = vpop.f32.mrb[0].mxu0
    %v1688 = vadd.f32 0.0, %v1687
    %v1689 = vpop.f32.mrb[0].mxu0
    %1690 = vmatprep.mubr.f32.mxu0 0.0
    %1691 = vmatmul.mubr.f32.gmra.mrb[0].mxu0 %v1406
    %v1692 = vpop.f32.mrb[0].mxu0
    %v1693 = vadd.f32 0.0, %v1692
    %v1694 = vpop.f32.mrb[0].mxu0
    %1695 = vmatprep.mubr.f32.mxu0 0.0
    %1696 = vmatmul.mubr.f32.gmra.mrb[0].mxu0 %v1407
    %v1697 = vpop.f32.mrb[0].mxu0
    %v1698 = vadd.f32 0.0, %v1697
    %v1699 = vpop.f32.mrb[0].mxu0
    %1700 = vmatprep.mubr.f32.mxu0 0.0
    %1701 = vmatmul.mubr.f32.gmra.mrb[0].mxu0 %v1408
    %v1702 = vpop.f32.mrb[0].mxu0
    %v1703 = vadd.f32 0.0, %v1702
    %v1704 = vpop.f32.mrb[0].mxu0
    %1705 = vmatprep.mubr.f32.mxu0 0.0
    %1706 = vmatmul.mubr.f32.gmra.mrb[0].mxu0 %v1409
    %v1707 = vpop.f32.mrb[0].mxu0
    %v1708 = vadd.f32 0.0, %v1707
    %v1709 = vpop.f32.mrb[0].mxu0
    %1710 = vmatprep.mubr.f32.mxu0 0.0
    %1711 = vmatmul.mubr.f32.gmra.mrb[0].mxu0 %v1410
    %v1712 = vpop.f32.mrb[0].mxu0
    %v1713 = vadd.f32 0.0, %v1712
    %v1714 = vpop.f32.mrb[0].mxu0
    %1715 = vmatprep.mubr.f32.mxu0 0.0
    %1716 = vmatmul.mubr.f32.gmra.mrb[0].mxu0 %v1411
    %v1717 = vpop.f32.mrb[0].mxu0
    %v1718 = vadd.f32 0.0, %v1717
    %v1719 = vpop.f32.mrb[0].mxu0
    %1720 = vmatprep.mubr.f32.mxu0 0.0
    %1721 = vmatmul.mubr.f32.gmra.mrb[0].mxu0 %v1412
    %v1722 = vpop.f32.mrb[0].mxu0
    %v1723 = vadd.f32 0.0, %v1722
    %v1724 = vpop.f32.mrb[0].mxu0
    %1725 = vmatprep.mubr.f32.mxu0 0.0
    %1726 = vmatmul.mubr.f32.gmra.mrb[0].mxu0 %v1413
    %v1727 = vpop.f32.mrb[0].mxu0
    %v1728 = vadd.f32 0.0, %v1727
    %v1729 = vpop.f32.mrb[0].mxu0
    %1730 = vmatprep.mubr.f32.mxu0 0.0
    %1731 = vmatmul.mubr.f32.gmra.mrb[0].mxu0 %v1414
    %v1732 = vpop.f32.mrb[0].mxu0
    %v1733 = vadd.f32 0.0, %v1732
    %v1734 = vpop.f32.mrb[0].mxu0
    %1735 = vmatprep.mubr.f32.mxu0 0.0
    %1736 = vmatmul.mubr.f32.gmra.mrb[0].mxu0 %v1415
    %v1737 = vpop.f32.mrb[0].mxu0
    %v1738 = vadd.f32 0.0, %v1737
    %v1739 = vpop.f32.mrb[0].mxu0
    %1740 = vmatprep.mubr.f32.mxu0 0.0
    %1741 = vmatmul.mubr.f32.gmra.mrb[0].mxu0 %v1416
    %v1742 = vpop.f32.mrb[0].mxu0
    %v1743 = vadd.f32 0.0, %v1742
    %v1744 = vpop.f32.mrb[0].mxu0
    %1745 = vmatprep.mubr.f32.mxu0 0.0
    %1746 = vmatmul.mubr.f32.gmra.mrb[0].mxu0 %v1417
    %v1747 = vpop.f32.mrb[0].mxu0
    %v1748 = vadd.f32 0.0, %v1747
    %v1749 = vpop.f32.mrb[0].mxu0
    %1750 = vmatprep.mubr.f32.mxu0 0.0
    %1751 = vmatmul.mubr.f32.gmra.mrb[0].mxu0 %v1418
    %v1752 = vpop.f32.mrb[0].mxu0
    %v1753 = vadd.f32 0.0, %v1752
    %v1754 = vpop.f32.mrb[0].mxu0
    %1755 = vmatprep.mubr.f32.mxu0 0.0
    %1756 = vmatmul.mubr.f32.gmra.mrb[0].mxu0 %v1419
    %v1757 = vpop.f32.mrb[0].mxu0
    %v1758 = vadd.f32 0.0, %v1757
    %v1759 = vpop.f32.mrb[0].mxu0
    %1760 = vmatprep.mubr.f32.mxu0 0.0
    %1761 = vmatmul.mubr.f32.gmra.mrb[0].mxu0 %v1420
    %v1762 = vpop.f32.mrb[0].mxu0
    %v1763 = vadd.f32 0.0, %v1762
    %v1764 = vpop.f32.mrb[0].mxu0
    %1765 = vmatprep.mubr.f32.mxu0 0.0
    %1766 = vmatmul.mubr.f32.gmra.mrb[0].mxu0 %v1421
    %v1767 = vpop.f32.mrb[0].mxu0
    %v1768 = vadd.f32 0.0, %v1767
    %v1769 = vpop.f32.mrb[0].mxu0
    %1770 = vmatprep.mubr.f32.mxu0 0.0
    %1771 = vmatmul.mubr.f32.gmra.mrb[0].mxu0 %v1422
    %v1772 = vpop.f32.mrb[0].mxu0
    %v1773 = vadd.f32 0.0, %v1772
    %v1774 = vpop.f32.mrb[0].mxu0
    %1775 = vmatprep.mubr.f32.mxu0 0.0
    %1776 = vmatmul.mubr.f32.gmra.mrb[0].mxu0 %v1423
    %v1777 = vpop.f32.mrb[0].mxu0
    %v1778 = vadd.f32 0.0, %v1777
    %v1779 = vpop.f32.mrb[0].mxu0
    %1780 = vmatprep.mubr.f32.mxu0 0.0
    %1781 = vmatmul.mubr.f32.gmra.mrb[0].mxu0 %v1424
    %v1782 = vpop.f32.mrb[0].mxu0
    %v1783 = vadd.f32 0.0, %v1782
    %v1784 = vpop.f32.mrb[0].mxu0
    %1785 = vmatprep.mubr.f32.mxu0 0.0
    %1786 = vmatmul.mubr.f32.gmra.mrb[0].mxu0 %v1425
    %v1787 = vpop.f32.mrb[0].mxu0
    %v1788 = vadd.f32 0.0, %v1787
    %v1789 = vpop.f32.mrb[0].mxu0
    %1790 = vmatprep.mubr.f32.mxu0 0.0
    %1791 = vmatmul.mubr.f32.gmra.mrb[0].mxu0 %v1426
    %v1792 = vpop.f32.mrb[0].mxu0
    %v1793 = vadd.f32 0.0, %v1792
    %v1794 = vpop.f32.mrb[0].mxu0
    %1795 = vmatprep.mubr.f32.mxu0 0.0
    %1796 = vmatmul.mubr.f32.gmra.mrb[0].mxu0 %v1427
    %v1797 = vpop.f32.mrb[0].mxu0
    %v1798 = vadd.f32 0.0, %v1797
    %v1799 = vpop.f32.mrb[0].mxu0
    %1800 = vmatprep.mubr.f32.mxu0 0.0
    %1801 = vmatmul.mubr.f32.gmra.mrb[0].mxu0 %v1428
    %v1802 = vpop.f32.mrb[0].mxu0
    %v1803 = vadd.f32 0.0, %v1802
    %v1804 = vpop.f32.mrb[0].mxu0
    %1805 = vmatprep.mubr.f32.mxu0 0.0
    %1806 = vmatmul.mubr.f32.gmra.mrb[0].mxu0 %v1429
    %v1807 = vpop.f32.mrb[0].mxu0
    %v1808 = vadd.f32 0.0, %v1807
    %v1809 = vpop.f32.mrb[0].mxu0
    %1810 = vmatprep.mubr.f32.mxu0 0.0
    %1811 = vmatmul.mubr.f32.gmra.mrb[0].mxu0 %v1430
    %v1812 = vpop.f32.mrb[0].mxu0
    %v1813 = vadd.f32 0.0, %v1812
    %v1814 = vpop.f32.mrb[0].mxu0
    %1815 = vmatprep.mubr.f32.mxu0 0.0
    %1816 = vmatmul.mubr.f32.gmra.mrb[0].mxu0 %v1431
    %v1817 = vpop.f32.mrb[0].mxu0
    %v1818 = vadd.f32 0.0, %v1817
    %v1819 = vpop.f32.mrb[0].mxu0
    %1820 = vmatprep.mubr.f32.mxu0 0.0
    %1821 = vmatmul.mubr.f32.gmra.mrb[0].mxu0 %v1432
    %v1822 = vpop.f32.mrb[0].mxu0
    %v1823 = vadd.f32 0.0, %v1822
    %v1824 = vpop.f32.mrb[0].mxu0
    %1825 = vmatprep.mubr.f32.mxu0 0.0
    %1826 = vmatmul.mubr.f32.gmra.mrb[0].mxu0 %v1433
    %v1827 = vpop.f32.mrb[0].mxu0
    %v1828 = vadd.f32 0.0, %v1827
    %v1829 = vpop.f32.mrb[0].mxu0
    %1830 = vmatprep.mubr.f32.mxu0 0.0
    %1831 = vmatmul.mubr.f32.gmra.mrb[0].mxu0 %v1434
    %v1832 = vpop.f32.mrb[0].mxu0
    %v1833 = vadd.f32 0.0, %v1832
    %v1834 = vpop.f32.mrb[0].mxu0
    %1835 = vmatprep.mubr.f32.mxu0 0.0
    %1836 = vmatmul.mubr.f32.gmra.mrb[0].mxu0 %v1435
    %v1837 = vpop.f32.mrb[0].mxu0
    %v1838 = vadd.f32 0.0, %v1837
    %v1839 = vpop.f32.mrb[0].mxu0
    %1840 = vmatprep.mubr.f32.mxu0 0.0
    %1841 = vmatmul.mubr.f32.gmra.mrb[0].mxu0 %v1436
    %v1842 = vpop.f32.mrb[0].mxu0
    %v1843 = vadd.f32 0.0, %v1842
    %v1844 = vpop.f32.mrb[0].mxu0
    %1845 = vmatprep.mubr.f32.mxu0 0.0
    %1846 = vmatmul.mubr.f32.gmra.mrb[0].mxu0 %v1437
    %v1847 = vpop.f32.mrb[0].mxu0
    %v1848 = vadd.f32 0.0, %v1847
    %v1849 = vpop.f32.mrb[0].mxu0
    %1850 = vmatprep.mubr.f32.mxu0 0.0
    %1851 = vmatmul.mubr.f32.gmra.mrb[0].mxu0 %v1438
    %v1852 = vpop.f32.mrb[0].mxu0
    %v1853 = vadd.f32 0.0, %v1852
    %v1854 = vpop.f32.mrb[0].mxu0
    %1855 = vmatprep.mubr.f32.mxu0 0.0
    %1856 = vmatmul.mubr.f32.gmra.mrb[0].mxu0 %v1439
    %v1857 = vpop.f32.mrb[0].mxu0
    %v1858 = vadd.f32 0.0, %v1857
    %v1859 = vpop.f32.mrb[0].mxu0
    %1860 = vmatprep.mubr.f32.mxu0 0.0
    %1861 = vmatmul.mubr.f32.gmra.mrb[0].mxu0 %v1440
    %v1862 = vpop.f32.mrb[0].mxu0
    %v1863 = vadd.f32 0.0, %v1862
    %v1864 = vpop.f32.mrb[0].mxu0
    %1865 = vmatprep.mubr.f32.mxu0 0.0
    %1866 = vmatmul.mubr.f32.gmra.mrb[0].mxu0 %v1441
    %v1867 = vpop.f32.mrb[0].mxu0
    %v1868 = vadd.f32 0.0, %v1867
    %v1869 = vpop.f32.mrb[0].mxu0
    %1870 = vmatprep.mubr.f32.mxu0 0.0
    %1871 = vmatmul.mubr.f32.gmra.mrb[0].mxu0 %v1442
    %v1872 = vpop.f32.mrb[0].mxu0
    %v1873 = vadd.f32 0.0, %v1872
    %v1874 = vpop.f32.mrb[0].mxu0
    %1875 = vmatprep.mubr.f32.mxu0 0.0
    %1876 = vmatmul.mubr.f32.gmra.mrb[0].mxu0 %v1443
    %v1877 = vpop.f32.mrb[0].mxu0
    %v1878 = vadd.f32 0.0, %v1877
    %v1879 = vpop.f32.mrb[0].mxu0
    %1880 = vmatprep.mubr.f32.mxu0 0.0
    %1881 = vmatmul.mubr.f32.gmra.mrb[0].mxu0 %v1444
    %v1882 = vpop.f32.mrb[0].mxu0
    %v1883 = vadd.f32 0.0, %v1882
    %v1884 = vpop.f32.mrb[0].mxu0
    %1885 = vmatprep.mubr.f32.mxu0 0.0
    %1886 = vmatmul.mubr.f32.gmra.mrb[0].mxu0 %v1445
    %v1887 = vpop.f32.mrb[0].mxu0
    %v1888 = vadd.f32 0.0, %v1887
    %v1889 = vpop.f32.mrb[0].mxu0
    %1890 = vmatprep.mubr.f32.mxu0 0.0
    %1891 = vmatmul.mubr.f32.gmra.mrb[0].mxu0 %v1446
    %v1892 = vpop.f32.mrb[0].mxu0
    %v1893 = vadd.f32 0.0, %v1892
    %v1894 = vpop.f32.mrb[0].mxu0
    %1895 = vmatprep.mubr.f32.mxu0 0.0
    %1896 = vmatmul.mubr.f32.gmra.mrb[0].mxu0 %v1447
    %v1897 = vpop.f32.mrb[0].mxu0
    %v1898 = vadd.f32 0.0, %v1897
    %v1899 = vpop.f32.mrb[0].mxu0
    %1900 = vmatprep.mubr.f32.mxu0 0.0
    %1901 = vmatmul.mubr.f32.gmra.mrb[0].mxu0 %v1448
    %v1902 = vpop.f32.mrb[0].mxu0
    %v1903 = vadd.f32 0.0, %v1902
    %v1904 = vpop.f32.mrb[0].mxu0
    %1905 = vmatprep.mubr.f32.mxu0 0.0
    %1906 = vmatmul.mubr.f32.gmra.mrb[0].mxu0 %v1449
    %v1907 = vpop.f32.mrb[0].mxu0
    %v1908 = vadd.f32 0.0, %v1907
    %v1909 = vpop.f32.mrb[0].mxu0
    %1910 = vmatprep.mubr.f32.mxu0 0.0
    %1911 = vmatmul.mubr.f32.gmra.mrb[0].mxu0 %v1450
    %v1912 = vpop.f32.mrb[0].mxu0
    %v1913 = vadd.f32 0.0, %v1912
    %v1914 = vpop.f32.mrb[0].mxu0
    %1915 = vmatprep.mubr.f32.mxu0 0.0
    %1916 = vmatmul.mubr.f32.gmra.mrb[0].mxu0 %v1451
    %v1917 = vpop.f32.mrb[0].mxu0
    %v1918 = vadd.f32 0.0, %v1917
    %v1919 = vpop.f32.mrb[0].mxu0
    %1920 = vmatprep.mubr.f32.mxu0 0.0
    %1921 = vmatmul.mubr.f32.gmra.mrb[0].mxu0 %v1452
    %v1922 = vpop.f32.mrb[0].mxu0
    %v1923 = vadd.f32 0.0, %v1922
    %v1924 = vpop.f32.mrb[0].mxu0
    %1925 = vmatprep.mubr.f32.mxu0 0.0
    %1926 = vmatmul.mubr.f32.gmra.mrb[0].mxu0 %v1453
    %v1927 = vpop.f32.mrb[0].mxu0
    %v1928 = vadd.f32 0.0, %v1927
    %v1929 = vpop.f32.mrb[0].mxu0
    %1930 = vmatprep.mubr.f32.mxu0 0.0
    %1931 = vmatmul.mubr.f32.gmra.mrb[0].mxu0 %v1454
    %v1932 = vpop.f32.mrb[0].mxu0
    %v1933 = vadd.f32 0.0, %v1932
    %v1934 = vpop.f32.mrb[0].mxu0
    %1935 = vmatprep.mubr.f32.mxu0 0.0
    %1936 = vmatmul.mubr.f32.gmra.mrb[0].mxu0 %v1455
    %v1937 = vpop.f32.mrb[0].mxu0
    %v1938 = vadd.f32 0.0, %v1937
    %v1939 = vpop.f32.mrb[0].mxu0
    %1940 = vmatprep.mubr.f32.mxu0 0.0
    %1941 = vmatmul.mubr.f32.gmra.mrb[0].mxu0 %v1456
    %v1942 = vpop.f32.mrb[0].mxu0
    %v1943 = vadd.f32 0.0, %v1942
    %v1944 = vpop.f32.mrb[0].mxu0
    %1945 = vmatprep.mubr.f32.mxu0 0.0
    %1946 = vmatmul.mubr.f32.gmra.mrb[0].mxu0 %v1457
    %v1947 = vpop.f32.mrb[0].mxu0
    %v1948 = vadd.f32 0.0, %v1947
    %v1949 = vpop.f32.mrb[0].mxu0
    %1950 = vmatprep.mubr.f32.mxu0 0.0
    %1951 = vmatmul.mubr.f32.gmra.mrb[0].mxu0 %v1458
    %v1952 = vpop.f32.mrb[0].mxu0
    %v1953 = vadd.f32 0.0, %v1952
    %v1954 = vpop.f32.mrb[0].mxu0
    %1955 = vmatprep.mubr.f32.mxu0 0.0
    %1956 = vmatmul.mubr.f32.gmra.mrb[0].mxu0 %v1459
    %v1957 = vpop.f32.mrb[0].mxu0
    %v1958 = vadd.f32 0.0, %v1957
    %v1959 = vpop.f32.mrb[0].mxu0
    %1960 = vdwg.mxu0
    %1961 = vmatprep.subr.mxu0 0.0
    %1962 = vmatpush1.msra.mxu0 %v1643
    %1963 = vmatprep.subr.mxu0 0.0
    %1964 = vmatpush1.msra.mxu0 %v1648
    %1965 = vmatprep.subr.mxu0 0.0
    %1966 = vmatpush1.msra.mxu0 %v1653
    %1967 = vmatprep.subr.mxu0 0.0
    %1968 = vmatpush1.msra.mxu0 %v1658
    %1969 = vmatprep.subr.mxu0 0.0
    %1970 = vmatpush1.msra.mxu0 %v1663
    %1971 = vmatprep.subr.mxu0 0.0
    %1972 = vmatpush1.msra.mxu0 %v1668
    %1973 = vmatprep.subr.mxu0 0.0
    %1974 = vmatpush1.msra.mxu0 %v1673
    %1975 = vmatprep.subr.mxu0 0.0
    %1976 = vmatpush1.msra.mxu0 %v1678
    %1977 = vmatprep.subr.mxu0 0.0
    %1978 = vmatpush1.msra.mxu0 %v1683
    %1979 = vmatprep.subr.mxu0 0.0
    %1980 = vmatpush1.msra.mxu0 %v1688
    %1981 = vmatprep.subr.mxu0 0.0
    %1982 = vmatpush1.msra.mxu0 %v1693
    %1983 = vmatprep.subr.mxu0 0.0
    %1984 = vmatpush1.msra.mxu0 %v1698
    %1985 = vmatprep.subr.mxu0 0.0
    %1986 = vmatpush1.msra.mxu0 %v1703
    %1987 = vmatprep.subr.mxu0 0.0
    %1988 = vmatpush1.msra.mxu0 %v1708
    %1989 = vmatprep.subr.mxu0 0.0
    %1990 = vmatpush1.msra.mxu0 %v1713
    %1991 = vmatprep.subr.mxu0 0.0
    %1992 = vmatpush1.msra.mxu0 %v1718
    %1993 = vmatprep.subr.mxu0 0.0
    %1994 = vmatpush1.msra.mxu0 %v1723
    %1995 = vmatprep.subr.mxu0 0.0
    %1996 = vmatpush1.msra.mxu0 %v1728
    %1997 = vmatprep.subr.mxu0 0.0
    %1998 = vmatpush1.msra.mxu0 %v1733
    %1999 = vmatprep.subr.mxu0 0.0
    %2000 = vmatpush1.msra.mxu0 %v1738
    %2001 = vmatprep.subr.mxu0 0.0
    %2002 = vmatpush1.msra.mxu0 %v1743
    %2003 = vmatprep.subr.mxu0 0.0
    %2004 = vmatpush1.msra.mxu0 %v1748
    %2005 = vmatprep.subr.mxu0 0.0
    %2006 = vmatpush1.msra.mxu0 %v1753
    %2007 = vmatprep.subr.mxu0 0.0
    %2008 = vmatpush1.msra.mxu0 %v1758
    %2009 = vmatprep.subr.mxu0 0.0
    %2010 = vmatpush1.msra.mxu0 %v1763
    %2011 = vmatprep.subr.mxu0 0.0
    %2012 = vmatpush1.msra.mxu0 %v1768
    %2013 = vmatprep.subr.mxu0 0.0
    %2014 = vmatpush1.msra.mxu0 %v1773
    %2015 = vmatprep.subr.mxu0 0.0
    %2016 = vmatpush1.msra.mxu0 %v1778
    %2017 = vmatprep.subr.mxu0 0.0
    %2018 = vmatpush1.msra.mxu0 %v1783
    %2019 = vmatprep.subr.mxu0 0.0
    %2020 = vmatpush1.msra.mxu0 %v1788
    %2021 = vmatprep.subr.mxu0 0.0
    %2022 = vmatpush1.msra.mxu0 %v1793
    %2023 = vmatprep.subr.mxu0 0.0
    %2024 = vmatpush1.msra.mxu0 %v1798
    %2025 = vmatprep.mubr.f32.mxu0 %v1461
    %2026 = vmatmul.mubr.f32.gmra.mrb[0].mxu0 %v1460
    %v2027 = vpop.f32.mrb[0].mxu0
    %v2028 = vadd.f32 0.0, %v2027
    %v2029 = vpop.f32.mrb[0].mxu0
    %2030 = vmatprep.mubr.f32.mxu0 %v1465
    %2031 = vmatmul.mubr.f32.gmra.mrb[0].mxu0 %v1464
    %v2032 = vpop.f32.mrb[0].mxu0
    %v2033 = vadd.f32 0.0, %v2032
    %v2034 = vpop.f32.mrb[0].mxu0
    %2035 = vmatprep.mubr.f32.mxu0 %v1469
    %2036 = vmatmul.mubr.f32.gmra.mrb[0].mxu0 %v1468
    %v2037 = vpop.f32.mrb[0].mxu0
    %v2038 = vadd.f32 0.0, %v2037
    %v2039 = vpop.f32.mrb[0].mxu0
    %2040 = vmatprep.mubr.f32.mxu0 %v1473
    %2041 = vmatmul.mubr.f32.gmra.mrb[0].mxu0 %v1472
    %v2042 = vpop.f32.mrb[0].mxu0
    %v2043 = vadd.f32 0.0, %v2042
    %v2044 = vpop.f32.mrb[0].mxu0
    %2045 = vmatprep.mubr.f32.mxu0 %v1477
    %2046 = vmatmul.mubr.f32.gmra.mrb[0].mxu0 %v1476
    %v2047 = vpop.f32.mrb[0].mxu0
    %v2048 = vadd.f32 0.0, %v2047
    %v2049 = vpop.f32.mrb[0].mxu0
    %2050 = vmatprep.mubr.f32.mxu0 %v1481
    %2051 = vmatmul.mubr.f32.gmra.mrb[0].mxu0 %v1480
    %v2052 = vpop.f32.mrb[0].mxu0
    %v2053 = vadd.f32 0.0, %v2052
    %v2054 = vpop.f32.mrb[0].mxu0
    %2055 = vmatprep.mubr.f32.mxu0 %v1485
    %2056 = vmatmul.mubr.f32.gmra.mrb[0].mxu0 %v1484
    %v2057 = vpop.f32.mrb[0].mxu0
    %v2058 = vadd.f32 0.0, %v2057
    %v2059 = vpop.f32.mrb[0].mxu0
    %2060 = vmatprep.mubr.f32.mxu0 %v1489
    %2061 = vmatmul.mubr.f32.gmra.mrb[0].mxu0 %v1488
    %v2062 = vpop.f32.mrb[0].mxu0
    %v2063 = vadd.f32 0.0, %v2062
    %v2064 = vpop.f32.mrb[0].mxu0
    %2065 = vmatprep.mubr.f32.mxu0 %v1493
    %2066 = vmatmul.mubr.f32.gmra.mrb[0].mxu0 %v1492
    %v2067 = vpop.f32.mrb[0].mxu0
    %v2068 = vadd.f32 0.0, %v2067
    %v2069 = vpop.f32.mrb[0].mxu0
    %2070 = vmatprep.mubr.f32.mxu0 %v1497
    %2071 = vmatmul.mubr.f32.gmra.mrb[0].mxu0 %v1496
    %v2072 = vpop.f32.mrb[0].mxu0
    %v2073 = vadd.f32 0.0, %v2072
    %v2074 = vpop.f32.mrb[0].mxu0
    %2075 = vmatprep.mubr.f32.mxu0 %v1501
    %2076 = vmatmul.mubr.f32.gmra.mrb[0].mxu0 %v1500
    %v2077 = vpop.f32.mrb[0].mxu0
    %v2078 = vadd.f32 0.0, %v2077
    %v2079 = vpop.f32.mrb[0].mxu0
    %2080 = vmatprep.mubr.f32.mxu0 %v1505
    %2081 = vmatmul.mubr.f32.gmra.mrb[0].mxu0 %v1504
    %v2082 = vpop.f32.mrb[0].mxu0
    %v2083 = vadd.f32 0.0, %v2082
    %v2084 = vpop.f32.mrb[0].mxu0
    %2085 = vmatprep.mubr.f32.mxu0 %v1509
    %2086 = vmatmul.mubr.f32.gmra.mrb[0].mxu0 %v1508
    %v2087 = vpop.f32.mrb[0].mxu0
    %v2088 = vadd.f32 0.0, %v2087
    %v2089 = vpop.f32.mrb[0].mxu0
    %2090 = vmatprep.mubr.f32.mxu0 %v1513
    %2091 = vmatmul.mubr.f32.gmra.mrb[0].mxu0 %v1512
    %v2092 = vpop.f32.mrb[0].mxu0
    %v2093 = vadd.f32 0.0, %v2092
    %v2094 = vpop.f32.mrb[0].mxu0
    %2095 = vmatprep.mubr.f32.mxu0 %v1517
    %2096 = vmatmul.mubr.f32.gmra.mrb[0].mxu0 %v1516
    %v2097 = vpop.f32.mrb[0].mxu0
    %v2098 = vadd.f32 0.0, %v2097
    %v2099 = vpop.f32.mrb[0].mxu0
    %2100 = vmatprep.mubr.f32.mxu0 %v1521
    %2101 = vmatmul.mubr.f32.gmra.mrb[0].mxu0 %v1520
    %v2102 = vpop.f32.mrb[0].mxu0
    %v2103 = vadd.f32 0.0, %v2102
    %v2104 = vpop.f32.mrb[0].mxu0
    %2105 = vmatprep.mubr.f32.mxu0 %v1525
    %2106 = vmatmul.mubr.f32.gmra.mrb[0].mxu0 %v1524
    %v2107 = vpop.f32.mrb[0].mxu0
    %v2108 = vadd.f32 0.0, %v2107
    %v2109 = vpop.f32.mrb[0].mxu0
    %2110 = vmatprep.mubr.f32.mxu0 %v1529
    %2111 = vmatmul.mubr.f32.gmra.mrb[0].mxu0 %v1528
    %v2112 = vpop.f32.mrb[0].mxu0
    %v2113 = vadd.f32 0.0, %v2112
    %v2114 = vpop.f32.mrb[0].mxu0
    %2115 = vmatprep.mubr.f32.mxu0 %v1533
    %2116 = vmatmul.mubr.f32.gmra.mrb[0].mxu0 %v1532
    %v2117 = vpop.f32.mrb[0].mxu0
    %v2118 = vadd.f32 0.0, %v2117
    %v2119 = vpop.f32.mrb[0].mxu0
    %2120 = vmatprep.mubr.f32.mxu0 %v1537
    %2121 = vmatmul.mubr.f32.gmra.mrb[0].mxu0 %v1536
    %v2122 = vpop.f32.mrb[0].mxu0
    %v2123 = vadd.f32 0.0, %v2122
    %v2124 = vpop.f32.mrb[0].mxu0
    %2125 = vmatprep.mubr.f32.mxu0 %v1541
    %2126 = vmatmul.mubr.f32.gmra.mrb[0].mxu0 %v1540
    %v2127 = vpop.f32.mrb[0].mxu0
    %v2128 = vadd.f32 0.0, %v2127
    %v2129 = vpop.f32.mrb[0].mxu0
    %2130 = vmatprep.mubr.f32.mxu0 %v1545
    %2131 = vmatmul.mubr.f32.gmra.mrb[0].mxu0 %v1544
    %v2132 = vpop.f32.mrb[0].mxu0
    %v2133 = vadd.f32 0.0, %v2132
    %v2134 = vpop.f32.mrb[0].mxu0
    %2135 = vmatprep.mubr.f32.mxu0 %v1549
    %2136 = vmatmul.mubr.f32.gmra.mrb[0].mxu0 %v1548
    %v2137 = vpop.f32.mrb[0].mxu0
    %v2138 = vadd.f32 0.0, %v2137
    %v2139 = vpop.f32.mrb[0].mxu0
    %2140 = vmatprep.mubr.f32.mxu0 %v1553
    %2141 = vmatmul.mubr.f32.gmra.mrb[0].mxu0 %v1552
    %v2142 = vpop.f32.mrb[0].mxu0
    %v2143 = vadd.f32 0.0, %v2142
    %v2144 = vpop.f32.mrb[0].mxu0
    %2145 = vmatprep.mubr.f32.mxu0 %v1557
    %2146 = vmatmul.mubr.f32.gmra.mrb[0].mxu0 %v1556
    %v2147 = vpop.f32.mrb[0].mxu0
    %v2148 = vadd.f32 0.0, %v2147
    %v2149 = vpop.f32.mrb[0].mxu0
    %2150 = vdwg.mxu0
    %2151 = vmatprep.subr.mxu0 0.0
    %2152 = vmatpush1.msra.mxu0 %v1803
    %2153 = vmatprep.subr.mxu0 0.0
    %2154 = vmatpush1.msra.mxu0 %v1808
    %2155 = vmatprep.subr.mxu0 0.0
    %2156 = vmatpush1.msra.mxu0 %v1813
    %2157 = vmatprep.subr.mxu0 0.0
    %2158 = vmatpush1.msra.mxu0 %v1818
    %2159 = vmatprep.subr.mxu0 0.0
    %2160 = vmatpush1.msra.mxu0 %v1823
    %2161 = vmatprep.subr.mxu0 0.0
    %2162 = vmatpush1.msra.mxu0 %v1828
    %2163 = vmatprep.subr.mxu0 0.0
    %2164 = vmatpush1.msra.mxu0 %v1833
    %2165 = vmatprep.subr.mxu0 0.0
    %2166 = vmatpush1.msra.mxu0 %v1838
    %2167 = vmatprep.subr.mxu0 0.0
    %2168 = vmatpush1.msra.mxu0 %v1843
    %2169 = vmatprep.subr.mxu0 0.0
    %2170 = vmatpush1.msra.mxu0 %v1848
    %2171 = vmatprep.subr.mxu0 0.0
    %2172 = vmatpush1.msra.mxu0 %v1853
    %2173 = vmatprep.subr.mxu0 0.0
    %2174 = vmatpush1.msra.mxu0 %v1858
    %2175 = vmatprep.subr.mxu0 0.0
    %2176 = vmatpush1.msra.mxu0 %v1863
    %2177 = vmatprep.subr.mxu0 0.0
    %2178 = vmatpush1.msra.mxu0 %v1868
    %2179 = vmatprep.subr.mxu0 0.0
    %2180 = vmatpush1.msra.mxu0 %v1873
    %2181 = vmatprep.subr.mxu0 0.0
    %2182 = vmatpush1.msra.mxu0 %v1878
    %2183 = vmatprep.subr.mxu0 0.0
    %2184 = vmatpush1.msra.mxu0 %v1883
    %2185 = vmatprep.subr.mxu0 0.0
    %2186 = vmatpush1.msra.mxu0 %v1888
    %2187 = vmatprep.subr.mxu0 0.0
    %2188 = vmatpush1.msra.mxu0 %v1893
    %2189 = vmatprep.subr.mxu0 0.0
    %2190 = vmatpush1.msra.mxu0 %v1898
    %2191 = vmatprep.subr.mxu0 0.0
    %2192 = vmatpush1.msra.mxu0 %v1903
    %2193 = vmatprep.subr.mxu0 0.0
    %2194 = vmatpush1.msra.mxu0 %v1908
    %2195 = vmatprep.subr.mxu0 0.0
    %2196 = vmatpush1.msra.mxu0 %v1913
    %2197 = vmatprep.subr.mxu0 0.0
    %2198 = vmatpush1.msra.mxu0 %v1918
    %2199 = vmatprep.subr.mxu0 0.0
    %2200 = vmatpush1.msra.mxu0 %v1923
    %2201 = vmatprep.subr.mxu0 0.0
    %2202 = vmatpush1.msra.mxu0 %v1928
    %2203 = vmatprep.subr.mxu0 0.0
    %2204 = vmatpush1.msra.mxu0 %v1933
    %2205 = vmatprep.subr.mxu0 0.0
    %2206 = vmatpush1.msra.mxu0 %v1938
    %2207 = vmatprep.subr.mxu0 0.0
    %2208 = vmatpush1.msra.mxu0 %v1943
    %2209 = vmatprep.subr.mxu0 0.0
    %2210 = vmatpush1.msra.mxu0 %v1948
    %2211 = vmatprep.subr.mxu0 0.0
    %2212 = vmatpush1.msra.mxu0 %v1953
    %2213 = vmatprep.subr.mxu0 0.0
    %2214 = vmatpush1.msra.mxu0 %v1958
    %2215 = vmatprep.mubr.f32.mxu0 %v1463
    %2216 = vmatmul.mubr.f32.gmra.mrb[0].mxu0 %v1462
    %v2217 = vpop.f32.mrb[0].mxu0
    %v2218 = vadd.f32 %v2028, %v2217
    %v2219 = vpop.f32.mrb[0].mxu0
    %2220 = vmatprep.mubr.f32.mxu0 %v1467
    %2221 = vmatmul.mubr.f32.gmra.mrb[0].mxu0 %v1466
    %v2222 = vpop.f32.mrb[0].mxu0
    %v2223 = vadd.f32 %v2033, %v2222
    %v2224 = vpop.f32.mrb[0].mxu0
    %2225 = vmatprep.mubr.f32.mxu0 %v1471
    %2226 = vmatmul.mubr.f32.gmra.mrb[0].mxu0 %v1470
    %v2227 = vpop.f32.mrb[0].mxu0
    %v2228 = vadd.f32 %v2038, %v2227
    %v2229 = vpop.f32.mrb[0].mxu0
    %2230 = vmatprep.mubr.f32.mxu0 %v1475
    %2231 = vmatmul.mubr.f32.gmra.mrb[0].mxu0 %v1474
    %v2232 = vpop.f32.mrb[0].mxu0
    %v2233 = vadd.f32 %v2043, %v2232
    %v2234 = vpop.f32.mrb[0].mxu0
    %2235 = vmatprep.mubr.f32.mxu0 %v1479
    %2236 = vmatmul.mubr.f32.gmra.mrb[0].mxu0 %v1478
    %v2237 = vpop.f32.mrb[0].mxu0
    %v2238 = vadd.f32 %v2048, %v2237
    %v2239 = vpop.f32.mrb[0].mxu0
    %2240 = vmatprep.mubr.f32.mxu0 %v1483
    %2241 = vmatmul.mubr.f32.gmra.mrb[0].mxu0 %v1482
    %v2242 = vpop.f32.mrb[0].mxu0
    %v2243 = vadd.f32 %v2053, %v2242
    %v2244 = vpop.f32.mrb[0].mxu0
    %2245 = vmatprep.mubr.f32.mxu0 %v1487
    %2246 = vmatmul.mubr.f32.gmra.mrb[0].mxu0 %v1486
    %v2247 = vpop.f32.mrb[0].mxu0
    %v2248 = vadd.f32 %v2058, %v2247
    %v2249 = vpop.f32.mrb[0].mxu0
    %2250 = vmatprep.mubr.f32.mxu0 %v1491
    %2251 = vmatmul.mubr.f32.gmra.mrb[0].mxu0 %v1490
    %v2252 = vpop.f32.mrb[0].mxu0
    %v2253 = vadd.f32 %v2063, %v2252
    %v2254 = vpop.f32.mrb[0].mxu0
    %2255 = vmatprep.mubr.f32.mxu0 %v1495
    %2256 = vmatmul.mubr.f32.gmra.mrb[0].mxu0 %v1494
    %v2257 = vpop.f32.mrb[0].mxu0
    %v2258 = vadd.f32 %v2068, %v2257
    %v2259 = vpop.f32.mrb[0].mxu0
    %2260 = vmatprep.mubr.f32.mxu0 %v1499
    %2261 = vmatmul.mubr.f32.gmra.mrb[0].mxu0 %v1498
    %v2262 = vpop.f32.mrb[0].mxu0
    %v2263 = vadd.f32 %v2073, %v2262
    %v2264 = vpop.f32.mrb[0].mxu0
    %2265 = vmatprep.mubr.f32.mxu0 %v1503
    %2266 = vmatmul.mubr.f32.gmra.mrb[0].mxu0 %v1502
    %v2267 = vpop.f32.mrb[0].mxu0
    %v2268 = vadd.f32 %v2078, %v2267
    %v2269 = vpop.f32.mrb[0].mxu0
    %2270 = vmatprep.mubr.f32.mxu0 %v1507
    %2271 = vmatmul.mubr.f32.gmra.mrb[0].mxu0 %v1506
    %v2272 = vpop.f32.mrb[0].mxu0
    %v2273 = vadd.f32 %v2083, %v2272
    %v2274 = vpop.f32.mrb[0].mxu0
    %2275 = vmatprep.mubr.f32.mxu0 %v1511
    %2276 = vmatmul.mubr.f32.gmra.mrb[0].mxu0 %v1510
    %v2277 = vpop.f32.mrb[0].mxu0
    %v2278 = vadd.f32 %v2088, %v2277
    %v2279 = vpop.f32.mrb[0].mxu0
    %2280 = vmatprep.mubr.f32.mxu0 %v1515
    %2281 = vmatmul.mubr.f32.gmra.mrb[0].mxu0 %v1514
    %v2282 = vpop.f32.mrb[0].mxu0
    %v2283 = vadd.f32 %v2093, %v2282
    %v2284 = vpop.f32.mrb[0].mxu0
    %2285 = vmatprep.mubr.f32.mxu0 %v1519
    %2286 = vmatmul.mubr.f32.gmra.mrb[0].mxu0 %v1518
    %v2287 = vpop.f32.mrb[0].mxu0
    %v2288 = vadd.f32 %v2098, %v2287
    %v2289 = vpop.f32.mrb[0].mxu0
    %2290 = vmatprep.mubr.f32.mxu0 %v1523
    %2291 = vmatmul.mubr.f32.gmra.mrb[0].mxu0 %v1522
    %v2292 = vpop.f32.mrb[0].mxu0
    %v2293 = vadd.f32 %v2103, %v2292
    %v2294 = vpop.f32.mrb[0].mxu0
    %2295 = vmatprep.mubr.f32.mxu0 %v1527
    %2296 = vmatmul.mubr.f32.gmra.mrb[0].mxu0 %v1526
    %v2297 = vpop.f32.mrb[0].mxu0
    %v2298 = vadd.f32 %v2108, %v2297
    %v2299 = vpop.f32.mrb[0].mxu0
    %2300 = vmatprep.mubr.f32.mxu0 %v1531
    %2301 = vmatmul.mubr.f32.gmra.mrb[0].mxu0 %v1530
    %v2302 = vpop.f32.mrb[0].mxu0
    %v2303 = vadd.f32 %v2113, %v2302
    %v2304 = vpop.f32.mrb[0].mxu0
    %2305 = vmatprep.mubr.f32.mxu0 %v1535
    %2306 = vmatmul.mubr.f32.gmra.mrb[0].mxu0 %v1534
    %v2307 = vpop.f32.mrb[0].mxu0
    %v2308 = vadd.f32 %v2118, %v2307
    %v2309 = vpop.f32.mrb[0].mxu0
    %2310 = vmatprep.mubr.f32.mxu0 %v1539
    %2311 = vmatmul.mubr.f32.gmra.mrb[0].mxu0 %v1538
    %v2312 = vpop.f32.mrb[0].mxu0
    %v2313 = vadd.f32 %v2123, %v2312
    %v2314 = vpop.f32.mrb[0].mxu0
    %2315 = vmatprep.mubr.f32.mxu0 %v1543
    %2316 = vmatmul.mubr.f32.gmra.mrb[0].mxu0 %v1542
    %v2317 = vpop.f32.mrb[0].mxu0
    %v2318 = vadd.f32 %v2128, %v2317
    %v2319 = vpop.f32.mrb[0].mxu0
    %2320 = vmatprep.mubr.f32.mxu0 %v1547
    %2321 = vmatmul.mubr.f32.gmra.mrb[0].mxu0 %v1546
    %v2322 = vpop.f32.mrb[0].mxu0
    %v2323 = vadd.f32 %v2133, %v2322
    %v2324 = vpop.f32.mrb[0].mxu0
    %2325 = vmatprep.mubr.f32.mxu0 %v1551
    %2326 = vmatmul.mubr.f32.gmra.mrb[0].mxu0 %v1550
    %v2327 = vpop.f32.mrb[0].mxu0
    %v2328 = vadd.f32 %v2138, %v2327
    %v2329 = vpop.f32.mrb[0].mxu0
    %2330 = vmatprep.mubr.f32.mxu0 %v1555
    %2331 = vmatmul.mubr.f32.gmra.mrb[0].mxu0 %v1554
    %v2332 = vpop.f32.mrb[0].mxu0
    %v2333 = vadd.f32 %v2143, %v2332
    %v2334 = vpop.f32.mrb[0].mxu0
    %2335 = vmatprep.mubr.f32.mxu0 %v1559
    %2336 = vmatmul.mubr.f32.gmra.mrb[0].mxu0 %v1558
    %v2337 = vpop.f32.mrb[0].mxu0
    %v2338 = vadd.f32 %v2148, %v2337
    %v2339 = vpop.f32.mrb[0].mxu0
    %2340 = vdwg.mxu0
    %v2341 = vld [vmem:[%s7] sm:$0xff]
    %v2342 = vld [vmem:[%s7 + $0x8] sm:$0xff]
    %v2343 = vld [vmem:[%s7 + $0x10] sm:$0xff]
    %v2344 = vld [vmem:[%s7 + $0x18] sm:$0xff]
    %v2345 = vld [vmem:[%s7 + $0x20] sm:$0xff]
    %v2346 = vld [vmem:[%s7 + $0x28] sm:$0xff]
    %v2347 = vld [vmem:[%s7 + $0x30] sm:$0xff]
    %v2348 = vld [vmem:[%s7 + $0x38] sm:$0xff]
    %v2349 = vld [vmem:[%s7 + $0x40] sm:$0xff]
    %v2350 = vld [vmem:[%s7 + $0x48] sm:$0xff]
    %v2351 = vld [vmem:[%s7 + $0x50] sm:$0xff]
    %v2352 = vld [vmem:[%s7 + $0x58] sm:$0xff]
    %v2353 = vld [vmem:[%s7 + $0x60] sm:$0xff]
    %v2354 = vld [vmem:[%s7 + $0x68] sm:$0xff]
    %v2355 = vld [vmem:[%s7 + $0x70] sm:$0xff]
    %v2356 = vld [vmem:[%s7 + $0x78] sm:$0xff]
    %v2357 = vld [vmem:[%s7 + $0x80] sm:$0xff]
    %v2358 = vld [vmem:[%s7 + $0x88] sm:$0xff]
    %v2359 = vld [vmem:[%s7 + $0x90] sm:$0xff]
    %v2360 = vld [vmem:[%s7 + $0x98] sm:$0xff]
    %v2361 = vld [vmem:[%s7 + $0xa0] sm:$0xff]
    %v2362 = vld [vmem:[%s7 + $0xa8] sm:$0xff]
    %v2363 = vld [vmem:[%s7 + $0xb0] sm:$0xff]
    %v2364 = vld [vmem:[%s7 + $0xb8] sm:$0xff]
    %v2365 = vld [vmem:[%s7 + $0xc0] sm:$0xff]
    %v2366 = vld [vmem:[%s7 + $0xc8] sm:$0xff]
    %v2367 = vld [vmem:[%s7 + $0xd0] sm:$0xff]
    %v2368 = vld [vmem:[%s7 + $0xd8] sm:$0xff]
    %v2369 = vld [vmem:[%s7 + $0xe0] sm:$0xff]
    %v2370 = vld [vmem:[%s7 + $0xe8] sm:$0xff]
    %v2371 = vld [vmem:[%s7 + $0xf0] sm:$0xff]
    %v2372 = vld [vmem:[%s7 + $0xf8] sm:$0xff]
    %v2373 = vld [vmem:[%s7 + $0x100] sm:$0xff]
    %v2374 = vld [vmem:[%s7 + $0x108] sm:$0xff]
    %v2375 = vld [vmem:[%s7 + $0x110] sm:$0xff]
    %v2376 = vld [vmem:[%s7 + $0x118] sm:$0xff]
    %v2377 = vld [vmem:[%s7 + $0x120] sm:$0xff]
    %v2378 = vld [vmem:[%s7 + $0x128] sm:$0xff]
    %v2379 = vld [vmem:[%s7 + $0x130] sm:$0xff]
    %v2380 = vld [vmem:[%s7 + $0x138] sm:$0xff]
    %v2381 = vld [vmem:[%s7 + $0x140] sm:$0xff]
    %v2382 = vld [vmem:[%s7 + $0x148] sm:$0xff]
    %v2383 = vld [vmem:[%s7 + $0x150] sm:$0xff]
    %v2384 = vld [vmem:[%s7 + $0x158] sm:$0xff]
    %v2385 = vld [vmem:[%s7 + $0x160] sm:$0xff]
    %v2386 = vld [vmem:[%s7 + $0x168] sm:$0xff]
    %v2387 = vld [vmem:[%s7 + $0x170] sm:$0xff]
    %v2388 = vld [vmem:[%s7 + $0x178] sm:$0xff]
    %v2389 = vld [vmem:[%s7 + $0x180] sm:$0xff]
    %v2390 = vld [vmem:[%s7 + $0x188] sm:$0xff]
    %v2391 = vld [vmem:[%s7 + $0x190] sm:$0xff]
    %v2392 = vld [vmem:[%s7 + $0x198] sm:$0xff]
    %v2393 = vld [vmem:[%s7 + $0x1a0] sm:$0xff]
    %v2394 = vld [vmem:[%s7 + $0x1a8] sm:$0xff]
    %v2395 = vld [vmem:[%s7 + $0x1b0] sm:$0xff]
    %v2396 = vld [vmem:[%s7 + $0x1b8] sm:$0xff]
    %v2397 = vld [vmem:[%s7 + $0x1c0] sm:$0xff]
    %v2398 = vld [vmem:[%s7 + $0x1c8] sm:$0xff]
    %v2399 = vld [vmem:[%s7 + $0x1d0] sm:$0xff]
    %v2400 = vld [vmem:[%s7 + $0x1d8] sm:$0xff]
    %v2401 = vld [vmem:[%s7 + $0x1e0] sm:$0xff]
    %v2402 = vld [vmem:[%s7 + $0x1e8] sm:$0xff]
    %v2403 = vld [vmem:[%s7 + $0x1f0] sm:$0xff]
    %v2404 = vld [vmem:[%s7 + $0x1f8] sm:$0xff]
    %v2405 = vld [vmem:[%s7 + $0x200] sm:$0xff]
    %v2406 = vld [vmem:[%s7 + $0x208] sm:$0xff]
    %v2407 = vld [vmem:[%s7 + $0x210] sm:$0xff]
    %v2408 = vld [vmem:[%s7 + $0x218] sm:$0xff]
    %v2409 = vld [vmem:[%s7 + $0x220] sm:$0xff]
    %v2410 = vld [vmem:[%s7 + $0x228] sm:$0xff]
    %v2411 = vld [vmem:[%s7 + $0x230] sm:$0xff]
    %v2412 = vld [vmem:[%s7 + $0x238] sm:$0xff]
    %v2413 = vld [vmem:[%s7 + $0x240] sm:$0xff]
    %v2414 = vld [vmem:[%s7 + $0x248] sm:$0xff]
    %v2415 = vld [vmem:[%s7 + $0x250] sm:$0xff]
    %v2416 = vld [vmem:[%s7 + $0x258] sm:$0xff]
    %v2417 = vld [vmem:[%s7 + $0x260] sm:$0xff]
    %v2418 = vld [vmem:[%s7 + $0x268] sm:$0xff]
    %v2419 = vld [vmem:[%s7 + $0x270] sm:$0xff]
    %v2420 = vld [vmem:[%s7 + $0x278] sm:$0xff]
    %v2421 = vld [vmem:[%s7 + $0x280] sm:$0xff]
    %v2422 = vld [vmem:[%s7 + $0x288] sm:$0xff]
    %v2423 = vld [vmem:[%s7 + $0x290] sm:$0xff]
    %v2424 = vld [vmem:[%s7 + $0x298] sm:$0xff]
    %v2425 = vld [vmem:[%s7 + $0x2a0] sm:$0xff]
    %v2426 = vld [vmem:[%s7 + $0x2a8] sm:$0xff]
    %v2427 = vld [vmem:[%s7 + $0x2b0] sm:$0xff]
    %v2428 = vld [vmem:[%s7 + $0x2b8] sm:$0xff]
    %v2429 = vld [vmem:[%s7 + $0x2c0] sm:$0xff]
    %v2430 = vld [vmem:[%s7 + $0x2c8] sm:$0xff]
    %v2431 = vld [vmem:[%s7 + $0x2d0] sm:$0xff]
    %v2432 = vld [vmem:[%s7 + $0x2d8] sm:$0xff]
    %v2433 = vld [vmem:[%s7 + $0x2e0] sm:$0xff]
    %v2434 = vld [vmem:[%s7 + $0x2e8] sm:$0xff]
    %v2435 = vld [vmem:[%s7 + $0x2f0] sm:$0xff]
    %v2436 = vld [vmem:[%s7 + $0x2f8] sm:$0xff]
    %v2437 = vld [vmem:[%s7 + $0x300] sm:$0xff]
    %v2438 = vld [vmem:[%s7 + $0x308] sm:$0xff]
    %v2439 = vld [vmem:[%s7 + $0x310] sm:$0xff]
    %v2440 = vld [vmem:[%s7 + $0x318] sm:$0xff]
    %v2441 = vld [vmem:[%s7 + $0x320] sm:$0xff]
    %v2442 = vld [vmem:[%s7 + $0x328] sm:$0xff]
    %v2443 = vld [vmem:[%s7 + $0x330] sm:$0xff]
    %v2444 = vld [vmem:[%s7 + $0x338] sm:$0xff]
    %v2445 = vld [vmem:[%s7 + $0x340] sm:$0xff]
    %v2446 = vld [vmem:[%s7 + $0x348] sm:$0xff]
    %v2447 = vld [vmem:[%s7 + $0x350] sm:$0xff]
    %v2448 = vld [vmem:[%s7 + $0x358] sm:$0xff]
    %v2449 = vld [vmem:[%s7 + $0x360] sm:$0xff]
    %v2450 = vld [vmem:[%s7 + $0x368] sm:$0xff]
    %v2451 = vld [vmem:[%s7 + $0x370] sm:$0xff]
    %v2452 = vld [vmem:[%s7 + $0x378] sm:$0xff]
    %v2453 = vld [vmem:[%s7 + $0x380] sm:$0xff]
    %v2454 = vld [vmem:[%s7 + $0x388] sm:$0xff]
    %v2455 = vld [vmem:[%s7 + $0x390] sm:$0xff]
    %v2456 = vld [vmem:[%s7 + $0x398] sm:$0xff]
    %v2457 = vld [vmem:[%s7 + $0x3a0] sm:$0xff]
    %v2458 = vld [vmem:[%s7 + $0x3a8] sm:$0xff]
    %v2459 = vld [vmem:[%s7 + $0x3b0] sm:$0xff]
    %v2460 = vld [vmem:[%s7 + $0x3b8] sm:$0xff]
    %v2461 = vld [vmem:[%s7 + $0x3c0] sm:$0xff]
    %v2462 = vld [vmem:[%s7 + $0x3c8] sm:$0xff]
    %v2463 = vld [vmem:[%s7 + $0x3d0] sm:$0xff]
    %v2464 = vld [vmem:[%s7 + $0x3d8] sm:$0xff]
    %v2465 = vld [vmem:[%s7 + $0x3e0] sm:$0xff]
    %v2466 = vld [vmem:[%s7 + $0x3e8] sm:$0xff]
    %v2467 = vld [vmem:[%s7 + $0x3f0] sm:$0xff]
    %v2468 = vld [vmem:[%s7 + $0x3f8] sm:$0xff]
    %v2469 = vld [vmem:[%s7 + $0x400] sm:$0xff]
    %v2470 = vld [vmem:[%s7 + $0x408] sm:$0xff]
    %v2471 = vld [vmem:[%s7 + $0x410] sm:$0xff]
    %v2472 = vld [vmem:[%s7 + $0x418] sm:$0xff]
    %v2473 = vld [vmem:[%s7 + $0x420] sm:$0xff]
    %v2474 = vld [vmem:[%s7 + $0x428] sm:$0xff]
    %v2475 = vld [vmem:[%s7 + $0x430] sm:$0xff]
    %v2476 = vld [vmem:[%s7 + $0x438] sm:$0xff]
    %v2477 = vld [vmem:[%s7 + $0x440] sm:$0xff]
    %v2478 = vld [vmem:[%s7 + $0x448] sm:$0xff]
    %v2479 = vld [vmem:[%s7 + $0x450] sm:$0xff]
    %v2480 = vld [vmem:[%s7 + $0x458] sm:$0xff]
    %v2481 = vld [vmem:[%s7 + $0x460] sm:$0xff]
    %v2482 = vld [vmem:[%s7 + $0x468] sm:$0xff]
    %v2483 = vld [vmem:[%s7 + $0x470] sm:$0xff]
    %v2484 = vld [vmem:[%s7 + $0x478] sm:$0xff]
    %v2485 = vld [vmem:[%s7 + $0x480] sm:$0xff]
    %v2486 = vld [vmem:[%s7 + $0x488] sm:$0xff]
    %v2487 = vld [vmem:[%s7 + $0x490] sm:$0xff]
    %v2488 = vld [vmem:[%s7 + $0x498] sm:$0xff]
    %v2489 = vld [vmem:[%s7 + $0x4a0] sm:$0xff]
    %v2490 = vld [vmem:[%s7 + $0x4a8] sm:$0xff]
    %v2491 = vld [vmem:[%s7 + $0x4b0] sm:$0xff]
    %v2492 = vld [vmem:[%s7 + $0x4b8] sm:$0xff]
    %v2493 = vld [vmem:[%s7 + $0x4c0] sm:$0xff]
    %v2494 = vld [vmem:[%s7 + $0x4c8] sm:$0xff]
    %v2495 = vld [vmem:[%s7 + $0x4d0] sm:$0xff]
    %v2496 = vld [vmem:[%s7 + $0x4d8] sm:$0xff]
    %v2497 = vld [vmem:[%s7 + $0x4e0] sm:$0xff]
    %v2498 = vld [vmem:[%s7 + $0x4e8] sm:$0xff]
    %v2499 = vld [vmem:[%s7 + $0x4f0] sm:$0xff]
    %v2500 = vld [vmem:[%s7 + $0x4f8] sm:$0xff]
    %v2501 = vld [vmem:[%s7 + $0x500] sm:$0xff]
    %v2502 = vld [vmem:[%s7 + $0x508] sm:$0xff]
    %v2503 = vld [vmem:[%s7 + $0x510] sm:$0xff]
    %v2504 = vld [vmem:[%s7 + $0x518] sm:$0xff]
    %v2505 = vld [vmem:[%s7 + $0x520] sm:$0xff]
    %v2506 = vld [vmem:[%s7 + $0x528] sm:$0xff]
    %v2507 = vld [vmem:[%s7 + $0x530] sm:$0xff]
    %v2508 = vld [vmem:[%s7 + $0x538] sm:$0xff]
    %v2509 = vld [vmem:[%s7 + $0x540] sm:$0xff]
    %v2510 = vld [vmem:[%s7 + $0x548] sm:$0xff]
    %v2511 = vld [vmem:[%s7 + $0x550] sm:$0xff]
    %v2512 = vld [vmem:[%s7 + $0x558] sm:$0xff]
    %v2513 = vld [vmem:[%s7 + $0x560] sm:$0xff]
    %v2514 = vld [vmem:[%s7 + $0x568] sm:$0xff]
    %v2515 = vld [vmem:[%s7 + $0x570] sm:$0xff]
    %v2516 = vld [vmem:[%s7 + $0x578] sm:$0xff]
    %v2517 = vld [vmem:[%s7 + $0x580] sm:$0xff]
    %v2518 = vld [vmem:[%s7 + $0x588] sm:$0xff]
    %v2519 = vld [vmem:[%s7 + $0x590] sm:$0xff]
    %v2520 = vld [vmem:[%s7 + $0x598] sm:$0xff]
    %v2521 = vld [vmem:[%s7 + $0x5a0] sm:$0xff]
    %v2522 = vld [vmem:[%s7 + $0x5a8] sm:$0xff]
    %v2523 = vld [vmem:[%s7 + $0x5b0] sm:$0xff]
    %v2524 = vld [vmem:[%s7 + $0x5b8] sm:$0xff]
    %v2525 = vld [vmem:[%s7 + $0x5c0] sm:$0xff]
    %v2526 = vld [vmem:[%s7 + $0x5c8] sm:$0xff]
    %v2527 = vld [vmem:[%s7 + $0x5d0] sm:$0xff]
    %v2528 = vld [vmem:[%s7 + $0x5d8] sm:$0xff]
    %v2529 = vld [vmem:[%s7 + $0x5e0] sm:$0xff]
    %v2530 = vld [vmem:[%s7 + $0x5e8] sm:$0xff]
    %v2531 = vld [vmem:[%s7 + $0x5f0] sm:$0xff]
    %v2532 = vld [vmem:[%s7 + $0x5f8] sm:$0xff]
    %v2533 = vld [vmem:[%s7 + $0x600] sm:$0xff]
    %v2534 = vld [vmem:[%s7 + $0x608] sm:$0xff]
    %v2535 = vld [vmem:[%s7 + $0x610] sm:$0xff]
    %v2536 = vld [vmem:[%s7 + $0x618] sm:$0xff]
    %v2537 = vld [vmem:[%s7 + $0x620] sm:$0xff]
    %v2538 = vld [vmem:[%s7 + $0x628] sm:$0xff]
    %v2539 = vld [vmem:[%s7 + $0x630] sm:$0xff]
    %v2540 = vld [vmem:[%s7 + $0x638] sm:$0xff]
    %v2541 = vld [vmem:[%s7 + $0x640] sm:$0xff]
    %v2542 = vld [vmem:[%s7 + $0x648] sm:$0xff]
    %v2543 = vld [vmem:[%s7 + $0x650] sm:$0xff]
    %v2544 = vld [vmem:[%s7 + $0x658] sm:$0xff]
    %v2545 = vld [vmem:[%s7 + $0x660] sm:$0xff]
    %v2546 = vld [vmem:[%s7 + $0x668] sm:$0xff]
    %v2547 = vld [vmem:[%s7 + $0x670] sm:$0xff]
    %v2548 = vld [vmem:[%s7 + $0x678] sm:$0xff]
    %v2549 = vld [vmem:[%s7 + $0x680] sm:$0xff]
    %v2550 = vld [vmem:[%s7 + $0x688] sm:$0xff]
    %v2551 = vld [vmem:[%s7 + $0x690] sm:$0xff]
    %v2552 = vld [vmem:[%s7 + $0x698] sm:$0xff]
    %v2553 = vld [vmem:[%s7 + $0x6a0] sm:$0xff]
    %v2554 = vld [vmem:[%s7 + $0x6a8] sm:$0xff]
    %v2555 = vld [vmem:[%s7 + $0x6b0] sm:$0xff]
    %v2556 = vld [vmem:[%s7 + $0x6b8] sm:$0xff]
    %v2557 = vld [vmem:[%s7 + $0x6c0] sm:$0xff]
    %v2558 = vld [vmem:[%s7 + $0x6c8] sm:$0xff]
    %v2559 = vld [vmem:[%s7 + $0x6d0] sm:$0xff]
    %v2560 = vld [vmem:[%s7 + $0x6d8] sm:$0xff]
    %v2561 = vld [vmem:[%s7 + $0x6e0] sm:$0xff]
    %v2562 = vld [vmem:[%s7 + $0x6e8] sm:$0xff]
    %v2563 = vld [vmem:[%s7 + $0x6f0] sm:$0xff]
    %v2564 = vld [vmem:[%s7 + $0x6f8] sm:$0xff]
    %v2565 = vld [vmem:[%s7 + $0x700] sm:$0xff]
    %v2566 = vld [vmem:[%s7 + $0x708] sm:$0xff]
    %v2567 = vld [vmem:[%s7 + $0x710] sm:$0xff]
    %v2568 = vld [vmem:[%s7 + $0x718] sm:$0xff]
    %v2569 = vld [vmem:[%s7 + $0x720] sm:$0xff]
    %v2570 = vld [vmem:[%s7 + $0x728] sm:$0xff]
    %v2571 = vld [vmem:[%s7 + $0x730] sm:$0xff]
    %v2572 = vld [vmem:[%s7 + $0x738] sm:$0xff]
    %v2573 = vld [vmem:[%s7 + $0x740] sm:$0xff]
    %v2574 = vld [vmem:[%s7 + $0x748] sm:$0xff]
    %v2575 = vld [vmem:[%s7 + $0x750] sm:$0xff]
    %v2576 = vld [vmem:[%s7 + $0x758] sm:$0xff]
    %v2577 = vld [vmem:[%s7 + $0x760] sm:$0xff]
    %v2578 = vld [vmem:[%s7 + $0x768] sm:$0xff]
    %v2579 = vld [vmem:[%s7 + $0x770] sm:$0xff]
    %v2580 = vld [vmem:[%s7 + $0x778] sm:$0xff]
    %v2581 = vld [vmem:[%s7 + $0x780] sm:$0xff]
    %v2582 = vld [vmem:[%s7 + $0x788] sm:$0xff]
    %v2583 = vld [vmem:[%s7 + $0x790] sm:$0xff]
    %v2584 = vld [vmem:[%s7 + $0x798] sm:$0xff]
    %v2585 = vld [vmem:[%s7 + $0x7a0] sm:$0xff]
    %v2586 = vld [vmem:[%s7 + $0x7a8] sm:$0xff]
    %v2587 = vld [vmem:[%s7 + $0x7b0] sm:$0xff]
    %v2588 = vld [vmem:[%s7 + $0x7b8] sm:$0xff]
    %v2589 = vld [vmem:[%s7 + $0x7c0] sm:$0xff]
    %v2590 = vld [vmem:[%s7 + $0x7c8] sm:$0xff]
    %v2591 = vld [vmem:[%s7 + $0x7d0] sm:$0xff]
    %v2592 = vld [vmem:[%s7 + $0x7d8] sm:$0xff]
    %v2593 = vld [vmem:[%s7 + $0x7e0] sm:$0xff]
    %v2594 = vld [vmem:[%s7 + $0x7e8] sm:$0xff]
    %v2595 = vld [vmem:[%s7 + $0x7f0] sm:$0xff]
    %v2596 = vld [vmem:[%s7 + $0x7f8] sm:$0xff]
    %v2597 = vld [vmem:[%s7 + $0x800] sm:$0xff]
    %v2598 = vld [vmem:[%s7 + $0x808] sm:$0xff]
    %v2599 = vld [vmem:[%s7 + $0x810] sm:$0xff]
    %v2600 = vld [vmem:[%s7 + $0x818] sm:$0xff]
    %v2601 = vld [vmem:[%s7 + $0x820] sm:$0xff]
    %v2602 = vld [vmem:[%s7 + $0x828] sm:$0xff]
    %v2603 = vld [vmem:[%s7 + $0x830] sm:$0xff]
    %v2604 = vld [vmem:[%s7 + $0x838] sm:$0xff]
    %v2605 = vld [vmem:[%s7 + $0x840] sm:$0xff]
    %v2606 = vld [vmem:[%s7 + $0x848] sm:$0xff]
    %v2607 = vld [vmem:[%s7 + $0x850] sm:$0xff]
    %v2608 = vld [vmem:[%s7 + $0x858] sm:$0xff]
    %v2609 = vld [vmem:[%s7 + $0x860] sm:$0xff]
    %v2610 = vld [vmem:[%s7 + $0x868] sm:$0xff]
    %v2611 = vld [vmem:[%s7 + $0x870] sm:$0xff]
    %v2612 = vld [vmem:[%s7 + $0x878] sm:$0xff]
    %v2613 = vld [vmem:[%s7 + $0x880] sm:$0xff]
    %v2614 = vld [vmem:[%s7 + $0x888] sm:$0xff]
    %v2615 = vld [vmem:[%s7 + $0x890] sm:$0xff]
    %v2616 = vld [vmem:[%s7 + $0x898] sm:$0xff]
    %v2617 = vld [vmem:[%s7 + $0x8a0] sm:$0xff]
    %v2618 = vld [vmem:[%s7 + $0x8a8] sm:$0xff]
    %v2619 = vld [vmem:[%s7 + $0x8b0] sm:$0xff]
    %v2620 = vld [vmem:[%s7 + $0x8b8] sm:$0xff]
    %v2621 = vld [vmem:[%s7 + $0x8c0] sm:$0xff]
    %v2622 = vld [vmem:[%s7 + $0x8c8] sm:$0xff]
    %v2623 = vld [vmem:[%s7 + $0x8d0] sm:$0xff]
    %v2624 = vld [vmem:[%s7 + $0x8d8] sm:$0xff]
    %v2625 = vld [vmem:[%s7 + $0x8e0] sm:$0xff]
    %v2626 = vld [vmem:[%s7 + $0x8e8] sm:$0xff]
    %v2627 = vld [vmem:[%s7 + $0x8f0] sm:$0xff]
    %v2628 = vld [vmem:[%s7 + $0x8f8] sm:$0xff]
    %vm2629 = vcmask 588800
    %v2631 = vsel %vm2629, %v2342, 0
    %v2634 = vsel %vm2629, %v2344, 0
    %v2637 = vsel %vm2629, %v2346, 0
    %v2640 = vsel %vm2629, %v2348, 0
    %v2643 = vsel %vm2629, %v2350, 0
    %v2646 = vsel %vm2629, %v2352, 0
    %v2649 = vsel %vm2629, %v2354, 0
    %v2652 = vsel %vm2629, %v2356, 0
    %v2655 = vsel %vm2629, %v2358, 0
    %v2658 = vsel %vm2629, %v2360, 0
    %v2661 = vsel %vm2629, %v2362, 0
    %v2664 = vsel %vm2629, %v2364, 0
    %v2667 = vsel %vm2629, %v2366, 0
    %v2670 = vsel %vm2629, %v2368, 0
    %v2673 = vsel %vm2629, %v2370, 0
    %v2676 = vsel %vm2629, %v2372, 0
    %v2679 = vsel %vm2629, %v2374, 0
    %v2682 = vsel %vm2629, %v2376, 0
    %v2685 = vsel %vm2629, %v2378, 0
    %v2688 = vsel %vm2629, %v2380, 0
    %v2691 = vsel %vm2629, %v2382, 0
    %v2694 = vsel %vm2629, %v2384, 0
    %v2697 = vsel %vm2629, %v2386, 0
    %v2700 = vsel %vm2629, %v2388, 0
    %v2703 = vsel %vm2629, %v2390, 0
    %v2706 = vsel %vm2629, %v2392, 0
    %v2709 = vsel %vm2629, %v2394, 0
    %v2712 = vsel %vm2629, %v2396, 0
    %v2715 = vsel %vm2629, %v2398, 0
    %v2718 = vsel %vm2629, %v2400, 0
    %v2721 = vsel %vm2629, %v2402, 0
    %v2724 = vsel %vm2629, %v2404, 0
    %v2727 = vsel %vm2629, %v2406, 0
    %v2730 = vsel %vm2629, %v2408, 0
    %v2733 = vsel %vm2629, %v2410, 0
    %v2736 = vsel %vm2629, %v2412, 0
    %v2739 = vsel %vm2629, %v2414, 0
    %v2742 = vsel %vm2629, %v2416, 0
    %v2745 = vsel %vm2629, %v2418, 0
    %v2748 = vsel %vm2629, %v2420, 0
    %v2751 = vsel %vm2629, %v2422, 0
    %v2754 = vsel %vm2629, %v2424, 0
    %v2757 = vsel %vm2629, %v2426, 0
    %v2760 = vsel %vm2629, %v2428, 0
    %v2763 = vsel %vm2629, %v2430, 0
    %v2766 = vsel %vm2629, %v2432, 0
    %v2769 = vsel %vm2629, %v2434, 0
    %v2772 = vsel %vm2629, %v2436, 0
    %v2775 = vsel %vm2629, %v2438, 0
    %v2778 = vsel %vm2629, %v2440, 0
    %v2781 = vsel %vm2629, %v2442, 0
    %v2784 = vsel %vm2629, %v2444, 0
    %v2787 = vsel %vm2629, %v2446, 0
    %v2790 = vsel %vm2629, %v2448, 0
    %v2793 = vsel %vm2629, %v2450, 0
    %v2796 = vsel %vm2629, %v2452, 0
    %v2799 = vsel %vm2629, %v2454, 0
    %v2802 = vsel %vm2629, %v2456, 0
    %v2805 = vsel %vm2629, %v2458, 0
    %v2808 = vsel %vm2629, %v2460, 0
    %v2811 = vsel %vm2629, %v2462, 0
    %v2814 = vsel %vm2629, %v2464, 0
    %v2817 = vsel %vm2629, %v2466, 0
    %v2820 = vsel %vm2629, %v2468, 0
    %v2823 = vsel %vm2629, %v2470, 0
    %v2826 = vsel %vm2629, %v2472, 0
    %v2829 = vsel %vm2629, %v2474, 0
    %v2832 = vsel %vm2629, %v2476, 0
    %v2835 = vsel %vm2629, %v2478, 0
    %v2838 = vsel %vm2629, %v2480, 0
    %v2841 = vsel %vm2629, %v2482, 0
    %v2844 = vsel %vm2629, %v2484, 0
    %v2847 = vsel %vm2629, %v2486, 0
    %v2850 = vsel %vm2629, %v2488, 0
    %v2853 = vsel %vm2629, %v2490, 0
    %v2856 = vsel %vm2629, %v2492, 0
    %v2859 = vsel %vm2629, %v2494, 0
    %v2862 = vsel %vm2629, %v2496, 0
    %v2865 = vsel %vm2629, %v2498, 0
    %v2868 = vsel %vm2629, %v2500, 0
    %v2871 = vsel %vm2629, %v2502, 0
    %v2874 = vsel %vm2629, %v2504, 0
    %v2877 = vsel %vm2629, %v2506, 0
    %v2880 = vsel %vm2629, %v2508, 0
    %v2883 = vsel %vm2629, %v2510, 0
    %v2886 = vsel %vm2629, %v2512, 0
    %v2889 = vsel %vm2629, %v2514, 0
    %v2892 = vsel %vm2629, %v2516, 0
    %v2895 = vsel %vm2629, %v2518, 0
    %v2898 = vsel %vm2629, %v2520, 0
    %v2901 = vsel %vm2629, %v2522, 0
    %v2904 = vsel %vm2629, %v2524, 0
    %v2907 = vsel %vm2629, %v2526, 0
    %v2910 = vsel %vm2629, %v2528, 0
    %v2913 = vsel %vm2629, %v2530, 0
    %v2916 = vsel %vm2629, %v2532, 0
    %v2919 = vsel %vm2629, %v2534, 0
    %v2922 = vsel %vm2629, %v2536, 0
    %v2925 = vsel %vm2629, %v2538, 0
    %v2928 = vsel %vm2629, %v2540, 0
    %v2931 = vsel %vm2629, %v2542, 0
    %v2934 = vsel %vm2629, %v2544, 0
    %v2937 = vsel %vm2629, %v2546, 0
    %v2940 = vsel %vm2629, %v2548, 0
    %v2943 = vsel %vm2629, %v2550, 0
    %v2946 = vsel %vm2629, %v2552, 0
    %v2949 = vsel %vm2629, %v2554, 0
    %v2952 = vsel %vm2629, %v2556, 0
    %v2955 = vsel %vm2629, %v2558, 0
    %v2958 = vsel %vm2629, %v2560, 0
    %v2961 = vsel %vm2629, %v2562, 0
    %v2964 = vsel %vm2629, %v2564, 0
    %v2967 = vsel %vm2629, %v2566, 0
    %v2970 = vsel %vm2629, %v2568, 0
    %v2973 = vsel %vm2629, %v2570, 0
    %v2976 = vsel %vm2629, %v2572, 0
    %v2979 = vsel %vm2629, %v2574, 0
    %v2982 = vsel %vm2629, %v2576, 0
    %v2985 = vsel %vm2629, %v2578, 0
    %v2988 = vsel %vm2629, %v2580, 0
    %v2991 = vsel %vm2629, %v2582, 0
    %v2994 = vsel %vm2629, %v2584, 0
    %v2997 = vsel %vm2629, %v2586, 0
    %v3000 = vsel %vm2629, %v2588, 0
    %v3003 = vsel %vm2629, %v2590, 0
    %v3006 = vsel %vm2629, %v2592, 0
    %v3009 = vsel %vm2629, %v2594, 0
    %v3012 = vsel %vm2629, %v2596, 0
    %v3015 = vsel %vm2629, %v2598, 0
    %v3018 = vsel %vm2629, %v2600, 0
    %v3021 = vsel %vm2629, %v2602, 0
    %v3024 = vsel %vm2629, %v2604, 0
    %v3027 = vsel %vm2629, %v2606, 0
    %v3030 = vsel %vm2629, %v2608, 0
    %v3033 = vsel %vm2629, %v2610, 0
    %v3036 = vsel %vm2629, %v2612, 0
    %v3039 = vsel %vm2629, %v2614, 0
    %v3042 = vsel %vm2629, %v2616, 0
    %v3045 = vsel %vm2629, %v2618, 0
    %v3048 = vsel %vm2629, %v2620, 0
    %v3051 = vsel %vm2629, %v2622, 0
    %v3054 = vsel %vm2629, %v2624, 0
    %v3057 = vsel %vm2629, %v2626, 0
    %v3060 = vsel %vm2629, %v2628, 0
    %3062 = vmatprep.subr.mxu0 0.0
    %3063 = vmatpush1.msra.mxu0 %v2218
    %3064 = vmatprep.subr.mxu0 0.0
    %3065 = vmatpush1.msra.mxu0 %v2223
    %3066 = vmatprep.subr.mxu0 0.0
    %3067 = vmatpush1.msra.mxu0 %v2228
    %3068 = vmatprep.subr.mxu0 0.0
    %3069 = vmatpush1.msra.mxu0 %v2233
    %3070 = vmatprep.subr.mxu0 0.0
    %3071 = vmatpush1.msra.mxu0 %v2238
    %3072 = vmatprep.subr.mxu0 0.0
    %3073 = vmatpush1.msra.mxu0 %v2243
    %3074 = vmatprep.subr.mxu0 0.0
    %3075 = vmatpush1.msra.mxu0 %v2248
    %3076 = vmatprep.subr.mxu0 0.0
    %3077 = vmatpush1.msra.mxu0 %v2253
    %3078 = vmatprep.subr.mxu0 0.0
    %3079 = vmatpush1.msra.mxu0 %v2258
    %3080 = vmatprep.subr.mxu0 0.0
    %3081 = vmatpush1.msra.mxu0 %v2263
    %3082 = vmatprep.subr.mxu0 0.0
    %3083 = vmatpush1.msra.mxu0 %v2268
    %3084 = vmatprep.subr.mxu0 0.0
    %3085 = vmatpush1.msra.mxu0 %v2273
    %3086 = vmatprep.subr.mxu0 0.0
    %3087 = vmatpush1.msra.mxu0 %v2278
    %3088 = vmatprep.subr.mxu0 0.0
    %3089 = vmatpush1.msra.mxu0 %v2283
    %3090 = vmatprep.subr.mxu0 0.0
    %3091 = vmatpush1.msra.mxu0 %v2288
    %3092 = vmatprep.subr.mxu0 0.0
    %3093 = vmatpush1.msra.mxu0 %v2293
    %3094 = vmatprep.subr.mxu0 0.0
    %3095 = vmatpush1.msra.mxu0 %v2298
    %3096 = vmatprep.subr.mxu0 0.0
    %3097 = vmatpush1.msra.mxu0 %v2303
    %3098 = vmatprep.subr.mxu0 0.0
    %3099 = vmatpush1.msra.mxu0 %v2308
    %3100 = vmatprep.subr.mxu0 0.0
    %3101 = vmatpush1.msra.mxu0 %v2313
    %3102 = vmatprep.subr.mxu0 0.0
    %3103 = vmatpush1.msra.mxu0 %v2318
    %3104 = vmatprep.subr.mxu0 0.0
    %3105 = vmatpush1.msra.mxu0 %v2323
    %3106 = vmatprep.subr.mxu0 0.0
    %3107 = vmatpush1.msra.mxu0 %v2328
    %3108 = vmatprep.subr.mxu0 0.0
    %3109 = vmatpush1.msra.mxu0 %v2333
    %3110 = vmatprep.subr.mxu0 0.0
    %3111 = vmatpush1.msra.mxu0 %v2338
    %3112 = vmatprep.subr.mxu0 0.0
    %3113 = vmatpush1.msra.mxu0 0.0
    %3114 = vmatprep.subr.mxu0 0.0
    %3115 = vmatpush1.msra.mxu0 0.0
    %3116 = vmatprep.subr.mxu0 0.0
    %3117 = vmatpush1.msra.mxu0 0.0
    %3118 = vmatprep.subr.mxu0 0.0
    %3119 = vmatpush1.msra.mxu0 0.0
    %3120 = vmatprep.subr.mxu0 0.0
    %3121 = vmatpush1.msra.mxu0 0.0
    %3122 = vmatprep.subr.mxu0 0.0
    %3123 = vmatpush1.msra.mxu0 0.0
    %3124 = vmatprep.subr.mxu0 0.0
    %3125 = vmatpush1.msra.mxu0 0.0
    %3126 = vmatprep.mubr.f32.mxu0 %v2631
    %3127 = vmatmul.mubr.f32.gmra.mrb[0].mxu0 %v2341
    %v3128 = vpop.f32.mrb[0].mxu0
    %v3129 = vadd.f32 0.0, %v3128
    %v3130 = vpop.f32.mrb[0].mxu0
    %3131 = vmatprep.mubr.f32.mxu0 %v2634
    %3132 = vmatmul.mubr.f32.gmra.mrb[0].mxu0 %v2343
    %v3133 = vpop.f32.mrb[0].mxu0
    %v3134 = vadd.f32 0.0, %v3133
    %v3135 = vpop.f32.mrb[0].mxu0
    %3136 = vmatprep.mubr.f32.mxu0 %v2637
    %3137 = vmatmul.mubr.f32.gmra.mrb[0].mxu0 %v2345
    %v3138 = vpop.f32.mrb[0].mxu0
    %v3139 = vadd.f32 0.0, %v3138
    %v3140 = vpop.f32.mrb[0].mxu0
    %3141 = vmatprep.mubr.f32.mxu0 %v2640
    %3142 = vmatmul.mubr.f32.gmra.mrb[0].mxu0 %v2347
    %v3143 = vpop.f32.mrb[0].mxu0
    %v3144 = vadd.f32 0.0, %v3143
    %v3145 = vpop.f32.mrb[0].mxu0
    %3146 = vmatprep.mubr.f32.mxu0 %v2643
    %3147 = vmatmul.mubr.f32.gmra.mrb[0].mxu0 %v2349
    %v3148 = vpop.f32.mrb[0].mxu0
    %v3149 = vadd.f32 0.0, %v3148
    %v3150 = vpop.f32.mrb[0].mxu0
    %3151 = vmatprep.mubr.f32.mxu0 %v2646
    %3152 = vmatmul.mubr.f32.gmra.mrb[0].mxu0 %v2351
    %v3153 = vpop.f32.mrb[0].mxu0
    %v3154 = vadd.f32 0.0, %v3153
    %v3155 = vpop.f32.mrb[0].mxu0
    %3156 = vmatprep.mubr.f32.mxu0 %v2649
    %3157 = vmatmul.mubr.f32.gmra.mrb[0].mxu0 %v2353
    %v3158 = vpop.f32.mrb[0].mxu0
    %v3159 = vadd.f32 0.0, %v3158
    %v3160 = vpop.f32.mrb[0].mxu0
    %3161 = vmatprep.mubr.f32.mxu0 %v2652
    %3162 = vmatmul.mubr.f32.gmra.mrb[0].mxu0 %v2355
    %v3163 = vpop.f32.mrb[0].mxu0
    %v3164 = vadd.f32 0.0, %v3163
    %v3165 = vpop.f32.mrb[0].mxu0
    %3166 = vmatprep.mubr.f32.mxu0 %v2655
    %3167 = vmatmul.mubr.f32.gmra.mrb[0].mxu0 %v2357
    %v3168 = vpop.f32.mrb[0].mxu0
    %v3169 = vadd.f32 0.0, %v3168
    %v3170 = vpop.f32.mrb[0].mxu0
    %3171 = vmatprep.mubr.f32.mxu0 %v2658
    %3172 = vmatmul.mubr.f32.gmra.mrb[0].mxu0 %v2359
    %v3173 = vpop.f32.mrb[0].mxu0
    %v3174 = vadd.f32 0.0, %v3173
    %v3175 = vpop.f32.mrb[0].mxu0
    %3176 = vmatprep.mubr.f32.mxu0 %v2661
    %3177 = vmatmul.mubr.f32.gmra.mrb[0].mxu0 %v2361
    %v3178 = vpop.f32.mrb[0].mxu0
    %v3179 = vadd.f32 0.0, %v3178
    %v3180 = vpop.f32.mrb[0].mxu0
    %3181 = vmatprep.mubr.f32.mxu0 %v2664
    %3182 = vmatmul.mubr.f32.gmra.mrb[0].mxu0 %v2363
    %v3183 = vpop.f32.mrb[0].mxu0
    %v3184 = vadd.f32 0.0, %v3183
    %v3185 = vpop.f32.mrb[0].mxu0
    %3186 = vmatprep.mubr.f32.mxu0 %v2667
    %3187 = vmatmul.mubr.f32.gmra.mrb[0].mxu0 %v2365
    %v3188 = vpop.f32.mrb[0].mxu0
    %v3189 = vadd.f32 0.0, %v3188
    %v3190 = vpop.f32.mrb[0].mxu0
    %3191 = vmatprep.mubr.f32.mxu0 %v2670
    %3192 = vmatmul.mubr.f32.gmra.mrb[0].mxu0 %v2367
    %v3193 = vpop.f32.mrb[0].mxu0
    %v3194 = vadd.f32 0.0, %v3193
    %v3195 = vpop.f32.mrb[0].mxu0
    %3196 = vmatprep.mubr.f32.mxu0 %v2673
    %3197 = vmatmul.mubr.f32.gmra.mrb[0].mxu0 %v2369
    %v3198 = vpop.f32.mrb[0].mxu0
    %v3199 = vadd.f32 0.0, %v3198
    %v3200 = vpop.f32.mrb[0].mxu0
    %3201 = vmatprep.mubr.f32.mxu0 %v2676
    %3202 = vmatmul.mubr.f32.gmra.mrb[0].mxu0 %v2371
    %v3203 = vpop.f32.mrb[0].mxu0
    %v3204 = vadd.f32 0.0, %v3203
    %v3205 = vpop.f32.mrb[0].mxu0
    %3206 = vmatprep.mubr.f32.mxu0 %v2679
    %3207 = vmatmul.mubr.f32.gmra.mrb[0].mxu0 %v2373
    %v3208 = vpop.f32.mrb[0].mxu0
    %v3209 = vadd.f32 0.0, %v3208
    %v3210 = vpop.f32.mrb[0].mxu0
    %3211 = vmatprep.mubr.f32.mxu0 %v2682
    %3212 = vmatmul.mubr.f32.gmra.mrb[0].mxu0 %v2375
    %v3213 = vpop.f32.mrb[0].mxu0
    %v3214 = vadd.f32 0.0, %v3213
    %v3215 = vpop.f32.mrb[0].mxu0
    %3216 = vmatprep.mubr.f32.mxu0 %v2685
    %3217 = vmatmul.mubr.f32.gmra.mrb[0].mxu0 %v2377
    %v3218 = vpop.f32.mrb[0].mxu0
    %v3219 = vadd.f32 0.0, %v3218
    %v3220 = vpop.f32.mrb[0].mxu0
    %3221 = vmatprep.mubr.f32.mxu0 %v2688
    %3222 = vmatmul.mubr.f32.gmra.mrb[0].mxu0 %v2379
    %v3223 = vpop.f32.mrb[0].mxu0
    %v3224 = vadd.f32 0.0, %v3223
    %v3225 = vpop.f32.mrb[0].mxu0
    %3226 = vmatprep.mubr.f32.mxu0 %v2691
    %3227 = vmatmul.mubr.f32.gmra.mrb[0].mxu0 %v2381
    %v3228 = vpop.f32.mrb[0].mxu0
    %v3229 = vadd.f32 0.0, %v3228
    %v3230 = vpop.f32.mrb[0].mxu0
    %3231 = vmatprep.mubr.f32.mxu0 %v2694
    %3232 = vmatmul.mubr.f32.gmra.mrb[0].mxu0 %v2383
    %v3233 = vpop.f32.mrb[0].mxu0
    %v3234 = vadd.f32 0.0, %v3233
    %v3235 = vpop.f32.mrb[0].mxu0
    %3236 = vmatprep.mubr.f32.mxu0 %v2697
    %3237 = vmatmul.mubr.f32.gmra.mrb[0].mxu0 %v2385
    %v3238 = vpop.f32.mrb[0].mxu0
    %v3239 = vadd.f32 0.0, %v3238
    %v3240 = vpop.f32.mrb[0].mxu0
    %3241 = vmatprep.mubr.f32.mxu0 %v2700
    %3242 = vmatmul.mubr.f32.gmra.mrb[0].mxu0 %v2387
    %v3243 = vpop.f32.mrb[0].mxu0
    %v3244 = vadd.f32 0.0, %v3243
    %v3245 = vpop.f32.mrb[0].mxu0
    %3246 = vmatprep.mubr.f32.mxu0 %v2703
    %3247 = vmatmul.mubr.f32.gmra.mrb[0].mxu0 %v2389
    %v3248 = vpop.f32.mrb[0].mxu0
    %v3249 = vadd.f32 0.0, %v3248
    %v3250 = vpop.f32.mrb[0].mxu0
    %3251 = vmatprep.mubr.f32.mxu0 %v2706
    %3252 = vmatmul.mubr.f32.gmra.mrb[0].mxu0 %v2391
    %v3253 = vpop.f32.mrb[0].mxu0
    %v3254 = vadd.f32 0.0, %v3253
    %v3255 = vpop.f32.mrb[0].mxu0
    %3256 = vmatprep.mubr.f32.mxu0 %v2709
    %3257 = vmatmul.mubr.f32.gmra.mrb[0].mxu0 %v2393
    %v3258 = vpop.f32.mrb[0].mxu0
    %v3259 = vadd.f32 0.0, %v3258
    %v3260 = vpop.f32.mrb[0].mxu0
    %3261 = vmatprep.mubr.f32.mxu0 %v2712
    %3262 = vmatmul.mubr.f32.gmra.mrb[0].mxu0 %v2395
    %v3263 = vpop.f32.mrb[0].mxu0
    %v3264 = vadd.f32 0.0, %v3263
    %v3265 = vpop.f32.mrb[0].mxu0
    %3266 = vmatprep.mubr.f32.mxu0 %v2715
    %3267 = vmatmul.mubr.f32.gmra.mrb[0].mxu0 %v2397
    %v3268 = vpop.f32.mrb[0].mxu0
    %v3269 = vadd.f32 0.0, %v3268
    %v3270 = vpop.f32.mrb[0].mxu0
    %3271 = vmatprep.mubr.f32.mxu0 %v2718
    %3272 = vmatmul.mubr.f32.gmra.mrb[0].mxu0 %v2399
    %v3273 = vpop.f32.mrb[0].mxu0
    %v3274 = vadd.f32 0.0, %v3273
    %v3275 = vpop.f32.mrb[0].mxu0
    %3276 = vmatprep.mubr.f32.mxu0 %v2721
    %3277 = vmatmul.mubr.f32.gmra.mrb[0].mxu0 %v2401
    %v3278 = vpop.f32.mrb[0].mxu0
    %v3279 = vadd.f32 0.0, %v3278
    %v3280 = vpop.f32.mrb[0].mxu0
    %3281 = vmatprep.mubr.f32.mxu0 %v2724
    %3282 = vmatmul.mubr.f32.gmra.mrb[0].mxu0 %v2403
    %v3283 = vpop.f32.mrb[0].mxu0
    %v3284 = vadd.f32 0.0, %v3283
    %v3285 = vpop.f32.mrb[0].mxu0
    %3286 = vmatprep.mubr.f32.mxu0 %v2727
    %3287 = vmatmul.mubr.f32.gmra.mrb[0].mxu0 %v2405
    %v3288 = vpop.f32.mrb[0].mxu0
    %v3289 = vadd.f32 0.0, %v3288
    %v3290 = vpop.f32.mrb[0].mxu0
    %3291 = vmatprep.mubr.f32.mxu0 %v2730
    %3292 = vmatmul.mubr.f32.gmra.mrb[0].mxu0 %v2407
    %v3293 = vpop.f32.mrb[0].mxu0
    %v3294 = vadd.f32 0.0, %v3293
    %v3295 = vpop.f32.mrb[0].mxu0
    %3296 = vmatprep.mubr.f32.mxu0 %v2733
    %3297 = vmatmul.mubr.f32.gmra.mrb[0].mxu0 %v2409
    %v3298 = vpop.f32.mrb[0].mxu0
    %v3299 = vadd.f32 0.0, %v3298
    %v3300 = vpop.f32.mrb[0].mxu0
    %3301 = vmatprep.mubr.f32.mxu0 %v2736
    %3302 = vmatmul.mubr.f32.gmra.mrb[0].mxu0 %v2411
    %v3303 = vpop.f32.mrb[0].mxu0
    %v3304 = vadd.f32 0.0, %v3303
    %v3305 = vpop.f32.mrb[0].mxu0
    %3306 = vmatprep.mubr.f32.mxu0 %v2739
    %3307 = vmatmul.mubr.f32.gmra.mrb[0].mxu0 %v2413
    %v3308 = vpop.f32.mrb[0].mxu0
    %v3309 = vadd.f32 0.0, %v3308
    %v3310 = vpop.f32.mrb[0].mxu0
    %3311 = vmatprep.mubr.f32.mxu0 %v2742
    %3312 = vmatmul.mubr.f32.gmra.mrb[0].mxu0 %v2415
    %v3313 = vpop.f32.mrb[0].mxu0
    %v3314 = vadd.f32 0.0, %v3313
    %v3315 = vpop.f32.mrb[0].mxu0
    %3316 = vmatprep.mubr.f32.mxu0 %v2745
    %3317 = vmatmul.mubr.f32.gmra.mrb[0].mxu0 %v2417
    %v3318 = vpop.f32.mrb[0].mxu0
    %v3319 = vadd.f32 0.0, %v3318
    %v3320 = vpop.f32.mrb[0].mxu0
    %3321 = vmatprep.mubr.f32.mxu0 %v2748
    %3322 = vmatmul.mubr.f32.gmra.mrb[0].mxu0 %v2419
    %v3323 = vpop.f32.mrb[0].mxu0
    %v3324 = vadd.f32 0.0, %v3323
    %v3325 = vpop.f32.mrb[0].mxu0
    %3326 = vmatprep.mubr.f32.mxu0 %v2751
    %3327 = vmatmul.mubr.f32.gmra.mrb[0].mxu0 %v2421
    %v3328 = vpop.f32.mrb[0].mxu0
    %v3329 = vadd.f32 0.0, %v3328
    %v3330 = vpop.f32.mrb[0].mxu0
    %3331 = vmatprep.mubr.f32.mxu0 %v2754
    %3332 = vmatmul.mubr.f32.gmra.mrb[0].mxu0 %v2423
    %v3333 = vpop.f32.mrb[0].mxu0
    %v3334 = vadd.f32 0.0, %v3333
    %v3335 = vpop.f32.mrb[0].mxu0
    %3336 = vmatprep.mubr.f32.mxu0 %v2757
    %3337 = vmatmul.mubr.f32.gmra.mrb[0].mxu0 %v2425
    %v3338 = vpop.f32.mrb[0].mxu0
    %v3339 = vadd.f32 0.0, %v3338
    %v3340 = vpop.f32.mrb[0].mxu0
    %3341 = vmatprep.mubr.f32.mxu0 %v2760
    %3342 = vmatmul.mubr.f32.gmra.mrb[0].mxu0 %v2427
    %v3343 = vpop.f32.mrb[0].mxu0
    %v3344 = vadd.f32 0.0, %v3343
    %v3345 = vpop.f32.mrb[0].mxu0
    %3346 = vmatprep.mubr.f32.mxu0 %v2763
    %3347 = vmatmul.mubr.f32.gmra.mrb[0].mxu0 %v2429
    %v3348 = vpop.f32.mrb[0].mxu0
    %v3349 = vadd.f32 0.0, %v3348
    %v3350 = vpop.f32.mrb[0].mxu0
    %3351 = vmatprep.mubr.f32.mxu0 %v2766
    %3352 = vmatmul.mubr.f32.gmra.mrb[0].mxu0 %v2431
    %v3353 = vpop.f32.mrb[0].mxu0
    %v3354 = vadd.f32 0.0, %v3353
    %v3355 = vpop.f32.mrb[0].mxu0
    %3356 = vmatprep.mubr.f32.mxu0 %v2769
    %3357 = vmatmul.mubr.f32.gmra.mrb[0].mxu0 %v2433
    %v3358 = vpop.f32.mrb[0].mxu0
    %v3359 = vadd.f32 0.0, %v3358
    %v3360 = vpop.f32.mrb[0].mxu0
    %3361 = vmatprep.mubr.f32.mxu0 %v2772
    %3362 = vmatmul.mubr.f32.gmra.mrb[0].mxu0 %v2435
    %v3363 = vpop.f32.mrb[0].mxu0
    %v3364 = vadd.f32 0.0, %v3363
    %v3365 = vpop.f32.mrb[0].mxu0
    %3366 = vmatprep.mubr.f32.mxu0 %v2775
    %3367 = vmatmul.mubr.f32.gmra.mrb[0].mxu0 %v2437
    %v3368 = vpop.f32.mrb[0].mxu0
    %v3369 = vadd.f32 0.0, %v3368
    %v3370 = vpop.f32.mrb[0].mxu0
    %3371 = vmatprep.mubr.f32.mxu0 %v2778
    %3372 = vmatmul.mubr.f32.gmra.mrb[0].mxu0 %v2439
    %v3373 = vpop.f32.mrb[0].mxu0
    %v3374 = vadd.f32 0.0, %v3373
    %v3375 = vpop.f32.mrb[0].mxu0
    %3376 = vmatprep.mubr.f32.mxu0 %v2781
    %3377 = vmatmul.mubr.f32.gmra.mrb[0].mxu0 %v2441
    %v3378 = vpop.f32.mrb[0].mxu0
    %v3379 = vadd.f32 0.0, %v3378
    %v3380 = vpop.f32.mrb[0].mxu0
    %3381 = vmatprep.mubr.f32.mxu0 %v2784
    %3382 = vmatmul.mubr.f32.gmra.mrb[0].mxu0 %v2443
    %v3383 = vpop.f32.mrb[0].mxu0
    %v3384 = vadd.f32 0.0, %v3383
    %v3385 = vpop.f32.mrb[0].mxu0
    %3386 = vmatprep.mubr.f32.mxu0 %v2787
    %3387 = vmatmul.mubr.f32.gmra.mrb[0].mxu0 %v2445
    %v3388 = vpop.f32.mrb[0].mxu0
    %v3389 = vadd.f32 0.0, %v3388
    %v3390 = vpop.f32.mrb[0].mxu0
    %3391 = vmatprep.mubr.f32.mxu0 %v2790
    %3392 = vmatmul.mubr.f32.gmra.mrb[0].mxu0 %v2447
    %v3393 = vpop.f32.mrb[0].mxu0
    %v3394 = vadd.f32 0.0, %v3393
    %v3395 = vpop.f32.mrb[0].mxu0
    %3396 = vmatprep.mubr.f32.mxu0 %v2793
    %3397 = vmatmul.mubr.f32.gmra.mrb[0].mxu0 %v2449
    %v3398 = vpop.f32.mrb[0].mxu0
    %v3399 = vadd.f32 0.0, %v3398
    %v3400 = vpop.f32.mrb[0].mxu0
    %3401 = vmatprep.mubr.f32.mxu0 %v2796
    %3402 = vmatmul.mubr.f32.gmra.mrb[0].mxu0 %v2451
    %v3403 = vpop.f32.mrb[0].mxu0
    %v3404 = vadd.f32 0.0, %v3403
    %v3405 = vpop.f32.mrb[0].mxu0
    %3406 = vmatprep.mubr.f32.mxu0 %v2799
    %3407 = vmatmul.mubr.f32.gmra.mrb[0].mxu0 %v2453
    %v3408 = vpop.f32.mrb[0].mxu0
    %v3409 = vadd.f32 0.0, %v3408
    %v3410 = vpop.f32.mrb[0].mxu0
    %3411 = vmatprep.mubr.f32.mxu0 %v2802
    %3412 = vmatmul.mubr.f32.gmra.mrb[0].mxu0 %v2455
    %v3413 = vpop.f32.mrb[0].mxu0
    %v3414 = vadd.f32 0.0, %v3413
    %v3415 = vpop.f32.mrb[0].mxu0
    %3416 = vmatprep.mubr.f32.mxu0 %v2805
    %3417 = vmatmul.mubr.f32.gmra.mrb[0].mxu0 %v2457
    %v3418 = vpop.f32.mrb[0].mxu0
    %v3419 = vadd.f32 0.0, %v3418
    %v3420 = vpop.f32.mrb[0].mxu0
    %3421 = vmatprep.mubr.f32.mxu0 %v2808
    %3422 = vmatmul.mubr.f32.gmra.mrb[0].mxu0 %v2459
    %v3423 = vpop.f32.mrb[0].mxu0
    %v3424 = vadd.f32 0.0, %v3423
    %v3425 = vpop.f32.mrb[0].mxu0
    %3426 = vmatprep.mubr.f32.mxu0 %v2811
    %3427 = vmatmul.mubr.f32.gmra.mrb[0].mxu0 %v2461
    %v3428 = vpop.f32.mrb[0].mxu0
    %v3429 = vadd.f32 0.0, %v3428
    %v3430 = vpop.f32.mrb[0].mxu0
    %3431 = vmatprep.mubr.f32.mxu0 %v2814
    %3432 = vmatmul.mubr.f32.gmra.mrb[0].mxu0 %v2463
    %v3433 = vpop.f32.mrb[0].mxu0
    %v3434 = vadd.f32 0.0, %v3433
    %v3435 = vpop.f32.mrb[0].mxu0
    %3436 = vmatprep.mubr.f32.mxu0 %v2817
    %3437 = vmatmul.mubr.f32.gmra.mrb[0].mxu0 %v2465
    %v3438 = vpop.f32.mrb[0].mxu0
    %v3439 = vadd.f32 0.0, %v3438
    %v3440 = vpop.f32.mrb[0].mxu0
    %3441 = vmatprep.mubr.f32.mxu0 %v2820
    %3442 = vmatmul.mubr.f32.gmra.mrb[0].mxu0 %v2467
    %v3443 = vpop.f32.mrb[0].mxu0
    %v3444 = vadd.f32 0.0, %v3443
    %v3445 = vpop.f32.mrb[0].mxu0
    %3446 = vmatprep.mubr.f32.mxu0 %v2823
    %3447 = vmatmul.mubr.f32.gmra.mrb[0].mxu0 %v2469
    %v3448 = vpop.f32.mrb[0].mxu0
    %v3449 = vadd.f32 0.0, %v3448
    %v3450 = vpop.f32.mrb[0].mxu0
    %3451 = vmatprep.mubr.f32.mxu0 %v2826
    %3452 = vmatmul.mubr.f32.gmra.mrb[0].mxu0 %v2471
    %v3453 = vpop.f32.mrb[0].mxu0
    %v3454 = vadd.f32 0.0, %v3453
    %v3455 = vpop.f32.mrb[0].mxu0
    %3456 = vmatprep.mubr.f32.mxu0 %v2829
    %3457 = vmatmul.mubr.f32.gmra.mrb[0].mxu0 %v2473
    %v3458 = vpop.f32.mrb[0].mxu0
    %v3459 = vadd.f32 0.0, %v3458
    %v3460 = vpop.f32.mrb[0].mxu0
    %3461 = vmatprep.mubr.f32.mxu0 %v2832
    %3462 = vmatmul.mubr.f32.gmra.mrb[0].mxu0 %v2475
    %v3463 = vpop.f32.mrb[0].mxu0
    %v3464 = vadd.f32 0.0, %v3463
    %v3465 = vpop.f32.mrb[0].mxu0
    %3466 = vmatprep.mubr.f32.mxu0 %v2835
    %3467 = vmatmul.mubr.f32.gmra.mrb[0].mxu0 %v2477
    %v3468 = vpop.f32.mrb[0].mxu0
    %v3469 = vadd.f32 0.0, %v3468
    %v3470 = vpop.f32.mrb[0].mxu0
    %3471 = vmatprep.mubr.f32.mxu0 %v2838
    %3472 = vmatmul.mubr.f32.gmra.mrb[0].mxu0 %v2479
    %v3473 = vpop.f32.mrb[0].mxu0
    %v3474 = vadd.f32 0.0, %v3473
    %v3475 = vpop.f32.mrb[0].mxu0
    %3476 = vmatprep.mubr.f32.mxu0 %v2841
    %3477 = vmatmul.mubr.f32.gmra.mrb[0].mxu0 %v2481
    %v3478 = vpop.f32.mrb[0].mxu0
    %v3479 = vadd.f32 0.0, %v3478
    %v3480 = vpop.f32.mrb[0].mxu0
    %3481 = vmatprep.mubr.f32.mxu0 %v2844
    %3482 = vmatmul.mubr.f32.gmra.mrb[0].mxu0 %v2483
    %v3483 = vpop.f32.mrb[0].mxu0
    %v3484 = vadd.f32 0.0, %v3483
    %v3485 = vpop.f32.mrb[0].mxu0
    %3486 = vmatprep.mubr.f32.mxu0 %v2847
    %3487 = vmatmul.mubr.f32.gmra.mrb[0].mxu0 %v2485
    %v3488 = vpop.f32.mrb[0].mxu0
    %v3489 = vadd.f32 0.0, %v3488
    %v3490 = vpop.f32.mrb[0].mxu0
    %3491 = vmatprep.mubr.f32.mxu0 %v2850
    %3492 = vmatmul.mubr.f32.gmra.mrb[0].mxu0 %v2487
    %v3493 = vpop.f32.mrb[0].mxu0
    %v3494 = vadd.f32 0.0, %v3493
    %v3495 = vpop.f32.mrb[0].mxu0
    %3496 = vmatprep.mubr.f32.mxu0 %v2853
    %3497 = vmatmul.mubr.f32.gmra.mrb[0].mxu0 %v2489
    %v3498 = vpop.f32.mrb[0].mxu0
    %v3499 = vadd.f32 0.0, %v3498
    %v3500 = vpop.f32.mrb[0].mxu0
    %3501 = vmatprep.mubr.f32.mxu0 %v2856
    %3502 = vmatmul.mubr.f32.gmra.mrb[0].mxu0 %v2491
    %v3503 = vpop.f32.mrb[0].mxu0
    %v3504 = vadd.f32 0.0, %v3503
    %v3505 = vpop.f32.mrb[0].mxu0
    %3506 = vmatprep.mubr.f32.mxu0 %v2859
    %3507 = vmatmul.mubr.f32.gmra.mrb[0].mxu0 %v2493
    %v3508 = vpop.f32.mrb[0].mxu0
    %v3509 = vadd.f32 0.0, %v3508
    %v3510 = vpop.f32.mrb[0].mxu0
    %3511 = vmatprep.mubr.f32.mxu0 %v2862
    %3512 = vmatmul.mubr.f32.gmra.mrb[0].mxu0 %v2495
    %v3513 = vpop.f32.mrb[0].mxu0
    %v3514 = vadd.f32 0.0, %v3513
    %v3515 = vpop.f32.mrb[0].mxu0
    %3516 = vmatprep.mubr.f32.mxu0 %v2865
    %3517 = vmatmul.mubr.f32.gmra.mrb[0].mxu0 %v2497
    %v3518 = vpop.f32.mrb[0].mxu0
    %v3519 = vadd.f32 0.0, %v3518
    %v3520 = vpop.f32.mrb[0].mxu0
    %3521 = vmatprep.mubr.f32.mxu0 %v2868
    %3522 = vmatmul.mubr.f32.gmra.mrb[0].mxu0 %v2499
    %v3523 = vpop.f32.mrb[0].mxu0
    %v3524 = vadd.f32 0.0, %v3523
    %v3525 = vpop.f32.mrb[0].mxu0
    %3526 = vmatprep.mubr.f32.mxu0 %v2871
    %3527 = vmatmul.mubr.f32.gmra.mrb[0].mxu0 %v2501
    %v3528 = vpop.f32.mrb[0].mxu0
    %v3529 = vadd.f32 0.0, %v3528
    %v3530 = vpop.f32.mrb[0].mxu0
    %3531 = vmatprep.mubr.f32.mxu0 %v2874
    %3532 = vmatmul.mubr.f32.gmra.mrb[0].mxu0 %v2503
    %v3533 = vpop.f32.mrb[0].mxu0
    %v3534 = vadd.f32 0.0, %v3533
    %v3535 = vpop.f32.mrb[0].mxu0
    %3536 = vmatprep.mubr.f32.mxu0 %v2877
    %3537 = vmatmul.mubr.f32.gmra.mrb[0].mxu0 %v2505
    %v3538 = vpop.f32.mrb[0].mxu0
    %v3539 = vadd.f32 0.0, %v3538
    %v3540 = vpop.f32.mrb[0].mxu0
    %3541 = vmatprep.mubr.f32.mxu0 %v2880
    %3542 = vmatmul.mubr.f32.gmra.mrb[0].mxu0 %v2507
    %v3543 = vpop.f32.mrb[0].mxu0
    %v3544 = vadd.f32 0.0, %v3543
    %v3545 = vpop.f32.mrb[0].mxu0
    %3546 = vmatprep.mubr.f32.mxu0 %v2883
    %3547 = vmatmul.mubr.f32.gmra.mrb[0].mxu0 %v2509
    %v3548 = vpop.f32.mrb[0].mxu0
    %v3549 = vadd.f32 0.0, %v3548
    %v3550 = vpop.f32.mrb[0].mxu0
    %3551 = vmatprep.mubr.f32.mxu0 %v2886
    %3552 = vmatmul.mubr.f32.gmra.mrb[0].mxu0 %v2511
    %v3553 = vpop.f32.mrb[0].mxu0
    %v3554 = vadd.f32 0.0, %v3553
    %v3555 = vpop.f32.mrb[0].mxu0
    %3556 = vmatprep.mubr.f32.mxu0 %v2889
    %3557 = vmatmul.mubr.f32.gmra.mrb[0].mxu0 %v2513
    %v3558 = vpop.f32.mrb[0].mxu0
    %v3559 = vadd.f32 0.0, %v3558
    %v3560 = vpop.f32.mrb[0].mxu0
    %3561 = vmatprep.mubr.f32.mxu0 %v2892
    %3562 = vmatmul.mubr.f32.gmra.mrb[0].mxu0 %v2515
    %v3563 = vpop.f32.mrb[0].mxu0
    %v3564 = vadd.f32 0.0, %v3563
    %v3565 = vpop.f32.mrb[0].mxu0
    %3566 = vmatprep.mubr.f32.mxu0 %v2895
    %3567 = vmatmul.mubr.f32.gmra.mrb[0].mxu0 %v2517
    %v3568 = vpop.f32.mrb[0].mxu0
    %v3569 = vadd.f32 0.0, %v3568
    %v3570 = vpop.f32.mrb[0].mxu0
    %3571 = vmatprep.mubr.f32.mxu0 %v2898
    %3572 = vmatmul.mubr.f32.gmra.mrb[0].mxu0 %v2519
    %v3573 = vpop.f32.mrb[0].mxu0
    %v3574 = vadd.f32 0.0, %v3573
    %v3575 = vpop.f32.mrb[0].mxu0
    %3576 = vmatprep.mubr.f32.mxu0 %v2901
    %3577 = vmatmul.mubr.f32.gmra.mrb[0].mxu0 %v2521
    %v3578 = vpop.f32.mrb[0].mxu0
    %v3579 = vadd.f32 0.0, %v3578
    %v3580 = vpop.f32.mrb[0].mxu0
    %3581 = vmatprep.mubr.f32.mxu0 %v2904
    %3582 = vmatmul.mubr.f32.gmra.mrb[0].mxu0 %v2523
    %v3583 = vpop.f32.mrb[0].mxu0
    %v3584 = vadd.f32 0.0, %v3583
    %v3585 = vpop.f32.mrb[0].mxu0
    %3586 = vmatprep.mubr.f32.mxu0 %v2907
    %3587 = vmatmul.mubr.f32.gmra.mrb[0].mxu0 %v2525
    %v3588 = vpop.f32.mrb[0].mxu0
    %v3589 = vadd.f32 0.0, %v3588
    %v3590 = vpop.f32.mrb[0].mxu0
    %3591 = vmatprep.mubr.f32.mxu0 %v2910
    %3592 = vmatmul.mubr.f32.gmra.mrb[0].mxu0 %v2527
    %v3593 = vpop.f32.mrb[0].mxu0
    %v3594 = vadd.f32 0.0, %v3593
    %v3595 = vpop.f32.mrb[0].mxu0
    %3596 = vmatprep.mubr.f32.mxu0 %v2913
    %3597 = vmatmul.mubr.f32.gmra.mrb[0].mxu0 %v2529
    %v3598 = vpop.f32.mrb[0].mxu0
    %v3599 = vadd.f32 0.0, %v3598
    %v3600 = vpop.f32.mrb[0].mxu0
    %3601 = vmatprep.mubr.f32.mxu0 %v2916
    %3602 = vmatmul.mubr.f32.gmra.mrb[0].mxu0 %v2531
    %v3603 = vpop.f32.mrb[0].mxu0
    %v3604 = vadd.f32 0.0, %v3603
    %v3605 = vpop.f32.mrb[0].mxu0
    %3606 = vmatprep.mubr.f32.mxu0 %v2919
    %3607 = vmatmul.mubr.f32.gmra.mrb[0].mxu0 %v2533
    %v3608 = vpop.f32.mrb[0].mxu0
    %v3609 = vadd.f32 0.0, %v3608
    %v3610 = vpop.f32.mrb[0].mxu0
    %3611 = vmatprep.mubr.f32.mxu0 %v2922
    %3612 = vmatmul.mubr.f32.gmra.mrb[0].mxu0 %v2535
    %v3613 = vpop.f32.mrb[0].mxu0
    %v3614 = vadd.f32 0.0, %v3613
    %v3615 = vpop.f32.mrb[0].mxu0
    %3616 = vmatprep.mubr.f32.mxu0 %v2925
    %3617 = vmatmul.mubr.f32.gmra.mrb[0].mxu0 %v2537
    %v3618 = vpop.f32.mrb[0].mxu0
    %v3619 = vadd.f32 0.0, %v3618
    %v3620 = vpop.f32.mrb[0].mxu0
    %3621 = vmatprep.mubr.f32.mxu0 %v2928
    %3622 = vmatmul.mubr.f32.gmra.mrb[0].mxu0 %v2539
    %v3623 = vpop.f32.mrb[0].mxu0
    %v3624 = vadd.f32 0.0, %v3623
    %v3625 = vpop.f32.mrb[0].mxu0
    %3626 = vmatprep.mubr.f32.mxu0 %v2931
    %3627 = vmatmul.mubr.f32.gmra.mrb[0].mxu0 %v2541
    %v3628 = vpop.f32.mrb[0].mxu0
    %v3629 = vadd.f32 0.0, %v3628
    %v3630 = vpop.f32.mrb[0].mxu0
    %3631 = vmatprep.mubr.f32.mxu0 %v2934
    %3632 = vmatmul.mubr.f32.gmra.mrb[0].mxu0 %v2543
    %v3633 = vpop.f32.mrb[0].mxu0
    %v3634 = vadd.f32 0.0, %v3633
    %v3635 = vpop.f32.mrb[0].mxu0
    %3636 = vmatprep.mubr.f32.mxu0 %v2937
    %3637 = vmatmul.mubr.f32.gmra.mrb[0].mxu0 %v2545
    %v3638 = vpop.f32.mrb[0].mxu0
    %v3639 = vadd.f32 0.0, %v3638
    %v3640 = vpop.f32.mrb[0].mxu0
    %3641 = vmatprep.mubr.f32.mxu0 %v2940
    %3642 = vmatmul.mubr.f32.gmra.mrb[0].mxu0 %v2547
    %v3643 = vpop.f32.mrb[0].mxu0
    %v3644 = vadd.f32 0.0, %v3643
    %v3645 = vpop.f32.mrb[0].mxu0
    %3646 = vmatprep.mubr.f32.mxu0 %v2943
    %3647 = vmatmul.mubr.f32.gmra.mrb[0].mxu0 %v2549
    %v3648 = vpop.f32.mrb[0].mxu0
    %v3649 = vadd.f32 0.0, %v3648
    %v3650 = vpop.f32.mrb[0].mxu0
    %3651 = vmatprep.mubr.f32.mxu0 %v2946
    %3652 = vmatmul.mubr.f32.gmra.mrb[0].mxu0 %v2551
    %v3653 = vpop.f32.mrb[0].mxu0
    %v3654 = vadd.f32 0.0, %v3653
    %v3655 = vpop.f32.mrb[0].mxu0
    %3656 = vmatprep.mubr.f32.mxu0 %v2949
    %3657 = vmatmul.mubr.f32.gmra.mrb[0].mxu0 %v2553
    %v3658 = vpop.f32.mrb[0].mxu0
    %v3659 = vadd.f32 0.0, %v3658
    %v3660 = vpop.f32.mrb[0].mxu0
    %3661 = vmatprep.mubr.f32.mxu0 %v2952
    %3662 = vmatmul.mubr.f32.gmra.mrb[0].mxu0 %v2555
    %v3663 = vpop.f32.mrb[0].mxu0
    %v3664 = vadd.f32 0.0, %v3663
    %v3665 = vpop.f32.mrb[0].mxu0
    %3666 = vmatprep.mubr.f32.mxu0 %v2955
    %3667 = vmatmul.mubr.f32.gmra.mrb[0].mxu0 %v2557
    %v3668 = vpop.f32.mrb[0].mxu0
    %v3669 = vadd.f32 0.0, %v3668
    %v3670 = vpop.f32.mrb[0].mxu0
    %3671 = vmatprep.mubr.f32.mxu0 %v2958
    %3672 = vmatmul.mubr.f32.gmra.mrb[0].mxu0 %v2559
    %v3673 = vpop.f32.mrb[0].mxu0
    %v3674 = vadd.f32 0.0, %v3673
    %v3675 = vpop.f32.mrb[0].mxu0
    %3676 = vmatprep.mubr.f32.mxu0 %v2961
    %3677 = vmatmul.mubr.f32.gmra.mrb[0].mxu0 %v2561
    %v3678 = vpop.f32.mrb[0].mxu0
    %v3679 = vadd.f32 0.0, %v3678
    %v3680 = vpop.f32.mrb[0].mxu0
    %3681 = vmatprep.mubr.f32.mxu0 %v2964
    %3682 = vmatmul.mubr.f32.gmra.mrb[0].mxu0 %v2563
    %v3683 = vpop.f32.mrb[0].mxu0
    %v3684 = vadd.f32 0.0, %v3683
    %v3685 = vpop.f32.mrb[0].mxu0
    %3686 = vmatprep.mubr.f32.mxu0 %v2967
    %3687 = vmatmul.mubr.f32.gmra.mrb[0].mxu0 %v2565
    %v3688 = vpop.f32.mrb[0].mxu0
    %v3689 = vadd.f32 0.0, %v3688
    %v3690 = vpop.f32.mrb[0].mxu0
    %3691 = vmatprep.mubr.f32.mxu0 %v2970
    %3692 = vmatmul.mubr.f32.gmra.mrb[0].mxu0 %v2567
    %v3693 = vpop.f32.mrb[0].mxu0
    %v3694 = vadd.f32 0.0, %v3693
    %v3695 = vpop.f32.mrb[0].mxu0
    %3696 = vmatprep.mubr.f32.mxu0 %v2973
    %3697 = vmatmul.mubr.f32.gmra.mrb[0].mxu0 %v2569
    %v3698 = vpop.f32.mrb[0].mxu0
    %v3699 = vadd.f32 0.0, %v3698
    %v3700 = vpop.f32.mrb[0].mxu0
    %3701 = vmatprep.mubr.f32.mxu0 %v2976
    %3702 = vmatmul.mubr.f32.gmra.mrb[0].mxu0 %v2571
    %v3703 = vpop.f32.mrb[0].mxu0
    %v3704 = vadd.f32 0.0, %v3703
    %v3705 = vpop.f32.mrb[0].mxu0
    %3706 = vmatprep.mubr.f32.mxu0 %v2979
    %3707 = vmatmul.mubr.f32.gmra.mrb[0].mxu0 %v2573
    %v3708 = vpop.f32.mrb[0].mxu0
    %v3709 = vadd.f32 0.0, %v3708
    %v3710 = vpop.f32.mrb[0].mxu0
    %3711 = vmatprep.mubr.f32.mxu0 %v2982
    %3712 = vmatmul.mubr.f32.gmra.mrb[0].mxu0 %v2575
    %v3713 = vpop.f32.mrb[0].mxu0
    %v3714 = vadd.f32 0.0, %v3713
    %v3715 = vpop.f32.mrb[0].mxu0
    %3716 = vmatprep.mubr.f32.mxu0 %v2985
    %3717 = vmatmul.mubr.f32.gmra.mrb[0].mxu0 %v2577
    %v3718 = vpop.f32.mrb[0].mxu0
    %v3719 = vadd.f32 0.0, %v3718
    %v3720 = vpop.f32.mrb[0].mxu0
    %3721 = vmatprep.mubr.f32.mxu0 %v2988
    %3722 = vmatmul.mubr.f32.gmra.mrb[0].mxu0 %v2579
    %v3723 = vpop.f32.mrb[0].mxu0
    %v3724 = vadd.f32 0.0, %v3723
    %v3725 = vpop.f32.mrb[0].mxu0
    %3726 = vmatprep.mubr.f32.mxu0 %v2991
    %3727 = vmatmul.mubr.f32.gmra.mrb[0].mxu0 %v2581
    %v3728 = vpop.f32.mrb[0].mxu0
    %v3729 = vadd.f32 0.0, %v3728
    %v3730 = vpop.f32.mrb[0].mxu0
    %3731 = vmatprep.mubr.f32.mxu0 %v2994
    %3732 = vmatmul.mubr.f32.gmra.mrb[0].mxu0 %v2583
    %v3733 = vpop.f32.mrb[0].mxu0
    %v3734 = vadd.f32 0.0, %v3733
    %v3735 = vpop.f32.mrb[0].mxu0
    %3736 = vmatprep.mubr.f32.mxu0 %v2997
    %3737 = vmatmul.mubr.f32.gmra.mrb[0].mxu0 %v2585
    %v3738 = vpop.f32.mrb[0].mxu0
    %v3739 = vadd.f32 0.0, %v3738
    %v3740 = vpop.f32.mrb[0].mxu0
    %3741 = vmatprep.mubr.f32.mxu0 %v3000
    %3742 = vmatmul.mubr.f32.gmra.mrb[0].mxu0 %v2587
    %v3743 = vpop.f32.mrb[0].mxu0
    %v3744 = vadd.f32 0.0, %v3743
    %v3745 = vpop.f32.mrb[0].mxu0
    %3746 = vmatprep.mubr.f32.mxu0 %v3003
    %3747 = vmatmul.mubr.f32.gmra.mrb[0].mxu0 %v2589
    %v3748 = vpop.f32.mrb[0].mxu0
    %v3749 = vadd.f32 0.0, %v3748
    %v3750 = vpop.f32.mrb[0].mxu0
    %3751 = vmatprep.mubr.f32.mxu0 %v3006
    %3752 = vmatmul.mubr.f32.gmra.mrb[0].mxu0 %v2591
    %v3753 = vpop.f32.mrb[0].mxu0
    %v3754 = vadd.f32 0.0, %v3753
    %v3755 = vpop.f32.mrb[0].mxu0
    %3756 = vmatprep.mubr.f32.mxu0 %v3009
    %3757 = vmatmul.mubr.f32.gmra.mrb[0].mxu0 %v2593
    %v3758 = vpop.f32.mrb[0].mxu0
    %v3759 = vadd.f32 0.0, %v3758
    %v3760 = vpop.f32.mrb[0].mxu0
    %3761 = vmatprep.mubr.f32.mxu0 %v3012
    %3762 = vmatmul.mubr.f32.gmra.mrb[0].mxu0 %v2595
    %v3763 = vpop.f32.mrb[0].mxu0
    %v3764 = vadd.f32 0.0, %v3763
    %v3765 = vpop.f32.mrb[0].mxu0
    %3766 = vmatprep.mubr.f32.mxu0 %v3015
    %3767 = vmatmul.mubr.f32.gmra.mrb[0].mxu0 %v2597
    %v3768 = vpop.f32.mrb[0].mxu0
    %v3769 = vadd.f32 0.0, %v3768
    %v3770 = vpop.f32.mrb[0].mxu0
    %3771 = vmatprep.mubr.f32.mxu0 %v3018
    %3772 = vmatmul.mubr.f32.gmra.mrb[0].mxu0 %v2599
    %v3773 = vpop.f32.mrb[0].mxu0
    %v3774 = vadd.f32 0.0, %v3773
    %v3775 = vpop.f32.mrb[0].mxu0
    %3776 = vmatprep.mubr.f32.mxu0 %v3021
    %3777 = vmatmul.mubr.f32.gmra.mrb[0].mxu0 %v2601
    %v3778 = vpop.f32.mrb[0].mxu0
    %v3779 = vadd.f32 0.0, %v3778
    %v3780 = vpop.f32.mrb[0].mxu0
    %3781 = vmatprep.mubr.f32.mxu0 %v3024
    %3782 = vmatmul.mubr.f32.gmra.mrb[0].mxu0 %v2603
    %v3783 = vpop.f32.mrb[0].mxu0
    %v3784 = vadd.f32 0.0, %v3783
    %v3785 = vpop.f32.mrb[0].mxu0
    %3786 = vmatprep.mubr.f32.mxu0 %v3027
    %3787 = vmatmul.mubr.f32.gmra.mrb[0].mxu0 %v2605
    %v3788 = vpop.f32.mrb[0].mxu0
    %v3789 = vadd.f32 0.0, %v3788
    %v3790 = vpop.f32.mrb[0].mxu0
    %3791 = vmatprep.mubr.f32.mxu0 %v3030
    %3792 = vmatmul.mubr.f32.gmra.mrb[0].mxu0 %v2607
    %v3793 = vpop.f32.mrb[0].mxu0
    %v3794 = vadd.f32 0.0, %v3793
    %v3795 = vpop.f32.mrb[0].mxu0
    %3796 = vmatprep.mubr.f32.mxu0 %v3033
    %3797 = vmatmul.mubr.f32.gmra.mrb[0].mxu0 %v2609
    %v3798 = vpop.f32.mrb[0].mxu0
    %v3799 = vadd.f32 0.0, %v3798
    %v3800 = vpop.f32.mrb[0].mxu0
    %3801 = vmatprep.mubr.f32.mxu0 %v3036
    %3802 = vmatmul.mubr.f32.gmra.mrb[0].mxu0 %v2611
    %v3803 = vpop.f32.mrb[0].mxu0
    %v3804 = vadd.f32 0.0, %v3803
    %v3805 = vpop.f32.mrb[0].mxu0
    %3806 = vmatprep.mubr.f32.mxu0 %v3039
    %3807 = vmatmul.mubr.f32.gmra.mrb[0].mxu0 %v2613
    %v3808 = vpop.f32.mrb[0].mxu0
    %v3809 = vadd.f32 0.0, %v3808
    %v3810 = vpop.f32.mrb[0].mxu0
    %3811 = vmatprep.mubr.f32.mxu0 %v3042
    %3812 = vmatmul.mubr.f32.gmra.mrb[0].mxu0 %v2615
    %v3813 = vpop.f32.mrb[0].mxu0
    %v3814 = vadd.f32 0.0, %v3813
    %v3815 = vpop.f32.mrb[0].mxu0
    %3816 = vmatprep.mubr.f32.mxu0 %v3045
    %3817 = vmatmul.mubr.f32.gmra.mrb[0].mxu0 %v2617
    %v3818 = vpop.f32.mrb[0].mxu0
    %v3819 = vadd.f32 0.0, %v3818
    %v3820 = vpop.f32.mrb[0].mxu0
    %3821 = vmatprep.mubr.f32.mxu0 %v3048
    %3822 = vmatmul.mubr.f32.gmra.mrb[0].mxu0 %v2619
    %v3823 = vpop.f32.mrb[0].mxu0
    %v3824 = vadd.f32 0.0, %v3823
    %v3825 = vpop.f32.mrb[0].mxu0
    %3826 = vmatprep.mubr.f32.mxu0 %v3051
    %3827 = vmatmul.mubr.f32.gmra.mrb[0].mxu0 %v2621
    %v3828 = vpop.f32.mrb[0].mxu0
    %v3829 = vadd.f32 0.0, %v3828
    %v3830 = vpop.f32.mrb[0].mxu0
    %3831 = vmatprep.mubr.f32.mxu0 %v3054
    %3832 = vmatmul.mubr.f32.gmra.mrb[0].mxu0 %v2623
    %v3833 = vpop.f32.mrb[0].mxu0
    %v3834 = vadd.f32 0.0, %v3833
    %v3835 = vpop.f32.mrb[0].mxu0
    %3836 = vmatprep.mubr.f32.mxu0 %v3057
    %3837 = vmatmul.mubr.f32.gmra.mrb[0].mxu0 %v2625
    %v3838 = vpop.f32.mrb[0].mxu0
    %v3839 = vadd.f32 0.0, %v3838
    %v3840 = vpop.f32.mrb[0].mxu0
    %3841 = vmatprep.mubr.f32.mxu0 %v3060
    %3842 = vmatmul.mubr.f32.gmra.mrb[0].mxu0 %v2627
    %v3843 = vpop.f32.mrb[0].mxu0
    %v3844 = vadd.f32 0.0, %v3843
    %v3845 = vpop.f32.mrb[0].mxu0
    %3846 = vdwg.mxu0
    %v3847 = vld [vmem:[%s8] sm:$0xff]
    %v3848 = vld [vmem:[%s8 + $0x8] sm:$0xff]
    %v3849 = vld [vmem:[%s8 + $0x10] sm:$0xff]
    %v3850 = vld [vmem:[%s8 + $0x18] sm:$0xff]
    %v3851 = vld [vmem:[%s8 + $0x20] sm:$0xff]
    %v3852 = vld [vmem:[%s8 + $0x28] sm:$0xff]
    %v3853 = vld [vmem:[%s8 + $0x30] sm:$0xff]
    %v3854 = vld [vmem:[%s8 + $0x38] sm:$0xff]
    %v3855 = vld [vmem:[%s8 + $0x40] sm:$0xff]
    %v3856 = vld [vmem:[%s8 + $0x48] sm:$0xff]
    %s3857 = scalar_lea.vmem %s8, 80
    %v3858 = vld [vmem:[%s3857] sm:$0xff]
    %v3859 = vld [vmem:[%s3857 + $0x8] sm:$0xff]
    %v3860 = vld [vmem:[%s3857 + $0x10] sm:$0xff]
    %v3861 = vld [vmem:[%s3857 + $0x18] sm:$0xff]
    %v3862 = vld [vmem:[%s3857 + $0x20] sm:$0xff]
    %v3863 = vld [vmem:[%s3857 + $0x28] sm:$0xff]
    %v3864 = vld [vmem:[%s3857 + $0x30] sm:$0xff]
    %v3865 = vld [vmem:[%s3857 + $0x38] sm:$0xff]
    %v3866 = vld [vmem:[%s3857 + $0x40] sm:$0xff]
    %v3867 = vld [vmem:[%s3857 + $0x48] sm:$0xff]
    %vm3868 = vcmask 654336
    %v3870 = vsel %vm3868, %v3209, 0
    %v3873 = vsel %vm3868, %v3214, 0
    %v3876 = vsel %vm3868, %v3219, 0
    %v3879 = vsel %vm3868, %v3224, 0
    %v3882 = vsel %vm3868, %v3229, 0
    %v3885 = vsel %vm3868, %v3234, 0
    %v3888 = vsel %vm3868, %v3239, 0
    %v3891 = vsel %vm3868, %v3244, 0
    %v3894 = vsel %vm3868, %v3249, 0
    %v3897 = vsel %vm3868, %v3254, 0
    %v3900 = vsel %vm3868, %v3259, 0
    %v3903 = vsel %vm3868, %v3264, 0
    %v3906 = vsel %vm3868, %v3269, 0
    %v3909 = vsel %vm3868, %v3274, 0
    %v3912 = vsel %vm3868, %v3279, 0
    %v3915 = vsel %vm3868, %v3284, 0
    %3917 = vmatprep.subr.mxu0 0.0
    %3918 = vmatpush1.msra.mxu0 %v3858
    %3919 = vmatprep.subr.mxu0 0.0
    %3920 = vmatpush1.msra.mxu0 %v3859
    %3921 = vmatprep.subr.mxu0 0.0
    %3922 = vmatpush1.msra.mxu0 %v3860
    %3923 = vmatprep.subr.mxu0 0.0
    %3924 = vmatpush1.msra.mxu0 %v3861
    %3925 = vmatprep.subr.mxu0 0.0
    %3926 = vmatpush1.msra.mxu0 %v3862
    %3927 = vmatprep.subr.mxu0 0.0
    %3928 = vmatpush1.msra.mxu0 %v3863
    %3929 = vmatprep.subr.mxu0 0.0
    %3930 = vmatpush1.msra.mxu0 %v3864
    %3931 = vmatprep.subr.mxu0 0.0
    %3932 = vmatpush1.msra.mxu0 %v3865
    %3933 = vmatprep.subr.mxu0 0.0
    %3934 = vmatpush1.msra.mxu0 %v3866
    %3935 = vmatprep.subr.mxu0 0.0
    %3936 = vmatpush1.msra.mxu0 %v3867
    %3937 = vmatprep.subr.mxu0 0.0
    %3938 = vmatpush1.msra.mxu0 0.0
    %3939 = vmatprep.subr.mxu0 0.0
    %3940 = vmatpush1.msra.mxu0 0.0
    %3941 = vmatprep.subr.mxu0 0.0
    %3942 = vmatpush1.msra.mxu0 0.0
    %3943 = vmatprep.subr.mxu0 0.0
    %3944 = vmatpush1.msra.mxu0 0.0
    %3945 = vmatprep.subr.mxu0 0.0
    %3946 = vmatpush1.msra.mxu0 0.0
    %3947 = vmatprep.subr.mxu0 0.0
    %3948 = vmatpush1.msra.mxu0 0.0
    %3949 = vmatprep.subr.mxu0 0.0
    %3950 = vmatpush1.msra.mxu0 0.0
    %3951 = vmatprep.subr.mxu0 0.0
    %3952 = vmatpush1.msra.mxu0 0.0
    %3953 = vmatprep.subr.mxu0 0.0
    %3954 = vmatpush1.msra.mxu0 0.0
    %3955 = vmatprep.subr.mxu0 0.0
    %3956 = vmatpush1.msra.mxu0 0.0
    %3957 = vmatprep.subr.mxu0 0.0
    %3958 = vmatpush1.msra.mxu0 0.0
    %3959 = vmatprep.subr.mxu0 0.0
    %3960 = vmatpush1.msra.mxu0 0.0
    %3961 = vmatprep.subr.mxu0 0.0
    %3962 = vmatpush1.msra.mxu0 0.0
    %3963 = vmatprep.subr.mxu0 0.0
    %3964 = vmatpush1.msra.mxu0 0.0
    %3965 = vmatprep.subr.mxu0 0.0
    %3966 = vmatpush1.msra.mxu0 0.0
    %3967 = vmatprep.subr.mxu0 0.0
    %3968 = vmatpush1.msra.mxu0 0.0
    %3969 = vmatprep.subr.mxu0 0.0
    %3970 = vmatpush1.msra.mxu0 0.0
    %3971 = vmatprep.subr.mxu0 0.0
    %3972 = vmatpush1.msra.mxu0 0.0
    %3973 = vmatprep.subr.mxu0 0.0
    %3974 = vmatpush1.msra.mxu0 0.0
    %3975 = vmatprep.subr.mxu0 0.0
    %3976 = vmatpush1.msra.mxu0 0.0
    %3977 = vmatprep.subr.mxu0 0.0
    %3978 = vmatpush1.msra.mxu0 0.0
    %3979 = vmatprep.subr.mxu0 0.0
    %3980 = vmatpush1.msra.mxu0 0.0
    %3981 = vmatprep.mubr.f32.mxu0 0.0
    %3982 = vmatmul.mubr.f32.gmra.mrb[0].mxu0 %v3870
    %v3983 = vpop.f32.mrb[0].mxu0
    %v3984 = vadd.f32 0.0, %v3983
    %v3985 = vpop.f32.mrb[0].mxu0
    %3986 = vmatprep.mubr.f32.mxu0 0.0
    %3987 = vmatmul.mubr.f32.gmra.mrb[0].mxu0 %v3873
    %v3988 = vpop.f32.mrb[0].mxu0
    %v3989 = vadd.f32 0.0, %v3988
    %v3990 = vpop.f32.mrb[0].mxu0
    %3991 = vmatprep.mubr.f32.mxu0 0.0
    %3992 = vmatmul.mubr.f32.gmra.mrb[0].mxu0 %v3876
    %v3993 = vpop.f32.mrb[0].mxu0
    %v3994 = vadd.f32 0.0, %v3993
    %v3995 = vpop.f32.mrb[0].mxu0
    %3996 = vmatprep.mubr.f32.mxu0 0.0
    %3997 = vmatmul.mubr.f32.gmra.mrb[0].mxu0 %v3879
    %v3998 = vpop.f32.mrb[0].mxu0
    %v3999 = vadd.f32 0.0, %v3998
    %v4000 = vpop.f32.mrb[0].mxu0
    %4001 = vmatprep.mubr.f32.mxu0 0.0
    %4002 = vmatmul.mubr.f32.gmra.mrb[0].mxu0 %v3882
    %v4003 = vpop.f32.mrb[0].mxu0
    %v4004 = vadd.f32 0.0, %v4003
    %v4005 = vpop.f32.mrb[0].mxu0
    %4006 = vmatprep.mubr.f32.mxu0 0.0
    %4007 = vmatmul.mubr.f32.gmra.mrb[0].mxu0 %v3885
    %v4008 = vpop.f32.mrb[0].mxu0
    %v4009 = vadd.f32 0.0, %v4008
    %v4010 = vpop.f32.mrb[0].mxu0
    %4011 = vmatprep.mubr.f32.mxu0 0.0
    %4012 = vmatmul.mubr.f32.gmra.mrb[0].mxu0 %v3888
    %v4013 = vpop.f32.mrb[0].mxu0
    %v4014 = vadd.f32 0.0, %v4013
    %v4015 = vpop.f32.mrb[0].mxu0
    %4016 = vmatprep.mubr.f32.mxu0 0.0
    %4017 = vmatmul.mubr.f32.gmra.mrb[0].mxu0 %v3891
    %v4018 = vpop.f32.mrb[0].mxu0
    %v4019 = vadd.f32 0.0, %v4018
    %v4020 = vpop.f32.mrb[0].mxu0
    %4021 = vmatprep.mubr.f32.mxu0 0.0
    %4022 = vmatmul.mubr.f32.gmra.mrb[0].mxu0 %v3894
    %v4023 = vpop.f32.mrb[0].mxu0
    %v4024 = vadd.f32 0.0, %v4023
    %v4025 = vpop.f32.mrb[0].mxu0
    %4026 = vmatprep.mubr.f32.mxu0 0.0
    %4027 = vmatmul.mubr.f32.gmra.mrb[0].mxu0 %v3897
    %v4028 = vpop.f32.mrb[0].mxu0
    %v4029 = vadd.f32 0.0, %v4028
    %v4030 = vpop.f32.mrb[0].mxu0
    %4031 = vmatprep.mubr.f32.mxu0 0.0
    %4032 = vmatmul.mubr.f32.gmra.mrb[0].mxu0 %v3900
    %v4033 = vpop.f32.mrb[0].mxu0
    %v4034 = vadd.f32 0.0, %v4033
    %v4035 = vpop.f32.mrb[0].mxu0
    %4036 = vmatprep.mubr.f32.mxu0 0.0
    %4037 = vmatmul.mubr.f32.gmra.mrb[0].mxu0 %v3903
    %v4038 = vpop.f32.mrb[0].mxu0
    %v4039 = vadd.f32 0.0, %v4038
    %v4040 = vpop.f32.mrb[0].mxu0
    %4041 = vmatprep.mubr.f32.mxu0 0.0
    %4042 = vmatmul.mubr.f32.gmra.mrb[0].mxu0 %v3906
    %v4043 = vpop.f32.mrb[0].mxu0
    %v4044 = vadd.f32 0.0, %v4043
    %v4045 = vpop.f32.mrb[0].mxu0
    %4046 = vmatprep.mubr.f32.mxu0 0.0
    %4047 = vmatmul.mubr.f32.gmra.mrb[0].mxu0 %v3909
    %v4048 = vpop.f32.mrb[0].mxu0
    %v4049 = vadd.f32 0.0, %v4048
    %v4050 = vpop.f32.mrb[0].mxu0
    %4051 = vmatprep.mubr.f32.mxu0 0.0
    %4052 = vmatmul.mubr.f32.gmra.mrb[0].mxu0 %v3912
    %v4053 = vpop.f32.mrb[0].mxu0
    %v4054 = vadd.f32 0.0, %v4053
    %v4055 = vpop.f32.mrb[0].mxu0
    %4056 = vmatprep.mubr.f32.mxu0 0.0
    %4057 = vmatmul.mubr.f32.gmra.mrb[0].mxu0 %v3915
    %v4058 = vpop.f32.mrb[0].mxu0
    %v4059 = vadd.f32 0.0, %v4058
    %v4060 = vpop.f32.mrb[0].mxu0
    %4061 = vdwg.mxu0
    %v4063 = vsel %vm3868, %v3129, 0
    %v4066 = vsel %vm3868, %v3134, 0
    %v4069 = vsel %vm3868, %v3139, 0
    %v4072 = vsel %vm3868, %v3144, 0
    %v4075 = vsel %vm3868, %v3149, 0
    %v4078 = vsel %vm3868, %v3154, 0
    %v4081 = vsel %vm3868, %v3159, 0
    %v4084 = vsel %vm3868, %v3164, 0
    %v4087 = vsel %vm3868, %v3169, 0
    %v4090 = vsel %vm3868, %v3174, 0
    %v4093 = vsel %vm3868, %v3179, 0
    %v4096 = vsel %vm3868, %v3184, 0
    %v4099 = vsel %vm3868, %v3189, 0
    %v4102 = vsel %vm3868, %v3194, 0
    %v4105 = vsel %vm3868, %v3199, 0
    %v4108 = vsel %vm3868, %v3204, 0
    %4110 = vmatprep.subr.mxu0 0.0
    %4111 = vmatpush1.msra.mxu0 %v3847
    %4112 = vmatprep.subr.mxu0 0.0
    %4113 = vmatpush1.msra.mxu0 %v3848
    %4114 = vmatprep.subr.mxu0 0.0
    %4115 = vmatpush1.msra.mxu0 %v3849
    %4116 = vmatprep.subr.mxu0 0.0
    %4117 = vmatpush1.msra.mxu0 %v3850
    %4118 = vmatprep.subr.mxu0 0.0
    %4119 = vmatpush1.msra.mxu0 %v3851
    %4120 = vmatprep.subr.mxu0 0.0
    %4121 = vmatpush1.msra.mxu0 %v3852
    %4122 = vmatprep.subr.mxu0 0.0
    %4123 = vmatpush1.msra.mxu0 %v3853
    %4124 = vmatprep.subr.mxu0 0.0
    %4125 = vmatpush1.msra.mxu0 %v3854
    %4126 = vmatprep.subr.mxu0 0.0
    %4127 = vmatpush1.msra.mxu0 %v3855
    %4128 = vmatprep.subr.mxu0 0.0
    %4129 = vmatpush1.msra.mxu0 %v3856
    %4130 = vmatprep.subr.mxu0 0.0
    %4131 = vmatpush1.msra.mxu0 0.0
    %4132 = vmatprep.subr.mxu0 0.0
    %4133 = vmatpush1.msra.mxu0 0.0
    %4134 = vmatprep.subr.mxu0 0.0
    %4135 = vmatpush1.msra.mxu0 0.0
    %4136 = vmatprep.subr.mxu0 0.0
    %4137 = vmatpush1.msra.mxu0 0.0
    %4138 = vmatprep.subr.mxu0 0.0
    %4139 = vmatpush1.msra.mxu0 0.0
    %4140 = vmatprep.subr.mxu0 0.0
    %4141 = vmatpush1.msra.mxu0 0.0
    %4142 = vmatprep.subr.mxu0 0.0
    %4143 = vmatpush1.msra.mxu0 0.0
    %4144 = vmatprep.subr.mxu0 0.0
    %4145 = vmatpush1.msra.mxu0 0.0
    %4146 = vmatprep.subr.mxu0 0.0
    %4147 = vmatpush1.msra.mxu0 0.0
    %4148 = vmatprep.subr.mxu0 0.0
    %4149 = vmatpush1.msra.mxu0 0.0
    %4150 = vmatprep.subr.mxu0 0.0
    %4151 = vmatpush1.msra.mxu0 0.0
    %4152 = vmatprep.subr.mxu0 0.0
    %4153 = vmatpush1.msra.mxu0 0.0
    %4154 = vmatprep.subr.mxu0 0.0
    %4155 = vmatpush1.msra.mxu0 0.0
    %4156 = vmatprep.subr.mxu0 0.0
    %4157 = vmatpush1.msra.mxu0 0.0
    %4158 = vmatprep.subr.mxu0 0.0
    %4159 = vmatpush1.msra.mxu0 0.0
    %4160 = vmatprep.subr.mxu0 0.0
    %4161 = vmatpush1.msra.mxu0 0.0
    %4162 = vmatprep.subr.mxu0 0.0
    %4163 = vmatpush1.msra.mxu0 0.0
    %4164 = vmatprep.subr.mxu0 0.0
    %4165 = vmatpush1.msra.mxu0 0.0
    %4166 = vmatprep.subr.mxu0 0.0
    %4167 = vmatpush1.msra.mxu0 0.0
    %4168 = vmatprep.subr.mxu0 0.0
    %4169 = vmatpush1.msra.mxu0 0.0
    %4170 = vmatprep.subr.mxu0 0.0
    %4171 = vmatpush1.msra.mxu0 0.0
    %4172 = vmatprep.subr.mxu0 0.0
    %4173 = vmatpush1.msra.mxu0 0.0
    %4174 = vmatprep.mubr.f32.mxu0 0.0
    %4175 = vmatmul.mubr.f32.gmra.mrb[0].mxu0 %v4063
    %v4176 = vpop.f32.mrb[0].mxu0
    %v4177 = vadd.f32 %v3984, %v4176
    %v4178 = vpop.f32.mrb[0].mxu0
    %4179 = vmatprep.mubr.f32.mxu0 0.0
    %4180 = vmatmul.mubr.f32.gmra.mrb[0].mxu0 %v4066
    %v4181 = vpop.f32.mrb[0].mxu0
    %v4182 = vadd.f32 %v3989, %v4181
    %v4183 = vpop.f32.mrb[0].mxu0
    %4184 = vmatprep.mubr.f32.mxu0 0.0
    %4185 = vmatmul.mubr.f32.gmra.mrb[0].mxu0 %v4069
    %v4186 = vpop.f32.mrb[0].mxu0
    %v4187 = vadd.f32 %v3994, %v4186
    %v4188 = vpop.f32.mrb[0].mxu0
    %4189 = vmatprep.mubr.f32.mxu0 0.0
    %4190 = vmatmul.mubr.f32.gmra.mrb[0].mxu0 %v4072
    %v4191 = vpop.f32.mrb[0].mxu0
    %v4192 = vadd.f32 %v3999, %v4191
    %v4193 = vpop.f32.mrb[0].mxu0
    %4194 = vmatprep.mubr.f32.mxu0 0.0
    %4195 = vmatmul.mubr.f32.gmra.mrb[0].mxu0 %v4075
    %v4196 = vpop.f32.mrb[0].mxu0
    %v4197 = vadd.f32 %v4004, %v4196
    %v4198 = vpop.f32.mrb[0].mxu0
    %4199 = vmatprep.mubr.f32.mxu0 0.0
    %4200 = vmatmul.mubr.f32.gmra.mrb[0].mxu0 %v4078
    %v4201 = vpop.f32.mrb[0].mxu0
    %v4202 = vadd.f32 %v4009, %v4201
    %v4203 = vpop.f32.mrb[0].mxu0
    %4204 = vmatprep.mubr.f32.mxu0 0.0
    %4205 = vmatmul.mubr.f32.gmra.mrb[0].mxu0 %v4081
    %v4206 = vpop.f32.mrb[0].mxu0
    %v4207 = vadd.f32 %v4014, %v4206
    %v4208 = vpop.f32.mrb[0].mxu0
    %4209 = vmatprep.mubr.f32.mxu0 0.0
    %4210 = vmatmul.mubr.f32.gmra.mrb[0].mxu0 %v4084
    %v4211 = vpop.f32.mrb[0].mxu0
    %v4212 = vadd.f32 %v4019, %v4211
    %v4213 = vpop.f32.mrb[0].mxu0
    %4214 = vmatprep.mubr.f32.mxu0 0.0
    %4215 = vmatmul.mubr.f32.gmra.mrb[0].mxu0 %v4087
    %v4216 = vpop.f32.mrb[0].mxu0
    %v4217 = vadd.f32 %v4024, %v4216
    %v4218 = vpop.f32.mrb[0].mxu0
    %4219 = vmatprep.mubr.f32.mxu0 0.0
    %4220 = vmatmul.mubr.f32.gmra.mrb[0].mxu0 %v4090
    %v4221 = vpop.f32.mrb[0].mxu0
    %v4222 = vadd.f32 %v4029, %v4221
    %v4223 = vpop.f32.mrb[0].mxu0
    %4224 = vmatprep.mubr.f32.mxu0 0.0
    %4225 = vmatmul.mubr.f32.gmra.mrb[0].mxu0 %v4093
    %v4226 = vpop.f32.mrb[0].mxu0
    %v4227 = vadd.f32 %v4034, %v4226
    %v4228 = vpop.f32.mrb[0].mxu0
    %4229 = vmatprep.mubr.f32.mxu0 0.0
    %4230 = vmatmul.mubr.f32.gmra.mrb[0].mxu0 %v4096
    %v4231 = vpop.f32.mrb[0].mxu0
    %v4232 = vadd.f32 %v4039, %v4231
    %v4233 = vpop.f32.mrb[0].mxu0
    %4234 = vmatprep.mubr.f32.mxu0 0.0
    %4235 = vmatmul.mubr.f32.gmra.mrb[0].mxu0 %v4099
    %v4236 = vpop.f32.mrb[0].mxu0
    %v4237 = vadd.f32 %v4044, %v4236
    %v4238 = vpop.f32.mrb[0].mxu0
    %4239 = vmatprep.mubr.f32.mxu0 0.0
    %4240 = vmatmul.mubr.f32.gmra.mrb[0].mxu0 %v4102
    %v4241 = vpop.f32.mrb[0].mxu0
    %v4242 = vadd.f32 %v4049, %v4241
    %v4243 = vpop.f32.mrb[0].mxu0
    %4244 = vmatprep.mubr.f32.mxu0 0.0
    %4245 = vmatmul.mubr.f32.gmra.mrb[0].mxu0 %v4105
    %v4246 = vpop.f32.mrb[0].mxu0
    %v4247 = vadd.f32 %v4054, %v4246
    %v4248 = vpop.f32.mrb[0].mxu0
    %4249 = vmatprep.mubr.f32.mxu0 0.0
    %4250 = vmatmul.mubr.f32.gmra.mrb[0].mxu0 %v4108
    %v4251 = vpop.f32.mrb[0].mxu0
    %v4252 = vadd.f32 %v4059, %v4251
    %v4253 = vpop.f32.mrb[0].mxu0
    %4254 = vdwg.mxu0
    %s4255 = scalar_lea.vmem %s8, 160
    %v4256 = vld [vmem:[%s4255] sm:$0xff]
    %v4257 = vld [vmem:[%s4255 + $0x8] sm:$0xff]
    %v4258 = vld [vmem:[%s4255 + $0x10] sm:$0xff]
    %v4259 = vld [vmem:[%s4255 + $0x18] sm:$0xff]
    %v4260 = vld [vmem:[%s4255 + $0x20] sm:$0xff]
    %v4261 = vld [vmem:[%s4255 + $0x28] sm:$0xff]
    %v4262 = vld [vmem:[%s4255 + $0x30] sm:$0xff]
    %v4263 = vld [vmem:[%s4255 + $0x38] sm:$0xff]
    %v4264 = vld [vmem:[%s4255 + $0x40] sm:$0xff]
    %v4265 = vld [vmem:[%s4255 + $0x48] sm:$0xff]
    %v4267 = vsel %vm3868, %v3289, 0
    %v4270 = vsel %vm3868, %v3294, 0
    %v4273 = vsel %vm3868, %v3299, 0
    %v4276 = vsel %vm3868, %v3304, 0
    %v4279 = vsel %vm3868, %v3309, 0
    %v4282 = vsel %vm3868, %v3314, 0
    %v4285 = vsel %vm3868, %v3319, 0
    %v4288 = vsel %vm3868, %v3324, 0
    %v4291 = vsel %vm3868, %v3329, 0
    %v4294 = vsel %vm3868, %v3334, 0
    %v4297 = vsel %vm3868, %v3339, 0
    %v4300 = vsel %vm3868, %v3344, 0
    %v4303 = vsel %vm3868, %v3349, 0
    %v4306 = vsel %vm3868, %v3354, 0
    %v4309 = vsel %vm3868, %v3359, 0
    %v4312 = vsel %vm3868, %v3364, 0
    %4314 = vmatprep.subr.mxu0 0.0
    %4315 = vmatpush1.msra.mxu0 %v4256
    %4316 = vmatprep.subr.mxu0 0.0
    %4317 = vmatpush1.msra.mxu0 %v4257
    %4318 = vmatprep.subr.mxu0 0.0
    %4319 = vmatpush1.msra.mxu0 %v4258
    %4320 = vmatprep.subr.mxu0 0.0
    %4321 = vmatpush1.msra.mxu0 %v4259
    %4322 = vmatprep.subr.mxu0 0.0
    %4323 = vmatpush1.msra.mxu0 %v4260
    %4324 = vmatprep.subr.mxu0 0.0
    %4325 = vmatpush1.msra.mxu0 %v4261
    %4326 = vmatprep.subr.mxu0 0.0
    %4327 = vmatpush1.msra.mxu0 %v4262
    %4328 = vmatprep.subr.mxu0 0.0
    %4329 = vmatpush1.msra.mxu0 %v4263
    %4330 = vmatprep.subr.mxu0 0.0
    %4331 = vmatpush1.msra.mxu0 %v4264
    %4332 = vmatprep.subr.mxu0 0.0
    %4333 = vmatpush1.msra.mxu0 %v4265
    %4334 = vmatprep.subr.mxu0 0.0
    %4335 = vmatpush1.msra.mxu0 0.0
    %4336 = vmatprep.subr.mxu0 0.0
    %4337 = vmatpush1.msra.mxu0 0.0
    %4338 = vmatprep.subr.mxu0 0.0
    %4339 = vmatpush1.msra.mxu0 0.0
    %4340 = vmatprep.subr.mxu0 0.0
    %4341 = vmatpush1.msra.mxu0 0.0
    %4342 = vmatprep.subr.mxu0 0.0
    %4343 = vmatpush1.msra.mxu0 0.0
    %4344 = vmatprep.subr.mxu0 0.0
    %4345 = vmatpush1.msra.mxu0 0.0
    %4346 = vmatprep.subr.mxu0 0.0
    %4347 = vmatpush1.msra.mxu0 0.0
    %4348 = vmatprep.subr.mxu0 0.0
    %4349 = vmatpush1.msra.mxu0 0.0
    %4350 = vmatprep.subr.mxu0 0.0
    %4351 = vmatpush1.msra.mxu0 0.0
    %4352 = vmatprep.subr.mxu0 0.0
    %4353 = vmatpush1.msra.mxu0 0.0
    %4354 = vmatprep.subr.mxu0 0.0
    %4355 = vmatpush1.msra.mxu0 0.0
    %4356 = vmatprep.subr.mxu0 0.0
    %4357 = vmatpush1.msra.mxu0 0.0
    %4358 = vmatprep.subr.mxu0 0.0
    %4359 = vmatpush1.msra.mxu0 0.0
    %4360 = vmatprep.subr.mxu0 0.0
    %4361 = vmatpush1.msra.mxu0 0.0
    %4362 = vmatprep.subr.mxu0 0.0
    %4363 = vmatpush1.msra.mxu0 0.0
    %4364 = vmatprep.subr.mxu0 0.0
    %4365 = vmatpush1.msra.mxu0 0.0
    %4366 = vmatprep.subr.mxu0 0.0
    %4367 = vmatpush1.msra.mxu0 0.0
    %4368 = vmatprep.subr.mxu0 0.0
    %4369 = vmatpush1.msra.mxu0 0.0
    %4370 = vmatprep.subr.mxu0 0.0
    %4371 = vmatpush1.msra.mxu0 0.0
    %4372 = vmatprep.subr.mxu0 0.0
    %4373 = vmatpush1.msra.mxu0 0.0
    %4374 = vmatprep.subr.mxu0 0.0
    %4375 = vmatpush1.msra.mxu0 0.0
    %4376 = vmatprep.subr.mxu0 0.0
    %4377 = vmatpush1.msra.mxu0 0.0
    %4378 = vmatprep.mubr.f32.mxu0 0.0
    %4379 = vmatmul.mubr.f32.gmra.mrb[0].mxu0 %v4267
    %v4380 = vpop.f32.mrb[0].mxu0
    %v4381 = vadd.f32 0.0, %v4380
    %v4382 = vpop.f32.mrb[0].mxu0
    %4383 = vmatprep.mubr.f32.mxu0 0.0
    %4384 = vmatmul.mubr.f32.gmra.mrb[0].mxu0 %v4270
    %v4385 = vpop.f32.mrb[0].mxu0
    %v4386 = vadd.f32 0.0, %v4385
    %v4387 = vpop.f32.mrb[0].mxu0
    %4388 = vmatprep.mubr.f32.mxu0 0.0
    %4389 = vmatmul.mubr.f32.gmra.mrb[0].mxu0 %v4273
    %v4390 = vpop.f32.mrb[0].mxu0
    %v4391 = vadd.f32 0.0, %v4390
    %v4392 = vpop.f32.mrb[0].mxu0
    %4393 = vmatprep.mubr.f32.mxu0 0.0
    %4394 = vmatmul.mubr.f32.gmra.mrb[0].mxu0 %v4276
    %v4395 = vpop.f32.mrb[0].mxu0
    %v4396 = vadd.f32 0.0, %v4395
    %v4397 = vpop.f32.mrb[0].mxu0
    %4398 = vmatprep.mubr.f32.mxu0 0.0
    %4399 = vmatmul.mubr.f32.gmra.mrb[0].mxu0 %v4279
    %v4400 = vpop.f32.mrb[0].mxu0
    %v4401 = vadd.f32 0.0, %v4400
    %v4402 = vpop.f32.mrb[0].mxu0
    %4403 = vmatprep.mubr.f32.mxu0 0.0
    %4404 = vmatmul.mubr.f32.gmra.mrb[0].mxu0 %v4282
    %v4405 = vpop.f32.mrb[0].mxu0
    %v4406 = vadd.f32 0.0, %v4405
    %v4407 = vpop.f32.mrb[0].mxu0
    %4408 = vmatprep.mubr.f32.mxu0 0.0
    %4409 = vmatmul.mubr.f32.gmra.mrb[0].mxu0 %v4285
    %v4410 = vpop.f32.mrb[0].mxu0
    %v4411 = vadd.f32 0.0, %v4410
    %v4412 = vpop.f32.mrb[0].mxu0
    %4413 = vmatprep.mubr.f32.mxu0 0.0
    %4414 = vmatmul.mubr.f32.gmra.mrb[0].mxu0 %v4288
    %v4415 = vpop.f32.mrb[0].mxu0
    %v4416 = vadd.f32 0.0, %v4415
    %v4417 = vpop.f32.mrb[0].mxu0
    %4418 = vmatprep.mubr.f32.mxu0 0.0
    %4419 = vmatmul.mubr.f32.gmra.mrb[0].mxu0 %v4291
    %v4420 = vpop.f32.mrb[0].mxu0
    %v4421 = vadd.f32 0.0, %v4420
    %v4422 = vpop.f32.mrb[0].mxu0
    %4423 = vmatprep.mubr.f32.mxu0 0.0
    %4424 = vmatmul.mubr.f32.gmra.mrb[0].mxu0 %v4294
    %v4425 = vpop.f32.mrb[0].mxu0
    %v4426 = vadd.f32 0.0, %v4425
    %v4427 = vpop.f32.mrb[0].mxu0
    %4428 = vmatprep.mubr.f32.mxu0 0.0
    %4429 = vmatmul.mubr.f32.gmra.mrb[0].mxu0 %v4297
    %v4430 = vpop.f32.mrb[0].mxu0
    %v4431 = vadd.f32 0.0, %v4430
    %v4432 = vpop.f32.mrb[0].mxu0
    %4433 = vmatprep.mubr.f32.mxu0 0.0
    %4434 = vmatmul.mubr.f32.gmra.mrb[0].mxu0 %v4300
    %v4435 = vpop.f32.mrb[0].mxu0
    %v4436 = vadd.f32 0.0, %v4435
    %v4437 = vpop.f32.mrb[0].mxu0
    %4438 = vmatprep.mubr.f32.mxu0 0.0
    %4439 = vmatmul.mubr.f32.gmra.mrb[0].mxu0 %v4303
    %v4440 = vpop.f32.mrb[0].mxu0
    %v4441 = vadd.f32 0.0, %v4440
    %v4442 = vpop.f32.mrb[0].mxu0
    %4443 = vmatprep.mubr.f32.mxu0 0.0
    %4444 = vmatmul.mubr.f32.gmra.mrb[0].mxu0 %v4306
    %v4445 = vpop.f32.mrb[0].mxu0
    %v4446 = vadd.f32 0.0, %v4445
    %v4447 = vpop.f32.mrb[0].mxu0
    %4448 = vmatprep.mubr.f32.mxu0 0.0
    %4449 = vmatmul.mubr.f32.gmra.mrb[0].mxu0 %v4309
    %v4450 = vpop.f32.mrb[0].mxu0
    %v4451 = vadd.f32 0.0, %v4450
    %v4452 = vpop.f32.mrb[0].mxu0
    %4453 = vmatprep.mubr.f32.mxu0 0.0
    %4454 = vmatmul.mubr.f32.gmra.mrb[0].mxu0 %v4312
    %v4455 = vpop.f32.mrb[0].mxu0
    %v4456 = vadd.f32 0.0, %v4455
    %v4457 = vpop.f32.mrb[0].mxu0
    %4458 = vdwg.mxu0
    %v4459 = vadd.f32 %v4177, %v4381
    %v4460 = vadd.f32 %v4182, %v4386
    %v4461 = vadd.f32 %v4187, %v4391
    %v4462 = vadd.f32 %v4192, %v4396
    %v4463 = vadd.f32 %v4197, %v4401
    %v4464 = vadd.f32 %v4202, %v4406
    %v4465 = vadd.f32 %v4207, %v4411
    %v4466 = vadd.f32 %v4212, %v4416
    %v4467 = vadd.f32 %v4217, %v4421
    %v4468 = vadd.f32 %v4222, %v4426
    %v4469 = vadd.f32 %v4227, %v4431
    %v4470 = vadd.f32 %v4232, %v4436
    %v4471 = vadd.f32 %v4237, %v4441
    %v4472 = vadd.f32 %v4242, %v4446
    %v4473 = vadd.f32 %v4247, %v4451
    %v4474 = vadd.f32 %v4252, %v4456
    %s4475 = scalar_lea.vmem %s8, 240
    %v4476 = vld [vmem:[%s4475] sm:$0xff]
    %v4477 = vld [vmem:[%s4475 + $0x8] sm:$0xff]
    %v4478 = vld [vmem:[%s4475 + $0x10] sm:$0xff]
    %v4479 = vld [vmem:[%s4475 + $0x18] sm:$0xff]
    %v4480 = vld [vmem:[%s4475 + $0x20] sm:$0xff]
    %v4481 = vld [vmem:[%s4475 + $0x28] sm:$0xff]
    %v4482 = vld [vmem:[%s4475 + $0x30] sm:$0xff]
    %v4483 = vld [vmem:[%s4475 + $0x38] sm:$0xff]
    %v4484 = vld [vmem:[%s4475 + $0x40] sm:$0xff]
    %v4485 = vld [vmem:[%s4475 + $0x48] sm:$0xff]
    %v4487 = vsel %vm3868, %v3369, 0
    %v4490 = vsel %vm3868, %v3374, 0
    %v4493 = vsel %vm3868, %v3379, 0
    %v4496 = vsel %vm3868, %v3384, 0
    %v4499 = vsel %vm3868, %v3389, 0
    %v4502 = vsel %vm3868, %v3394, 0
    %v4505 = vsel %vm3868, %v3399, 0
    %v4508 = vsel %vm3868, %v3404, 0
    %v4511 = vsel %vm3868, %v3409, 0
    %v4514 = vsel %vm3868, %v3414, 0
    %v4517 = vsel %vm3868, %v3419, 0
    %v4520 = vsel %vm3868, %v3424, 0
    %v4523 = vsel %vm3868, %v3429, 0
    %v4526 = vsel %vm3868, %v3434, 0
    %v4529 = vsel %vm3868, %v3439, 0
    %v4532 = vsel %vm3868, %v3444, 0
    %4534 = vmatprep.subr.mxu0 0.0
    %4535 = vmatpush1.msra.mxu0 %v4476
    %4536 = vmatprep.subr.mxu0 0.0
    %4537 = vmatpush1.msra.mxu0 %v4477
    %4538 = vmatprep.subr.mxu0 0.0
    %4539 = vmatpush1.msra.mxu0 %v4478
    %4540 = vmatprep.subr.mxu0 0.0
    %4541 = vmatpush1.msra.mxu0 %v4479
    %4542 = vmatprep.subr.mxu0 0.0
    %4543 = vmatpush1.msra.mxu0 %v4480
    %4544 = vmatprep.subr.mxu0 0.0
    %4545 = vmatpush1.msra.mxu0 %v4481
    %4546 = vmatprep.subr.mxu0 0.0
    %4547 = vmatpush1.msra.mxu0 %v4482
    %4548 = vmatprep.subr.mxu0 0.0
    %4549 = vmatpush1.msra.mxu0 %v4483
    %4550 = vmatprep.subr.mxu0 0.0
    %4551 = vmatpush1.msra.mxu0 %v4484
    %4552 = vmatprep.subr.mxu0 0.0
    %4553 = vmatpush1.msra.mxu0 %v4485
    %4554 = vmatprep.subr.mxu0 0.0
    %4555 = vmatpush1.msra.mxu0 0.0
    %4556 = vmatprep.subr.mxu0 0.0
    %4557 = vmatpush1.msra.mxu0 0.0
    %4558 = vmatprep.subr.mxu0 0.0
    %4559 = vmatpush1.msra.mxu0 0.0
    %4560 = vmatprep.subr.mxu0 0.0
    %4561 = vmatpush1.msra.mxu0 0.0
    %4562 = vmatprep.subr.mxu0 0.0
    %4563 = vmatpush1.msra.mxu0 0.0
    %4564 = vmatprep.subr.mxu0 0.0
    %4565 = vmatpush1.msra.mxu0 0.0
    %4566 = vmatprep.subr.mxu0 0.0
    %4567 = vmatpush1.msra.mxu0 0.0
    %4568 = vmatprep.subr.mxu0 0.0
    %4569 = vmatpush1.msra.mxu0 0.0
    %4570 = vmatprep.subr.mxu0 0.0
    %4571 = vmatpush1.msra.mxu0 0.0
    %4572 = vmatprep.subr.mxu0 0.0
    %4573 = vmatpush1.msra.mxu0 0.0
    %4574 = vmatprep.subr.mxu0 0.0
    %4575 = vmatpush1.msra.mxu0 0.0
    %4576 = vmatprep.subr.mxu0 0.0
    %4577 = vmatpush1.msra.mxu0 0.0
    %4578 = vmatprep.subr.mxu0 0.0
    %4579 = vmatpush1.msra.mxu0 0.0
    %4580 = vmatprep.subr.mxu0 0.0
    %4581 = vmatpush1.msra.mxu0 0.0
    %4582 = vmatprep.subr.mxu0 0.0
    %4583 = vmatpush1.msra.mxu0 0.0
    %4584 = vmatprep.subr.mxu0 0.0
    %4585 = vmatpush1.msra.mxu0 0.0
    %4586 = vmatprep.subr.mxu0 0.0
    %4587 = vmatpush1.msra.mxu0 0.0
    %4588 = vmatprep.subr.mxu0 0.0
    %4589 = vmatpush1.msra.mxu0 0.0
    %4590 = vmatprep.subr.mxu0 0.0
    %4591 = vmatpush1.msra.mxu0 0.0
    %4592 = vmatprep.subr.mxu0 0.0
    %4593 = vmatpush1.msra.mxu0 0.0
    %4594 = vmatprep.subr.mxu0 0.0
    %4595 = vmatpush1.msra.mxu0 0.0
    %4596 = vmatprep.subr.mxu0 0.0
    %4597 = vmatpush1.msra.mxu0 0.0
    %4598 = vmatprep.mubr.f32.mxu0 0.0
    %4599 = vmatmul.mubr.f32.gmra.mrb[0].mxu0 %v4487
    %v4600 = vpop.f32.mrb[0].mxu0
    %v4601 = vadd.f32 0.0, %v4600
    %v4602 = vpop.f32.mrb[0].mxu0
    %4603 = vmatprep.mubr.f32.mxu0 0.0
    %4604 = vmatmul.mubr.f32.gmra.mrb[0].mxu0 %v4490
    %v4605 = vpop.f32.mrb[0].mxu0
    %v4606 = vadd.f32 0.0, %v4605
    %v4607 = vpop.f32.mrb[0].mxu0
    %4608 = vmatprep.mubr.f32.mxu0 0.0
    %4609 = vmatmul.mubr.f32.gmra.mrb[0].mxu0 %v4493
    %v4610 = vpop.f32.mrb[0].mxu0
    %v4611 = vadd.f32 0.0, %v4610
    %v4612 = vpop.f32.mrb[0].mxu0
    %4613 = vmatprep.mubr.f32.mxu0 0.0
    %4614 = vmatmul.mubr.f32.gmra.mrb[0].mxu0 %v4496
    %v4615 = vpop.f32.mrb[0].mxu0
    %v4616 = vadd.f32 0.0, %v4615
    %v4617 = vpop.f32.mrb[0].mxu0
    %4618 = vmatprep.mubr.f32.mxu0 0.0
    %4619 = vmatmul.mubr.f32.gmra.mrb[0].mxu0 %v4499
    %v4620 = vpop.f32.mrb[0].mxu0
    %v4621 = vadd.f32 0.0, %v4620
    %v4622 = vpop.f32.mrb[0].mxu0
    %4623 = vmatprep.mubr.f32.mxu0 0.0
    %4624 = vmatmul.mubr.f32.gmra.mrb[0].mxu0 %v4502
    %v4625 = vpop.f32.mrb[0].mxu0
    %v4626 = vadd.f32 0.0, %v4625
    %v4627 = vpop.f32.mrb[0].mxu0
    %4628 = vmatprep.mubr.f32.mxu0 0.0
    %4629 = vmatmul.mubr.f32.gmra.mrb[0].mxu0 %v4505
    %v4630 = vpop.f32.mrb[0].mxu0
    %v4631 = vadd.f32 0.0, %v4630
    %v4632 = vpop.f32.mrb[0].mxu0
    %4633 = vmatprep.mubr.f32.mxu0 0.0
    %4634 = vmatmul.mubr.f32.gmra.mrb[0].mxu0 %v4508
    %v4635 = vpop.f32.mrb[0].mxu0
    %v4636 = vadd.f32 0.0, %v4635
    %v4637 = vpop.f32.mrb[0].mxu0
    %4638 = vmatprep.mubr.f32.mxu0 0.0
    %4639 = vmatmul.mubr.f32.gmra.mrb[0].mxu0 %v4511
    %v4640 = vpop.f32.mrb[0].mxu0
    %v4641 = vadd.f32 0.0, %v4640
    %v4642 = vpop.f32.mrb[0].mxu0
    %4643 = vmatprep.mubr.f32.mxu0 0.0
    %4644 = vmatmul.mubr.f32.gmra.mrb[0].mxu0 %v4514
    %v4645 = vpop.f32.mrb[0].mxu0
    %v4646 = vadd.f32 0.0, %v4645
    %v4647 = vpop.f32.mrb[0].mxu0
    %4648 = vmatprep.mubr.f32.mxu0 0.0
    %4649 = vmatmul.mubr.f32.gmra.mrb[0].mxu0 %v4517
    %v4650 = vpop.f32.mrb[0].mxu0
    %v4651 = vadd.f32 0.0, %v4650
    %v4652 = vpop.f32.mrb[0].mxu0
    %4653 = vmatprep.mubr.f32.mxu0 0.0
    %4654 = vmatmul.mubr.f32.gmra.mrb[0].mxu0 %v4520
    %v4655 = vpop.f32.mrb[0].mxu0
    %v4656 = vadd.f32 0.0, %v4655
    %v4657 = vpop.f32.mrb[0].mxu0
    %4658 = vmatprep.mubr.f32.mxu0 0.0
    %4659 = vmatmul.mubr.f32.gmra.mrb[0].mxu0 %v4523
    %v4660 = vpop.f32.mrb[0].mxu0
    %v4661 = vadd.f32 0.0, %v4660
    %v4662 = vpop.f32.mrb[0].mxu0
    %4663 = vmatprep.mubr.f32.mxu0 0.0
    %4664 = vmatmul.mubr.f32.gmra.mrb[0].mxu0 %v4526
    %v4665 = vpop.f32.mrb[0].mxu0
    %v4666 = vadd.f32 0.0, %v4665
    %v4667 = vpop.f32.mrb[0].mxu0
    %4668 = vmatprep.mubr.f32.mxu0 0.0
    %4669 = vmatmul.mubr.f32.gmra.mrb[0].mxu0 %v4529
    %v4670 = vpop.f32.mrb[0].mxu0
    %v4671 = vadd.f32 0.0, %v4670
    %v4672 = vpop.f32.mrb[0].mxu0
    %4673 = vmatprep.mubr.f32.mxu0 0.0
    %4674 = vmatmul.mubr.f32.gmra.mrb[0].mxu0 %v4532
    %v4675 = vpop.f32.mrb[0].mxu0
    %v4676 = vadd.f32 0.0, %v4675
    %v4677 = vpop.f32.mrb[0].mxu0
    %4678 = vdwg.mxu0
    %v4679 = vadd.f32 %v4459, %v4601
    %v4680 = vadd.f32 %v4460, %v4606
    %v4681 = vadd.f32 %v4461, %v4611
    %v4682 = vadd.f32 %v4462, %v4616
    %v4683 = vadd.f32 %v4463, %v4621
    %v4684 = vadd.f32 %v4464, %v4626
    %v4685 = vadd.f32 %v4465, %v4631
    %v4686 = vadd.f32 %v4466, %v4636
    %v4687 = vadd.f32 %v4467, %v4641
    %v4688 = vadd.f32 %v4468, %v4646
    %v4689 = vadd.f32 %v4469, %v4651
    %v4690 = vadd.f32 %v4470, %v4656
    %v4691 = vadd.f32 %v4471, %v4661
    %v4692 = vadd.f32 %v4472, %v4666
    %v4693 = vadd.f32 %v4473, %v4671
    %v4694 = vadd.f32 %v4474, %v4676
    %s4695 = scalar_lea.vmem %s8, 320
    %v4696 = vld [vmem:[%s4695] sm:$0xff]
    %v4697 = vld [vmem:[%s4695 + $0x8] sm:$0xff]
    %v4698 = vld [vmem:[%s4695 + $0x10] sm:$0xff]
    %v4699 = vld [vmem:[%s4695 + $0x18] sm:$0xff]
    %v4700 = vld [vmem:[%s4695 + $0x20] sm:$0xff]
    %v4701 = vld [vmem:[%s4695 + $0x28] sm:$0xff]
    %v4702 = vld [vmem:[%s4695 + $0x30] sm:$0xff]
    %v4703 = vld [vmem:[%s4695 + $0x38] sm:$0xff]
    %v4704 = vld [vmem:[%s4695 + $0x40] sm:$0xff]
    %v4705 = vld [vmem:[%s4695 + $0x48] sm:$0xff]
    %v4707 = vsel %vm3868, %v3449, 0
    %v4710 = vsel %vm3868, %v3454, 0
    %v4713 = vsel %vm3868, %v3459, 0
    %v4716 = vsel %vm3868, %v3464, 0
    %v4719 = vsel %vm3868, %v3469, 0
    %v4722 = vsel %vm3868, %v3474, 0
    %v4725 = vsel %vm3868, %v3479, 0
    %v4728 = vsel %vm3868, %v3484, 0
    %v4731 = vsel %vm3868, %v3489, 0
    %v4734 = vsel %vm3868, %v3494, 0
    %v4737 = vsel %vm3868, %v3499, 0
    %v4740 = vsel %vm3868, %v3504, 0
    %v4743 = vsel %vm3868, %v3509, 0
    %v4746 = vsel %vm3868, %v3514, 0
    %v4749 = vsel %vm3868, %v3519, 0
    %v4752 = vsel %vm3868, %v3524, 0
    %4754 = vmatprep.subr.mxu0 0.0
    %4755 = vmatpush1.msra.mxu0 %v4696
    %4756 = vmatprep.subr.mxu0 0.0
    %4757 = vmatpush1.msra.mxu0 %v4697
    %4758 = vmatprep.subr.mxu0 0.0
    %4759 = vmatpush1.msra.mxu0 %v4698
    %4760 = vmatprep.subr.mxu0 0.0
    %4761 = vmatpush1.msra.mxu0 %v4699
    %4762 = vmatprep.subr.mxu0 0.0
    %4763 = vmatpush1.msra.mxu0 %v4700
    %4764 = vmatprep.subr.mxu0 0.0
    %4765 = vmatpush1.msra.mxu0 %v4701
    %4766 = vmatprep.subr.mxu0 0.0
    %4767 = vmatpush1.msra.mxu0 %v4702
    %4768 = vmatprep.subr.mxu0 0.0
    %4769 = vmatpush1.msra.mxu0 %v4703
    %4770 = vmatprep.subr.mxu0 0.0
    %4771 = vmatpush1.msra.mxu0 %v4704
    %4772 = vmatprep.subr.mxu0 0.0
    %4773 = vmatpush1.msra.mxu0 %v4705
    %4774 = vmatprep.subr.mxu0 0.0
    %4775 = vmatpush1.msra.mxu0 0.0
    %4776 = vmatprep.subr.mxu0 0.0
    %4777 = vmatpush1.msra.mxu0 0.0
    %4778 = vmatprep.subr.mxu0 0.0
    %4779 = vmatpush1.msra.mxu0 0.0
    %4780 = vmatprep.subr.mxu0 0.0
    %4781 = vmatpush1.msra.mxu0 0.0
    %4782 = vmatprep.subr.mxu0 0.0
    %4783 = vmatpush1.msra.mxu0 0.0
    %4784 = vmatprep.subr.mxu0 0.0
    %4785 = vmatpush1.msra.mxu0 0.0
    %4786 = vmatprep.subr.mxu0 0.0
    %4787 = vmatpush1.msra.mxu0 0.0
    %4788 = vmatprep.subr.mxu0 0.0
    %4789 = vmatpush1.msra.mxu0 0.0
    %4790 = vmatprep.subr.mxu0 0.0
    %4791 = vmatpush1.msra.mxu0 0.0
    %4792 = vmatprep.subr.mxu0 0.0
    %4793 = vmatpush1.msra.mxu0 0.0
    %4794 = vmatprep.subr.mxu0 0.0
    %4795 = vmatpush1.msra.mxu0 0.0
    %4796 = vmatprep.subr.mxu0 0.0
    %4797 = vmatpush1.msra.mxu0 0.0
    %4798 = vmatprep.subr.mxu0 0.0
    %4799 = vmatpush1.msra.mxu0 0.0
    %4800 = vmatprep.subr.mxu0 0.0
    %4801 = vmatpush1.msra.mxu0 0.0
    %4802 = vmatprep.subr.mxu0 0.0
    %4803 = vmatpush1.msra.mxu0 0.0
    %4804 = vmatprep.subr.mxu0 0.0
    %4805 = vmatpush1.msra.mxu0 0.0
    %4806 = vmatprep.subr.mxu0 0.0
    %4807 = vmatpush1.msra.mxu0 0.0
    %4808 = vmatprep.subr.mxu0 0.0
    %4809 = vmatpush1.msra.mxu0 0.0
    %4810 = vmatprep.subr.mxu0 0.0
    %4811 = vmatpush1.msra.mxu0 0.0
    %4812 = vmatprep.subr.mxu0 0.0
    %4813 = vmatpush1.msra.mxu0 0.0
    %4814 = vmatprep.subr.mxu0 0.0
    %4815 = vmatpush1.msra.mxu0 0.0
    %4816 = vmatprep.subr.mxu0 0.0
    %4817 = vmatpush1.msra.mxu0 0.0
    %4818 = vmatprep.mubr.f32.mxu0 0.0
    %4819 = vmatmul.mubr.f32.gmra.mrb[0].mxu0 %v4707
    %v4820 = vpop.f32.mrb[0].mxu0
    %v4821 = vadd.f32 0.0, %v4820
    %v4822 = vpop.f32.mrb[0].mxu0
    %4823 = vmatprep.mubr.f32.mxu0 0.0
    %4824 = vmatmul.mubr.f32.gmra.mrb[0].mxu0 %v4710
    %v4825 = vpop.f32.mrb[0].mxu0
    %v4826 = vadd.f32 0.0, %v4825
    %v4827 = vpop.f32.mrb[0].mxu0
    %4828 = vmatprep.mubr.f32.mxu0 0.0
    %4829 = vmatmul.mubr.f32.gmra.mrb[0].mxu0 %v4713
    %v4830 = vpop.f32.mrb[0].mxu0
    %v4831 = vadd.f32 0.0, %v4830
    %v4832 = vpop.f32.mrb[0].mxu0
    %4833 = vmatprep.mubr.f32.mxu0 0.0
    %4834 = vmatmul.mubr.f32.gmra.mrb[0].mxu0 %v4716
    %v4835 = vpop.f32.mrb[0].mxu0
    %v4836 = vadd.f32 0.0, %v4835
    %v4837 = vpop.f32.mrb[0].mxu0
    %4838 = vmatprep.mubr.f32.mxu0 0.0
    %4839 = vmatmul.mubr.f32.gmra.mrb[0].mxu0 %v4719
    %v4840 = vpop.f32.mrb[0].mxu0
    %v4841 = vadd.f32 0.0, %v4840
    %v4842 = vpop.f32.mrb[0].mxu0
    %4843 = vmatprep.mubr.f32.mxu0 0.0
    %4844 = vmatmul.mubr.f32.gmra.mrb[0].mxu0 %v4722
    %v4845 = vpop.f32.mrb[0].mxu0
    %v4846 = vadd.f32 0.0, %v4845
    %v4847 = vpop.f32.mrb[0].mxu0
    %4848 = vmatprep.mubr.f32.mxu0 0.0
    %4849 = vmatmul.mubr.f32.gmra.mrb[0].mxu0 %v4725
    %v4850 = vpop.f32.mrb[0].mxu0
    %v4851 = vadd.f32 0.0, %v4850
    %v4852 = vpop.f32.mrb[0].mxu0
    %4853 = vmatprep.mubr.f32.mxu0 0.0
    %4854 = vmatmul.mubr.f32.gmra.mrb[0].mxu0 %v4728
    %v4855 = vpop.f32.mrb[0].mxu0
    %v4856 = vadd.f32 0.0, %v4855
    %v4857 = vpop.f32.mrb[0].mxu0
    %4858 = vmatprep.mubr.f32.mxu0 0.0
    %4859 = vmatmul.mubr.f32.gmra.mrb[0].mxu0 %v4731
    %v4860 = vpop.f32.mrb[0].mxu0
    %v4861 = vadd.f32 0.0, %v4860
    %v4862 = vpop.f32.mrb[0].mxu0
    %4863 = vmatprep.mubr.f32.mxu0 0.0
    %4864 = vmatmul.mubr.f32.gmra.mrb[0].mxu0 %v4734
    %v4865 = vpop.f32.mrb[0].mxu0
    %v4866 = vadd.f32 0.0, %v4865
    %v4867 = vpop.f32.mrb[0].mxu0
    %4868 = vmatprep.mubr.f32.mxu0 0.0
    %4869 = vmatmul.mubr.f32.gmra.mrb[0].mxu0 %v4737
    %v4870 = vpop.f32.mrb[0].mxu0
    %v4871 = vadd.f32 0.0, %v4870
    %v4872 = vpop.f32.mrb[0].mxu0
    %4873 = vmatprep.mubr.f32.mxu0 0.0
    %4874 = vmatmul.mubr.f32.gmra.mrb[0].mxu0 %v4740
    %v4875 = vpop.f32.mrb[0].mxu0
    %v4876 = vadd.f32 0.0, %v4875
    %v4877 = vpop.f32.mrb[0].mxu0
    %4878 = vmatprep.mubr.f32.mxu0 0.0
    %4879 = vmatmul.mubr.f32.gmra.mrb[0].mxu0 %v4743
    %v4880 = vpop.f32.mrb[0].mxu0
    %v4881 = vadd.f32 0.0, %v4880
    %v4882 = vpop.f32.mrb[0].mxu0
    %4883 = vmatprep.mubr.f32.mxu0 0.0
    %4884 = vmatmul.mubr.f32.gmra.mrb[0].mxu0 %v4746
    %v4885 = vpop.f32.mrb[0].mxu0
    %v4886 = vadd.f32 0.0, %v4885
    %v4887 = vpop.f32.mrb[0].mxu0
    %4888 = vmatprep.mubr.f32.mxu0 0.0
    %4889 = vmatmul.mubr.f32.gmra.mrb[0].mxu0 %v4749
    %v4890 = vpop.f32.mrb[0].mxu0
    %v4891 = vadd.f32 0.0, %v4890
    %v4892 = vpop.f32.mrb[0].mxu0
    %4893 = vmatprep.mubr.f32.mxu0 0.0
    %4894 = vmatmul.mubr.f32.gmra.mrb[0].mxu0 %v4752
    %v4895 = vpop.f32.mrb[0].mxu0
    %v4896 = vadd.f32 0.0, %v4895
    %v4897 = vpop.f32.mrb[0].mxu0
    %4898 = vdwg.mxu0
    %v4899 = vadd.f32 %v4679, %v4821
    %v4900 = vadd.f32 %v4680, %v4826
    %v4901 = vadd.f32 %v4681, %v4831
    %v4902 = vadd.f32 %v4682, %v4836
    %v4903 = vadd.f32 %v4683, %v4841
    %v4904 = vadd.f32 %v4684, %v4846
    %v4905 = vadd.f32 %v4685, %v4851
    %v4906 = vadd.f32 %v4686, %v4856
    %v4907 = vadd.f32 %v4687, %v4861
    %v4908 = vadd.f32 %v4688, %v4866
    %v4909 = vadd.f32 %v4689, %v4871
    %v4910 = vadd.f32 %v4690, %v4876
    %v4911 = vadd.f32 %v4691, %v4881
    %v4912 = vadd.f32 %v4692, %v4886
    %v4913 = vadd.f32 %v4693, %v4891
    %v4914 = vadd.f32 %v4694, %v4896
    %s4915 = scalar_lea.vmem %s8, 400
    %v4916 = vld [vmem:[%s4915] sm:$0xff]
    %v4917 = vld [vmem:[%s4915 + $0x8] sm:$0xff]
    %v4918 = vld [vmem:[%s4915 + $0x10] sm:$0xff]
    %v4919 = vld [vmem:[%s4915 + $0x18] sm:$0xff]
    %v4920 = vld [vmem:[%s4915 + $0x20] sm:$0xff]
    %v4921 = vld [vmem:[%s4915 + $0x28] sm:$0xff]
    %v4922 = vld [vmem:[%s4915 + $0x30] sm:$0xff]
    %v4923 = vld [vmem:[%s4915 + $0x38] sm:$0xff]
    %v4924 = vld [vmem:[%s4915 + $0x40] sm:$0xff]
    %v4925 = vld [vmem:[%s4915 + $0x48] sm:$0xff]
    %v4927 = vsel %vm3868, %v3529, 0
    %v4930 = vsel %vm3868, %v3534, 0
    %v4933 = vsel %vm3868, %v3539, 0
    %v4936 = vsel %vm3868, %v3544, 0
    %v4939 = vsel %vm3868, %v3549, 0
    %v4942 = vsel %vm3868, %v3554, 0
    %v4945 = vsel %vm3868, %v3559, 0
    %v4948 = vsel %vm3868, %v3564, 0
    %v4951 = vsel %vm3868, %v3569, 0
    %v4954 = vsel %vm3868, %v3574, 0
    %v4957 = vsel %vm3868, %v3579, 0
    %v4960 = vsel %vm3868, %v3584, 0
    %v4963 = vsel %vm3868, %v3589, 0
    %v4966 = vsel %vm3868, %v3594, 0
    %v4969 = vsel %vm3868, %v3599, 0
    %v4972 = vsel %vm3868, %v3604, 0
    %4974 = vmatprep.subr.mxu0 0.0
    %4975 = vmatpush1.msra.mxu0 %v4916
    %4976 = vmatprep.subr.mxu0 0.0
    %4977 = vmatpush1.msra.mxu0 %v4917
    %4978 = vmatprep.subr.mxu0 0.0
    %4979 = vmatpush1.msra.mxu0 %v4918
    %4980 = vmatprep.subr.mxu0 0.0
    %4981 = vmatpush1.msra.mxu0 %v4919
    %4982 = vmatprep.subr.mxu0 0.0
    %4983 = vmatpush1.msra.mxu0 %v4920
    %4984 = vmatprep.subr.mxu0 0.0
    %4985 = vmatpush1.msra.mxu0 %v4921
    %4986 = vmatprep.subr.mxu0 0.0
    %4987 = vmatpush1.msra.mxu0 %v4922
    %4988 = vmatprep.subr.mxu0 0.0
    %4989 = vmatpush1.msra.mxu0 %v4923
    %4990 = vmatprep.subr.mxu0 0.0
    %4991 = vmatpush1.msra.mxu0 %v4924
    %4992 = vmatprep.subr.mxu0 0.0
    %4993 = vmatpush1.msra.mxu0 %v4925
    %4994 = vmatprep.subr.mxu0 0.0
    %4995 = vmatpush1.msra.mxu0 0.0
    %4996 = vmatprep.subr.mxu0 0.0
    %4997 = vmatpush1.msra.mxu0 0.0
    %4998 = vmatprep.subr.mxu0 0.0
    %4999 = vmatpush1.msra.mxu0 0.0
    %5000 = vmatprep.subr.mxu0 0.0
    %5001 = vmatpush1.msra.mxu0 0.0
    %5002 = vmatprep.subr.mxu0 0.0
    %5003 = vmatpush1.msra.mxu0 0.0
    %5004 = vmatprep.subr.mxu0 0.0
    %5005 = vmatpush1.msra.mxu0 0.0
    %5006 = vmatprep.subr.mxu0 0.0
    %5007 = vmatpush1.msra.mxu0 0.0
    %5008 = vmatprep.subr.mxu0 0.0
    %5009 = vmatpush1.msra.mxu0 0.0
    %5010 = vmatprep.subr.mxu0 0.0
    %5011 = vmatpush1.msra.mxu0 0.0
    %5012 = vmatprep.subr.mxu0 0.0
    %5013 = vmatpush1.msra.mxu0 0.0
    %5014 = vmatprep.subr.mxu0 0.0
    %5015 = vmatpush1.msra.mxu0 0.0
    %5016 = vmatprep.subr.mxu0 0.0
    %5017 = vmatpush1.msra.mxu0 0.0
    %5018 = vmatprep.subr.mxu0 0.0
    %5019 = vmatpush1.msra.mxu0 0.0
    %5020 = vmatprep.subr.mxu0 0.0
    %5021 = vmatpush1.msra.mxu0 0.0
    %5022 = vmatprep.subr.mxu0 0.0
    %5023 = vmatpush1.msra.mxu0 0.0
    %5024 = vmatprep.subr.mxu0 0.0
    %5025 = vmatpush1.msra.mxu0 0.0
    %5026 = vmatprep.subr.mxu0 0.0
    %5027 = vmatpush1.msra.mxu0 0.0
    %5028 = vmatprep.subr.mxu0 0.0
    %5029 = vmatpush1.msra.mxu0 0.0
    %5030 = vmatprep.subr.mxu0 0.0
    %5031 = vmatpush1.msra.mxu0 0.0
    %5032 = vmatprep.subr.mxu0 0.0
    %5033 = vmatpush1.msra.mxu0 0.0
    %5034 = vmatprep.subr.mxu0 0.0
    %5035 = vmatpush1.msra.mxu0 0.0
    %5036 = vmatprep.subr.mxu0 0.0
    %5037 = vmatpush1.msra.mxu0 0.0
    %5038 = vmatprep.mubr.f32.mxu0 0.0
    %5039 = vmatmul.mubr.f32.gmra.mrb[0].mxu0 %v4927
    %v5040 = vpop.f32.mrb[0].mxu0
    %v5041 = vadd.f32 0.0, %v5040
    %v5042 = vpop.f32.mrb[0].mxu0
    %5043 = vmatprep.mubr.f32.mxu0 0.0
    %5044 = vmatmul.mubr.f32.gmra.mrb[0].mxu0 %v4930
    %v5045 = vpop.f32.mrb[0].mxu0
    %v5046 = vadd.f32 0.0, %v5045
    %v5047 = vpop.f32.mrb[0].mxu0
    %5048 = vmatprep.mubr.f32.mxu0 0.0
    %5049 = vmatmul.mubr.f32.gmra.mrb[0].mxu0 %v4933
    %v5050 = vpop.f32.mrb[0].mxu0
    %v5051 = vadd.f32 0.0, %v5050
    %v5052 = vpop.f32.mrb[0].mxu0
    %5053 = vmatprep.mubr.f32.mxu0 0.0
    %5054 = vmatmul.mubr.f32.gmra.mrb[0].mxu0 %v4936
    %v5055 = vpop.f32.mrb[0].mxu0
    %v5056 = vadd.f32 0.0, %v5055
    %v5057 = vpop.f32.mrb[0].mxu0
    %5058 = vmatprep.mubr.f32.mxu0 0.0
    %5059 = vmatmul.mubr.f32.gmra.mrb[0].mxu0 %v4939
    %v5060 = vpop.f32.mrb[0].mxu0
    %v5061 = vadd.f32 0.0, %v5060
    %v5062 = vpop.f32.mrb[0].mxu0
    %5063 = vmatprep.mubr.f32.mxu0 0.0
    %5064 = vmatmul.mubr.f32.gmra.mrb[0].mxu0 %v4942
    %v5065 = vpop.f32.mrb[0].mxu0
    %v5066 = vadd.f32 0.0, %v5065
    %v5067 = vpop.f32.mrb[0].mxu0
    %5068 = vmatprep.mubr.f32.mxu0 0.0
    %5069 = vmatmul.mubr.f32.gmra.mrb[0].mxu0 %v4945
    %v5070 = vpop.f32.mrb[0].mxu0
    %v5071 = vadd.f32 0.0, %v5070
    %v5072 = vpop.f32.mrb[0].mxu0
    %5073 = vmatprep.mubr.f32.mxu0 0.0
    %5074 = vmatmul.mubr.f32.gmra.mrb[0].mxu0 %v4948
    %v5075 = vpop.f32.mrb[0].mxu0
    %v5076 = vadd.f32 0.0, %v5075
    %v5077 = vpop.f32.mrb[0].mxu0
    %5078 = vmatprep.mubr.f32.mxu0 0.0
    %5079 = vmatmul.mubr.f32.gmra.mrb[0].mxu0 %v4951
    %v5080 = vpop.f32.mrb[0].mxu0
    %v5081 = vadd.f32 0.0, %v5080
    %v5082 = vpop.f32.mrb[0].mxu0
    %5083 = vmatprep.mubr.f32.mxu0 0.0
    %5084 = vmatmul.mubr.f32.gmra.mrb[0].mxu0 %v4954
    %v5085 = vpop.f32.mrb[0].mxu0
    %v5086 = vadd.f32 0.0, %v5085
    %v5087 = vpop.f32.mrb[0].mxu0
    %5088 = vmatprep.mubr.f32.mxu0 0.0
    %5089 = vmatmul.mubr.f32.gmra.mrb[0].mxu0 %v4957
    %v5090 = vpop.f32.mrb[0].mxu0
    %v5091 = vadd.f32 0.0, %v5090
    %v5092 = vpop.f32.mrb[0].mxu0
    %5093 = vmatprep.mubr.f32.mxu0 0.0
    %5094 = vmatmul.mubr.f32.gmra.mrb[0].mxu0 %v4960
    %v5095 = vpop.f32.mrb[0].mxu0
    %v5096 = vadd.f32 0.0, %v5095
    %v5097 = vpop.f32.mrb[0].mxu0
    %5098 = vmatprep.mubr.f32.mxu0 0.0
    %5099 = vmatmul.mubr.f32.gmra.mrb[0].mxu0 %v4963
    %v5100 = vpop.f32.mrb[0].mxu0
    %v5101 = vadd.f32 0.0, %v5100
    %v5102 = vpop.f32.mrb[0].mxu0
    %5103 = vmatprep.mubr.f32.mxu0 0.0
    %5104 = vmatmul.mubr.f32.gmra.mrb[0].mxu0 %v4966
    %v5105 = vpop.f32.mrb[0].mxu0
    %v5106 = vadd.f32 0.0, %v5105
    %v5107 = vpop.f32.mrb[0].mxu0
    %5108 = vmatprep.mubr.f32.mxu0 0.0
    %5109 = vmatmul.mubr.f32.gmra.mrb[0].mxu0 %v4969
    %v5110 = vpop.f32.mrb[0].mxu0
    %v5111 = vadd.f32 0.0, %v5110
    %v5112 = vpop.f32.mrb[0].mxu0
    %5113 = vmatprep.mubr.f32.mxu0 0.0
    %5114 = vmatmul.mubr.f32.gmra.mrb[0].mxu0 %v4972
    %v5115 = vpop.f32.mrb[0].mxu0
    %v5116 = vadd.f32 0.0, %v5115
    %v5117 = vpop.f32.mrb[0].mxu0
    %5118 = vdwg.mxu0
    %v5119 = vadd.f32 %v4899, %v5041
    %v5120 = vadd.f32 %v4900, %v5046
    %v5121 = vadd.f32 %v4901, %v5051
    %v5122 = vadd.f32 %v4902, %v5056
    %v5123 = vadd.f32 %v4903, %v5061
    %v5124 = vadd.f32 %v4904, %v5066
    %v5125 = vadd.f32 %v4905, %v5071
    %v5126 = vadd.f32 %v4906, %v5076
    %v5127 = vadd.f32 %v4907, %v5081
    %v5128 = vadd.f32 %v4908, %v5086
    %v5129 = vadd.f32 %v4909, %v5091
    %v5130 = vadd.f32 %v4910, %v5096
    %v5131 = vadd.f32 %v4911, %v5101
    %v5132 = vadd.f32 %v4912, %v5106
    %v5133 = vadd.f32 %v4913, %v5111
    %v5134 = vadd.f32 %v4914, %v5116
    %s5135 = scalar_lea.vmem %s8, 480
    %v5136 = vld [vmem:[%s5135] sm:$0xff]
    %v5137 = vld [vmem:[%s5135 + $0x8] sm:$0xff]
    %v5138 = vld [vmem:[%s5135 + $0x10] sm:$0xff]
    %v5139 = vld [vmem:[%s5135 + $0x18] sm:$0xff]
    %v5140 = vld [vmem:[%s5135 + $0x20] sm:$0xff]
    %v5141 = vld [vmem:[%s5135 + $0x28] sm:$0xff]
    %v5142 = vld [vmem:[%s5135 + $0x30] sm:$0xff]
    %v5143 = vld [vmem:[%s5135 + $0x38] sm:$0xff]
    %v5144 = vld [vmem:[%s5135 + $0x40] sm:$0xff]
    %v5145 = vld [vmem:[%s5135 + $0x48] sm:$0xff]
    %v5147 = vsel %vm3868, %v3609, 0
    %v5150 = vsel %vm3868, %v3614, 0
    %v5153 = vsel %vm3868, %v3619, 0
    %v5156 = vsel %vm3868, %v3624, 0
    %v5159 = vsel %vm3868, %v3629, 0
    %v5162 = vsel %vm3868, %v3634, 0
    %v5165 = vsel %vm3868, %v3639, 0
    %v5168 = vsel %vm3868, %v3644, 0
    %v5171 = vsel %vm3868, %v3649, 0
    %v5174 = vsel %vm3868, %v3654, 0
    %v5177 = vsel %vm3868, %v3659, 0
    %v5180 = vsel %vm3868, %v3664, 0
    %v5183 = vsel %vm3868, %v3669, 0
    %v5186 = vsel %vm3868, %v3674, 0
    %v5189 = vsel %vm3868, %v3679, 0
    %v5192 = vsel %vm3868, %v3684, 0
    %5194 = vmatprep.subr.mxu0 0.0
    %5195 = vmatpush1.msra.mxu0 %v5136
    %5196 = vmatprep.subr.mxu0 0.0
    %5197 = vmatpush1.msra.mxu0 %v5137
    %5198 = vmatprep.subr.mxu0 0.0
    %5199 = vmatpush1.msra.mxu0 %v5138
    %5200 = vmatprep.subr.mxu0 0.0
    %5201 = vmatpush1.msra.mxu0 %v5139
    %5202 = vmatprep.subr.mxu0 0.0
    %5203 = vmatpush1.msra.mxu0 %v5140
    %5204 = vmatprep.subr.mxu0 0.0
    %5205 = vmatpush1.msra.mxu0 %v5141
    %5206 = vmatprep.subr.mxu0 0.0
    %5207 = vmatpush1.msra.mxu0 %v5142
    %5208 = vmatprep.subr.mxu0 0.0
    %5209 = vmatpush1.msra.mxu0 %v5143
    %5210 = vmatprep.subr.mxu0 0.0
    %5211 = vmatpush1.msra.mxu0 %v5144
    %5212 = vmatprep.subr.mxu0 0.0
    %5213 = vmatpush1.msra.mxu0 %v5145
    %5214 = vmatprep.subr.mxu0 0.0
    %5215 = vmatpush1.msra.mxu0 0.0
    %5216 = vmatprep.subr.mxu0 0.0
    %5217 = vmatpush1.msra.mxu0 0.0
    %5218 = vmatprep.subr.mxu0 0.0
    %5219 = vmatpush1.msra.mxu0 0.0
    %5220 = vmatprep.subr.mxu0 0.0
    %5221 = vmatpush1.msra.mxu0 0.0
    %5222 = vmatprep.subr.mxu0 0.0
    %5223 = vmatpush1.msra.mxu0 0.0
    %5224 = vmatprep.subr.mxu0 0.0
    %5225 = vmatpush1.msra.mxu0 0.0
    %5226 = vmatprep.subr.mxu0 0.0
    %5227 = vmatpush1.msra.mxu0 0.0
    %5228 = vmatprep.subr.mxu0 0.0
    %5229 = vmatpush1.msra.mxu0 0.0
    %5230 = vmatprep.subr.mxu0 0.0
    %5231 = vmatpush1.msra.mxu0 0.0
    %5232 = vmatprep.subr.mxu0 0.0
    %5233 = vmatpush1.msra.mxu0 0.0
    %5234 = vmatprep.subr.mxu0 0.0
    %5235 = vmatpush1.msra.mxu0 0.0
    %5236 = vmatprep.subr.mxu0 0.0
    %5237 = vmatpush1.msra.mxu0 0.0
    %5238 = vmatprep.subr.mxu0 0.0
    %5239 = vmatpush1.msra.mxu0 0.0
    %5240 = vmatprep.subr.mxu0 0.0
    %5241 = vmatpush1.msra.mxu0 0.0
    %5242 = vmatprep.subr.mxu0 0.0
    %5243 = vmatpush1.msra.mxu0 0.0
    %5244 = vmatprep.subr.mxu0 0.0
    %5245 = vmatpush1.msra.mxu0 0.0
    %5246 = vmatprep.subr.mxu0 0.0
    %5247 = vmatpush1.msra.mxu0 0.0
    %5248 = vmatprep.subr.mxu0 0.0
    %5249 = vmatpush1.msra.mxu0 0.0
    %5250 = vmatprep.subr.mxu0 0.0
    %5251 = vmatpush1.msra.mxu0 0.0
    %5252 = vmatprep.subr.mxu0 0.0
    %5253 = vmatpush1.msra.mxu0 0.0
    %5254 = vmatprep.subr.mxu0 0.0
    %5255 = vmatpush1.msra.mxu0 0.0
    %5256 = vmatprep.subr.mxu0 0.0
    %5257 = vmatpush1.msra.mxu0 0.0
    %5258 = vmatprep.mubr.f32.mxu0 0.0
    %5259 = vmatmul.mubr.f32.gmra.mrb[0].mxu0 %v5147
    %v5260 = vpop.f32.mrb[0].mxu0
    %v5261 = vadd.f32 0.0, %v5260
    %v5262 = vpop.f32.mrb[0].mxu0
    %5263 = vmatprep.mubr.f32.mxu0 0.0
    %5264 = vmatmul.mubr.f32.gmra.mrb[0].mxu0 %v5150
    %v5265 = vpop.f32.mrb[0].mxu0
    %v5266 = vadd.f32 0.0, %v5265
    %v5267 = vpop.f32.mrb[0].mxu0
    %5268 = vmatprep.mubr.f32.mxu0 0.0
    %5269 = vmatmul.mubr.f32.gmra.mrb[0].mxu0 %v5153
    %v5270 = vpop.f32.mrb[0].mxu0
    %v5271 = vadd.f32 0.0, %v5270
    %v5272 = vpop.f32.mrb[0].mxu0
    %5273 = vmatprep.mubr.f32.mxu0 0.0
    %5274 = vmatmul.mubr.f32.gmra.mrb[0].mxu0 %v5156
    %v5275 = vpop.f32.mrb[0].mxu0
    %v5276 = vadd.f32 0.0, %v5275
    %v5277 = vpop.f32.mrb[0].mxu0
    %5278 = vmatprep.mubr.f32.mxu0 0.0
    %5279 = vmatmul.mubr.f32.gmra.mrb[0].mxu0 %v5159
    %v5280 = vpop.f32.mrb[0].mxu0
    %v5281 = vadd.f32 0.0, %v5280
    %v5282 = vpop.f32.mrb[0].mxu0
    %5283 = vmatprep.mubr.f32.mxu0 0.0
    %5284 = vmatmul.mubr.f32.gmra.mrb[0].mxu0 %v5162
    %v5285 = vpop.f32.mrb[0].mxu0
    %v5286 = vadd.f32 0.0, %v5285
    %v5287 = vpop.f32.mrb[0].mxu0
    %5288 = vmatprep.mubr.f32.mxu0 0.0
    %5289 = vmatmul.mubr.f32.gmra.mrb[0].mxu0 %v5165
    %v5290 = vpop.f32.mrb[0].mxu0
    %v5291 = vadd.f32 0.0, %v5290
    %v5292 = vpop.f32.mrb[0].mxu0
    %5293 = vmatprep.mubr.f32.mxu0 0.0
    %5294 = vmatmul.mubr.f32.gmra.mrb[0].mxu0 %v5168
    %v5295 = vpop.f32.mrb[0].mxu0
    %v5296 = vadd.f32 0.0, %v5295
    %v5297 = vpop.f32.mrb[0].mxu0
    %5298 = vmatprep.mubr.f32.mxu0 0.0
    %5299 = vmatmul.mubr.f32.gmra.mrb[0].mxu0 %v5171
    %v5300 = vpop.f32.mrb[0].mxu0
    %v5301 = vadd.f32 0.0, %v5300
    %v5302 = vpop.f32.mrb[0].mxu0
    %5303 = vmatprep.mubr.f32.mxu0 0.0
    %5304 = vmatmul.mubr.f32.gmra.mrb[0].mxu0 %v5174
    %v5305 = vpop.f32.mrb[0].mxu0
    %v5306 = vadd.f32 0.0, %v5305
    %v5307 = vpop.f32.mrb[0].mxu0
    %5308 = vmatprep.mubr.f32.mxu0 0.0
    %5309 = vmatmul.mubr.f32.gmra.mrb[0].mxu0 %v5177
    %v5310 = vpop.f32.mrb[0].mxu0
    %v5311 = vadd.f32 0.0, %v5310
    %v5312 = vpop.f32.mrb[0].mxu0
    %5313 = vmatprep.mubr.f32.mxu0 0.0
    %5314 = vmatmul.mubr.f32.gmra.mrb[0].mxu0 %v5180
    %v5315 = vpop.f32.mrb[0].mxu0
    %v5316 = vadd.f32 0.0, %v5315
    %v5317 = vpop.f32.mrb[0].mxu0
    %5318 = vmatprep.mubr.f32.mxu0 0.0
    %5319 = vmatmul.mubr.f32.gmra.mrb[0].mxu0 %v5183
    %v5320 = vpop.f32.mrb[0].mxu0
    %v5321 = vadd.f32 0.0, %v5320
    %v5322 = vpop.f32.mrb[0].mxu0
    %5323 = vmatprep.mubr.f32.mxu0 0.0
    %5324 = vmatmul.mubr.f32.gmra.mrb[0].mxu0 %v5186
    %v5325 = vpop.f32.mrb[0].mxu0
    %v5326 = vadd.f32 0.0, %v5325
    %v5327 = vpop.f32.mrb[0].mxu0
    %5328 = vmatprep.mubr.f32.mxu0 0.0
    %5329 = vmatmul.mubr.f32.gmra.mrb[0].mxu0 %v5189
    %v5330 = vpop.f32.mrb[0].mxu0
    %v5331 = vadd.f32 0.0, %v5330
    %v5332 = vpop.f32.mrb[0].mxu0
    %5333 = vmatprep.mubr.f32.mxu0 0.0
    %5334 = vmatmul.mubr.f32.gmra.mrb[0].mxu0 %v5192
    %v5335 = vpop.f32.mrb[0].mxu0
    %v5336 = vadd.f32 0.0, %v5335
    %v5337 = vpop.f32.mrb[0].mxu0
    %5338 = vdwg.mxu0
    %v5339 = vadd.f32 %v5119, %v5261
    %v5340 = vadd.f32 %v5120, %v5266
    %v5341 = vadd.f32 %v5121, %v5271
    %v5342 = vadd.f32 %v5122, %v5276
    %v5343 = vadd.f32 %v5123, %v5281
    %v5344 = vadd.f32 %v5124, %v5286
    %v5345 = vadd.f32 %v5125, %v5291
    %v5346 = vadd.f32 %v5126, %v5296
    %v5347 = vadd.f32 %v5127, %v5301
    %v5348 = vadd.f32 %v5128, %v5306
    %v5349 = vadd.f32 %v5129, %v5311
    %v5350 = vadd.f32 %v5130, %v5316
    %v5351 = vadd.f32 %v5131, %v5321
    %v5352 = vadd.f32 %v5132, %v5326
    %v5353 = vadd.f32 %v5133, %v5331
    %v5354 = vadd.f32 %v5134, %v5336
    %s5355 = scalar_lea.vmem %s8, 560
    %v5356 = vld [vmem:[%s5355] sm:$0xff]
    %v5357 = vld [vmem:[%s5355 + $0x8] sm:$0xff]
    %v5358 = vld [vmem:[%s5355 + $0x10] sm:$0xff]
    %v5359 = vld [vmem:[%s5355 + $0x18] sm:$0xff]
    %v5360 = vld [vmem:[%s5355 + $0x20] sm:$0xff]
    %v5361 = vld [vmem:[%s5355 + $0x28] sm:$0xff]
    %v5362 = vld [vmem:[%s5355 + $0x30] sm:$0xff]
    %v5363 = vld [vmem:[%s5355 + $0x38] sm:$0xff]
    %v5364 = vld [vmem:[%s5355 + $0x40] sm:$0xff]
    %v5365 = vld [vmem:[%s5355 + $0x48] sm:$0xff]
    %v5367 = vsel %vm3868, %v3689, 0
    %v5370 = vsel %vm3868, %v3694, 0
    %v5373 = vsel %vm3868, %v3699, 0
    %v5376 = vsel %vm3868, %v3704, 0
    %v5379 = vsel %vm3868, %v3709, 0
    %v5382 = vsel %vm3868, %v3714, 0
    %v5385 = vsel %vm3868, %v3719, 0
    %v5388 = vsel %vm3868, %v3724, 0
    %v5391 = vsel %vm3868, %v3729, 0
    %v5394 = vsel %vm3868, %v3734, 0
    %v5397 = vsel %vm3868, %v3739, 0
    %v5400 = vsel %vm3868, %v3744, 0
    %v5403 = vsel %vm3868, %v3749, 0
    %v5406 = vsel %vm3868, %v3754, 0
    %v5409 = vsel %vm3868, %v3759, 0
    %v5412 = vsel %vm3868, %v3764, 0
    %5414 = vmatprep.subr.mxu0 0.0
    %5415 = vmatpush1.msra.mxu0 %v5356
    %5416 = vmatprep.subr.mxu0 0.0
    %5417 = vmatpush1.msra.mxu0 %v5357
    %5418 = vmatprep.subr.mxu0 0.0
    %5419 = vmatpush1.msra.mxu0 %v5358
    %5420 = vmatprep.subr.mxu0 0.0
    %5421 = vmatpush1.msra.mxu0 %v5359
    %5422 = vmatprep.subr.mxu0 0.0
    %5423 = vmatpush1.msra.mxu0 %v5360
    %5424 = vmatprep.subr.mxu0 0.0
    %5425 = vmatpush1.msra.mxu0 %v5361
    %5426 = vmatprep.subr.mxu0 0.0
    %5427 = vmatpush1.msra.mxu0 %v5362
    %5428 = vmatprep.subr.mxu0 0.0
    %5429 = vmatpush1.msra.mxu0 %v5363
    %5430 = vmatprep.subr.mxu0 0.0
    %5431 = vmatpush1.msra.mxu0 %v5364
    %5432 = vmatprep.subr.mxu0 0.0
    %5433 = vmatpush1.msra.mxu0 %v5365
    %5434 = vmatprep.subr.mxu0 0.0
    %5435 = vmatpush1.msra.mxu0 0.0
    %5436 = vmatprep.subr.mxu0 0.0
    %5437 = vmatpush1.msra.mxu0 0.0
    %5438 = vmatprep.subr.mxu0 0.0
    %5439 = vmatpush1.msra.mxu0 0.0
    %5440 = vmatprep.subr.mxu0 0.0
    %5441 = vmatpush1.msra.mxu0 0.0
    %5442 = vmatprep.subr.mxu0 0.0
    %5443 = vmatpush1.msra.mxu0 0.0
    %5444 = vmatprep.subr.mxu0 0.0
    %5445 = vmatpush1.msra.mxu0 0.0
    %5446 = vmatprep.subr.mxu0 0.0
    %5447 = vmatpush1.msra.mxu0 0.0
    %5448 = vmatprep.subr.mxu0 0.0
    %5449 = vmatpush1.msra.mxu0 0.0
    %5450 = vmatprep.subr.mxu0 0.0
    %5451 = vmatpush1.msra.mxu0 0.0
    %5452 = vmatprep.subr.mxu0 0.0
    %5453 = vmatpush1.msra.mxu0 0.0
    %5454 = vmatprep.subr.mxu0 0.0
    %5455 = vmatpush1.msra.mxu0 0.0
    %5456 = vmatprep.subr.mxu0 0.0
    %5457 = vmatpush1.msra.mxu0 0.0
    %5458 = vmatprep.subr.mxu0 0.0
    %5459 = vmatpush1.msra.mxu0 0.0
    %5460 = vmatprep.subr.mxu0 0.0
    %5461 = vmatpush1.msra.mxu0 0.0
    %5462 = vmatprep.subr.mxu0 0.0
    %5463 = vmatpush1.msra.mxu0 0.0
    %5464 = vmatprep.subr.mxu0 0.0
    %5465 = vmatpush1.msra.mxu0 0.0
    %5466 = vmatprep.subr.mxu0 0.0
    %5467 = vmatpush1.msra.mxu0 0.0
    %5468 = vmatprep.subr.mxu0 0.0
    %5469 = vmatpush1.msra.mxu0 0.0
    %5470 = vmatprep.subr.mxu0 0.0
    %5471 = vmatpush1.msra.mxu0 0.0
    %5472 = vmatprep.subr.mxu0 0.0
    %5473 = vmatpush1.msra.mxu0 0.0
    %5474 = vmatprep.subr.mxu0 0.0
    %5475 = vmatpush1.msra.mxu0 0.0
    %5476 = vmatprep.subr.mxu0 0.0
    %5477 = vmatpush1.msra.mxu0 0.0
    %5478 = vmatprep.mubr.f32.mxu0 0.0
    %5479 = vmatmul.mubr.f32.gmra.mrb[0].mxu0 %v5367
    %v5480 = vpop.f32.mrb[0].mxu0
    %v5481 = vadd.f32 0.0, %v5480
    %v5482 = vpop.f32.mrb[0].mxu0
    %5483 = vmatprep.mubr.f32.mxu0 0.0
    %5484 = vmatmul.mubr.f32.gmra.mrb[0].mxu0 %v5370
    %v5485 = vpop.f32.mrb[0].mxu0
    %v5486 = vadd.f32 0.0, %v5485
    %v5487 = vpop.f32.mrb[0].mxu0
    %5488 = vmatprep.mubr.f32.mxu0 0.0
    %5489 = vmatmul.mubr.f32.gmra.mrb[0].mxu0 %v5373
    %v5490 = vpop.f32.mrb[0].mxu0
    %v5491 = vadd.f32 0.0, %v5490
    %v5492 = vpop.f32.mrb[0].mxu0
    %5493 = vmatprep.mubr.f32.mxu0 0.0
    %5494 = vmatmul.mubr.f32.gmra.mrb[0].mxu0 %v5376
    %v5495 = vpop.f32.mrb[0].mxu0
    %v5496 = vadd.f32 0.0, %v5495
    %v5497 = vpop.f32.mrb[0].mxu0
    %5498 = vmatprep.mubr.f32.mxu0 0.0
    %5499 = vmatmul.mubr.f32.gmra.mrb[0].mxu0 %v5379
    %v5500 = vpop.f32.mrb[0].mxu0
    %v5501 = vadd.f32 0.0, %v5500
    %v5502 = vpop.f32.mrb[0].mxu0
    %5503 = vmatprep.mubr.f32.mxu0 0.0
    %5504 = vmatmul.mubr.f32.gmra.mrb[0].mxu0 %v5382
    %v5505 = vpop.f32.mrb[0].mxu0
    %v5506 = vadd.f32 0.0, %v5505
    %v5507 = vpop.f32.mrb[0].mxu0
    %5508 = vmatprep.mubr.f32.mxu0 0.0
    %5509 = vmatmul.mubr.f32.gmra.mrb[0].mxu0 %v5385
    %v5510 = vpop.f32.mrb[0].mxu0
    %v5511 = vadd.f32 0.0, %v5510
    %v5512 = vpop.f32.mrb[0].mxu0
    %5513 = vmatprep.mubr.f32.mxu0 0.0
    %5514 = vmatmul.mubr.f32.gmra.mrb[0].mxu0 %v5388
    %v5515 = vpop.f32.mrb[0].mxu0
    %v5516 = vadd.f32 0.0, %v5515
    %v5517 = vpop.f32.mrb[0].mxu0
    %5518 = vmatprep.mubr.f32.mxu0 0.0
    %5519 = vmatmul.mubr.f32.gmra.mrb[0].mxu0 %v5391
    %v5520 = vpop.f32.mrb[0].mxu0
    %v5521 = vadd.f32 0.0, %v5520
    %v5522 = vpop.f32.mrb[0].mxu0
    %5523 = vmatprep.mubr.f32.mxu0 0.0
    %5524 = vmatmul.mubr.f32.gmra.mrb[0].mxu0 %v5394
    %v5525 = vpop.f32.mrb[0].mxu0
    %v5526 = vadd.f32 0.0, %v5525
    %v5527 = vpop.f32.mrb[0].mxu0
    %5528 = vmatprep.mubr.f32.mxu0 0.0
    %5529 = vmatmul.mubr.f32.gmra.mrb[0].mxu0 %v5397
    %v5530 = vpop.f32.mrb[0].mxu0
    %v5531 = vadd.f32 0.0, %v5530
    %v5532 = vpop.f32.mrb[0].mxu0
    %5533 = vmatprep.mubr.f32.mxu0 0.0
    %5534 = vmatmul.mubr.f32.gmra.mrb[0].mxu0 %v5400
    %v5535 = vpop.f32.mrb[0].mxu0
    %v5536 = vadd.f32 0.0, %v5535
    %v5537 = vpop.f32.mrb[0].mxu0
    %5538 = vmatprep.mubr.f32.mxu0 0.0
    %5539 = vmatmul.mubr.f32.gmra.mrb[0].mxu0 %v5403
    %v5540 = vpop.f32.mrb[0].mxu0
    %v5541 = vadd.f32 0.0, %v5540
    %v5542 = vpop.f32.mrb[0].mxu0
    %5543 = vmatprep.mubr.f32.mxu0 0.0
    %5544 = vmatmul.mubr.f32.gmra.mrb[0].mxu0 %v5406
    %v5545 = vpop.f32.mrb[0].mxu0
    %v5546 = vadd.f32 0.0, %v5545
    %v5547 = vpop.f32.mrb[0].mxu0
    %5548 = vmatprep.mubr.f32.mxu0 0.0
    %5549 = vmatmul.mubr.f32.gmra.mrb[0].mxu0 %v5409
    %v5550 = vpop.f32.mrb[0].mxu0
    %v5551 = vadd.f32 0.0, %v5550
    %v5552 = vpop.f32.mrb[0].mxu0
    %5553 = vmatprep.mubr.f32.mxu0 0.0
    %5554 = vmatmul.mubr.f32.gmra.mrb[0].mxu0 %v5412
    %v5555 = vpop.f32.mrb[0].mxu0
    %v5556 = vadd.f32 0.0, %v5555
    %v5557 = vpop.f32.mrb[0].mxu0
    %5558 = vdwg.mxu0
    %v5559 = vadd.f32 %v5339, %v5481
    %v5560 = vadd.f32 %v5340, %v5486
    %v5561 = vadd.f32 %v5341, %v5491
    %v5562 = vadd.f32 %v5342, %v5496
    %v5563 = vadd.f32 %v5343, %v5501
    %v5564 = vadd.f32 %v5344, %v5506
    %v5565 = vadd.f32 %v5345, %v5511
    %v5566 = vadd.f32 %v5346, %v5516
    %v5567 = vadd.f32 %v5347, %v5521
    %v5568 = vadd.f32 %v5348, %v5526
    %v5569 = vadd.f32 %v5349, %v5531
    %v5570 = vadd.f32 %v5350, %v5536
    %v5571 = vadd.f32 %v5351, %v5541
    %v5572 = vadd.f32 %v5352, %v5546
    %v5573 = vadd.f32 %v5353, %v5551
    %v5574 = vadd.f32 %v5354, %v5556
    %s5575 = scalar_lea.vmem %s8, 640
    %v5576 = vld [vmem:[%s5575] sm:$0xff]
    %v5577 = vld [vmem:[%s5575 + $0x8] sm:$0xff]
    %v5578 = vld [vmem:[%s5575 + $0x10] sm:$0xff]
    %v5579 = vld [vmem:[%s5575 + $0x18] sm:$0xff]
    %v5580 = vld [vmem:[%s5575 + $0x20] sm:$0xff]
    %v5581 = vld [vmem:[%s5575 + $0x28] sm:$0xff]
    %v5582 = vld [vmem:[%s5575 + $0x30] sm:$0xff]
    %v5583 = vld [vmem:[%s5575 + $0x38] sm:$0xff]
    %v5584 = vld [vmem:[%s5575 + $0x40] sm:$0xff]
    %v5585 = vld [vmem:[%s5575 + $0x48] sm:$0xff]
    %v5587 = vsel %vm3868, %v3769, 0
    %v5590 = vsel %vm3868, %v3774, 0
    %v5593 = vsel %vm3868, %v3779, 0
    %v5596 = vsel %vm3868, %v3784, 0
    %v5599 = vsel %vm3868, %v3789, 0
    %v5602 = vsel %vm3868, %v3794, 0
    %v5605 = vsel %vm3868, %v3799, 0
    %v5608 = vsel %vm3868, %v3804, 0
    %v5611 = vsel %vm3868, %v3809, 0
    %v5614 = vsel %vm3868, %v3814, 0
    %v5617 = vsel %vm3868, %v3819, 0
    %v5620 = vsel %vm3868, %v3824, 0
    %v5623 = vsel %vm3868, %v3829, 0
    %v5626 = vsel %vm3868, %v3834, 0
    %v5629 = vsel %vm3868, %v3839, 0
    %v5632 = vsel %vm3868, %v3844, 0
    %5634 = vmatprep.subr.mxu0 0.0
    %5635 = vmatpush1.msra.mxu0 %v5576
    %5636 = vmatprep.subr.mxu0 0.0
    %5637 = vmatpush1.msra.mxu0 %v5577
    %5638 = vmatprep.subr.mxu0 0.0
    %5639 = vmatpush1.msra.mxu0 %v5578
    %5640 = vmatprep.subr.mxu0 0.0
    %5641 = vmatpush1.msra.mxu0 %v5579
    %5642 = vmatprep.subr.mxu0 0.0
    %5643 = vmatpush1.msra.mxu0 %v5580
    %5644 = vmatprep.subr.mxu0 0.0
    %5645 = vmatpush1.msra.mxu0 %v5581
    %5646 = vmatprep.subr.mxu0 0.0
    %5647 = vmatpush1.msra.mxu0 %v5582
    %5648 = vmatprep.subr.mxu0 0.0
    %5649 = vmatpush1.msra.mxu0 %v5583
    %5650 = vmatprep.subr.mxu0 0.0
    %5651 = vmatpush1.msra.mxu0 %v5584
    %5652 = vmatprep.subr.mxu0 0.0
    %5653 = vmatpush1.msra.mxu0 %v5585
    %5654 = vmatprep.subr.mxu0 0.0
    %5655 = vmatpush1.msra.mxu0 0.0
    %5656 = vmatprep.subr.mxu0 0.0
    %5657 = vmatpush1.msra.mxu0 0.0
    %5658 = vmatprep.subr.mxu0 0.0
    %5659 = vmatpush1.msra.mxu0 0.0
    %5660 = vmatprep.subr.mxu0 0.0
    %5661 = vmatpush1.msra.mxu0 0.0
    %5662 = vmatprep.subr.mxu0 0.0
    %5663 = vmatpush1.msra.mxu0 0.0
    %5664 = vmatprep.subr.mxu0 0.0
    %5665 = vmatpush1.msra.mxu0 0.0
    %5666 = vmatprep.subr.mxu0 0.0
    %5667 = vmatpush1.msra.mxu0 0.0
    %5668 = vmatprep.subr.mxu0 0.0
    %5669 = vmatpush1.msra.mxu0 0.0
    %5670 = vmatprep.subr.mxu0 0.0
    %5671 = vmatpush1.msra.mxu0 0.0
    %5672 = vmatprep.subr.mxu0 0.0
    %5673 = vmatpush1.msra.mxu0 0.0
    %5674 = vmatprep.subr.mxu0 0.0
    %5675 = vmatpush1.msra.mxu0 0.0
    %5676 = vmatprep.subr.mxu0 0.0
    %5677 = vmatpush1.msra.mxu0 0.0
    %5678 = vmatprep.subr.mxu0 0.0
    %5679 = vmatpush1.msra.mxu0 0.0
    %5680 = vmatprep.subr.mxu0 0.0
    %5681 = vmatpush1.msra.mxu0 0.0
    %5682 = vmatprep.subr.mxu0 0.0
    %5683 = vmatpush1.msra.mxu0 0.0
    %5684 = vmatprep.subr.mxu0 0.0
    %5685 = vmatpush1.msra.mxu0 0.0
    %5686 = vmatprep.subr.mxu0 0.0
    %5687 = vmatpush1.msra.mxu0 0.0
    %5688 = vmatprep.subr.mxu0 0.0
    %5689 = vmatpush1.msra.mxu0 0.0
    %5690 = vmatprep.subr.mxu0 0.0
    %5691 = vmatpush1.msra.mxu0 0.0
    %5692 = vmatprep.subr.mxu0 0.0
    %5693 = vmatpush1.msra.mxu0 0.0
    %5694 = vmatprep.subr.mxu0 0.0
    %5695 = vmatpush1.msra.mxu0 0.0
    %5696 = vmatprep.subr.mxu0 0.0
    %5697 = vmatpush1.msra.mxu0 0.0
    %5698 = vmatprep.mubr.f32.mxu0 0.0
    %5699 = vmatmul.mubr.f32.gmra.mrb[0].mxu0 %v5587
    %v5700 = vpop.f32.mrb[0].mxu0
    %v5701 = vadd.f32 0.0, %v5700
    %v5702 = vpop.f32.mrb[0].mxu0
    %5703 = vmatprep.mubr.f32.mxu0 0.0
    %5704 = vmatmul.mubr.f32.gmra.mrb[0].mxu0 %v5590
    %v5705 = vpop.f32.mrb[0].mxu0
    %v5706 = vadd.f32 0.0, %v5705
    %v5707 = vpop.f32.mrb[0].mxu0
    %5708 = vmatprep.mubr.f32.mxu0 0.0
    %5709 = vmatmul.mubr.f32.gmra.mrb[0].mxu0 %v5593
    %v5710 = vpop.f32.mrb[0].mxu0
    %v5711 = vadd.f32 0.0, %v5710
    %v5712 = vpop.f32.mrb[0].mxu0
    %5713 = vmatprep.mubr.f32.mxu0 0.0
    %5714 = vmatmul.mubr.f32.gmra.mrb[0].mxu0 %v5596
    %v5715 = vpop.f32.mrb[0].mxu0
    %v5716 = vadd.f32 0.0, %v5715
    %v5717 = vpop.f32.mrb[0].mxu0
    %5718 = vmatprep.mubr.f32.mxu0 0.0
    %5719 = vmatmul.mubr.f32.gmra.mrb[0].mxu0 %v5599
    %v5720 = vpop.f32.mrb[0].mxu0
    %v5721 = vadd.f32 0.0, %v5720
    %v5722 = vpop.f32.mrb[0].mxu0
    %5723 = vmatprep.mubr.f32.mxu0 0.0
    %5724 = vmatmul.mubr.f32.gmra.mrb[0].mxu0 %v5602
    %v5725 = vpop.f32.mrb[0].mxu0
    %v5726 = vadd.f32 0.0, %v5725
    %v5727 = vpop.f32.mrb[0].mxu0
    %5728 = vmatprep.mubr.f32.mxu0 0.0
    %5729 = vmatmul.mubr.f32.gmra.mrb[0].mxu0 %v5605
    %v5730 = vpop.f32.mrb[0].mxu0
    %v5731 = vadd.f32 0.0, %v5730
    %v5732 = vpop.f32.mrb[0].mxu0
    %5733 = vmatprep.mubr.f32.mxu0 0.0
    %5734 = vmatmul.mubr.f32.gmra.mrb[0].mxu0 %v5608
    %v5735 = vpop.f32.mrb[0].mxu0
    %v5736 = vadd.f32 0.0, %v5735
    %v5737 = vpop.f32.mrb[0].mxu0
    %5738 = vmatprep.mubr.f32.mxu0 0.0
    %5739 = vmatmul.mubr.f32.gmra.mrb[0].mxu0 %v5611
    %v5740 = vpop.f32.mrb[0].mxu0
    %v5741 = vadd.f32 0.0, %v5740
    %v5742 = vpop.f32.mrb[0].mxu0
    %5743 = vmatprep.mubr.f32.mxu0 0.0
    %5744 = vmatmul.mubr.f32.gmra.mrb[0].mxu0 %v5614
    %v5745 = vpop.f32.mrb[0].mxu0
    %v5746 = vadd.f32 0.0, %v5745
    %v5747 = vpop.f32.mrb[0].mxu0
    %5748 = vmatprep.mubr.f32.mxu0 0.0
    %5749 = vmatmul.mubr.f32.gmra.mrb[0].mxu0 %v5617
    %v5750 = vpop.f32.mrb[0].mxu0
    %v5751 = vadd.f32 0.0, %v5750
    %v5752 = vpop.f32.mrb[0].mxu0
    %5753 = vmatprep.mubr.f32.mxu0 0.0
    %5754 = vmatmul.mubr.f32.gmra.mrb[0].mxu0 %v5620
    %v5755 = vpop.f32.mrb[0].mxu0
    %v5756 = vadd.f32 0.0, %v5755
    %v5757 = vpop.f32.mrb[0].mxu0
    %5758 = vmatprep.mubr.f32.mxu0 0.0
    %5759 = vmatmul.mubr.f32.gmra.mrb[0].mxu0 %v5623
    %v5760 = vpop.f32.mrb[0].mxu0
    %v5761 = vadd.f32 0.0, %v5760
    %v5762 = vpop.f32.mrb[0].mxu0
    %5763 = vmatprep.mubr.f32.mxu0 0.0
    %5764 = vmatmul.mubr.f32.gmra.mrb[0].mxu0 %v5626
    %v5765 = vpop.f32.mrb[0].mxu0
    %v5766 = vadd.f32 0.0, %v5765
    %v5767 = vpop.f32.mrb[0].mxu0
    %5768 = vmatprep.mubr.f32.mxu0 0.0
    %5769 = vmatmul.mubr.f32.gmra.mrb[0].mxu0 %v5629
    %v5770 = vpop.f32.mrb[0].mxu0
    %v5771 = vadd.f32 0.0, %v5770
    %v5772 = vpop.f32.mrb[0].mxu0
    %5773 = vmatprep.mubr.f32.mxu0 0.0
    %5774 = vmatmul.mubr.f32.gmra.mrb[0].mxu0 %v5632
    %v5775 = vpop.f32.mrb[0].mxu0
    %v5776 = vadd.f32 0.0, %v5775
    %v5777 = vpop.f32.mrb[0].mxu0
    %5778 = vdwg.mxu0
    %v5779 = vadd.f32 %v5559, %v5701
    %v5780 = vadd.f32 %v5560, %v5706
    %v5781 = vadd.f32 %v5561, %v5711
    %v5782 = vadd.f32 %v5562, %v5716
    %v5783 = vadd.f32 %v5563, %v5721
    %v5784 = vadd.f32 %v5564, %v5726
    %v5785 = vadd.f32 %v5565, %v5731
    %v5786 = vadd.f32 %v5566, %v5736
    %v5787 = vadd.f32 %v5567, %v5741
    %v5788 = vadd.f32 %v5568, %v5746
    %v5789 = vadd.f32 %v5569, %v5751
    %v5790 = vadd.f32 %v5570, %v5756
    %v5791 = vadd.f32 %v5571, %v5761
    %v5792 = vadd.f32 %v5572, %v5766
    %v5793 = vadd.f32 %v5573, %v5771
    %v5794 = vadd.f32 %v5574, %v5776
    %v5795 = vadd.f32 %v5779, %v5780
    %v5796 = vadd.f32 %v5795, %v5781
    %v5797 = vadd.f32 %v5796, %v5782
    %v5798 = vadd.f32 %v5797, %v5783
    %v5799 = vadd.f32 %v5798, %v5784
    %v5800 = vadd.f32 %v5799, %v5785
    %v5801 = vadd.f32 %v5800, %v5786
    %v5802 = vadd.f32 %v5801, %v5787
    %v5803 = vadd.f32 %v5802, %v5788
    %v5804 = vadd.f32 %v5803, %v5789
    %v5805 = vadd.f32 %v5804, %v5790
    %v5806 = vadd.f32 %v5805, %v5791
    %v5807 = vadd.f32 %v5806, %v5792
    %v5808 = vadd.f32 %v5807, %v5793
    %v5809 = vadd.f32 %v5808, %v5794
    %v5810 = vrot.slane %v5809, 4
    %v5811 = vadd.f32 %v5809, %v5810
    %v5812 = vrot.slane %v5811, 2
    %v5813 = vadd.f32 %v5811, %v5812
    %v5814 = vrot.slane %v5813, 1
    %v5815 = vadd.f32 %v5813, %v5814
    %v5816 = vld [vmem:[%s9] sm:$0xff]
    %v5817 = vld [vmem:[%s9 + $0x8] sm:$0xff]
    %v5818 = vld [vmem:[%s9 + $0x10] sm:$0xff]
    %v5819 = vld [vmem:[%s9 + $0x18] sm:$0xff]
    %v5820 = vld [vmem:[%s9 + $0x20] sm:$0xff]
    %v5821 = vld [vmem:[%s9 + $0x28] sm:$0xff]
    %v5822 = vld [vmem:[%s9 + $0x30] sm:$0xff]
    %v5823 = vld [vmem:[%s9 + $0x38] sm:$0xff]
    %v5824 = vld [vmem:[%s9 + $0x40] sm:$0xff]
    %v5825 = vld [vmem:[%s9 + $0x48] sm:$0xff]
    %v5826 = vld [vmem:[%s9 + $0x50] sm:$0xff]
    %v5827 = vld [vmem:[%s9 + $0x58] sm:$0xff]
    %v5828 = vld [vmem:[%s9 + $0x60] sm:$0xff]
    %v5829 = vld [vmem:[%s9 + $0x68] sm:$0xff]
    %v5830 = vld [vmem:[%s9 + $0x70] sm:$0xff]
    %v5831 = vld [vmem:[%s9 + $0x78] sm:$0xff]
    %5832 = vmatprep.subr.mxu0 0.0
    %5833 = vmatpush1.msra.mxu0 %v5816
    %5834 = vmatprep.subr.mxu0 0.0
    %5835 = vmatpush1.msra.mxu0 %v5817
    %5836 = vmatprep.subr.mxu0 0.0
    %5837 = vmatpush1.msra.mxu0 %v5818
    %5838 = vmatprep.subr.mxu0 0.0
    %5839 = vmatpush1.msra.mxu0 %v5819
    %5840 = vmatprep.subr.mxu0 0.0
    %5841 = vmatpush1.msra.mxu0 %v5820
    %5842 = vmatprep.subr.mxu0 0.0
    %5843 = vmatpush1.msra.mxu0 %v5821
    %5844 = vmatprep.subr.mxu0 0.0
    %5845 = vmatpush1.msra.mxu0 %v5822
    %5846 = vmatprep.subr.mxu0 0.0
    %5847 = vmatpush1.msra.mxu0 %v5823
    %5848 = vmatprep.subr.mxu0 0.0
    %5849 = vmatpush1.msra.mxu0 %v5824
    %5850 = vmatprep.subr.mxu0 0.0
    %5851 = vmatpush1.msra.mxu0 %v5825
    %5852 = vmatprep.subr.mxu0 0.0
    %5853 = vmatpush1.msra.mxu0 %v5826
    %5854 = vmatprep.subr.mxu0 0.0
    %5855 = vmatpush1.msra.mxu0 %v5827
    %5856 = vmatprep.subr.mxu0 0.0
    %5857 = vmatpush1.msra.mxu0 %v5828
    %5858 = vmatprep.subr.mxu0 0.0
    %5859 = vmatpush1.msra.mxu0 %v5829
    %5860 = vmatprep.subr.mxu0 0.0
    %5861 = vmatpush1.msra.mxu0 %v5830
    %5862 = vmatprep.subr.mxu0 0.0
    %5863 = vmatpush1.msra.mxu0 %v5831
    %5864 = vmatprep.subr.mxu0 0.0
    %5865 = vmatpush1.msra.mxu0 0.0
    %5866 = vmatprep.subr.mxu0 0.0
    %5867 = vmatpush1.msra.mxu0 0.0
    %5868 = vmatprep.subr.mxu0 0.0
    %5869 = vmatpush1.msra.mxu0 0.0
    %5870 = vmatprep.subr.mxu0 0.0
    %5871 = vmatpush1.msra.mxu0 0.0
    %5872 = vmatprep.subr.mxu0 0.0
    %5873 = vmatpush1.msra.mxu0 0.0
    %5874 = vmatprep.subr.mxu0 0.0
    %5875 = vmatpush1.msra.mxu0 0.0
    %5876 = vmatprep.subr.mxu0 0.0
    %5877 = vmatpush1.msra.mxu0 0.0
    %5878 = vmatprep.subr.mxu0 0.0
    %5879 = vmatpush1.msra.mxu0 0.0
    %5880 = vmatprep.subr.mxu0 0.0
    %5881 = vmatpush1.msra.mxu0 0.0
    %5882 = vmatprep.subr.mxu0 0.0
    %5883 = vmatpush1.msra.mxu0 0.0
    %5884 = vmatprep.subr.mxu0 0.0
    %5885 = vmatpush1.msra.mxu0 0.0
    %5886 = vmatprep.subr.mxu0 0.0
    %5887 = vmatpush1.msra.mxu0 0.0
    %5888 = vmatprep.subr.mxu0 0.0
    %5889 = vmatpush1.msra.mxu0 0.0
    %5890 = vmatprep.subr.mxu0 0.0
    %5891 = vmatpush1.msra.mxu0 0.0
    %5892 = vmatprep.subr.mxu0 0.0
    %5893 = vmatpush1.msra.mxu0 0.0
    %5894 = vmatprep.subr.mxu0 0.0
    %5895 = vmatpush1.msra.mxu0 0.0
    %5896 = vmatprep.mubr.f32.mxu0 0.0
    %5897 = vmatmul.mubr.f32.gmra.mrb[0].mxu0 %v5815
    %v5898 = vpop.f32.mrb[0].mxu0
    %v5899 = vadd.f32 0.0, %v5898
    %v5900 = vpop.f32.mrb[0].mxu0
    %5901 = vdwg.mxu0
    %v5902 = vmul.f32 %v5899, 0.0009765625
    %v5903 = vlaneseq
    %v5904 = vshrl.u32 %v5903, 7
    %v5905 = vsub.s32 0, %v5904
    %v5906 = vrot.slane %v5902, %v5905
    %v5907 = vsub.f32 %v5779, %v5906
    %v5908 = vsub.f32 %v5780, %v5906
    %v5909 = vsub.f32 %v5781, %v5906
    %v5910 = vsub.f32 %v5782, %v5906
    %v5911 = vsub.f32 %v5783, %v5906
    %v5912 = vsub.f32 %v5784, %v5906
    %v5913 = vsub.f32 %v5785, %v5906
    %v5914 = vsub.f32 %v5786, %v5906
    %v5915 = vsub.f32 %v5787, %v5906
    %v5916 = vsub.f32 %v5788, %v5906
    %v5917 = vsub.f32 %v5789, %v5906
    %v5918 = vsub.f32 %v5790, %v5906
    %v5919 = vsub.f32 %v5791, %v5906
    %v5920 = vsub.f32 %v5792, %v5906
    %v5921 = vsub.f32 %v5793, %v5906
    %v5922 = vsub.f32 %v5794, %v5906
    %v5923 = vmul.f32 %v5907, %v5907
    %v5924 = vmul.f32 %v5908, %v5908
    %v5925 = vmul.f32 %v5909, %v5909
    %v5926 = vmul.f32 %v5910, %v5910
    %v5927 = vmul.f32 %v5911, %v5911
    %v5928 = vmul.f32 %v5912, %v5912
    %v5929 = vmul.f32 %v5913, %v5913
    %v5930 = vmul.f32 %v5914, %v5914
    %v5931 = vmul.f32 %v5915, %v5915
    %v5932 = vmul.f32 %v5916, %v5916
    %v5933 = vmul.f32 %v5917, %v5917
    %v5934 = vmul.f32 %v5918, %v5918
    %v5935 = vmul.f32 %v5919, %v5919
    %v5936 = vmul.f32 %v5920, %v5920
    %v5937 = vmul.f32 %v5921, %v5921
    %v5938 = vmul.f32 %v5922, %v5922
    %v5939 = vadd.f32 %v5923, %v5924
    %v5940 = vadd.f32 %v5939, %v5925
    %v5941 = vadd.f32 %v5940, %v5926
    %v5942 = vadd.f32 %v5941, %v5927
    %v5943 = vadd.f32 %v5942, %v5928
    %v5944 = vadd.f32 %v5943, %v5929
    %v5945 = vadd.f32 %v5944, %v5930
    %v5946 = vadd.f32 %v5945, %v5931
    %v5947 = vadd.f32 %v5946, %v5932
    %v5948 = vadd.f32 %v5947, %v5933
    %v5949 = vadd.f32 %v5948, %v5934
    %v5950 = vadd.f32 %v5949, %v5935
    %v5951 = vadd.f32 %v5950, %v5936
    %v5952 = vadd.f32 %v5951, %v5937
    %v5953 = vadd.f32 %v5952, %v5938
    %v5954 = vrot.slane %v5953, 4
    %v5955 = vadd.f32 %v5953, %v5954
    %v5956 = vrot.slane %v5955, 2
    %v5957 = vadd.f32 %v5955, %v5956
    %v5958 = vrot.slane %v5957, 1
    %v5959 = vadd.f32 %v5957, %v5958
    %5960 = vmatprep.subr.mxu0 0.0
    %5961 = vmatpush1.msra.mxu0 %v5816
    %5962 = vmatprep.subr.mxu0 0.0
    %5963 = vmatpush1.msra.mxu0 %v5817
    %5964 = vmatprep.subr.mxu0 0.0
    %5965 = vmatpush1.msra.mxu0 %v5818
    %5966 = vmatprep.subr.mxu0 0.0
    %5967 = vmatpush1.msra.mxu0 %v5819
    %5968 = vmatprep.subr.mxu0 0.0
    %5969 = vmatpush1.msra.mxu0 %v5820
    %5970 = vmatprep.subr.mxu0 0.0
    %5971 = vmatpush1.msra.mxu0 %v5821
    %5972 = vmatprep.subr.mxu0 0.0
    %5973 = vmatpush1.msra.mxu0 %v5822
    %5974 = vmatprep.subr.mxu0 0.0
    %5975 = vmatpush1.msra.mxu0 %v5823
    %5976 = vmatprep.subr.mxu0 0.0
    %5977 = vmatpush1.msra.mxu0 %v5824
    %5978 = vmatprep.subr.mxu0 0.0
    %5979 = vmatpush1.msra.mxu0 %v5825
    %5980 = vmatprep.subr.mxu0 0.0
    %5981 = vmatpush1.msra.mxu0 %v5826
    %5982 = vmatprep.subr.mxu0 0.0
    %5983 = vmatpush1.msra.mxu0 %v5827
    %5984 = vmatprep.subr.mxu0 0.0
    %5985 = vmatpush1.msra.mxu0 %v5828
    %5986 = vmatprep.subr.mxu0 0.0
    %5987 = vmatpush1.msra.mxu0 %v5829
    %5988 = vmatprep.subr.mxu0 0.0
    %5989 = vmatpush1.msra.mxu0 %v5830
    %5990 = vmatprep.subr.mxu0 0.0
    %5991 = vmatpush1.msra.mxu0 %v5831
    %5992 = vmatprep.subr.mxu0 0.0
    %5993 = vmatpush1.msra.mxu0 0.0
    %5994 = vmatprep.subr.mxu0 0.0
    %5995 = vmatpush1.msra.mxu0 0.0
    %5996 = vmatprep.subr.mxu0 0.0
    %5997 = vmatpush1.msra.mxu0 0.0
    %5998 = vmatprep.subr.mxu0 0.0
    %5999 = vmatpush1.msra.mxu0 0.0
    %6000 = vmatprep.subr.mxu0 0.0
    %6001 = vmatpush1.msra.mxu0 0.0
    %6002 = vmatprep.subr.mxu0 0.0
    %6003 = vmatpush1.msra.mxu0 0.0
    %6004 = vmatprep.subr.mxu0 0.0
    %6005 = vmatpush1.msra.mxu0 0.0
    %6006 = vmatprep.subr.mxu0 0.0
    %6007 = vmatpush1.msra.mxu0 0.0
    %6008 = vmatprep.subr.mxu0 0.0
    %6009 = vmatpush1.msra.mxu0 0.0
    %6010 = vmatprep.subr.mxu0 0.0
    %6011 = vmatpush1.msra.mxu0 0.0
    %6012 = vmatprep.subr.mxu0 0.0
    %6013 = vmatpush1.msra.mxu0 0.0
    %6014 = vmatprep.subr.mxu0 0.0
    %6015 = vmatpush1.msra.mxu0 0.0
    %6016 = vmatprep.subr.mxu0 0.0
    %6017 = vmatpush1.msra.mxu0 0.0
    %6018 = vmatprep.subr.mxu0 0.0
    %6019 = vmatpush1.msra.mxu0 0.0
    %6020 = vmatprep.subr.mxu0 0.0
    %6021 = vmatpush1.msra.mxu0 0.0
    %6022 = vmatprep.subr.mxu0 0.0
    %6023 = vmatpush1.msra.mxu0 0.0
    %6024 = vmatprep.mubr.f32.mxu0 0.0
    %6025 = vmatmul.mubr.f32.gmra.mrb[0].mxu0 %v5959
    %v6026 = vpop.f32.mrb[0].mxu0
    %v6027 = vadd.f32 0.0, %v6026
    %v6028 = vpop.f32.mrb[0].mxu0
    %6029 = vdwg.mxu0
    %v6030 = vmul.f32 %v6027, 0.0009765625
    %v6031 = vld [vmem:[%s10] sm:$0x1]
    %v6032 = vadd.f32 %v6030, 1e-05
    %v6033 = vrsqrt.pop %v6032
    %v6034 = vmul.f32 %v6031, %v6033
    %v6035 = vld [vmem:[%s11] sm:$0x1]
    %v6036 = vmul.f32 %v5902, %v6034
    %v6037 = vsub.f32 %v6035, %v6036
    %v6039 = vlaneseq
    %v6040 = vshrl.u32 %v6039, 7
    %v6041 = vsub.s32 0, %v6040
    %v6042 = vrot.slane %v6034, %v6041
    %v6044 = vmul.f32 %v5779, %v6042
    %v6045 = vmul.f32 %v5780, %v6042
    %v6046 = vmul.f32 %v5781, %v6042
    %v6047 = vmul.f32 %v5782, %v6042
    %v6048 = vmul.f32 %v5783, %v6042
    %v6049 = vmul.f32 %v5784, %v6042
    %v6050 = vmul.f32 %v5785, %v6042
    %v6051 = vmul.f32 %v5786, %v6042
    %v6052 = vmul.f32 %v5787, %v6042
    %v6053 = vmul.f32 %v5788, %v6042
    %v6054 = vmul.f32 %v5789, %v6042
    %v6055 = vmul.f32 %v5790, %v6042
    %v6056 = vmul.f32 %v5791, %v6042
    %v6057 = vmul.f32 %v5792, %v6042
    %v6058 = vmul.f32 %v5793, %v6042
    %v6059 = vmul.f32 %v5794, %v6042
    %v6061 = vlaneseq
    %v6062 = vshrl.u32 %v6061, 7
    %v6063 = vsub.s32 0, %v6062
    %v6064 = vrot.slane %v6037, %v6063
    %v6066 = vadd.f32 %v6044, %v6064
    %v6067 = vadd.f32 %v6045, %v6064
    %v6068 = vadd.f32 %v6046, %v6064
    %v6069 = vadd.f32 %v6047, %v6064
    %v6070 = vadd.f32 %v6048, %v6064
    %v6071 = vadd.f32 %v6049, %v6064
    %v6072 = vadd.f32 %v6050, %v6064
    %v6073 = vadd.f32 %v6051, %v6064
    %v6074 = vadd.f32 %v6052, %v6064
    %v6075 = vadd.f32 %v6053, %v6064
    %v6076 = vadd.f32 %v6054, %v6064
    %v6077 = vadd.f32 %v6055, %v6064
    %v6078 = vadd.f32 %v6056, %v6064
    %v6079 = vadd.f32 %v6057, %v6064
    %v6080 = vadd.f32 %v6058, %v6064
    %v6081 = vadd.f32 %v6059, %v6064
    %v6082 = vmax.f32 %v6066, 0.0
    %v6083 = vmax.f32 %v6067, 0.0
    %v6084 = vmax.f32 %v6068, 0.0
    %v6085 = vmax.f32 %v6069, 0.0
    %v6086 = vmax.f32 %v6070, 0.0
    %v6087 = vmax.f32 %v6071, 0.0
    %v6088 = vmax.f32 %v6072, 0.0
    %v6089 = vmax.f32 %v6073, 0.0
    %v6090 = vmax.f32 %v6074, 0.0
    %v6091 = vmax.f32 %v6075, 0.0
    %v6092 = vmax.f32 %v6076, 0.0
    %v6093 = vmax.f32 %v6077, 0.0
    %v6094 = vmax.f32 %v6078, 0.0
    %v6095 = vmax.f32 %v6079, 0.0
    %v6096 = vmax.f32 %v6080, 0.0
    %v6097 = vmax.f32 %v6081, 0.0
    %v6098 = vld [vmem:[%s12] sm:$0xff]
    %v6099 = vld [vmem:[%s12 + $0x8] sm:$0xff]
    %v6100 = vld [vmem:[%s12 + $0x10] sm:$0xff]
    %v6101 = vld [vmem:[%s12 + $0x18] sm:$0xff]
    %v6102 = vld [vmem:[%s12 + $0x20] sm:$0xff]
    %v6103 = vld [vmem:[%s12 + $0x28] sm:$0xff]
    %v6104 = vld [vmem:[%s12 + $0x30] sm:$0xff]
    %v6105 = vld [vmem:[%s12 + $0x38] sm:$0xff]
    %v6106 = vld [vmem:[%s12 + $0x40] sm:$0xff]
    %v6107 = vld [vmem:[%s13] sm:$0xff]
    %v6108 = vld [vmem:[%s13 + $0x8] sm:$0xff]
    %v6109 = vld [vmem:[%s13 + $0x10] sm:$0xff]
    %v6110 = vld [vmem:[%s13 + $0x18] sm:$0xff]
    %v6111 = vld [vmem:[%s13 + $0x20] sm:$0xff]
    %v6112 = vld [vmem:[%s13 + $0x28] sm:$0xff]
    %v6113 = vld [vmem:[%s13 + $0x30] sm:$0xff]
    %v6114 = vld [vmem:[%s13 + $0x38] sm:$0xff]
    %v6115 = vld [vmem:[%s13 + $0x40] sm:$0xff]
    %v6116 = vld [vmem:[%s13 + $0x48] sm:$0xff]
    %v6117 = vld [vmem:[%s13 + $0x50] sm:$0xff]
    %v6118 = vld [vmem:[%s13 + $0x58] sm:$0xff]
    %v6119 = vld [vmem:[%s13 + $0x60] sm:$0xff]
    %v6120 = vld [vmem:[%s13 + $0x68] sm:$0xff]
    %v6121 = vld [vmem:[%s13 + $0x70] sm:$0xff]
    %v6122 = vld [vmem:[%s13 + $0x78] sm:$0xff]
    %6123 = vmatprep.subr.mxu0 0.0
    %6124 = vmatpush1.msra.mxu0 %v6107
    %6125 = vmatprep.subr.mxu0 0.0
    %6126 = vmatpush1.msra.mxu0 %v6108
    %6127 = vmatprep.subr.mxu0 0.0
    %6128 = vmatpush1.msra.mxu0 %v6109
    %6129 = vmatprep.subr.mxu0 0.0
    %6130 = vmatpush1.msra.mxu0 %v6110
    %6131 = vmatprep.subr.mxu0 0.0
    %6132 = vmatpush1.msra.mxu0 %v6111
    %6133 = vmatprep.subr.mxu0 0.0
    %6134 = vmatpush1.msra.mxu0 %v6112
    %6135 = vmatprep.subr.mxu0 0.0
    %6136 = vmatpush1.msra.mxu0 %v6113
    %6137 = vmatprep.subr.mxu0 0.0
    %6138 = vmatpush1.msra.mxu0 %v6114
    %6139 = vmatprep.subr.mxu0 0.0
    %6140 = vmatpush1.msra.mxu0 %v6115
    %6141 = vmatprep.subr.mxu0 0.0
    %6142 = vmatpush1.msra.mxu0 %v6116
    %6143 = vmatprep.subr.mxu0 0.0
    %6144 = vmatpush1.msra.mxu0 %v6117
    %6145 = vmatprep.subr.mxu0 0.0
    %6146 = vmatpush1.msra.mxu0 %v6118
    %6147 = vmatprep.subr.mxu0 0.0
    %6148 = vmatpush1.msra.mxu0 %v6119
    %6149 = vmatprep.subr.mxu0 0.0
    %6150 = vmatpush1.msra.mxu0 %v6120
    %6151 = vmatprep.subr.mxu0 0.0
    %6152 = vmatpush1.msra.mxu0 %v6121
    %6153 = vmatprep.subr.mxu0 0.0
    %6154 = vmatpush1.msra.mxu0 %v6122
    %6155 = vmatprep.subr.mxu0 0.0
    %6156 = vmatpush1.msra.mxu0 0.0
    %6157 = vmatprep.subr.mxu0 0.0
    %6158 = vmatpush1.msra.mxu0 0.0
    %6159 = vmatprep.subr.mxu0 0.0
    %6160 = vmatpush1.msra.mxu0 0.0
    %6161 = vmatprep.subr.mxu0 0.0
    %6162 = vmatpush1.msra.mxu0 0.0
    %6163 = vmatprep.subr.mxu0 0.0
    %6164 = vmatpush1.msra.mxu0 0.0
    %6165 = vmatprep.subr.mxu0 0.0
    %6166 = vmatpush1.msra.mxu0 0.0
    %6167 = vmatprep.subr.mxu0 0.0
    %6168 = vmatpush1.msra.mxu0 0.0
    %6169 = vmatprep.subr.mxu0 0.0
    %6170 = vmatpush1.msra.mxu0 0.0
    %6171 = vmatprep.subr.mxu0 0.0
    %6172 = vmatpush1.msra.mxu0 0.0
    %6173 = vmatprep.subr.mxu0 0.0
    %6174 = vmatpush1.msra.mxu0 0.0
    %6175 = vmatprep.subr.mxu0 0.0
    %6176 = vmatpush1.msra.mxu0 0.0
    %6177 = vmatprep.subr.mxu0 0.0
    %6178 = vmatpush1.msra.mxu0 0.0
    %6179 = vmatprep.subr.mxu0 0.0
    %6180 = vmatpush1.msra.mxu0 0.0
    %6181 = vmatprep.subr.mxu0 0.0
    %6182 = vmatpush1.msra.mxu0 0.0
    %6183 = vmatprep.subr.mxu0 0.0
    %6184 = vmatpush1.msra.mxu0 0.0
    %6185 = vmatprep.subr.mxu0 0.0
    %6186 = vmatpush1.msra.mxu0 0.0
    %6187 = vmatprep.mubr.f32.mxu0 0.0
    %6188 = vmatmul.mubr.f32.gmra.mrb[0].mxu0 %v6082
    %v6189 = vpop.f32.mrb[0].mxu0
    %v6190 = vadd.f32 0.0, %v6189
    %v6191 = vpop.f32.mrb[0].mxu0
    %6192 = vmatprep.mubr.f32.mxu0 0.0
    %6193 = vmatmul.mubr.f32.gmra.mrb[0].mxu0 %v6083
    %v6194 = vpop.f32.mrb[0].mxu0
    %v6195 = vadd.f32 0.0, %v6194
    %v6196 = vpop.f32.mrb[0].mxu0
    %6197 = vmatprep.mubr.f32.mxu0 0.0
    %6198 = vmatmul.mubr.f32.gmra.mrb[0].mxu0 %v6084
    %v6199 = vpop.f32.mrb[0].mxu0
    %v6200 = vadd.f32 0.0, %v6199
    %v6201 = vpop.f32.mrb[0].mxu0
    %6202 = vmatprep.mubr.f32.mxu0 0.0
    %6203 = vmatmul.mubr.f32.gmra.mrb[0].mxu0 %v6085
    %v6204 = vpop.f32.mrb[0].mxu0
    %v6205 = vadd.f32 0.0, %v6204
    %v6206 = vpop.f32.mrb[0].mxu0
    %6207 = vmatprep.mubr.f32.mxu0 0.0
    %6208 = vmatmul.mubr.f32.gmra.mrb[0].mxu0 %v6086
    %v6209 = vpop.f32.mrb[0].mxu0
    %v6210 = vadd.f32 0.0, %v6209
    %v6211 = vpop.f32.mrb[0].mxu0
    %6212 = vmatprep.mubr.f32.mxu0 0.0
    %6213 = vmatmul.mubr.f32.gmra.mrb[0].mxu0 %v6087
    %v6214 = vpop.f32.mrb[0].mxu0
    %v6215 = vadd.f32 0.0, %v6214
    %v6216 = vpop.f32.mrb[0].mxu0
    %6217 = vmatprep.mubr.f32.mxu0 0.0
    %6218 = vmatmul.mubr.f32.gmra.mrb[0].mxu0 %v6088
    %v6219 = vpop.f32.mrb[0].mxu0
    %v6220 = vadd.f32 0.0, %v6219
    %v6221 = vpop.f32.mrb[0].mxu0
    %6222 = vmatprep.mubr.f32.mxu0 0.0
    %6223 = vmatmul.mubr.f32.gmra.mrb[0].mxu0 %v6089
    %v6224 = vpop.f32.mrb[0].mxu0
    %v6225 = vadd.f32 0.0, %v6224
    %v6226 = vpop.f32.mrb[0].mxu0
    %6227 = vmatprep.mubr.f32.mxu0 0.0
    %6228 = vmatmul.mubr.f32.gmra.mrb[0].mxu0 %v6090
    %v6229 = vpop.f32.mrb[0].mxu0
    %v6230 = vadd.f32 0.0, %v6229
    %v6231 = vpop.f32.mrb[0].mxu0
    %6232 = vmatprep.mubr.f32.mxu0 0.0
    %6233 = vmatmul.mubr.f32.gmra.mrb[0].mxu0 %v6091
    %v6234 = vpop.f32.mrb[0].mxu0
    %v6235 = vadd.f32 0.0, %v6234
    %v6236 = vpop.f32.mrb[0].mxu0
    %6237 = vmatprep.mubr.f32.mxu0 0.0
    %6238 = vmatmul.mubr.f32.gmra.mrb[0].mxu0 %v6092
    %v6239 = vpop.f32.mrb[0].mxu0
    %v6240 = vadd.f32 0.0, %v6239
    %v6241 = vpop.f32.mrb[0].mxu0
    %6242 = vmatprep.mubr.f32.mxu0 0.0
    %6243 = vmatmul.mubr.f32.gmra.mrb[0].mxu0 %v6093
    %v6244 = vpop.f32.mrb[0].mxu0
    %v6245 = vadd.f32 0.0, %v6244
    %v6246 = vpop.f32.mrb[0].mxu0
    %6247 = vmatprep.mubr.f32.mxu0 0.0
    %6248 = vmatmul.mubr.f32.gmra.mrb[0].mxu0 %v6094
    %v6249 = vpop.f32.mrb[0].mxu0
    %v6250 = vadd.f32 0.0, %v6249
    %v6251 = vpop.f32.mrb[0].mxu0
    %6252 = vmatprep.mubr.f32.mxu0 0.0
    %6253 = vmatmul.mubr.f32.gmra.mrb[0].mxu0 %v6095
    %v6254 = vpop.f32.mrb[0].mxu0
    %v6255 = vadd.f32 0.0, %v6254
    %v6256 = vpop.f32.mrb[0].mxu0
    %6257 = vmatprep.mubr.f32.mxu0 0.0
    %6258 = vmatmul.mubr.f32.gmra.mrb[0].mxu0 %v6096
    %v6259 = vpop.f32.mrb[0].mxu0
    %v6260 = vadd.f32 0.0, %v6259
    %v6261 = vpop.f32.mrb[0].mxu0
    %6262 = vmatprep.mubr.f32.mxu0 0.0
    %6263 = vmatmul.mubr.f32.gmra.mrb[0].mxu0 %v6097
    %v6264 = vpop.f32.mrb[0].mxu0
    %v6265 = vadd.f32 0.0, %v6264
    %v6266 = vpop.f32.mrb[0].mxu0
    %6267 = vdwg.mxu0
    %6268 = vmatprep.subr.mxu0 0.0
    %6269 = vmatpush1.msra.mxu0 %v6190
    %6270 = vmatprep.subr.mxu0 0.0
    %6271 = vmatpush1.msra.mxu0 %v6195
    %6272 = vmatprep.subr.mxu0 0.0
    %6273 = vmatpush1.msra.mxu0 %v6200
    %6274 = vmatprep.subr.mxu0 0.0
    %6275 = vmatpush1.msra.mxu0 %v6205
    %6276 = vmatprep.subr.mxu0 0.0
    %6277 = vmatpush1.msra.mxu0 %v6210
    %6278 = vmatprep.subr.mxu0 0.0
    %6279 = vmatpush1.msra.mxu0 %v6215
    %6280 = vmatprep.subr.mxu0 0.0
    %6281 = vmatpush1.msra.mxu0 %v6220
    %6282 = vmatprep.subr.mxu0 0.0
    %6283 = vmatpush1.msra.mxu0 %v6225
    %6284 = vmatprep.subr.mxu0 0.0
    %6285 = vmatpush1.msra.mxu0 %v6230
    %6286 = vmatprep.subr.mxu0 0.0
    %6287 = vmatpush1.msra.mxu0 %v6235
    %6288 = vmatprep.subr.mxu0 0.0
    %6289 = vmatpush1.msra.mxu0 %v6240
    %6290 = vmatprep.subr.mxu0 0.0
    %6291 = vmatpush1.msra.mxu0 %v6245
    %6292 = vmatprep.subr.mxu0 0.0
    %6293 = vmatpush1.msra.mxu0 %v6250
    %6294 = vmatprep.subr.mxu0 0.0
    %6295 = vmatpush1.msra.mxu0 %v6255
    %6296 = vmatprep.subr.mxu0 0.0
    %6297 = vmatpush1.msra.mxu0 %v6260
    %6298 = vmatprep.subr.mxu0 0.0
    %6299 = vmatpush1.msra.mxu0 %v6265
    %6300 = vmatprep.subr.mxu0 0.0
    %6301 = vmatpush1.msra.mxu0 0.0
    %6302 = vmatprep.subr.mxu0 0.0
    %6303 = vmatpush1.msra.mxu0 0.0
    %6304 = vmatprep.subr.mxu0 0.0
    %6305 = vmatpush1.msra.mxu0 0.0
    %6306 = vmatprep.subr.mxu0 0.0
    %6307 = vmatpush1.msra.mxu0 0.0
    %6308 = vmatprep.subr.mxu0 0.0
    %6309 = vmatpush1.msra.mxu0 0.0
    %6310 = vmatprep.subr.mxu0 0.0
    %6311 = vmatpush1.msra.mxu0 0.0
    %6312 = vmatprep.subr.mxu0 0.0
    %6313 = vmatpush1.msra.mxu0 0.0
    %6314 = vmatprep.subr.mxu0 0.0
    %6315 = vmatpush1.msra.mxu0 0.0
    %6316 = vmatprep.subr.mxu0 0.0
    %6317 = vmatpush1.msra.mxu0 0.0
    %6318 = vmatprep.subr.mxu0 0.0
    %6319 = vmatpush1.msra.mxu0 0.0
    %6320 = vmatprep.subr.mxu0 0.0
    %6321 = vmatpush1.msra.mxu0 0.0
    %6322 = vmatprep.subr.mxu0 0.0
    %6323 = vmatpush1.msra.mxu0 0.0
    %6324 = vmatprep.subr.mxu0 0.0
    %6325 = vmatpush1.msra.mxu0 0.0
    %6326 = vmatprep.subr.mxu0 0.0
    %6327 = vmatpush1.msra.mxu0 0.0
    %6328 = vmatprep.subr.mxu0 0.0
    %6329 = vmatpush1.msra.mxu0 0.0
    %6330 = vmatprep.subr.mxu0 0.0
    %6331 = vmatpush1.msra.mxu0 0.0
    %6332 = vmatprep.mubr.f32.mxu0 0.0
    %6333 = vmatmul.mubr.f32.gmra.mrb[0].mxu0 %v6098
    %v6334 = vpop.f32.mrb[0].mxu0
    %v6335 = vadd.f32 0.0, %v6334
    %v6336 = vpop.f32.mrb[0].mxu0
    %6337 = vmatprep.mubr.f32.mxu0 0.0
    %6338 = vmatmul.mubr.f32.gmra.mrb[0].mxu0 %v6099
    %v6339 = vpop.f32.mrb[0].mxu0
    %v6340 = vadd.f32 0.0, %v6339
    %v6341 = vpop.f32.mrb[0].mxu0
    %6342 = vmatprep.mubr.f32.mxu0 0.0
    %6343 = vmatmul.mubr.f32.gmra.mrb[0].mxu0 %v6100
    %v6344 = vpop.f32.mrb[0].mxu0
    %v6345 = vadd.f32 0.0, %v6344
    %v6346 = vpop.f32.mrb[0].mxu0
    %6347 = vmatprep.mubr.f32.mxu0 0.0
    %6348 = vmatmul.mubr.f32.gmra.mrb[0].mxu0 %v6101
    %v6349 = vpop.f32.mrb[0].mxu0
    %v6350 = vadd.f32 0.0, %v6349
    %v6351 = vpop.f32.mrb[0].mxu0
    %6352 = vmatprep.mubr.f32.mxu0 0.0
    %6353 = vmatmul.mubr.f32.gmra.mrb[0].mxu0 %v6102
    %v6354 = vpop.f32.mrb[0].mxu0
    %v6355 = vadd.f32 0.0, %v6354
    %v6356 = vpop.f32.mrb[0].mxu0
    %6357 = vmatprep.mubr.f32.mxu0 0.0
    %6358 = vmatmul.mubr.f32.gmra.mrb[0].mxu0 %v6103
    %v6359 = vpop.f32.mrb[0].mxu0
    %v6360 = vadd.f32 0.0, %v6359
    %v6361 = vpop.f32.mrb[0].mxu0
    %6362 = vmatprep.mubr.f32.mxu0 0.0
    %6363 = vmatmul.mubr.f32.gmra.mrb[0].mxu0 %v6104
    %v6364 = vpop.f32.mrb[0].mxu0
    %v6365 = vadd.f32 0.0, %v6364
    %v6366 = vpop.f32.mrb[0].mxu0
    %6367 = vmatprep.mubr.f32.mxu0 0.0
    %6368 = vmatmul.mubr.f32.gmra.mrb[0].mxu0 %v6105
    %v6369 = vpop.f32.mrb[0].mxu0
    %v6370 = vadd.f32 0.0, %v6369
    %v6371 = vpop.f32.mrb[0].mxu0
    %6372 = vmatprep.mubr.f32.mxu0 0.0
    %6373 = vmatmul.mubr.f32.gmra.mrb[0].mxu0 %v6106
    %v6374 = vpop.f32.mrb[0].mxu0
    %v6375 = vadd.f32 0.0, %v6374
    %v6376 = vpop.f32.mrb[0].mxu0
    %6377 = vdwg.mxu0
    %v6378 = vld [vmem:[%s14] sm:$0xff]
    %v6379 = vld [vmem:[%s14 + $0x8] sm:$0xff]
    %v6380 = vld [vmem:[%s14 + $0x10] sm:$0xff]
    %v6381 = vld [vmem:[%s14 + $0x18] sm:$0xff]
    %v6382 = vld [vmem:[%s14 + $0x20] sm:$0xff]
    %v6383 = vld [vmem:[%s14 + $0x28] sm:$0xff]
    %v6384 = vld [vmem:[%s14 + $0x30] sm:$0xff]
    %v6385 = vld [vmem:[%s14 + $0x38] sm:$0xff]
    %v6386 = vld [vmem:[%s14 + $0x40] sm:$0xff]
    %v6387 = vld [vmem:[%s14 + $0x48] sm:$0xff]
    %v6388 = vld [vmem:[%s14 + $0x50] sm:$0xff]
    %v6389 = vld [vmem:[%s14 + $0x58] sm:$0xff]
    %v6390 = vld [vmem:[%s14 + $0x60] sm:$0xff]
    %v6391 = vld [vmem:[%s14 + $0x68] sm:$0xff]
    %v6392 = vld [vmem:[%s14 + $0x70] sm:$0xff]
    %v6393 = vld [vmem:[%s14 + $0x78] sm:$0xff]
    %v6394 = vld [vmem:[%s14 + $0x80] sm:$0xff]
    %v6395 = vld [vmem:[%s14 + $0x88] sm:$0xff]
    %v6396 = vld [vmem:[%s14 + $0x90] sm:$0xff]
    %v6397 = vld [vmem:[%s14 + $0x98] sm:$0xff]
    %v6398 = vld [vmem:[%s14 + $0xa0] sm:$0xff]
    %v6399 = vld [vmem:[%s14 + $0xa8] sm:$0xff]
    %v6400 = vld [vmem:[%s14 + $0xb0] sm:$0xff]
    %v6401 = vld [vmem:[%s14 + $0xb8] sm:$0xff]
    %v6402 = vld [vmem:[%s14 + $0xc0] sm:$0xff]
    %v6403 = vld [vmem:[%s14 + $0xc8] sm:$0xff]
    %v6404 = vld [vmem:[%s14 + $0xd0] sm:$0xff]
    %v6405 = vld [vmem:[%s14 + $0xd8] sm:$0xff]
    %v6406 = vld [vmem:[%s14 + $0xe0] sm:$0xff]
    %v6407 = vld [vmem:[%s14 + $0xe8] sm:$0xff]
    %v6408 = vld [vmem:[%s14 + $0xf0] sm:$0xff]
    %v6409 = vld [vmem:[%s14 + $0xf8] sm:$0xff]
    %v6410 = vld [vmem:[%s14 + $0x100] sm:$0xff]
    %v6411 = vld [vmem:[%s14 + $0x108] sm:$0xff]
    %v6412 = vld [vmem:[%s14 + $0x110] sm:$0xff]
    %v6413 = vld [vmem:[%s14 + $0x118] sm:$0xff]
    %v6415 = vsel %vm2629, %v6378, 0
    %v6418 = vsel %vm2629, %v6379, 0
    %v6421 = vsel %vm2629, %v6380, 0
    %v6424 = vsel %vm2629, %v6381, 0
    %v6427 = vsel %vm2629, %v6382, 0
    %v6430 = vsel %vm2629, %v6383, 0
    %v6433 = vsel %vm2629, %v6384, 0
    %v6436 = vsel %vm2629, %v6385, 0
    %v6439 = vsel %vm2629, %v6386, 0
    %v6442 = vsel %vm2629, %v6387, 0
    %v6445 = vsel %vm2629, %v6388, 0
    %v6448 = vsel %vm2629, %v6389, 0
    %v6451 = vsel %vm2629, %v6390, 0
    %v6454 = vsel %vm2629, %v6391, 0
    %v6457 = vsel %vm2629, %v6392, 0
    %v6460 = vsel %vm2629, %v6393, 0
    %v6463 = vsel %vm2629, %v6394, 0
    %v6466 = vsel %vm2629, %v6395, 0
    %v6469 = vsel %vm2629, %v6396, 0
    %v6472 = vsel %vm2629, %v6397, 0
    %v6475 = vsel %vm2629, %v6398, 0
    %v6478 = vsel %vm2629, %v6399, 0
    %v6481 = vsel %vm2629, %v6400, 0
    %v6484 = vsel %vm2629, %v6401, 0
    %v6487 = vsel %vm2629, %v6402, 0
    %v6490 = vsel %vm2629, %v6403, 0
    %v6493 = vsel %vm2629, %v6404, 0
    %v6496 = vsel %vm2629, %v6405, 0
    %v6499 = vsel %vm2629, %v6406, 0
    %v6502 = vsel %vm2629, %v6407, 0
    %v6505 = vsel %vm2629, %v6408, 0
    %v6508 = vsel %vm2629, %v6409, 0
    %v6511 = vsel %vm2629, %v6410, 0
    %v6514 = vsel %vm2629, %v6411, 0
    %v6517 = vsel %vm2629, %v6412, 0
    %v6520 = vsel %vm2629, %v6413, 0
    %6522 = vmatprep.subr.mxu0 0.0
    %6523 = vmatpush1.msra.mxu0 %v6335
    %6524 = vmatprep.subr.mxu0 0.0
    %6525 = vmatpush1.msra.mxu0 %v6340
    %6526 = vmatprep.subr.mxu0 0.0
    %6527 = vmatpush1.msra.mxu0 %v6345
    %6528 = vmatprep.subr.mxu0 0.0
    %6529 = vmatpush1.msra.mxu0 %v6350
    %6530 = vmatprep.subr.mxu0 0.0
    %6531 = vmatpush1.msra.mxu0 %v6355
    %6532 = vmatprep.subr.mxu0 0.0
    %6533 = vmatpush1.msra.mxu0 %v6360
    %6534 = vmatprep.subr.mxu0 0.0
    %6535 = vmatpush1.msra.mxu0 %v6365
    %6536 = vmatprep.subr.mxu0 0.0
    %6537 = vmatpush1.msra.mxu0 %v6370
    %6538 = vmatprep.subr.mxu0 0.0
    %6539 = vmatpush1.msra.mxu0 %v6375
    %6540 = vmatprep.subr.mxu0 0.0
    %6541 = vmatpush1.msra.mxu0 0.0
    %6542 = vmatprep.subr.mxu0 0.0
    %6543 = vmatpush1.msra.mxu0 0.0
    %6544 = vmatprep.subr.mxu0 0.0
    %6545 = vmatpush1.msra.mxu0 0.0
    %6546 = vmatprep.subr.mxu0 0.0
    %6547 = vmatpush1.msra.mxu0 0.0
    %6548 = vmatprep.subr.mxu0 0.0
    %6549 = vmatpush1.msra.mxu0 0.0
    %6550 = vmatprep.subr.mxu0 0.0
    %6551 = vmatpush1.msra.mxu0 0.0
    %6552 = vmatprep.subr.mxu0 0.0
    %6553 = vmatpush1.msra.mxu0 0.0
    %6554 = vmatprep.subr.mxu0 0.0
    %6555 = vmatpush1.msra.mxu0 0.0
    %6556 = vmatprep.subr.mxu0 0.0
    %6557 = vmatpush1.msra.mxu0 0.0
    %6558 = vmatprep.subr.mxu0 0.0
    %6559 = vmatpush1.msra.mxu0 0.0
    %6560 = vmatprep.subr.mxu0 0.0
    %6561 = vmatpush1.msra.mxu0 0.0
    %6562 = vmatprep.subr.mxu0 0.0
    %6563 = vmatpush1.msra.mxu0 0.0
    %6564 = vmatprep.subr.mxu0 0.0
    %6565 = vmatpush1.msra.mxu0 0.0
    %6566 = vmatprep.subr.mxu0 0.0
    %6567 = vmatpush1.msra.mxu0 0.0
    %6568 = vmatprep.subr.mxu0 0.0
    %6569 = vmatpush1.msra.mxu0 0.0
    %6570 = vmatprep.subr.mxu0 0.0
    %6571 = vmatpush1.msra.mxu0 0.0
    %6572 = vmatprep.subr.mxu0 0.0
    %6573 = vmatpush1.msra.mxu0 0.0
    %6574 = vmatprep.subr.mxu0 0.0
    %6575 = vmatpush1.msra.mxu0 0.0
    %6576 = vmatprep.subr.mxu0 0.0
    %6577 = vmatpush1.msra.mxu0 0.0
    %6578 = vmatprep.subr.mxu0 0.0
    %6579 = vmatpush1.msra.mxu0 0.0
    %6580 = vmatprep.subr.mxu0 0.0
    %6581 = vmatpush1.msra.mxu0 0.0
    %6582 = vmatprep.subr.mxu0 0.0
    %6583 = vmatpush1.msra.mxu0 0.0
    %6584 = vmatprep.subr.mxu0 0.0
    %6585 = vmatpush1.msra.mxu0 0.0
    %6586 = vmatprep.mubr.f32.mxu0 0.0
    %6587 = vmatmul.mubr.f32.gmra.mrb[0].mxu0 %v6415
    %v6588 = vpop.f32.mrb[0].mxu0
    %v6589 = vadd.f32 0.0, %v6588
    %v6590 = vpop.f32.mrb[0].mxu0
    %6591 = vmatprep.mubr.f32.mxu0 0.0
    %6592 = vmatmul.mubr.f32.gmra.mrb[0].mxu0 %v6418
    %v6593 = vpop.f32.mrb[0].mxu0
    %v6594 = vadd.f32 0.0, %v6593
    %v6595 = vpop.f32.mrb[0].mxu0
    %6596 = vmatprep.mubr.f32.mxu0 0.0
    %6597 = vmatmul.mubr.f32.gmra.mrb[0].mxu0 %v6421
    %v6598 = vpop.f32.mrb[0].mxu0
    %v6599 = vadd.f32 0.0, %v6598
    %v6600 = vpop.f32.mrb[0].mxu0
    %6601 = vmatprep.mubr.f32.mxu0 0.0
    %6602 = vmatmul.mubr.f32.gmra.mrb[0].mxu0 %v6424
    %v6603 = vpop.f32.mrb[0].mxu0
    %v6604 = vadd.f32 0.0, %v6603
    %v6605 = vpop.f32.mrb[0].mxu0
    %6606 = vmatprep.mubr.f32.mxu0 0.0
    %6607 = vmatmul.mubr.f32.gmra.mrb[0].mxu0 %v6427
    %v6608 = vpop.f32.mrb[0].mxu0
    %v6609 = vadd.f32 0.0, %v6608
    %v6610 = vpop.f32.mrb[0].mxu0
    %6611 = vmatprep.mubr.f32.mxu0 0.0
    %6612 = vmatmul.mubr.f32.gmra.mrb[0].mxu0 %v6430
    %v6613 = vpop.f32.mrb[0].mxu0
    %v6614 = vadd.f32 0.0, %v6613
    %v6615 = vpop.f32.mrb[0].mxu0
    %6616 = vmatprep.mubr.f32.mxu0 0.0
    %6617 = vmatmul.mubr.f32.gmra.mrb[0].mxu0 %v6433
    %v6618 = vpop.f32.mrb[0].mxu0
    %v6619 = vadd.f32 0.0, %v6618
    %v6620 = vpop.f32.mrb[0].mxu0
    %6621 = vmatprep.mubr.f32.mxu0 0.0
    %6622 = vmatmul.mubr.f32.gmra.mrb[0].mxu0 %v6436
    %v6623 = vpop.f32.mrb[0].mxu0
    %v6624 = vadd.f32 0.0, %v6623
    %v6625 = vpop.f32.mrb[0].mxu0
    %6626 = vmatprep.mubr.f32.mxu0 0.0
    %6627 = vmatmul.mubr.f32.gmra.mrb[0].mxu0 %v6439
    %v6628 = vpop.f32.mrb[0].mxu0
    %v6629 = vadd.f32 0.0, %v6628
    %v6630 = vpop.f32.mrb[0].mxu0
    %6631 = vmatprep.mubr.f32.mxu0 0.0
    %6632 = vmatmul.mubr.f32.gmra.mrb[0].mxu0 %v6442
    %v6633 = vpop.f32.mrb[0].mxu0
    %v6634 = vadd.f32 0.0, %v6633
    %v6635 = vpop.f32.mrb[0].mxu0
    %6636 = vmatprep.mubr.f32.mxu0 0.0
    %6637 = vmatmul.mubr.f32.gmra.mrb[0].mxu0 %v6445
    %v6638 = vpop.f32.mrb[0].mxu0
    %v6639 = vadd.f32 0.0, %v6638
    %v6640 = vpop.f32.mrb[0].mxu0
    %6641 = vmatprep.mubr.f32.mxu0 0.0
    %6642 = vmatmul.mubr.f32.gmra.mrb[0].mxu0 %v6448
    %v6643 = vpop.f32.mrb[0].mxu0
    %v6644 = vadd.f32 0.0, %v6643
    %v6645 = vpop.f32.mrb[0].mxu0
    %6646 = vmatprep.mubr.f32.mxu0 0.0
    %6647 = vmatmul.mubr.f32.gmra.mrb[0].mxu0 %v6451
    %v6648 = vpop.f32.mrb[0].mxu0
    %v6649 = vadd.f32 0.0, %v6648
    %v6650 = vpop.f32.mrb[0].mxu0
    %6651 = vmatprep.mubr.f32.mxu0 0.0
    %6652 = vmatmul.mubr.f32.gmra.mrb[0].mxu0 %v6454
    %v6653 = vpop.f32.mrb[0].mxu0
    %v6654 = vadd.f32 0.0, %v6653
    %v6655 = vpop.f32.mrb[0].mxu0
    %6656 = vmatprep.mubr.f32.mxu0 0.0
    %6657 = vmatmul.mubr.f32.gmra.mrb[0].mxu0 %v6457
    %v6658 = vpop.f32.mrb[0].mxu0
    %v6659 = vadd.f32 0.0, %v6658
    %v6660 = vpop.f32.mrb[0].mxu0
    %6661 = vmatprep.mubr.f32.mxu0 0.0
    %6662 = vmatmul.mubr.f32.gmra.mrb[0].mxu0 %v6460
    %v6663 = vpop.f32.mrb[0].mxu0
    %v6664 = vadd.f32 0.0, %v6663
    %v6665 = vpop.f32.mrb[0].mxu0
    %6666 = vmatprep.mubr.f32.mxu0 0.0
    %6667 = vmatmul.mubr.f32.gmra.mrb[0].mxu0 %v6463
    %v6668 = vpop.f32.mrb[0].mxu0
    %v6669 = vadd.f32 0.0, %v6668
    %v6670 = vpop.f32.mrb[0].mxu0
    %6671 = vmatprep.mubr.f32.mxu0 0.0
    %6672 = vmatmul.mubr.f32.gmra.mrb[0].mxu0 %v6466
    %v6673 = vpop.f32.mrb[0].mxu0
    %v6674 = vadd.f32 0.0, %v6673
    %v6675 = vpop.f32.mrb[0].mxu0
    %6676 = vmatprep.mubr.f32.mxu0 0.0
    %6677 = vmatmul.mubr.f32.gmra.mrb[0].mxu0 %v6469
    %v6678 = vpop.f32.mrb[0].mxu0
    %v6679 = vadd.f32 0.0, %v6678
    %v6680 = vpop.f32.mrb[0].mxu0
    %6681 = vmatprep.mubr.f32.mxu0 0.0
    %6682 = vmatmul.mubr.f32.gmra.mrb[0].mxu0 %v6472
    %v6683 = vpop.f32.mrb[0].mxu0
    %v6684 = vadd.f32 0.0, %v6683
    %v6685 = vpop.f32.mrb[0].mxu0
    %6686 = vmatprep.mubr.f32.mxu0 0.0
    %6687 = vmatmul.mubr.f32.gmra.mrb[0].mxu0 %v6475
    %v6688 = vpop.f32.mrb[0].mxu0
    %v6689 = vadd.f32 0.0, %v6688
    %v6690 = vpop.f32.mrb[0].mxu0
    %6691 = vmatprep.mubr.f32.mxu0 0.0
    %6692 = vmatmul.mubr.f32.gmra.mrb[0].mxu0 %v6478
    %v6693 = vpop.f32.mrb[0].mxu0
    %v6694 = vadd.f32 0.0, %v6693
    %v6695 = vpop.f32.mrb[0].mxu0
    %6696 = vmatprep.mubr.f32.mxu0 0.0
    %6697 = vmatmul.mubr.f32.gmra.mrb[0].mxu0 %v6481
    %v6698 = vpop.f32.mrb[0].mxu0
    %v6699 = vadd.f32 0.0, %v6698
    %v6700 = vpop.f32.mrb[0].mxu0
    %6701 = vmatprep.mubr.f32.mxu0 0.0
    %6702 = vmatmul.mubr.f32.gmra.mrb[0].mxu0 %v6484
    %v6703 = vpop.f32.mrb[0].mxu0
    %v6704 = vadd.f32 0.0, %v6703
    %v6705 = vpop.f32.mrb[0].mxu0
    %6706 = vmatprep.mubr.f32.mxu0 0.0
    %6707 = vmatmul.mubr.f32.gmra.mrb[0].mxu0 %v6487
    %v6708 = vpop.f32.mrb[0].mxu0
    %v6709 = vadd.f32 0.0, %v6708
    %v6710 = vpop.f32.mrb[0].mxu0
    %6711 = vmatprep.mubr.f32.mxu0 0.0
    %6712 = vmatmul.mubr.f32.gmra.mrb[0].mxu0 %v6490
    %v6713 = vpop.f32.mrb[0].mxu0
    %v6714 = vadd.f32 0.0, %v6713
    %v6715 = vpop.f32.mrb[0].mxu0
    %6716 = vmatprep.mubr.f32.mxu0 0.0
    %6717 = vmatmul.mubr.f32.gmra.mrb[0].mxu0 %v6493
    %v6718 = vpop.f32.mrb[0].mxu0
    %v6719 = vadd.f32 0.0, %v6718
    %v6720 = vpop.f32.mrb[0].mxu0
    %6721 = vmatprep.mubr.f32.mxu0 0.0
    %6722 = vmatmul.mubr.f32.gmra.mrb[0].mxu0 %v6496
    %v6723 = vpop.f32.mrb[0].mxu0
    %v6724 = vadd.f32 0.0, %v6723
    %v6725 = vpop.f32.mrb[0].mxu0
    %6726 = vmatprep.mubr.f32.mxu0 0.0
    %6727 = vmatmul.mubr.f32.gmra.mrb[0].mxu0 %v6499
    %v6728 = vpop.f32.mrb[0].mxu0
    %v6729 = vadd.f32 0.0, %v6728
    %v6730 = vpop.f32.mrb[0].mxu0
    %6731 = vmatprep.mubr.f32.mxu0 0.0
    %6732 = vmatmul.mubr.f32.gmra.mrb[0].mxu0 %v6502
    %v6733 = vpop.f32.mrb[0].mxu0
    %v6734 = vadd.f32 0.0, %v6733
    %v6735 = vpop.f32.mrb[0].mxu0
    %6736 = vmatprep.mubr.f32.mxu0 0.0
    %6737 = vmatmul.mubr.f32.gmra.mrb[0].mxu0 %v6505
    %v6738 = vpop.f32.mrb[0].mxu0
    %v6739 = vadd.f32 0.0, %v6738
    %v6740 = vpop.f32.mrb[0].mxu0
    %6741 = vmatprep.mubr.f32.mxu0 0.0
    %6742 = vmatmul.mubr.f32.gmra.mrb[0].mxu0 %v6508
    %v6743 = vpop.f32.mrb[0].mxu0
    %v6744 = vadd.f32 0.0, %v6743
    %v6745 = vpop.f32.mrb[0].mxu0
    %6746 = vmatprep.mubr.f32.mxu0 0.0
    %6747 = vmatmul.mubr.f32.gmra.mrb[0].mxu0 %v6511
    %v6748 = vpop.f32.mrb[0].mxu0
    %v6749 = vadd.f32 0.0, %v6748
    %v6750 = vpop.f32.mrb[0].mxu0
    %6751 = vmatprep.mubr.f32.mxu0 0.0
    %6752 = vmatmul.mubr.f32.gmra.mrb[0].mxu0 %v6514
    %v6753 = vpop.f32.mrb[0].mxu0
    %v6754 = vadd.f32 0.0, %v6753
    %v6755 = vpop.f32.mrb[0].mxu0
    %6756 = vmatprep.mubr.f32.mxu0 0.0
    %6757 = vmatmul.mubr.f32.gmra.mrb[0].mxu0 %v6517
    %v6758 = vpop.f32.mrb[0].mxu0
    %v6759 = vadd.f32 0.0, %v6758
    %v6760 = vpop.f32.mrb[0].mxu0
    %6761 = vmatprep.mubr.f32.mxu0 0.0
    %6762 = vmatmul.mubr.f32.gmra.mrb[0].mxu0 %v6520
    %v6763 = vpop.f32.mrb[0].mxu0
    %v6764 = vadd.f32 0.0, %v6763
    %v6765 = vpop.f32.mrb[0].mxu0
    %6766 = vdwg.mxu0
    %v6767 = vld [vmem:[%s15] sm:$0xff]
    %v6768 = vld [vmem:[%s15 + $0x8] sm:$0xff]
    %v6769 = vld [vmem:[%s15 + $0x10] sm:$0xff]
    %v6770 = vld [vmem:[%s15 + $0x18] sm:$0xff]
    %v6771 = vld [vmem:[%s15 + $0x20] sm:$0xff]
    %v6772 = vld [vmem:[%s15 + $0x28] sm:$0xff]
    %v6773 = vld [vmem:[%s15 + $0x30] sm:$0xff]
    %v6774 = vld [vmem:[%s15 + $0x38] sm:$0xff]
    %v6775 = vld [vmem:[%s15 + $0x40] sm:$0xff]
    %v6776 = vld [vmem:[%s15 + $0x48] sm:$0xff]
    %v6777 = vld [vmem:[%s15 + $0x50] sm:$0xff]
    %v6778 = vld [vmem:[%s15 + $0x58] sm:$0xff]
    %s6779 = scalar_lea.vmem %s15, 96
    %v6780 = vld [vmem:[%s6779] sm:$0xff]
    %v6781 = vld [vmem:[%s6779 + $0x8] sm:$0xff]
    %v6782 = vld [vmem:[%s6779 + $0x10] sm:$0xff]
    %v6783 = vld [vmem:[%s6779 + $0x18] sm:$0xff]
    %v6784 = vld [vmem:[%s6779 + $0x20] sm:$0xff]
    %v6785 = vld [vmem:[%s6779 + $0x28] sm:$0xff]
    %v6786 = vld [vmem:[%s6779 + $0x30] sm:$0xff]
    %v6787 = vld [vmem:[%s6779 + $0x38] sm:$0xff]
    %v6788 = vld [vmem:[%s6779 + $0x40] sm:$0xff]
    %v6789 = vld [vmem:[%s6779 + $0x48] sm:$0xff]
    %v6790 = vld [vmem:[%s6779 + $0x50] sm:$0xff]
    %v6791 = vld [vmem:[%s6779 + $0x58] sm:$0xff]
    %vm6792 = vcmask 785408
    %v6794 = vsel %vm6792, %v6609, 0
    %v6797 = vsel %vm6792, %v6614, 0
    %v6800 = vsel %vm6792, %v6619, 0
    %v6803 = vsel %vm6792, %v6624, 0
    %6805 = vmatprep.subr.mxu0 0.0
    %6806 = vmatpush1.msra.mxu0 %v6780
    %6807 = vmatprep.subr.mxu0 0.0
    %6808 = vmatpush1.msra.mxu0 %v6781
    %6809 = vmatprep.subr.mxu0 0.0
    %6810 = vmatpush1.msra.mxu0 %v6782
    %6811 = vmatprep.subr.mxu0 0.0
    %6812 = vmatpush1.msra.mxu0 %v6783
    %6813 = vmatprep.subr.mxu0 0.0
    %6814 = vmatpush1.msra.mxu0 %v6784
    %6815 = vmatprep.subr.mxu0 0.0
    %6816 = vmatpush1.msra.mxu0 %v6785
    %6817 = vmatprep.subr.mxu0 0.0
    %6818 = vmatpush1.msra.mxu0 %v6786
    %6819 = vmatprep.subr.mxu0 0.0
    %6820 = vmatpush1.msra.mxu0 %v6787
    %6821 = vmatprep.subr.mxu0 0.0
    %6822 = vmatpush1.msra.mxu0 %v6788
    %6823 = vmatprep.subr.mxu0 0.0
    %6824 = vmatpush1.msra.mxu0 %v6789
    %6825 = vmatprep.subr.mxu0 0.0
    %6826 = vmatpush1.msra.mxu0 %v6790
    %6827 = vmatprep.subr.mxu0 0.0
    %6828 = vmatpush1.msra.mxu0 %v6791
    %6829 = vmatprep.subr.mxu0 0.0
    %6830 = vmatpush1.msra.mxu0 0.0
    %6831 = vmatprep.subr.mxu0 0.0
    %6832 = vmatpush1.msra.mxu0 0.0
    %6833 = vmatprep.subr.mxu0 0.0
    %6834 = vmatpush1.msra.mxu0 0.0
    %6835 = vmatprep.subr.mxu0 0.0
    %6836 = vmatpush1.msra.mxu0 0.0
    %6837 = vmatprep.subr.mxu0 0.0
    %6838 = vmatpush1.msra.mxu0 0.0
    %6839 = vmatprep.subr.mxu0 0.0
    %6840 = vmatpush1.msra.mxu0 0.0
    %6841 = vmatprep.subr.mxu0 0.0
    %6842 = vmatpush1.msra.mxu0 0.0
    %6843 = vmatprep.subr.mxu0 0.0
    %6844 = vmatpush1.msra.mxu0 0.0
    %6845 = vmatprep.subr.mxu0 0.0
    %6846 = vmatpush1.msra.mxu0 0.0
    %6847 = vmatprep.subr.mxu0 0.0
    %6848 = vmatpush1.msra.mxu0 0.0
    %6849 = vmatprep.subr.mxu0 0.0
    %6850 = vmatpush1.msra.mxu0 0.0
    %6851 = vmatprep.subr.mxu0 0.0
    %6852 = vmatpush1.msra.mxu0 0.0
    %6853 = vmatprep.subr.mxu0 0.0
    %6854 = vmatpush1.msra.mxu0 0.0
    %6855 = vmatprep.subr.mxu0 0.0
    %6856 = vmatpush1.msra.mxu0 0.0
    %6857 = vmatprep.subr.mxu0 0.0
    %6858 = vmatpush1.msra.mxu0 0.0
    %6859 = vmatprep.subr.mxu0 0.0
    %6860 = vmatpush1.msra.mxu0 0.0
    %6861 = vmatprep.subr.mxu0 0.0
    %6862 = vmatpush1.msra.mxu0 0.0
    %6863 = vmatprep.subr.mxu0 0.0
    %6864 = vmatpush1.msra.mxu0 0.0
    %6865 = vmatprep.subr.mxu0 0.0
    %6866 = vmatpush1.msra.mxu0 0.0
    %6867 = vmatprep.subr.mxu0 0.0
    %6868 = vmatpush1.msra.mxu0 0.0
    %6869 = vmatprep.mubr.f32.mxu0 0.0
    %6870 = vmatmul.mubr.f32.gmra.mrb[0].mxu0 %v6794
    %v6871 = vpop.f32.mrb[0].mxu0
    %v6872 = vadd.f32 0.0, %v6871
    %v6873 = vpop.f32.mrb[0].mxu0
    %6874 = vmatprep.mubr.f32.mxu0 0.0
    %6875 = vmatmul.mubr.f32.gmra.mrb[0].mxu0 %v6797
    %v6876 = vpop.f32.mrb[0].mxu0
    %v6877 = vadd.f32 0.0, %v6876
    %v6878 = vpop.f32.mrb[0].mxu0
    %6879 = vmatprep.mubr.f32.mxu0 0.0
    %6880 = vmatmul.mubr.f32.gmra.mrb[0].mxu0 %v6800
    %v6881 = vpop.f32.mrb[0].mxu0
    %v6882 = vadd.f32 0.0, %v6881
    %v6883 = vpop.f32.mrb[0].mxu0
    %6884 = vmatprep.mubr.f32.mxu0 0.0
    %6885 = vmatmul.mubr.f32.gmra.mrb[0].mxu0 %v6803
    %v6886 = vpop.f32.mrb[0].mxu0
    %v6887 = vadd.f32 0.0, %v6886
    %v6888 = vpop.f32.mrb[0].mxu0
    %6889 = vdwg.mxu0
    %v6891 = vsel %vm6792, %v6589, 0
    %v6894 = vsel %vm6792, %v6594, 0
    %v6897 = vsel %vm6792, %v6599, 0
    %v6900 = vsel %vm6792, %v6604, 0
    %6902 = vmatprep.subr.mxu0 0.0
    %6903 = vmatpush1.msra.mxu0 %v6767
    %6904 = vmatprep.subr.mxu0 0.0
    %6905 = vmatpush1.msra.mxu0 %v6768
    %6906 = vmatprep.subr.mxu0 0.0
    %6907 = vmatpush1.msra.mxu0 %v6769
    %6908 = vmatprep.subr.mxu0 0.0
    %6909 = vmatpush1.msra.mxu0 %v6770
    %6910 = vmatprep.subr.mxu0 0.0
    %6911 = vmatpush1.msra.mxu0 %v6771
    %6912 = vmatprep.subr.mxu0 0.0
    %6913 = vmatpush1.msra.mxu0 %v6772
    %6914 = vmatprep.subr.mxu0 0.0
    %6915 = vmatpush1.msra.mxu0 %v6773
    %6916 = vmatprep.subr.mxu0 0.0
    %6917 = vmatpush1.msra.mxu0 %v6774
    %6918 = vmatprep.subr.mxu0 0.0
    %6919 = vmatpush1.msra.mxu0 %v6775
    %6920 = vmatprep.subr.mxu0 0.0
    %6921 = vmatpush1.msra.mxu0 %v6776
    %6922 = vmatprep.subr.mxu0 0.0
    %6923 = vmatpush1.msra.mxu0 %v6777
    %6924 = vmatprep.subr.mxu0 0.0
    %6925 = vmatpush1.msra.mxu0 %v6778
    %6926 = vmatprep.subr.mxu0 0.0
    %6927 = vmatpush1.msra.mxu0 0.0
    %6928 = vmatprep.subr.mxu0 0.0
    %6929 = vmatpush1.msra.mxu0 0.0
    %6930 = vmatprep.subr.mxu0 0.0
    %6931 = vmatpush1.msra.mxu0 0.0
    %6932 = vmatprep.subr.mxu0 0.0
    %6933 = vmatpush1.msra.mxu0 0.0
    %6934 = vmatprep.subr.mxu0 0.0
    %6935 = vmatpush1.msra.mxu0 0.0
    %6936 = vmatprep.subr.mxu0 0.0
    %6937 = vmatpush1.msra.mxu0 0.0
    %6938 = vmatprep.subr.mxu0 0.0
    %6939 = vmatpush1.msra.mxu0 0.0
    %6940 = vmatprep.subr.mxu0 0.0
    %6941 = vmatpush1.msra.mxu0 0.0
    %6942 = vmatprep.subr.mxu0 0.0
    %6943 = vmatpush1.msra.mxu0 0.0
    %6944 = vmatprep.subr.mxu0 0.0
    %6945 = vmatpush1.msra.mxu0 0.0
    %6946 = vmatprep.subr.mxu0 0.0
    %6947 = vmatpush1.msra.mxu0 0.0
    %6948 = vmatprep.subr.mxu0 0.0
    %6949 = vmatpush1.msra.mxu0 0.0
    %6950 = vmatprep.subr.mxu0 0.0
    %6951 = vmatpush1.msra.mxu0 0.0
    %6952 = vmatprep.subr.mxu0 0.0
    %6953 = vmatpush1.msra.mxu0 0.0
    %6954 = vmatprep.subr.mxu0 0.0
    %6955 = vmatpush1.msra.mxu0 0.0
    %6956 = vmatprep.subr.mxu0 0.0
    %6957 = vmatpush1.msra.mxu0 0.0
    %6958 = vmatprep.subr.mxu0 0.0
    %6959 = vmatpush1.msra.mxu0 0.0
    %6960 = vmatprep.subr.mxu0 0.0
    %6961 = vmatpush1.msra.mxu0 0.0
    %6962 = vmatprep.subr.mxu0 0.0
    %6963 = vmatpush1.msra.mxu0 0.0
    %6964 = vmatprep.subr.mxu0 0.0
    %6965 = vmatpush1.msra.mxu0 0.0
    %6966 = vmatprep.mubr.f32.mxu0 0.0
    %6967 = vmatmul.mubr.f32.gmra.mrb[0].mxu0 %v6891
    %v6968 = vpop.f32.mrb[0].mxu0
    %v6969 = vadd.f32 %v6872, %v6968
    %v6970 = vpop.f32.mrb[0].mxu0
    %6971 = vmatprep.mubr.f32.mxu0 0.0
    %6972 = vmatmul.mubr.f32.gmra.mrb[0].mxu0 %v6894
    %v6973 = vpop.f32.mrb[0].mxu0
    %v6974 = vadd.f32 %v6877, %v6973
    %v6975 = vpop.f32.mrb[0].mxu0
    %6976 = vmatprep.mubr.f32.mxu0 0.0
    %6977 = vmatmul.mubr.f32.gmra.mrb[0].mxu0 %v6897
    %v6978 = vpop.f32.mrb[0].mxu0
    %v6979 = vadd.f32 %v6882, %v6978
    %v6980 = vpop.f32.mrb[0].mxu0
    %6981 = vmatprep.mubr.f32.mxu0 0.0
    %6982 = vmatmul.mubr.f32.gmra.mrb[0].mxu0 %v6900
    %v6983 = vpop.f32.mrb[0].mxu0
    %v6984 = vadd.f32 %v6887, %v6983
    %v6985 = vpop.f32.mrb[0].mxu0
    %6986 = vdwg.mxu0
    %s6987 = scalar_lea.vmem %s15, 192
    %v6988 = vld [vmem:[%s6987] sm:$0xff]
    %v6989 = vld [vmem:[%s6987 + $0x8] sm:$0xff]
    %v6990 = vld [vmem:[%s6987 + $0x10] sm:$0xff]
    %v6991 = vld [vmem:[%s6987 + $0x18] sm:$0xff]
    %v6992 = vld [vmem:[%s6987 + $0x20] sm:$0xff]
    %v6993 = vld [vmem:[%s6987 + $0x28] sm:$0xff]
    %v6994 = vld [vmem:[%s6987 + $0x30] sm:$0xff]
    %v6995 = vld [vmem:[%s6987 + $0x38] sm:$0xff]
    %v6996 = vld [vmem:[%s6987 + $0x40] sm:$0xff]
    %v6997 = vld [vmem:[%s6987 + $0x48] sm:$0xff]
    %v6998 = vld [vmem:[%s6987 + $0x50] sm:$0xff]
    %v6999 = vld [vmem:[%s6987 + $0x58] sm:$0xff]
    %v7001 = vsel %vm6792, %v6629, 0
    %v7004 = vsel %vm6792, %v6634, 0
    %v7007 = vsel %vm6792, %v6639, 0
    %v7010 = vsel %vm6792, %v6644, 0
    %7012 = vmatprep.subr.mxu0 0.0
    %7013 = vmatpush1.msra.mxu0 %v6988
    %7014 = vmatprep.subr.mxu0 0.0
    %7015 = vmatpush1.msra.mxu0 %v6989
    %7016 = vmatprep.subr.mxu0 0.0
    %7017 = vmatpush1.msra.mxu0 %v6990
    %7018 = vmatprep.subr.mxu0 0.0
    %7019 = vmatpush1.msra.mxu0 %v6991
    %7020 = vmatprep.subr.mxu0 0.0
    %7021 = vmatpush1.msra.mxu0 %v6992
    %7022 = vmatprep.subr.mxu0 0.0
    %7023 = vmatpush1.msra.mxu0 %v6993
    %7024 = vmatprep.subr.mxu0 0.0
    %7025 = vmatpush1.msra.mxu0 %v6994
    %7026 = vmatprep.subr.mxu0 0.0
    %7027 = vmatpush1.msra.mxu0 %v6995
    %7028 = vmatprep.subr.mxu0 0.0
    %7029 = vmatpush1.msra.mxu0 %v6996
    %7030 = vmatprep.subr.mxu0 0.0
    %7031 = vmatpush1.msra.mxu0 %v6997
    %7032 = vmatprep.subr.mxu0 0.0
    %7033 = vmatpush1.msra.mxu0 %v6998
    %7034 = vmatprep.subr.mxu0 0.0
    %7035 = vmatpush1.msra.mxu0 %v6999
    %7036 = vmatprep.subr.mxu0 0.0
    %7037 = vmatpush1.msra.mxu0 0.0
    %7038 = vmatprep.subr.mxu0 0.0
    %7039 = vmatpush1.msra.mxu0 0.0
    %7040 = vmatprep.subr.mxu0 0.0
    %7041 = vmatpush1.msra.mxu0 0.0
    %7042 = vmatprep.subr.mxu0 0.0
    %7043 = vmatpush1.msra.mxu0 0.0
    %7044 = vmatprep.subr.mxu0 0.0
    %7045 = vmatpush1.msra.mxu0 0.0
    %7046 = vmatprep.subr.mxu0 0.0
    %7047 = vmatpush1.msra.mxu0 0.0
    %7048 = vmatprep.subr.mxu0 0.0
    %7049 = vmatpush1.msra.mxu0 0.0
    %7050 = vmatprep.subr.mxu0 0.0
    %7051 = vmatpush1.msra.mxu0 0.0
    %7052 = vmatprep.subr.mxu0 0.0
    %7053 = vmatpush1.msra.mxu0 0.0
    %7054 = vmatprep.subr.mxu0 0.0
    %7055 = vmatpush1.msra.mxu0 0.0
    %7056 = vmatprep.subr.mxu0 0.0
    %7057 = vmatpush1.msra.mxu0 0.0
    %7058 = vmatprep.subr.mxu0 0.0
    %7059 = vmatpush1.msra.mxu0 0.0
    %7060 = vmatprep.subr.mxu0 0.0
    %7061 = vmatpush1.msra.mxu0 0.0
    %7062 = vmatprep.subr.mxu0 0.0
    %7063 = vmatpush1.msra.mxu0 0.0
    %7064 = vmatprep.subr.mxu0 0.0
    %7065 = vmatpush1.msra.mxu0 0.0
    %7066 = vmatprep.subr.mxu0 0.0
    %7067 = vmatpush1.msra.mxu0 0.0
    %7068 = vmatprep.subr.mxu0 0.0
    %7069 = vmatpush1.msra.mxu0 0.0
    %7070 = vmatprep.subr.mxu0 0.0
    %7071 = vmatpush1.msra.mxu0 0.0
    %7072 = vmatprep.subr.mxu0 0.0
    %7073 = vmatpush1.msra.mxu0 0.0
    %7074 = vmatprep.subr.mxu0 0.0
    %7075 = vmatpush1.msra.mxu0 0.0
    %7076 = vmatprep.mubr.f32.mxu0 0.0
    %7077 = vmatmul.mubr.f32.gmra.mrb[0].mxu0 %v7001
    %v7078 = vpop.f32.mrb[0].mxu0
    %v7079 = vadd.f32 0.0, %v7078
    %v7080 = vpop.f32.mrb[0].mxu0
    %7081 = vmatprep.mubr.f32.mxu0 0.0
    %7082 = vmatmul.mubr.f32.gmra.mrb[0].mxu0 %v7004
    %v7083 = vpop.f32.mrb[0].mxu0
    %v7084 = vadd.f32 0.0, %v7083
    %v7085 = vpop.f32.mrb[0].mxu0
    %7086 = vmatprep.mubr.f32.mxu0 0.0
    %7087 = vmatmul.mubr.f32.gmra.mrb[0].mxu0 %v7007
    %v7088 = vpop.f32.mrb[0].mxu0
    %v7089 = vadd.f32 0.0, %v7088
    %v7090 = vpop.f32.mrb[0].mxu0
    %7091 = vmatprep.mubr.f32.mxu0 0.0
    %7092 = vmatmul.mubr.f32.gmra.mrb[0].mxu0 %v7010
    %v7093 = vpop.f32.mrb[0].mxu0
    %v7094 = vadd.f32 0.0, %v7093
    %v7095 = vpop.f32.mrb[0].mxu0
    %7096 = vdwg.mxu0
    %v7097 = vadd.f32 %v6969, %v7079
    %v7098 = vadd.f32 %v6974, %v7084
    %v7099 = vadd.f32 %v6979, %v7089
    %v7100 = vadd.f32 %v6984, %v7094
    %s7101 = scalar_lea.vmem %s15, 288
    %v7102 = vld [vmem:[%s7101] sm:$0xff]
    %v7103 = vld [vmem:[%s7101 + $0x8] sm:$0xff]
    %v7104 = vld [vmem:[%s7101 + $0x10] sm:$0xff]
    %v7105 = vld [vmem:[%s7101 + $0x18] sm:$0xff]
    %v7106 = vld [vmem:[%s7101 + $0x20] sm:$0xff]
    %v7107 = vld [vmem:[%s7101 + $0x28] sm:$0xff]
    %v7108 = vld [vmem:[%s7101 + $0x30] sm:$0xff]
    %v7109 = vld [vmem:[%s7101 + $0x38] sm:$0xff]
    %v7110 = vld [vmem:[%s7101 + $0x40] sm:$0xff]
    %v7111 = vld [vmem:[%s7101 + $0x48] sm:$0xff]
    %v7112 = vld [vmem:[%s7101 + $0x50] sm:$0xff]
    %v7113 = vld [vmem:[%s7101 + $0x58] sm:$0xff]
    %v7115 = vsel %vm6792, %v6649, 0
    %v7118 = vsel %vm6792, %v6654, 0
    %v7121 = vsel %vm6792, %v6659, 0
    %v7124 = vsel %vm6792, %v6664, 0
    %7126 = vmatprep.subr.mxu0 0.0
    %7127 = vmatpush1.msra.mxu0 %v7102
    %7128 = vmatprep.subr.mxu0 0.0
    %7129 = vmatpush1.msra.mxu0 %v7103
    %7130 = vmatprep.subr.mxu0 0.0
    %7131 = vmatpush1.msra.mxu0 %v7104
    %7132 = vmatprep.subr.mxu0 0.0
    %7133 = vmatpush1.msra.mxu0 %v7105
    %7134 = vmatprep.subr.mxu0 0.0
    %7135 = vmatpush1.msra.mxu0 %v7106
    %7136 = vmatprep.subr.mxu0 0.0
    %7137 = vmatpush1.msra.mxu0 %v7107
    %7138 = vmatprep.subr.mxu0 0.0
    %7139 = vmatpush1.msra.mxu0 %v7108
    %7140 = vmatprep.subr.mxu0 0.0
    %7141 = vmatpush1.msra.mxu0 %v7109
    %7142 = vmatprep.subr.mxu0 0.0
    %7143 = vmatpush1.msra.mxu0 %v7110
    %7144 = vmatprep.subr.mxu0 0.0
    %7145 = vmatpush1.msra.mxu0 %v7111
    %7146 = vmatprep.subr.mxu0 0.0
    %7147 = vmatpush1.msra.mxu0 %v7112
    %7148 = vmatprep.subr.mxu0 0.0
    %7149 = vmatpush1.msra.mxu0 %v7113
    %7150 = vmatprep.subr.mxu0 0.0
    %7151 = vmatpush1.msra.mxu0 0.0
    %7152 = vmatprep.subr.mxu0 0.0
    %7153 = vmatpush1.msra.mxu0 0.0
    %7154 = vmatprep.subr.mxu0 0.0
    %7155 = vmatpush1.msra.mxu0 0.0
    %7156 = vmatprep.subr.mxu0 0.0
    %7157 = vmatpush1.msra.mxu0 0.0
    %7158 = vmatprep.subr.mxu0 0.0
    %7159 = vmatpush1.msra.mxu0 0.0
    %7160 = vmatprep.subr.mxu0 0.0
    %7161 = vmatpush1.msra.mxu0 0.0
    %7162 = vmatprep.subr.mxu0 0.0
    %7163 = vmatpush1.msra.mxu0 0.0
    %7164 = vmatprep.subr.mxu0 0.0
    %7165 = vmatpush1.msra.mxu0 0.0
    %7166 = vmatprep.subr.mxu0 0.0
    %7167 = vmatpush1.msra.mxu0 0.0
    %7168 = vmatprep.subr.mxu0 0.0
    %7169 = vmatpush1.msra.mxu0 0.0
    %7170 = vmatprep.subr.mxu0 0.0
    %7171 = vmatpush1.msra.mxu0 0.0
    %7172 = vmatprep.subr.mxu0 0.0
    %7173 = vmatpush1.msra.mxu0 0.0
    %7174 = vmatprep.subr.mxu0 0.0
    %7175 = vmatpush1.msra.mxu0 0.0
    %7176 = vmatprep.subr.mxu0 0.0
    %7177 = vmatpush1.msra.mxu0 0.0
    %7178 = vmatprep.subr.mxu0 0.0
    %7179 = vmatpush1.msra.mxu0 0.0
    %7180 = vmatprep.subr.mxu0 0.0
    %7181 = vmatpush1.msra.mxu0 0.0
    %7182 = vmatprep.subr.mxu0 0.0
    %7183 = vmatpush1.msra.mxu0 0.0
    %7184 = vmatprep.subr.mxu0 0.0
    %7185 = vmatpush1.msra.mxu0 0.0
    %7186 = vmatprep.subr.mxu0 0.0
    %7187 = vmatpush1.msra.mxu0 0.0
    %7188 = vmatprep.subr.mxu0 0.0
    %7189 = vmatpush1.msra.mxu0 0.0
    %7190 = vmatprep.mubr.f32.mxu0 0.0
    %7191 = vmatmul.mubr.f32.gmra.mrb[0].mxu0 %v7115
    %v7192 = vpop.f32.mrb[0].mxu0
    %v7193 = vadd.f32 0.0, %v7192
    %v7194 = vpop.f32.mrb[0].mxu0
    %7195 = vmatprep.mubr.f32.mxu0 0.0
    %7196 = vmatmul.mubr.f32.gmra.mrb[0].mxu0 %v7118
    %v7197 = vpop.f32.mrb[0].mxu0
    %v7198 = vadd.f32 0.0, %v7197
    %v7199 = vpop.f32.mrb[0].mxu0
    %7200 = vmatprep.mubr.f32.mxu0 0.0
    %7201 = vmatmul.mubr.f32.gmra.mrb[0].mxu0 %v7121
    %v7202 = vpop.f32.mrb[0].mxu0
    %v7203 = vadd.f32 0.0, %v7202
    %v7204 = vpop.f32.mrb[0].mxu0
    %7205 = vmatprep.mubr.f32.mxu0 0.0
    %7206 = vmatmul.mubr.f32.gmra.mrb[0].mxu0 %v7124
    %v7207 = vpop.f32.mrb[0].mxu0
    %v7208 = vadd.f32 0.0, %v7207
    %v7209 = vpop.f32.mrb[0].mxu0
    %7210 = vdwg.mxu0
    %v7211 = vadd.f32 %v7097, %v7193
    %v7212 = vadd.f32 %v7098, %v7198
    %v7213 = vadd.f32 %v7099, %v7203
    %v7214 = vadd.f32 %v7100, %v7208
    %s7215 = scalar_lea.vmem %s15, 384
    %v7216 = vld [vmem:[%s7215] sm:$0xff]
    %v7217 = vld [vmem:[%s7215 + $0x8] sm:$0xff]
    %v7218 = vld [vmem:[%s7215 + $0x10] sm:$0xff]
    %v7219 = vld [vmem:[%s7215 + $0x18] sm:$0xff]
    %v7220 = vld [vmem:[%s7215 + $0x20] sm:$0xff]
    %v7221 = vld [vmem:[%s7215 + $0x28] sm:$0xff]
    %v7222 = vld [vmem:[%s7215 + $0x30] sm:$0xff]
    %v7223 = vld [vmem:[%s7215 + $0x38] sm:$0xff]
    %v7224 = vld [vmem:[%s7215 + $0x40] sm:$0xff]
    %v7225 = vld [vmem:[%s7215 + $0x48] sm:$0xff]
    %v7226 = vld [vmem:[%s7215 + $0x50] sm:$0xff]
    %v7227 = vld [vmem:[%s7215 + $0x58] sm:$0xff]
    %v7229 = vsel %vm6792, %v6669, 0
    %v7232 = vsel %vm6792, %v6674, 0
    %v7235 = vsel %vm6792, %v6679, 0
    %v7238 = vsel %vm6792, %v6684, 0
    %7240 = vmatprep.subr.mxu0 0.0
    %7241 = vmatpush1.msra.mxu0 %v7216
    %7242 = vmatprep.subr.mxu0 0.0
    %7243 = vmatpush1.msra.mxu0 %v7217
    %7244 = vmatprep.subr.mxu0 0.0
    %7245 = vmatpush1.msra.mxu0 %v7218
    %7246 = vmatprep.subr.mxu0 0.0
    %7247 = vmatpush1.msra.mxu0 %v7219
    %7248 = vmatprep.subr.mxu0 0.0
    %7249 = vmatpush1.msra.mxu0 %v7220
    %7250 = vmatprep.subr.mxu0 0.0
    %7251 = vmatpush1.msra.mxu0 %v7221
    %7252 = vmatprep.subr.mxu0 0.0
    %7253 = vmatpush1.msra.mxu0 %v7222
    %7254 = vmatprep.subr.mxu0 0.0
    %7255 = vmatpush1.msra.mxu0 %v7223
    %7256 = vmatprep.subr.mxu0 0.0
    %7257 = vmatpush1.msra.mxu0 %v7224
    %7258 = vmatprep.subr.mxu0 0.0
    %7259 = vmatpush1.msra.mxu0 %v7225
    %7260 = vmatprep.subr.mxu0 0.0
    %7261 = vmatpush1.msra.mxu0 %v7226
    %7262 = vmatprep.subr.mxu0 0.0
    %7263 = vmatpush1.msra.mxu0 %v7227
    %7264 = vmatprep.subr.mxu0 0.0
    %7265 = vmatpush1.msra.mxu0 0.0
    %7266 = vmatprep.subr.mxu0 0.0
    %7267 = vmatpush1.msra.mxu0 0.0
    %7268 = vmatprep.subr.mxu0 0.0
    %7269 = vmatpush1.msra.mxu0 0.0
    %7270 = vmatprep.subr.mxu0 0.0
    %7271 = vmatpush1.msra.mxu0 0.0
    %7272 = vmatprep.subr.mxu0 0.0
    %7273 = vmatpush1.msra.mxu0 0.0
    %7274 = vmatprep.subr.mxu0 0.0
    %7275 = vmatpush1.msra.mxu0 0.0
    %7276 = vmatprep.subr.mxu0 0.0
    %7277 = vmatpush1.msra.mxu0 0.0
    %7278 = vmatprep.subr.mxu0 0.0
    %7279 = vmatpush1.msra.mxu0 0.0
    %7280 = vmatprep.subr.mxu0 0.0
    %7281 = vmatpush1.msra.mxu0 0.0
    %7282 = vmatprep.subr.mxu0 0.0
    %7283 = vmatpush1.msra.mxu0 0.0
    %7284 = vmatprep.subr.mxu0 0.0
    %7285 = vmatpush1.msra.mxu0 0.0
    %7286 = vmatprep.subr.mxu0 0.0
    %7287 = vmatpush1.msra.mxu0 0.0
    %7288 = vmatprep.subr.mxu0 0.0
    %7289 = vmatpush1.msra.mxu0 0.0
    %7290 = vmatprep.subr.mxu0 0.0
    %7291 = vmatpush1.msra.mxu0 0.0
    %7292 = vmatprep.subr.mxu0 0.0
    %7293 = vmatpush1.msra.mxu0 0.0
    %7294 = vmatprep.subr.mxu0 0.0
    %7295 = vmatpush1.msra.mxu0 0.0
    %7296 = vmatprep.subr.mxu0 0.0
    %7297 = vmatpush1.msra.mxu0 0.0
    %7298 = vmatprep.subr.mxu0 0.0
    %7299 = vmatpush1.msra.mxu0 0.0
    %7300 = vmatprep.subr.mxu0 0.0
    %7301 = vmatpush1.msra.mxu0 0.0
    %7302 = vmatprep.subr.mxu0 0.0
    %7303 = vmatpush1.msra.mxu0 0.0
    %7304 = vmatprep.mubr.f32.mxu0 0.0
    %7305 = vmatmul.mubr.f32.gmra.mrb[0].mxu0 %v7229
    %v7306 = vpop.f32.mrb[0].mxu0
    %v7307 = vadd.f32 0.0, %v7306
    %v7308 = vpop.f32.mrb[0].mxu0
    %7309 = vmatprep.mubr.f32.mxu0 0.0
    %7310 = vmatmul.mubr.f32.gmra.mrb[0].mxu0 %v7232
    %v7311 = vpop.f32.mrb[0].mxu0
    %v7312 = vadd.f32 0.0, %v7311
    %v7313 = vpop.f32.mrb[0].mxu0
    %7314 = vmatprep.mubr.f32.mxu0 0.0
    %7315 = vmatmul.mubr.f32.gmra.mrb[0].mxu0 %v7235
    %v7316 = vpop.f32.mrb[0].mxu0
    %v7317 = vadd.f32 0.0, %v7316
    %v7318 = vpop.f32.mrb[0].mxu0
    %7319 = vmatprep.mubr.f32.mxu0 0.0
    %7320 = vmatmul.mubr.f32.gmra.mrb[0].mxu0 %v7238
    %v7321 = vpop.f32.mrb[0].mxu0
    %v7322 = vadd.f32 0.0, %v7321
    %v7323 = vpop.f32.mrb[0].mxu0
    %7324 = vdwg.mxu0
    %v7325 = vadd.f32 %v7211, %v7307
    %v7326 = vadd.f32 %v7212, %v7312
    %v7327 = vadd.f32 %v7213, %v7317
    %v7328 = vadd.f32 %v7214, %v7322
    %s7329 = scalar_lea.vmem %s15, 480
    %v7330 = vld [vmem:[%s7329] sm:$0xff]
    %v7331 = vld [vmem:[%s7329 + $0x8] sm:$0xff]
    %v7332 = vld [vmem:[%s7329 + $0x10] sm:$0xff]
    %v7333 = vld [vmem:[%s7329 + $0x18] sm:$0xff]
    %v7334 = vld [vmem:[%s7329 + $0x20] sm:$0xff]
    %v7335 = vld [vmem:[%s7329 + $0x28] sm:$0xff]
    %v7336 = vld [vmem:[%s7329 + $0x30] sm:$0xff]
    %v7337 = vld [vmem:[%s7329 + $0x38] sm:$0xff]
    %v7338 = vld [vmem:[%s7329 + $0x40] sm:$0xff]
    %v7339 = vld [vmem:[%s7329 + $0x48] sm:$0xff]
    %v7340 = vld [vmem:[%s7329 + $0x50] sm:$0xff]
    %v7341 = vld [vmem:[%s7329 + $0x58] sm:$0xff]
    %v7343 = vsel %vm6792, %v6689, 0
    %v7346 = vsel %vm6792, %v6694, 0
    %v7349 = vsel %vm6792, %v6699, 0
    %v7352 = vsel %vm6792, %v6704, 0
    %7354 = vmatprep.subr.mxu0 0.0
    %7355 = vmatpush1.msra.mxu0 %v7330
    %7356 = vmatprep.subr.mxu0 0.0
    %7357 = vmatpush1.msra.mxu0 %v7331
    %7358 = vmatprep.subr.mxu0 0.0
    %7359 = vmatpush1.msra.mxu0 %v7332
    %7360 = vmatprep.subr.mxu0 0.0
    %7361 = vmatpush1.msra.mxu0 %v7333
    %7362 = vmatprep.subr.mxu0 0.0
    %7363 = vmatpush1.msra.mxu0 %v7334
    %7364 = vmatprep.subr.mxu0 0.0
    %7365 = vmatpush1.msra.mxu0 %v7335
    %7366 = vmatprep.subr.mxu0 0.0
    %7367 = vmatpush1.msra.mxu0 %v7336
    %7368 = vmatprep.subr.mxu0 0.0
    %7369 = vmatpush1.msra.mxu0 %v7337
    %7370 = vmatprep.subr.mxu0 0.0
    %7371 = vmatpush1.msra.mxu0 %v7338
    %7372 = vmatprep.subr.mxu0 0.0
    %7373 = vmatpush1.msra.mxu0 %v7339
    %7374 = vmatprep.subr.mxu0 0.0
    %7375 = vmatpush1.msra.mxu0 %v7340
    %7376 = vmatprep.subr.mxu0 0.0
    %7377 = vmatpush1.msra.mxu0 %v7341
    %7378 = vmatprep.subr.mxu0 0.0
    %7379 = vmatpush1.msra.mxu0 0.0
    %7380 = vmatprep.subr.mxu0 0.0
    %7381 = vmatpush1.msra.mxu0 0.0
    %7382 = vmatprep.subr.mxu0 0.0
    %7383 = vmatpush1.msra.mxu0 0.0
    %7384 = vmatprep.subr.mxu0 0.0
    %7385 = vmatpush1.msra.mxu0 0.0
    %7386 = vmatprep.subr.mxu0 0.0
    %7387 = vmatpush1.msra.mxu0 0.0
    %7388 = vmatprep.subr.mxu0 0.0
    %7389 = vmatpush1.msra.mxu0 0.0
    %7390 = vmatprep.subr.mxu0 0.0
    %7391 = vmatpush1.msra.mxu0 0.0
    %7392 = vmatprep.subr.mxu0 0.0
    %7393 = vmatpush1.msra.mxu0 0.0
    %7394 = vmatprep.subr.mxu0 0.0
    %7395 = vmatpush1.msra.mxu0 0.0
    %7396 = vmatprep.subr.mxu0 0.0
    %7397 = vmatpush1.msra.mxu0 0.0
    %7398 = vmatprep.subr.mxu0 0.0
    %7399 = vmatpush1.msra.mxu0 0.0
    %7400 = vmatprep.subr.mxu0 0.0
    %7401 = vmatpush1.msra.mxu0 0.0
    %7402 = vmatprep.subr.mxu0 0.0
    %7403 = vmatpush1.msra.mxu0 0.0
    %7404 = vmatprep.subr.mxu0 0.0
    %7405 = vmatpush1.msra.mxu0 0.0
    %7406 = vmatprep.subr.mxu0 0.0
    %7407 = vmatpush1.msra.mxu0 0.0
    %7408 = vmatprep.subr.mxu0 0.0
    %7409 = vmatpush1.msra.mxu0 0.0
    %7410 = vmatprep.subr.mxu0 0.0
    %7411 = vmatpush1.msra.mxu0 0.0
    %7412 = vmatprep.subr.mxu0 0.0
    %7413 = vmatpush1.msra.mxu0 0.0
    %7414 = vmatprep.subr.mxu0 0.0
    %7415 = vmatpush1.msra.mxu0 0.0
    %7416 = vmatprep.subr.mxu0 0.0
    %7417 = vmatpush1.msra.mxu0 0.0
    %7418 = vmatprep.mubr.f32.mxu0 0.0
    %7419 = vmatmul.mubr.f32.gmra.mrb[0].mxu0 %v7343
    %v7420 = vpop.f32.mrb[0].mxu0
    %v7421 = vadd.f32 0.0, %v7420
    %v7422 = vpop.f32.mrb[0].mxu0
    %7423 = vmatprep.mubr.f32.mxu0 0.0
    %7424 = vmatmul.mubr.f32.gmra.mrb[0].mxu0 %v7346
    %v7425 = vpop.f32.mrb[0].mxu0
    %v7426 = vadd.f32 0.0, %v7425
    %v7427 = vpop.f32.mrb[0].mxu0
    %7428 = vmatprep.mubr.f32.mxu0 0.0
    %7429 = vmatmul.mubr.f32.gmra.mrb[0].mxu0 %v7349
    %v7430 = vpop.f32.mrb[0].mxu0
    %v7431 = vadd.f32 0.0, %v7430
    %v7432 = vpop.f32.mrb[0].mxu0
    %7433 = vmatprep.mubr.f32.mxu0 0.0
    %7434 = vmatmul.mubr.f32.gmra.mrb[0].mxu0 %v7352
    %v7435 = vpop.f32.mrb[0].mxu0
    %v7436 = vadd.f32 0.0, %v7435
    %v7437 = vpop.f32.mrb[0].mxu0
    %7438 = vdwg.mxu0
    %v7439 = vadd.f32 %v7325, %v7421
    %v7440 = vadd.f32 %v7326, %v7426
    %v7441 = vadd.f32 %v7327, %v7431
    %v7442 = vadd.f32 %v7328, %v7436
    %s7443 = scalar_lea.vmem %s15, 576
    %v7444 = vld [vmem:[%s7443] sm:$0xff]
    %v7445 = vld [vmem:[%s7443 + $0x8] sm:$0xff]
    %v7446 = vld [vmem:[%s7443 + $0x10] sm:$0xff]
    %v7447 = vld [vmem:[%s7443 + $0x18] sm:$0xff]
    %v7448 = vld [vmem:[%s7443 + $0x20] sm:$0xff]
    %v7449 = vld [vmem:[%s7443 + $0x28] sm:$0xff]
    %v7450 = vld [vmem:[%s7443 + $0x30] sm:$0xff]
    %v7451 = vld [vmem:[%s7443 + $0x38] sm:$0xff]
    %v7452 = vld [vmem:[%s7443 + $0x40] sm:$0xff]
    %v7453 = vld [vmem:[%s7443 + $0x48] sm:$0xff]
    %v7454 = vld [vmem:[%s7443 + $0x50] sm:$0xff]
    %v7455 = vld [vmem:[%s7443 + $0x58] sm:$0xff]
    %v7457 = vsel %vm6792, %v6709, 0
    %v7460 = vsel %vm6792, %v6714, 0
    %v7463 = vsel %vm6792, %v6719, 0
    %v7466 = vsel %vm6792, %v6724, 0
    %7468 = vmatprep.subr.mxu0 0.0
    %7469 = vmatpush1.msra.mxu0 %v7444
    %7470 = vmatprep.subr.mxu0 0.0
    %7471 = vmatpush1.msra.mxu0 %v7445
    %7472 = vmatprep.subr.mxu0 0.0
    %7473 = vmatpush1.msra.mxu0 %v7446
    %7474 = vmatprep.subr.mxu0 0.0
    %7475 = vmatpush1.msra.mxu0 %v7447
    %7476 = vmatprep.subr.mxu0 0.0
    %7477 = vmatpush1.msra.mxu0 %v7448
    %7478 = vmatprep.subr.mxu0 0.0
    %7479 = vmatpush1.msra.mxu0 %v7449
    %7480 = vmatprep.subr.mxu0 0.0
    %7481 = vmatpush1.msra.mxu0 %v7450
    %7482 = vmatprep.subr.mxu0 0.0
    %7483 = vmatpush1.msra.mxu0 %v7451
    %7484 = vmatprep.subr.mxu0 0.0
    %7485 = vmatpush1.msra.mxu0 %v7452
    %7486 = vmatprep.subr.mxu0 0.0
    %7487 = vmatpush1.msra.mxu0 %v7453
    %7488 = vmatprep.subr.mxu0 0.0
    %7489 = vmatpush1.msra.mxu0 %v7454
    %7490 = vmatprep.subr.mxu0 0.0
    %7491 = vmatpush1.msra.mxu0 %v7455
    %7492 = vmatprep.subr.mxu0 0.0
    %7493 = vmatpush1.msra.mxu0 0.0
    %7494 = vmatprep.subr.mxu0 0.0
    %7495 = vmatpush1.msra.mxu0 0.0
    %7496 = vmatprep.subr.mxu0 0.0
    %7497 = vmatpush1.msra.mxu0 0.0
    %7498 = vmatprep.subr.mxu0 0.0
    %7499 = vmatpush1.msra.mxu0 0.0
    %7500 = vmatprep.subr.mxu0 0.0
    %7501 = vmatpush1.msra.mxu0 0.0
    %7502 = vmatprep.subr.mxu0 0.0
    %7503 = vmatpush1.msra.mxu0 0.0
    %7504 = vmatprep.subr.mxu0 0.0
    %7505 = vmatpush1.msra.mxu0 0.0
    %7506 = vmatprep.subr.mxu0 0.0
    %7507 = vmatpush1.msra.mxu0 0.0
    %7508 = vmatprep.subr.mxu0 0.0
    %7509 = vmatpush1.msra.mxu0 0.0
    %7510 = vmatprep.subr.mxu0 0.0
    %7511 = vmatpush1.msra.mxu0 0.0
    %7512 = vmatprep.subr.mxu0 0.0
    %7513 = vmatpush1.msra.mxu0 0.0
    %7514 = vmatprep.subr.mxu0 0.0
    %7515 = vmatpush1.msra.mxu0 0.0
    %7516 = vmatprep.subr.mxu0 0.0
    %7517 = vmatpush1.msra.mxu0 0.0
    %7518 = vmatprep.subr.mxu0 0.0
    %7519 = vmatpush1.msra.mxu0 0.0
    %7520 = vmatprep.subr.mxu0 0.0
    %7521 = vmatpush1.msra.mxu0 0.0
    %7522 = vmatprep.subr.mxu0 0.0
    %7523 = vmatpush1.msra.mxu0 0.0
    %7524 = vmatprep.subr.mxu0 0.0
    %7525 = vmatpush1.msra.mxu0 0.0
    %7526 = vmatprep.subr.mxu0 0.0
    %7527 = vmatpush1.msra.mxu0 0.0
    %7528 = vmatprep.subr.mxu0 0.0
    %7529 = vmatpush1.msra.mxu0 0.0
    %7530 = vmatprep.subr.mxu0 0.0
    %7531 = vmatpush1.msra.mxu0 0.0
    %7532 = vmatprep.mubr.f32.mxu0 0.0
    %7533 = vmatmul.mubr.f32.gmra.mrb[0].mxu0 %v7457
    %v7534 = vpop.f32.mrb[0].mxu0
    %v7535 = vadd.f32 0.0, %v7534
    %v7536 = vpop.f32.mrb[0].mxu0
    %7537 = vmatprep.mubr.f32.mxu0 0.0
    %7538 = vmatmul.mubr.f32.gmra.mrb[0].mxu0 %v7460
    %v7539 = vpop.f32.mrb[0].mxu0
    %v7540 = vadd.f32 0.0, %v7539
    %v7541 = vpop.f32.mrb[0].mxu0
    %7542 = vmatprep.mubr.f32.mxu0 0.0
    %7543 = vmatmul.mubr.f32.gmra.mrb[0].mxu0 %v7463
    %v7544 = vpop.f32.mrb[0].mxu0
    %v7545 = vadd.f32 0.0, %v7544
    %v7546 = vpop.f32.mrb[0].mxu0
    %7547 = vmatprep.mubr.f32.mxu0 0.0
    %7548 = vmatmul.mubr.f32.gmra.mrb[0].mxu0 %v7466
    %v7549 = vpop.f32.mrb[0].mxu0
    %v7550 = vadd.f32 0.0, %v7549
    %v7551 = vpop.f32.mrb[0].mxu0
    %7552 = vdwg.mxu0
    %v7553 = vadd.f32 %v7439, %v7535
    %v7554 = vadd.f32 %v7440, %v7540
    %v7555 = vadd.f32 %v7441, %v7545
    %v7556 = vadd.f32 %v7442, %v7550
    %s7557 = scalar_lea.vmem %s15, 672
    %v7558 = vld [vmem:[%s7557] sm:$0xff]
    %v7559 = vld [vmem:[%s7557 + $0x8] sm:$0xff]
    %v7560 = vld [vmem:[%s7557 + $0x10] sm:$0xff]
    %v7561 = vld [vmem:[%s7557 + $0x18] sm:$0xff]
    %v7562 = vld [vmem:[%s7557 + $0x20] sm:$0xff]
    %v7563 = vld [vmem:[%s7557 + $0x28] sm:$0xff]
    %v7564 = vld [vmem:[%s7557 + $0x30] sm:$0xff]
    %v7565 = vld [vmem:[%s7557 + $0x38] sm:$0xff]
    %v7566 = vld [vmem:[%s7557 + $0x40] sm:$0xff]
    %v7567 = vld [vmem:[%s7557 + $0x48] sm:$0xff]
    %v7568 = vld [vmem:[%s7557 + $0x50] sm:$0xff]
    %v7569 = vld [vmem:[%s7557 + $0x58] sm:$0xff]
    %v7571 = vsel %vm6792, %v6729, 0
    %v7574 = vsel %vm6792, %v6734, 0
    %v7577 = vsel %vm6792, %v6739, 0
    %v7580 = vsel %vm6792, %v6744, 0
    %7582 = vmatprep.subr.mxu0 0.0
    %7583 = vmatpush1.msra.mxu0 %v7558
    %7584 = vmatprep.subr.mxu0 0.0
    %7585 = vmatpush1.msra.mxu0 %v7559
    %7586 = vmatprep.subr.mxu0 0.0
    %7587 = vmatpush1.msra.mxu0 %v7560
    %7588 = vmatprep.subr.mxu0 0.0
    %7589 = vmatpush1.msra.mxu0 %v7561
    %7590 = vmatprep.subr.mxu0 0.0
    %7591 = vmatpush1.msra.mxu0 %v7562
    %7592 = vmatprep.subr.mxu0 0.0
    %7593 = vmatpush1.msra.mxu0 %v7563
    %7594 = vmatprep.subr.mxu0 0.0
    %7595 = vmatpush1.msra.mxu0 %v7564
    %7596 = vmatprep.subr.mxu0 0.0
    %7597 = vmatpush1.msra.mxu0 %v7565
    %7598 = vmatprep.subr.mxu0 0.0
    %7599 = vmatpush1.msra.mxu0 %v7566
    %7600 = vmatprep.subr.mxu0 0.0
    %7601 = vmatpush1.msra.mxu0 %v7567
    %7602 = vmatprep.subr.mxu0 0.0
    %7603 = vmatpush1.msra.mxu0 %v7568
    %7604 = vmatprep.subr.mxu0 0.0
    %7605 = vmatpush1.msra.mxu0 %v7569
    %7606 = vmatprep.subr.mxu0 0.0
    %7607 = vmatpush1.msra.mxu0 0.0
    %7608 = vmatprep.subr.mxu0 0.0
    %7609 = vmatpush1.msra.mxu0 0.0
    %7610 = vmatprep.subr.mxu0 0.0
    %7611 = vmatpush1.msra.mxu0 0.0
    %7612 = vmatprep.subr.mxu0 0.0
    %7613 = vmatpush1.msra.mxu0 0.0
    %7614 = vmatprep.subr.mxu0 0.0
    %7615 = vmatpush1.msra.mxu0 0.0
    %7616 = vmatprep.subr.mxu0 0.0
    %7617 = vmatpush1.msra.mxu0 0.0
    %7618 = vmatprep.subr.mxu0 0.0
    %7619 = vmatpush1.msra.mxu0 0.0
    %7620 = vmatprep.subr.mxu0 0.0
    %7621 = vmatpush1.msra.mxu0 0.0
    %7622 = vmatprep.subr.mxu0 0.0
    %7623 = vmatpush1.msra.mxu0 0.0
    %7624 = vmatprep.subr.mxu0 0.0
    %7625 = vmatpush1.msra.mxu0 0.0
    %7626 = vmatprep.subr.mxu0 0.0
    %7627 = vmatpush1.msra.mxu0 0.0
    %7628 = vmatprep.subr.mxu0 0.0
    %7629 = vmatpush1.msra.mxu0 0.0
    %7630 = vmatprep.subr.mxu0 0.0
    %7631 = vmatpush1.msra.mxu0 0.0
    %7632 = vmatprep.subr.mxu0 0.0
    %7633 = vmatpush1.msra.mxu0 0.0
    %7634 = vmatprep.subr.mxu0 0.0
    %7635 = vmatpush1.msra.mxu0 0.0
    %7636 = vmatprep.subr.mxu0 0.0
    %7637 = vmatpush1.msra.mxu0 0.0
    %7638 = vmatprep.subr.mxu0 0.0
    %7639 = vmatpush1.msra.mxu0 0.0
    %7640 = vmatprep.subr.mxu0 0.0
    %7641 = vmatpush1.msra.mxu0 0.0
    %7642 = vmatprep.subr.mxu0 0.0
    %7643 = vmatpush1.msra.mxu0 0.0
    %7644 = vmatprep.subr.mxu0 0.0
    %7645 = vmatpush1.msra.mxu0 0.0
    %7646 = vmatprep.mubr.f32.mxu0 0.0
    %7647 = vmatmul.mubr.f32.gmra.mrb[0].mxu0 %v7571
    %v7648 = vpop.f32.mrb[0].mxu0
    %v7649 = vadd.f32 0.0, %v7648
    %v7650 = vpop.f32.mrb[0].mxu0
    %7651 = vmatprep.mubr.f32.mxu0 0.0
    %7652 = vmatmul.mubr.f32.gmra.mrb[0].mxu0 %v7574
    %v7653 = vpop.f32.mrb[0].mxu0
    %v7654 = vadd.f32 0.0, %v7653
    %v7655 = vpop.f32.mrb[0].mxu0
    %7656 = vmatprep.mubr.f32.mxu0 0.0
    %7657 = vmatmul.mubr.f32.gmra.mrb[0].mxu0 %v7577
    %v7658 = vpop.f32.mrb[0].mxu0
    %v7659 = vadd.f32 0.0, %v7658
    %v7660 = vpop.f32.mrb[0].mxu0
    %7661 = vmatprep.mubr.f32.mxu0 0.0
    %7662 = vmatmul.mubr.f32.gmra.mrb[0].mxu0 %v7580
    %v7663 = vpop.f32.mrb[0].mxu0
    %v7664 = vadd.f32 0.0, %v7663
    %v7665 = vpop.f32.mrb[0].mxu0
    %7666 = vdwg.mxu0
    %v7667 = vadd.f32 %v7553, %v7649
    %v7668 = vadd.f32 %v7554, %v7654
    %v7669 = vadd.f32 %v7555, %v7659
    %v7670 = vadd.f32 %v7556, %v7664
    %s7671 = scalar_lea.vmem %s15, 768
    %v7672 = vld [vmem:[%s7671] sm:$0xff]
    %v7673 = vld [vmem:[%s7671 + $0x8] sm:$0xff]
    %v7674 = vld [vmem:[%s7671 + $0x10] sm:$0xff]
    %v7675 = vld [vmem:[%s7671 + $0x18] sm:$0xff]
    %v7676 = vld [vmem:[%s7671 + $0x20] sm:$0xff]
    %v7677 = vld [vmem:[%s7671 + $0x28] sm:$0xff]
    %v7678 = vld [vmem:[%s7671 + $0x30] sm:$0xff]
    %v7679 = vld [vmem:[%s7671 + $0x38] sm:$0xff]
    %v7680 = vld [vmem:[%s7671 + $0x40] sm:$0xff]
    %v7681 = vld [vmem:[%s7671 + $0x48] sm:$0xff]
    %v7682 = vld [vmem:[%s7671 + $0x50] sm:$0xff]
    %v7683 = vld [vmem:[%s7671 + $0x58] sm:$0xff]
    %v7685 = vsel %vm6792, %v6749, 0
    %v7688 = vsel %vm6792, %v6754, 0
    %v7691 = vsel %vm6792, %v6759, 0
    %v7694 = vsel %vm6792, %v6764, 0
    %7696 = vmatprep.subr.mxu0 0.0
    %7697 = vmatpush1.msra.mxu0 %v7672
    %7698 = vmatprep.subr.mxu0 0.0
    %7699 = vmatpush1.msra.mxu0 %v7673
    %7700 = vmatprep.subr.mxu0 0.0
    %7701 = vmatpush1.msra.mxu0 %v7674
    %7702 = vmatprep.subr.mxu0 0.0
    %7703 = vmatpush1.msra.mxu0 %v7675
    %7704 = vmatprep.subr.mxu0 0.0
    %7705 = vmatpush1.msra.mxu0 %v7676
    %7706 = vmatprep.subr.mxu0 0.0
    %7707 = vmatpush1.msra.mxu0 %v7677
    %7708 = vmatprep.subr.mxu0 0.0
    %7709 = vmatpush1.msra.mxu0 %v7678
    %7710 = vmatprep.subr.mxu0 0.0
    %7711 = vmatpush1.msra.mxu0 %v7679
    %7712 = vmatprep.subr.mxu0 0.0
    %7713 = vmatpush1.msra.mxu0 %v7680
    %7714 = vmatprep.subr.mxu0 0.0
    %7715 = vmatpush1.msra.mxu0 %v7681
    %7716 = vmatprep.subr.mxu0 0.0
    %7717 = vmatpush1.msra.mxu0 %v7682
    %7718 = vmatprep.subr.mxu0 0.0
    %7719 = vmatpush1.msra.mxu0 %v7683
    %7720 = vmatprep.subr.mxu0 0.0
    %7721 = vmatpush1.msra.mxu0 0.0
    %7722 = vmatprep.subr.mxu0 0.0
    %7723 = vmatpush1.msra.mxu0 0.0
    %7724 = vmatprep.subr.mxu0 0.0
    %7725 = vmatpush1.msra.mxu0 0.0
    %7726 = vmatprep.subr.mxu0 0.0
    %7727 = vmatpush1.msra.mxu0 0.0
    %7728 = vmatprep.subr.mxu0 0.0
    %7729 = vmatpush1.msra.mxu0 0.0
    %7730 = vmatprep.subr.mxu0 0.0
    %7731 = vmatpush1.msra.mxu0 0.0
    %7732 = vmatprep.subr.mxu0 0.0
    %7733 = vmatpush1.msra.mxu0 0.0
    %7734 = vmatprep.subr.mxu0 0.0
    %7735 = vmatpush1.msra.mxu0 0.0
    %7736 = vmatprep.subr.mxu0 0.0
    %7737 = vmatpush1.msra.mxu0 0.0
    %7738 = vmatprep.subr.mxu0 0.0
    %7739 = vmatpush1.msra.mxu0 0.0
    %7740 = vmatprep.subr.mxu0 0.0
    %7741 = vmatpush1.msra.mxu0 0.0
    %7742 = vmatprep.subr.mxu0 0.0
    %7743 = vmatpush1.msra.mxu0 0.0
    %7744 = vmatprep.subr.mxu0 0.0
    %7745 = vmatpush1.msra.mxu0 0.0
    %7746 = vmatprep.subr.mxu0 0.0
    %7747 = vmatpush1.msra.mxu0 0.0
    %7748 = vmatprep.subr.mxu0 0.0
    %7749 = vmatpush1.msra.mxu0 0.0
    %7750 = vmatprep.subr.mxu0 0.0
    %7751 = vmatpush1.msra.mxu0 0.0
    %7752 = vmatprep.subr.mxu0 0.0
    %7753 = vmatpush1.msra.mxu0 0.0
    %7754 = vmatprep.subr.mxu0 0.0
    %7755 = vmatpush1.msra.mxu0 0.0
    %7756 = vmatprep.subr.mxu0 0.0
    %7757 = vmatpush1.msra.mxu0 0.0
    %7758 = vmatprep.subr.mxu0 0.0
    %7759 = vmatpush1.msra.mxu0 0.0
    %7760 = vmatprep.mubr.f32.mxu0 0.0
    %7761 = vmatmul.mubr.f32.gmra.mrb[0].mxu0 %v7685
    %v7762 = vpop.f32.mrb[0].mxu0
    %v7763 = vadd.f32 0.0, %v7762
    %v7764 = vpop.f32.mrb[0].mxu0
    %7765 = vmatprep.mubr.f32.mxu0 0.0
    %7766 = vmatmul.mubr.f32.gmra.mrb[0].mxu0 %v7688
    %v7767 = vpop.f32.mrb[0].mxu0
    %v7768 = vadd.f32 0.0, %v7767
    %v7769 = vpop.f32.mrb[0].mxu0
    %7770 = vmatprep.mubr.f32.mxu0 0.0
    %7771 = vmatmul.mubr.f32.gmra.mrb[0].mxu0 %v7691
    %v7772 = vpop.f32.mrb[0].mxu0
    %v7773 = vadd.f32 0.0, %v7772
    %v7774 = vpop.f32.mrb[0].mxu0
    %7775 = vmatprep.mubr.f32.mxu0 0.0
    %7776 = vmatmul.mubr.f32.gmra.mrb[0].mxu0 %v7694
    %v7777 = vpop.f32.mrb[0].mxu0
    %v7778 = vadd.f32 0.0, %v7777
    %v7779 = vpop.f32.mrb[0].mxu0
    %7780 = vdwg.mxu0
    %v7781 = vadd.f32 %v7667, %v7763
    %v7782 = vadd.f32 %v7668, %v7768
    %v7783 = vadd.f32 %v7669, %v7773
    %v7784 = vadd.f32 %v7670, %v7778
    %v7785 = vadd.f32 %v7781, %v7782
    %v7786 = vadd.f32 %v7785, %v7783
    %v7787 = vadd.f32 %v7786, %v7784
    %v7788 = vrot.slane %v7787, 4
    %v7789 = vadd.f32 %v7787, %v7788
    %v7790 = vrot.slane %v7789, 2
    %v7791 = vadd.f32 %v7789, %v7790
    %v7792 = vrot.slane %v7791, 1
    %v7793 = vadd.f32 %v7791, %v7792
    %v7794 = vld [vmem:[%s16] sm:$0xff]
    %v7795 = vld [vmem:[%s16 + $0x8] sm:$0xff]
    %v7796 = vld [vmem:[%s16 + $0x10] sm:$0xff]
    %v7797 = vld [vmem:[%s16 + $0x18] sm:$0xff]
    %v7798 = vld [vmem:[%s16 + $0x20] sm:$0xff]
    %v7799 = vld [vmem:[%s16 + $0x28] sm:$0xff]
    %v7800 = vld [vmem:[%s16 + $0x30] sm:$0xff]
    %v7801 = vld [vmem:[%s16 + $0x38] sm:$0xff]
    %v7802 = vld [vmem:[%s16 + $0x40] sm:$0xff]
    %v7803 = vld [vmem:[%s16 + $0x48] sm:$0xff]
    %v7804 = vld [vmem:[%s16 + $0x50] sm:$0xff]
    %v7805 = vld [vmem:[%s16 + $0x58] sm:$0xff]
    %v7806 = vld [vmem:[%s16 + $0x60] sm:$0xff]
    %v7807 = vld [vmem:[%s16 + $0x68] sm:$0xff]
    %v7808 = vld [vmem:[%s16 + $0x70] sm:$0xff]
    %v7809 = vld [vmem:[%s16 + $0x78] sm:$0xff]
    %7810 = vmatprep.subr.mxu0 0.0
    %7811 = vmatpush1.msra.mxu0 %v7794
    %7812 = vmatprep.subr.mxu0 0.0
    %7813 = vmatpush1.msra.mxu0 %v7795
    %7814 = vmatprep.subr.mxu0 0.0
    %7815 = vmatpush1.msra.mxu0 %v7796
    %7816 = vmatprep.subr.mxu0 0.0
    %7817 = vmatpush1.msra.mxu0 %v7797
    %7818 = vmatprep.subr.mxu0 0.0
    %7819 = vmatpush1.msra.mxu0 %v7798
    %7820 = vmatprep.subr.mxu0 0.0
    %7821 = vmatpush1.msra.mxu0 %v7799
    %7822 = vmatprep.subr.mxu0 0.0
    %7823 = vmatpush1.msra.mxu0 %v7800
    %7824 = vmatprep.subr.mxu0 0.0
    %7825 = vmatpush1.msra.mxu0 %v7801
    %7826 = vmatprep.subr.mxu0 0.0
    %7827 = vmatpush1.msra.mxu0 %v7802
    %7828 = vmatprep.subr.mxu0 0.0
    %7829 = vmatpush1.msra.mxu0 %v7803
    %7830 = vmatprep.subr.mxu0 0.0
    %7831 = vmatpush1.msra.mxu0 %v7804
    %7832 = vmatprep.subr.mxu0 0.0
    %7833 = vmatpush1.msra.mxu0 %v7805
    %7834 = vmatprep.subr.mxu0 0.0
    %7835 = vmatpush1.msra.mxu0 %v7806
    %7836 = vmatprep.subr.mxu0 0.0
    %7837 = vmatpush1.msra.mxu0 %v7807
    %7838 = vmatprep.subr.mxu0 0.0
    %7839 = vmatpush1.msra.mxu0 %v7808
    %7840 = vmatprep.subr.mxu0 0.0
    %7841 = vmatpush1.msra.mxu0 %v7809
    %7842 = vmatprep.subr.mxu0 0.0
    %7843 = vmatpush1.msra.mxu0 0.0
    %7844 = vmatprep.subr.mxu0 0.0
    %7845 = vmatpush1.msra.mxu0 0.0
    %7846 = vmatprep.subr.mxu0 0.0
    %7847 = vmatpush1.msra.mxu0 0.0
    %7848 = vmatprep.subr.mxu0 0.0
    %7849 = vmatpush1.msra.mxu0 0.0
    %7850 = vmatprep.subr.mxu0 0.0
    %7851 = vmatpush1.msra.mxu0 0.0
    %7852 = vmatprep.subr.mxu0 0.0
    %7853 = vmatpush1.msra.mxu0 0.0
    %7854 = vmatprep.subr.mxu0 0.0
    %7855 = vmatpush1.msra.mxu0 0.0
    %7856 = vmatprep.subr.mxu0 0.0
    %7857 = vmatpush1.msra.mxu0 0.0
    %7858 = vmatprep.subr.mxu0 0.0
    %7859 = vmatpush1.msra.mxu0 0.0
    %7860 = vmatprep.subr.mxu0 0.0
    %7861 = vmatpush1.msra.mxu0 0.0
    %7862 = vmatprep.subr.mxu0 0.0
    %7863 = vmatpush1.msra.mxu0 0.0
    %7864 = vmatprep.subr.mxu0 0.0
    %7865 = vmatpush1.msra.mxu0 0.0
    %7866 = vmatprep.subr.mxu0 0.0
    %7867 = vmatpush1.msra.mxu0 0.0
    %7868 = vmatprep.subr.mxu0 0.0
    %7869 = vmatpush1.msra.mxu0 0.0
    %7870 = vmatprep.subr.mxu0 0.0
    %7871 = vmatpush1.msra.mxu0 0.0
    %7872 = vmatprep.subr.mxu0 0.0
    %7873 = vmatpush1.msra.mxu0 0.0
    %7874 = vmatprep.mubr.f32.mxu0 0.0
    %7875 = vmatmul.mubr.f32.gmra.mrb[0].mxu0 %v7793
    %v7876 = vpop.f32.mrb[0].mxu0
    %v7877 = vadd.f32 0.0, %v7876
    %v7878 = vpop.f32.mrb[0].mxu0
    %7879 = vdwg.mxu0
    %v7880 = vmul.f32 %v7877, 0.0078125
    %v7881 = vlaneseq
    %v7882 = vshrl.u32 %v7881, 7
    %v7883 = vsub.s32 0, %v7882
    %v7884 = vrot.slane %v7880, %v7883
    %v7885 = vsub.f32 %v7781, %v7884
    %v7886 = vsub.f32 %v7782, %v7884
    %v7887 = vsub.f32 %v7783, %v7884
    %v7888 = vsub.f32 %v7784, %v7884
    %v7889 = vmul.f32 %v7885, %v7885
    %v7890 = vmul.f32 %v7886, %v7886
    %v7891 = vmul.f32 %v7887, %v7887
    %v7892 = vmul.f32 %v7888, %v7888
    %v7893 = vadd.f32 %v7889, %v7890
    %v7894 = vadd.f32 %v7893, %v7891
    %v7895 = vadd.f32 %v7894, %v7892
    %v7896 = vrot.slane %v7895, 4
    %v7897 = vadd.f32 %v7895, %v7896
    %v7898 = vrot.slane %v7897, 2
    %v7899 = vadd.f32 %v7897, %v7898
    %v7900 = vrot.slane %v7899, 1
    %v7901 = vadd.f32 %v7899, %v7900
    %7902 = vmatprep.subr.mxu0 0.0
    %7903 = vmatpush1.msra.mxu0 %v7794
    %7904 = vmatprep.subr.mxu0 0.0
    %7905 = vmatpush1.msra.mxu0 %v7795
    %7906 = vmatprep.subr.mxu0 0.0
    %7907 = vmatpush1.msra.mxu0 %v7796
    %7908 = vmatprep.subr.mxu0 0.0
    %7909 = vmatpush1.msra.mxu0 %v7797
    %7910 = vmatprep.subr.mxu0 0.0
    %7911 = vmatpush1.msra.mxu0 %v7798
    %7912 = vmatprep.subr.mxu0 0.0
    %7913 = vmatpush1.msra.mxu0 %v7799
    %7914 = vmatprep.subr.mxu0 0.0
    %7915 = vmatpush1.msra.mxu0 %v7800
    %7916 = vmatprep.subr.mxu0 0.0
    %7917 = vmatpush1.msra.mxu0 %v7801
    %7918 = vmatprep.subr.mxu0 0.0
    %7919 = vmatpush1.msra.mxu0 %v7802
    %7920 = vmatprep.subr.mxu0 0.0
    %7921 = vmatpush1.msra.mxu0 %v7803
    %7922 = vmatprep.subr.mxu0 0.0
    %7923 = vmatpush1.msra.mxu0 %v7804
    %7924 = vmatprep.subr.mxu0 0.0
    %7925 = vmatpush1.msra.mxu0 %v7805
    %7926 = vmatprep.subr.mxu0 0.0
    %7927 = vmatpush1.msra.mxu0 %v7806
    %7928 = vmatprep.subr.mxu0 0.0
    %7929 = vmatpush1.msra.mxu0 %v7807
    %7930 = vmatprep.subr.mxu0 0.0
    %7931 = vmatpush1.msra.mxu0 %v7808
    %7932 = vmatprep.subr.mxu0 0.0
    %7933 = vmatpush1.msra.mxu0 %v7809
    %7934 = vmatprep.subr.mxu0 0.0
    %7935 = vmatpush1.msra.mxu0 0.0
    %7936 = vmatprep.subr.mxu0 0.0
    %7937 = vmatpush1.msra.mxu0 0.0
    %7938 = vmatprep.subr.mxu0 0.0
    %7939 = vmatpush1.msra.mxu0 0.0
    %7940 = vmatprep.subr.mxu0 0.0
    %7941 = vmatpush1.msra.mxu0 0.0
    %7942 = vmatprep.subr.mxu0 0.0
    %7943 = vmatpush1.msra.mxu0 0.0
    %7944 = vmatprep.subr.mxu0 0.0
    %7945 = vmatpush1.msra.mxu0 0.0
    %7946 = vmatprep.subr.mxu0 0.0
    %7947 = vmatpush1.msra.mxu0 0.0
    %7948 = vmatprep.subr.mxu0 0.0
    %7949 = vmatpush1.msra.mxu0 0.0
    %7950 = vmatprep.subr.mxu0 0.0
    %7951 = vmatpush1.msra.mxu0 0.0
    %7952 = vmatprep.subr.mxu0 0.0
    %7953 = vmatpush1.msra.mxu0 0.0
    %7954 = vmatprep.subr.mxu0 0.0
    %7955 = vmatpush1.msra.mxu0 0.0
    %7956 = vmatprep.subr.mxu0 0.0
    %7957 = vmatpush1.msra.mxu0 0.0
    %7958 = vmatprep.subr.mxu0 0.0
    %7959 = vmatpush1.msra.mxu0 0.0
    %7960 = vmatprep.subr.mxu0 0.0
    %7961 = vmatpush1.msra.mxu0 0.0
    %7962 = vmatprep.subr.mxu0 0.0
    %7963 = vmatpush1.msra.mxu0 0.0
    %7964 = vmatprep.subr.mxu0 0.0
    %7965 = vmatpush1.msra.mxu0 0.0
    %7966 = vmatprep.mubr.f32.mxu0 0.0
    %7967 = vmatmul.mubr.f32.gmra.mrb[0].mxu0 %v7901
    %v7968 = vpop.f32.mrb[0].mxu0
    %v7969 = vadd.f32 0.0, %v7968
    %v7970 = vpop.f32.mrb[0].mxu0
    %7971 = vdwg.mxu0
    %v7972 = vmul.f32 %v7969, 0.0078125
    %v7973 = vld [vmem:[%s17] sm:$0x1]
    %v7974 = vadd.f32 %v7972, 1e-05
    %v7975 = vrsqrt.pop %v7974
    %v7976 = vmul.f32 %v7973, %v7975
    %v7977 = vld [vmem:[%s18] sm:$0x1]
    %v7978 = vmul.f32 %v7880, %v7976
    %v7979 = vsub.f32 %v7977, %v7978
    %v7981 = vlaneseq
    %v7982 = vshrl.u32 %v7981, 7
    %v7983 = vsub.s32 0, %v7982
    %v7984 = vrot.slane %v7976, %v7983
    %v7986 = vmul.f32 %v7781, %v7984
    %v7987 = vmul.f32 %v7782, %v7984
    %v7988 = vmul.f32 %v7783, %v7984
    %v7989 = vmul.f32 %v7784, %v7984
    %v7991 = vlaneseq
    %v7992 = vshrl.u32 %v7991, 7
    %v7993 = vsub.s32 0, %v7992
    %v7994 = vrot.slane %v7979, %v7993
    %v7996 = vadd.f32 %v7986, %v7994
    %v7997 = vadd.f32 %v7987, %v7994
    %v7998 = vadd.f32 %v7988, %v7994
    %v7999 = vadd.f32 %v7989, %v7994
    %v8000 = vmax.f32 %v7996, 0.0
    %v8001 = vmax.f32 %v7997, 0.0
    %v8002 = vmax.f32 %v7998, 0.0
    %v8003 = vmax.f32 %v7999, 0.0
    %v8004 = vld [vmem:[%s19] sm:$0xff]
    %v8005 = vld [vmem:[%s19 + $0x8] sm:$0xff]
    %v8006 = vld [vmem:[%s19 + $0x10] sm:$0xff]
    %v8007 = vld [vmem:[%s19 + $0x18] sm:$0xff]
    %v8008 = vld [vmem:[%s20] sm:$0xff]
    %v8009 = vld [vmem:[%s20 + $0x8] sm:$0xff]
    %v8010 = vld [vmem:[%s20 + $0x10] sm:$0xff]
    %v8011 = vld [vmem:[%s20 + $0x18] sm:$0xff]
    %v8012 = vld [vmem:[%s20 + $0x20] sm:$0xff]
    %v8013 = vld [vmem:[%s20 + $0x28] sm:$0xff]
    %v8014 = vld [vmem:[%s20 + $0x30] sm:$0xff]
    %v8015 = vld [vmem:[%s20 + $0x38] sm:$0xff]
    %v8016 = vld [vmem:[%s20 + $0x40] sm:$0xff]
    %v8017 = vld [vmem:[%s20 + $0x48] sm:$0xff]
    %v8018 = vld [vmem:[%s20 + $0x50] sm:$0xff]
    %v8019 = vld [vmem:[%s20 + $0x58] sm:$0xff]
    %v8020 = vld [vmem:[%s20 + $0x60] sm:$0xff]
    %v8021 = vld [vmem:[%s20 + $0x68] sm:$0xff]
    %v8022 = vld [vmem:[%s20 + $0x70] sm:$0xff]
    %v8023 = vld [vmem:[%s20 + $0x78] sm:$0xff]
    %8024 = vmatprep.subr.mxu0 0.0
    %8025 = vmatpush1.msra.mxu0 %v8008
    %8026 = vmatprep.subr.mxu0 0.0
    %8027 = vmatpush1.msra.mxu0 %v8009
    %8028 = vmatprep.subr.mxu0 0.0
    %8029 = vmatpush1.msra.mxu0 %v8010
    %8030 = vmatprep.subr.mxu0 0.0
    %8031 = vmatpush1.msra.mxu0 %v8011
    %8032 = vmatprep.subr.mxu0 0.0
    %8033 = vmatpush1.msra.mxu0 %v8012
    %8034 = vmatprep.subr.mxu0 0.0
    %8035 = vmatpush1.msra.mxu0 %v8013
    %8036 = vmatprep.subr.mxu0 0.0
    %8037 = vmatpush1.msra.mxu0 %v8014
    %8038 = vmatprep.subr.mxu0 0.0
    %8039 = vmatpush1.msra.mxu0 %v8015
    %8040 = vmatprep.subr.mxu0 0.0
    %8041 = vmatpush1.msra.mxu0 %v8016
    %8042 = vmatprep.subr.mxu0 0.0
    %8043 = vmatpush1.msra.mxu0 %v8017
    %8044 = vmatprep.subr.mxu0 0.0
    %8045 = vmatpush1.msra.mxu0 %v8018
    %8046 = vmatprep.subr.mxu0 0.0
    %8047 = vmatpush1.msra.mxu0 %v8019
    %8048 = vmatprep.subr.mxu0 0.0
    %8049 = vmatpush1.msra.mxu0 %v8020
    %8050 = vmatprep.subr.mxu0 0.0
    %8051 = vmatpush1.msra.mxu0 %v8021
    %8052 = vmatprep.subr.mxu0 0.0
    %8053 = vmatpush1.msra.mxu0 %v8022
    %8054 = vmatprep.subr.mxu0 0.0
    %8055 = vmatpush1.msra.mxu0 %v8023
    %8056 = vmatprep.subr.mxu0 0.0
    %8057 = vmatpush1.msra.mxu0 0.0
    %8058 = vmatprep.subr.mxu0 0.0
    %8059 = vmatpush1.msra.mxu0 0.0
    %8060 = vmatprep.subr.mxu0 0.0
    %8061 = vmatpush1.msra.mxu0 0.0
    %8062 = vmatprep.subr.mxu0 0.0
    %8063 = vmatpush1.msra.mxu0 0.0
    %8064 = vmatprep.subr.mxu0 0.0
    %8065 = vmatpush1.msra.mxu0 0.0
    %8066 = vmatprep.subr.mxu0 0.0
    %8067 = vmatpush1.msra.mxu0 0.0
    %8068 = vmatprep.subr.mxu0 0.0
    %8069 = vmatpush1.msra.mxu0 0.0
    %8070 = vmatprep.subr.mxu0 0.0
    %8071 = vmatpush1.msra.mxu0 0.0
    %8072 = vmatprep.subr.mxu0 0.0
    %8073 = vmatpush1.msra.mxu0 0.0
    %8074 = vmatprep.subr.mxu0 0.0
    %8075 = vmatpush1.msra.mxu0 0.0
    %8076 = vmatprep.subr.mxu0 0.0
    %8077 = vmatpush1.msra.mxu0 0.0
    %8078 = vmatprep.subr.mxu0 0.0
    %8079 = vmatpush1.msra.mxu0 0.0
    %8080 = vmatprep.subr.mxu0 0.0
    %8081 = vmatpush1.msra.mxu0 0.0
    %8082 = vmatprep.subr.mxu0 0.0
    %8083 = vmatpush1.msra.mxu0 0.0
    %8084 = vmatprep.subr.mxu0 0.0
    %8085 = vmatpush1.msra.mxu0 0.0
    %8086 = vmatprep.subr.mxu0 0.0
    %8087 = vmatpush1.msra.mxu0 0.0
    %8088 = vmatprep.mubr.f32.mxu0 0.0
    %8089 = vmatmul.mubr.f32.gmra.mrb[0].mxu0 %v8000
    %v8090 = vpop.f32.mrb[0].mxu0
    %v8091 = vadd.f32 0.0, %v8090
    %v8092 = vpop.f32.mrb[0].mxu0
    %8093 = vmatprep.mubr.f32.mxu0 0.0
    %8094 = vmatmul.mubr.f32.gmra.mrb[0].mxu0 %v8001
    %v8095 = vpop.f32.mrb[0].mxu0
    %v8096 = vadd.f32 0.0, %v8095
    %v8097 = vpop.f32.mrb[0].mxu0
    %8098 = vmatprep.mubr.f32.mxu0 0.0
    %8099 = vmatmul.mubr.f32.gmra.mrb[0].mxu0 %v8002
    %v8100 = vpop.f32.mrb[0].mxu0
    %v8101 = vadd.f32 0.0, %v8100
    %v8102 = vpop.f32.mrb[0].mxu0
    %8103 = vmatprep.mubr.f32.mxu0 0.0
    %8104 = vmatmul.mubr.f32.gmra.mrb[0].mxu0 %v8003
    %v8105 = vpop.f32.mrb[0].mxu0
    %v8106 = vadd.f32 0.0, %v8105
    %v8107 = vpop.f32.mrb[0].mxu0
    %8108 = vdwg.mxu0
    %vm8109 = vcmask 261120
    %v8111 = vsel %vm8109, %v8004, 0
    %v8114 = vsel %vm8109, %v8005, 0
    %v8117 = vsel %vm8109, %v8006, 0
    %v8120 = vsel %vm8109, %v8007, 0
    %8122 = vmatprep.subr.mxu0 0.0
    %8123 = vmatpush1.msra.mxu0 %v8091
    %8124 = vmatprep.subr.mxu0 0.0
    %8125 = vmatpush1.msra.mxu0 %v8096
    %8126 = vmatprep.subr.mxu0 0.0
    %8127 = vmatpush1.msra.mxu0 %v8101
    %8128 = vmatprep.subr.mxu0 0.0
    %8129 = vmatpush1.msra.mxu0 %v8106
    %8130 = vmatprep.subr.mxu0 0.0
    %8131 = vmatpush1.msra.mxu0 0.0
    %8132 = vmatprep.subr.mxu0 0.0
    %8133 = vmatpush1.msra.mxu0 0.0
    %8134 = vmatprep.subr.mxu0 0.0
    %8135 = vmatpush1.msra.mxu0 0.0
    %8136 = vmatprep.subr.mxu0 0.0
    %8137 = vmatpush1.msra.mxu0 0.0
    %8138 = vmatprep.subr.mxu0 0.0
    %8139 = vmatpush1.msra.mxu0 0.0
    %8140 = vmatprep.subr.mxu0 0.0
    %8141 = vmatpush1.msra.mxu0 0.0
    %8142 = vmatprep.subr.mxu0 0.0
    %8143 = vmatpush1.msra.mxu0 0.0
    %8144 = vmatprep.subr.mxu0 0.0
    %8145 = vmatpush1.msra.mxu0 0.0
    %8146 = vmatprep.subr.mxu0 0.0
    %8147 = vmatpush1.msra.mxu0 0.0
    %8148 = vmatprep.subr.mxu0 0.0
    %8149 = vmatpush1.msra.mxu0 0.0
    %8150 = vmatprep.subr.mxu0 0.0
    %8151 = vmatpush1.msra.mxu0 0.0
    %8152 = vmatprep.subr.mxu0 0.0
    %8153 = vmatpush1.msra.mxu0 0.0
    %8154 = vmatprep.subr.mxu0 0.0
    %8155 = vmatpush1.msra.mxu0 0.0
    %8156 = vmatprep.subr.mxu0 0.0
    %8157 = vmatpush1.msra.mxu0 0.0
    %8158 = vmatprep.subr.mxu0 0.0
    %8159 = vmatpush1.msra.mxu0 0.0
    %8160 = vmatprep.subr.mxu0 0.0
    %8161 = vmatpush1.msra.mxu0 0.0
    %8162 = vmatprep.subr.mxu0 0.0
    %8163 = vmatpush1.msra.mxu0 0.0
    %8164 = vmatprep.subr.mxu0 0.0
    %8165 = vmatpush1.msra.mxu0 0.0
    %8166 = vmatprep.subr.mxu0 0.0
    %8167 = vmatpush1.msra.mxu0 0.0
    %8168 = vmatprep.subr.mxu0 0.0
    %8169 = vmatpush1.msra.mxu0 0.0
    %8170 = vmatprep.subr.mxu0 0.0
    %8171 = vmatpush1.msra.mxu0 0.0
    %8172 = vmatprep.subr.mxu0 0.0
    %8173 = vmatpush1.msra.mxu0 0.0
    %8174 = vmatprep.subr.mxu0 0.0
    %8175 = vmatpush1.msra.mxu0 0.0
    %8176 = vmatprep.subr.mxu0 0.0
    %8177 = vmatpush1.msra.mxu0 0.0
    %8178 = vmatprep.subr.mxu0 0.0
    %8179 = vmatpush1.msra.mxu0 0.0
    %8180 = vmatprep.subr.mxu0 0.0
    %8181 = vmatpush1.msra.mxu0 0.0
    %8182 = vmatprep.subr.mxu0 0.0
    %8183 = vmatpush1.msra.mxu0 0.0
    %8184 = vmatprep.subr.mxu0 0.0
    %8185 = vmatpush1.msra.mxu0 0.0
    %8186 = vmatprep.mubr.f32.mxu0 0.0
    %8187 = vmatmul.mubr.f32.gmra.mrb[0].mxu0 %v8111
    %v8188 = vpop.f32.mrb[0].mxu0
    %v8189 = vadd.f32 0.0, %v8188
    %v8190 = vpop.f32.mrb[0].mxu0
    %8191 = vmatprep.mubr.f32.mxu0 0.0
    %8192 = vmatmul.mubr.f32.gmra.mrb[0].mxu0 %v8114
    %v8193 = vpop.f32.mrb[0].mxu0
    %v8194 = vadd.f32 0.0, %v8193
    %v8195 = vpop.f32.mrb[0].mxu0
    %8196 = vmatprep.mubr.f32.mxu0 0.0
    %8197 = vmatmul.mubr.f32.gmra.mrb[0].mxu0 %v8117
    %v8198 = vpop.f32.mrb[0].mxu0
    %v8199 = vadd.f32 0.0, %v8198
    %v8200 = vpop.f32.mrb[0].mxu0
    %8201 = vmatprep.mubr.f32.mxu0 0.0
    %8202 = vmatmul.mubr.f32.gmra.mrb[0].mxu0 %v8120
    %v8203 = vpop.f32.mrb[0].mxu0
    %v8204 = vadd.f32 0.0, %v8203
    %v8205 = vpop.f32.mrb[0].mxu0
    %8206 = vdwg.mxu0
    %v8207 = vld [vmem:[%s21] sm:$0xff]
    %v8208 = vld [vmem:[%s21 + $0x8] sm:$0xff]
    %v8209 = vld [vmem:[%s21 + $0x10] sm:$0xff]
    %v8210 = vld [vmem:[%s21 + $0x18] sm:$0xff]
    %v8211 = vld [vmem:[%s21 + $0x20] sm:$0xff]
    %v8212 = vld [vmem:[%s21 + $0x28] sm:$0xff]
    %v8213 = vld [vmem:[%s21 + $0x30] sm:$0xff]
    %v8214 = vld [vmem:[%s21 + $0x38] sm:$0xff]
    %v8215 = vld [vmem:[%s21 + $0x40] sm:$0xff]
    %v8217 = vsel %vm8109, %v8207, 0
    %v8220 = vsel %vm8109, %v8208, 0
    %v8223 = vsel %vm8109, %v8209, 0
    %v8226 = vsel %vm8109, %v8210, 0
    %v8229 = vsel %vm8109, %v8211, 0
    %v8232 = vsel %vm8109, %v8212, 0
    %v8235 = vsel %vm8109, %v8213, 0
    %v8238 = vsel %vm8109, %v8214, 0
    %v8241 = vsel %vm8109, %v8215, 0
    %8243 = vmatprep.subr.mxu0 0.0
    %8244 = vmatpush1.msra.mxu0 %v8189
    %8245 = vmatprep.subr.mxu0 0.0
    %8246 = vmatpush1.msra.mxu0 %v8194
    %8247 = vmatprep.subr.mxu0 0.0
    %8248 = vmatpush1.msra.mxu0 %v8199
    %8249 = vmatprep.subr.mxu0 0.0
    %8250 = vmatpush1.msra.mxu0 %v8204
    %8251 = vmatprep.subr.mxu0 0.0
    %8252 = vmatpush1.msra.mxu0 0.0
    %8253 = vmatprep.subr.mxu0 0.0
    %8254 = vmatpush1.msra.mxu0 0.0
    %8255 = vmatprep.subr.mxu0 0.0
    %8256 = vmatpush1.msra.mxu0 0.0
    %8257 = vmatprep.subr.mxu0 0.0
    %8258 = vmatpush1.msra.mxu0 0.0
    %8259 = vmatprep.subr.mxu0 0.0
    %8260 = vmatpush1.msra.mxu0 0.0
    %8261 = vmatprep.subr.mxu0 0.0
    %8262 = vmatpush1.msra.mxu0 0.0
    %8263 = vmatprep.subr.mxu0 0.0
    %8264 = vmatpush1.msra.mxu0 0.0
    %8265 = vmatprep.subr.mxu0 0.0
    %8266 = vmatpush1.msra.mxu0 0.0
    %8267 = vmatprep.subr.mxu0 0.0
    %8268 = vmatpush1.msra.mxu0 0.0
    %8269 = vmatprep.subr.mxu0 0.0
    %8270 = vmatpush1.msra.mxu0 0.0
    %8271 = vmatprep.subr.mxu0 0.0
    %8272 = vmatpush1.msra.mxu0 0.0
    %8273 = vmatprep.subr.mxu0 0.0
    %8274 = vmatpush1.msra.mxu0 0.0
    %8275 = vmatprep.subr.mxu0 0.0
    %8276 = vmatpush1.msra.mxu0 0.0
    %8277 = vmatprep.subr.mxu0 0.0
    %8278 = vmatpush1.msra.mxu0 0.0
    %8279 = vmatprep.subr.mxu0 0.0
    %8280 = vmatpush1.msra.mxu0 0.0
    %8281 = vmatprep.subr.mxu0 0.0
    %8282 = vmatpush1.msra.mxu0 0.0
    %8283 = vmatprep.subr.mxu0 0.0
    %8284 = vmatpush1.msra.mxu0 0.0
    %8285 = vmatprep.subr.mxu0 0.0
    %8286 = vmatpush1.msra.mxu0 0.0
    %8287 = vmatprep.subr.mxu0 0.0
    %8288 = vmatpush1.msra.mxu0 0.0
    %8289 = vmatprep.subr.mxu0 0.0
    %8290 = vmatpush1.msra.mxu0 0.0
    %8291 = vmatprep.subr.mxu0 0.0
    %8292 = vmatpush1.msra.mxu0 0.0
    %8293 = vmatprep.subr.mxu0 0.0
    %8294 = vmatpush1.msra.mxu0 0.0
    %8295 = vmatprep.subr.mxu0 0.0
    %8296 = vmatpush1.msra.mxu0 0.0
    %8297 = vmatprep.subr.mxu0 0.0
    %8298 = vmatpush1.msra.mxu0 0.0
    %8299 = vmatprep.subr.mxu0 0.0
    %8300 = vmatpush1.msra.mxu0 0.0
    %8301 = vmatprep.subr.mxu0 0.0
    %8302 = vmatpush1.msra.mxu0 0.0
    %8303 = vmatprep.subr.mxu0 0.0
    %8304 = vmatpush1.msra.mxu0 0.0
    %8305 = vmatprep.subr.mxu0 0.0
    %8306 = vmatpush1.msra.mxu0 0.0
    %8307 = vmatprep.mubr.f32.mxu0 0.0
    %8308 = vmatmul.mubr.f32.gmra.mrb[0].mxu0 %v8217
    %v8309 = vpop.f32.mrb[0].mxu0
    %v8310 = vadd.f32 0.0, %v8309
    %v8311 = vpop.f32.mrb[0].mxu0
    %8312 = vmatprep.mubr.f32.mxu0 0.0
    %8313 = vmatmul.mubr.f32.gmra.mrb[0].mxu0 %v8220
    %v8314 = vpop.f32.mrb[0].mxu0
    %v8315 = vadd.f32 0.0, %v8314
    %v8316 = vpop.f32.mrb[0].mxu0
    %8317 = vmatprep.mubr.f32.mxu0 0.0
    %8318 = vmatmul.mubr.f32.gmra.mrb[0].mxu0 %v8223
    %v8319 = vpop.f32.mrb[0].mxu0
    %v8320 = vadd.f32 0.0, %v8319
    %v8321 = vpop.f32.mrb[0].mxu0
    %8322 = vmatprep.mubr.f32.mxu0 0.0
    %8323 = vmatmul.mubr.f32.gmra.mrb[0].mxu0 %v8226
    %v8324 = vpop.f32.mrb[0].mxu0
    %v8325 = vadd.f32 0.0, %v8324
    %v8326 = vpop.f32.mrb[0].mxu0
    %8327 = vmatprep.mubr.f32.mxu0 0.0
    %8328 = vmatmul.mubr.f32.gmra.mrb[0].mxu0 %v8229
    %v8329 = vpop.f32.mrb[0].mxu0
    %v8330 = vadd.f32 0.0, %v8329
    %v8331 = vpop.f32.mrb[0].mxu0
    %8332 = vmatprep.mubr.f32.mxu0 0.0
    %8333 = vmatmul.mubr.f32.gmra.mrb[0].mxu0 %v8232
    %v8334 = vpop.f32.mrb[0].mxu0
    %v8335 = vadd.f32 0.0, %v8334
    %v8336 = vpop.f32.mrb[0].mxu0
    %8337 = vmatprep.mubr.f32.mxu0 0.0
    %8338 = vmatmul.mubr.f32.gmra.mrb[0].mxu0 %v8235
    %v8339 = vpop.f32.mrb[0].mxu0
    %v8340 = vadd.f32 0.0, %v8339
    %v8341 = vpop.f32.mrb[0].mxu0
    %8342 = vmatprep.mubr.f32.mxu0 0.0
    %8343 = vmatmul.mubr.f32.gmra.mrb[0].mxu0 %v8238
    %v8344 = vpop.f32.mrb[0].mxu0
    %v8345 = vadd.f32 0.0, %v8344
    %v8346 = vpop.f32.mrb[0].mxu0
    %8347 = vmatprep.mubr.f32.mxu0 0.0
    %8348 = vmatmul.mubr.f32.gmra.mrb[0].mxu0 %v8241
    %v8349 = vpop.f32.mrb[0].mxu0
    %v8350 = vadd.f32 0.0, %v8349
    %v8351 = vpop.f32.mrb[0].mxu0
    %8352 = vdwg.mxu0
    %v8353 = vld [vmem:[%s22] sm:$0xff]
    %v8354 = vld [vmem:[%s22 + $0x8] sm:$0xff]
    %v8355 = vld [vmem:[%s22 + $0x10] sm:$0xff]
    %v8356 = vld [vmem:[%s22 + $0x18] sm:$0xff]
    %v8357 = vld [vmem:[%s22 + $0x20] sm:$0xff]
    %v8358 = vld [vmem:[%s22 + $0x28] sm:$0xff]
    %v8359 = vld [vmem:[%s22 + $0x30] sm:$0xff]
    %v8360 = vld [vmem:[%s22 + $0x38] sm:$0xff]
    %v8361 = vld [vmem:[%s22 + $0x40] sm:$0xff]
    %v8362 = vld [vmem:[%s22 + $0x48] sm:$0xff]
    %v8363 = vld [vmem:[%s22 + $0x50] sm:$0xff]
    %v8364 = vld [vmem:[%s22 + $0x58] sm:$0xff]
    %v8365 = vld [vmem:[%s22 + $0x60] sm:$0xff]
    %v8366 = vld [vmem:[%s22 + $0x68] sm:$0xff]
    %v8367 = vld [vmem:[%s22 + $0x70] sm:$0xff]
    %v8368 = vld [vmem:[%s22 + $0x78] sm:$0xff]
    %s8369 = scalar_lea.vmem %s22, 128
    %v8370 = vld [vmem:[%s8369] sm:$0xff]
    %v8371 = vld [vmem:[%s8369 + $0x8] sm:$0xff]
    %v8372 = vld [vmem:[%s8369 + $0x10] sm:$0xff]
    %v8373 = vld [vmem:[%s8369 + $0x18] sm:$0xff]
    %v8374 = vld [vmem:[%s8369 + $0x20] sm:$0xff]
    %v8375 = vld [vmem:[%s8369 + $0x28] sm:$0xff]
    %v8376 = vld [vmem:[%s8369 + $0x30] sm:$0xff]
    %v8377 = vld [vmem:[%s8369 + $0x38] sm:$0xff]
    %v8378 = vld [vmem:[%s8369 + $0x40] sm:$0xff]
    %v8379 = vld [vmem:[%s8369 + $0x48] sm:$0xff]
    %v8380 = vld [vmem:[%s8369 + $0x50] sm:$0xff]
    %v8381 = vld [vmem:[%s8369 + $0x58] sm:$0xff]
    %v8382 = vld [vmem:[%s8369 + $0x60] sm:$0xff]
    %v8383 = vld [vmem:[%s8369 + $0x68] sm:$0xff]
    %v8384 = vld [vmem:[%s8369 + $0x70] sm:$0xff]
    %v8385 = vld [vmem:[%s8369 + $0x78] sm:$0xff]
    %8386 = vmatprep.subr.mxu0 0.0
    %8387 = vmatpush1.msra.mxu0 %v8370
    %8388 = vmatprep.subr.mxu0 0.0
    %8389 = vmatpush1.msra.mxu0 %v8371
    %8390 = vmatprep.subr.mxu0 0.0
    %8391 = vmatpush1.msra.mxu0 %v8372
    %8392 = vmatprep.subr.mxu0 0.0
    %8393 = vmatpush1.msra.mxu0 %v8373
    %8394 = vmatprep.subr.mxu0 0.0
    %8395 = vmatpush1.msra.mxu0 %v8374
    %8396 = vmatprep.subr.mxu0 0.0
    %8397 = vmatpush1.msra.mxu0 %v8375
    %8398 = vmatprep.subr.mxu0 0.0
    %8399 = vmatpush1.msra.mxu0 %v8376
    %8400 = vmatprep.subr.mxu0 0.0
    %8401 = vmatpush1.msra.mxu0 %v8377
    %8402 = vmatprep.subr.mxu0 0.0
    %8403 = vmatpush1.msra.mxu0 %v8378
    %8404 = vmatprep.subr.mxu0 0.0
    %8405 = vmatpush1.msra.mxu0 %v8379
    %8406 = vmatprep.subr.mxu0 0.0
    %8407 = vmatpush1.msra.mxu0 %v8380
    %8408 = vmatprep.subr.mxu0 0.0
    %8409 = vmatpush1.msra.mxu0 %v8381
    %8410 = vmatprep.subr.mxu0 0.0
    %8411 = vmatpush1.msra.mxu0 %v8382
    %8412 = vmatprep.subr.mxu0 0.0
    %8413 = vmatpush1.msra.mxu0 %v8383
    %8414 = vmatprep.subr.mxu0 0.0
    %8415 = vmatpush1.msra.mxu0 %v8384
    %8416 = vmatprep.subr.mxu0 0.0
    %8417 = vmatpush1.msra.mxu0 %v8385
    %8418 = vmatprep.subr.mxu0 0.0
    %8419 = vmatpush1.msra.mxu0 0.0
    %8420 = vmatprep.subr.mxu0 0.0
    %8421 = vmatpush1.msra.mxu0 0.0
    %8422 = vmatprep.subr.mxu0 0.0
    %8423 = vmatpush1.msra.mxu0 0.0
    %8424 = vmatprep.subr.mxu0 0.0
    %8425 = vmatpush1.msra.mxu0 0.0
    %8426 = vmatprep.subr.mxu0 0.0
    %8427 = vmatpush1.msra.mxu0 0.0
    %8428 = vmatprep.subr.mxu0 0.0
    %8429 = vmatpush1.msra.mxu0 0.0
    %8430 = vmatprep.subr.mxu0 0.0
    %8431 = vmatpush1.msra.mxu0 0.0
    %8432 = vmatprep.subr.mxu0 0.0
    %8433 = vmatpush1.msra.mxu0 0.0
    %8434 = vmatprep.subr.mxu0 0.0
    %8435 = vmatpush1.msra.mxu0 0.0
    %8436 = vmatprep.subr.mxu0 0.0
    %8437 = vmatpush1.msra.mxu0 0.0
    %8438 = vmatprep.subr.mxu0 0.0
    %8439 = vmatpush1.msra.mxu0 0.0
    %8440 = vmatprep.subr.mxu0 0.0
    %8441 = vmatpush1.msra.mxu0 0.0
    %8442 = vmatprep.subr.mxu0 0.0
    %8443 = vmatpush1.msra.mxu0 0.0
    %8444 = vmatprep.subr.mxu0 0.0
    %8445 = vmatpush1.msra.mxu0 0.0
    %8446 = vmatprep.subr.mxu0 0.0
    %8447 = vmatpush1.msra.mxu0 0.0
    %8448 = vmatprep.subr.mxu0 0.0
    %8449 = vmatpush1.msra.mxu0 0.0
    %8450 = vmatprep.mubr.f32.mxu0 0.0
    %8451 = vmatmul.mubr.f32.gmra.mrb[0].mxu0 %v8315
    %v8452 = vpop.f32.mrb[0].mxu0
    %v8453 = vadd.f32 0.0, %v8452
    %v8454 = vpop.f32.mrb[0].mxu0
    %8455 = vdwg.mxu0
    %8456 = vmatprep.subr.mxu0 0.0
    %8457 = vmatpush1.msra.mxu0 %v8353
    %8458 = vmatprep.subr.mxu0 0.0
    %8459 = vmatpush1.msra.mxu0 %v8354
    %8460 = vmatprep.subr.mxu0 0.0
    %8461 = vmatpush1.msra.mxu0 %v8355
    %8462 = vmatprep.subr.mxu0 0.0
    %8463 = vmatpush1.msra.mxu0 %v8356
    %8464 = vmatprep.subr.mxu0 0.0
    %8465 = vmatpush1.msra.mxu0 %v8357
    %8466 = vmatprep.subr.mxu0 0.0
    %8467 = vmatpush1.msra.mxu0 %v8358
    %8468 = vmatprep.subr.mxu0 0.0
    %8469 = vmatpush1.msra.mxu0 %v8359
    %8470 = vmatprep.subr.mxu0 0.0
    %8471 = vmatpush1.msra.mxu0 %v8360
    %8472 = vmatprep.subr.mxu0 0.0
    %8473 = vmatpush1.msra.mxu0 %v8361
    %8474 = vmatprep.subr.mxu0 0.0
    %8475 = vmatpush1.msra.mxu0 %v8362
    %8476 = vmatprep.subr.mxu0 0.0
    %8477 = vmatpush1.msra.mxu0 %v8363
    %8478 = vmatprep.subr.mxu0 0.0
    %8479 = vmatpush1.msra.mxu0 %v8364
    %8480 = vmatprep.subr.mxu0 0.0
    %8481 = vmatpush1.msra.mxu0 %v8365
    %8482 = vmatprep.subr.mxu0 0.0
    %8483 = vmatpush1.msra.mxu0 %v8366
    %8484 = vmatprep.subr.mxu0 0.0
    %8485 = vmatpush1.msra.mxu0 %v8367
    %8486 = vmatprep.subr.mxu0 0.0
    %8487 = vmatpush1.msra.mxu0 %v8368
    %8488 = vmatprep.subr.mxu0 0.0
    %8489 = vmatpush1.msra.mxu0 0.0
    %8490 = vmatprep.subr.mxu0 0.0
    %8491 = vmatpush1.msra.mxu0 0.0
    %8492 = vmatprep.subr.mxu0 0.0
    %8493 = vmatpush1.msra.mxu0 0.0
    %8494 = vmatprep.subr.mxu0 0.0
    %8495 = vmatpush1.msra.mxu0 0.0
    %8496 = vmatprep.subr.mxu0 0.0
    %8497 = vmatpush1.msra.mxu0 0.0
    %8498 = vmatprep.subr.mxu0 0.0
    %8499 = vmatpush1.msra.mxu0 0.0
    %8500 = vmatprep.subr.mxu0 0.0
    %8501 = vmatpush1.msra.mxu0 0.0
    %8502 = vmatprep.subr.mxu0 0.0
    %8503 = vmatpush1.msra.mxu0 0.0
    %8504 = vmatprep.subr.mxu0 0.0
    %8505 = vmatpush1.msra.mxu0 0.0
    %8506 = vmatprep.subr.mxu0 0.0
    %8507 = vmatpush1.msra.mxu0 0.0
    %8508 = vmatprep.subr.mxu0 0.0
    %8509 = vmatpush1.msra.mxu0 0.0
    %8510 = vmatprep.subr.mxu0 0.0
    %8511 = vmatpush1.msra.mxu0 0.0
    %8512 = vmatprep.subr.mxu0 0.0
    %8513 = vmatpush1.msra.mxu0 0.0
    %8514 = vmatprep.subr.mxu0 0.0
    %8515 = vmatpush1.msra.mxu0 0.0
    %8516 = vmatprep.subr.mxu0 0.0
    %8517 = vmatpush1.msra.mxu0 0.0
    %8518 = vmatprep.subr.mxu0 0.0
    %8519 = vmatpush1.msra.mxu0 0.0
    %8520 = vmatprep.mubr.f32.mxu0 0.0
    %8521 = vmatmul.mubr.f32.gmra.mrb[0].mxu0 %v8310
    %v8522 = vpop.f32.mrb[0].mxu0
    %v8523 = vadd.f32 %v8453, %v8522
    %v8524 = vpop.f32.mrb[0].mxu0
    %8525 = vdwg.mxu0
    %s8526 = scalar_lea.vmem %s22, 256
    %v8527 = vld [vmem:[%s8526] sm:$0xff]
    %v8528 = vld [vmem:[%s8526 + $0x8] sm:$0xff]
    %v8529 = vld [vmem:[%s8526 + $0x10] sm:$0xff]
    %v8530 = vld [vmem:[%s8526 + $0x18] sm:$0xff]
    %v8531 = vld [vmem:[%s8526 + $0x20] sm:$0xff]
    %v8532 = vld [vmem:[%s8526 + $0x28] sm:$0xff]
    %v8533 = vld [vmem:[%s8526 + $0x30] sm:$0xff]
    %v8534 = vld [vmem:[%s8526 + $0x38] sm:$0xff]
    %v8535 = vld [vmem:[%s8526 + $0x40] sm:$0xff]
    %v8536 = vld [vmem:[%s8526 + $0x48] sm:$0xff]
    %v8537 = vld [vmem:[%s8526 + $0x50] sm:$0xff]
    %v8538 = vld [vmem:[%s8526 + $0x58] sm:$0xff]
    %v8539 = vld [vmem:[%s8526 + $0x60] sm:$0xff]
    %v8540 = vld [vmem:[%s8526 + $0x68] sm:$0xff]
    %v8541 = vld [vmem:[%s8526 + $0x70] sm:$0xff]
    %v8542 = vld [vmem:[%s8526 + $0x78] sm:$0xff]
    %8543 = vmatprep.subr.mxu0 0.0
    %8544 = vmatpush1.msra.mxu0 %v8527
    %8545 = vmatprep.subr.mxu0 0.0
    %8546 = vmatpush1.msra.mxu0 %v8528
    %8547 = vmatprep.subr.mxu0 0.0
    %8548 = vmatpush1.msra.mxu0 %v8529
    %8549 = vmatprep.subr.mxu0 0.0
    %8550 = vmatpush1.msra.mxu0 %v8530
    %8551 = vmatprep.subr.mxu0 0.0
    %8552 = vmatpush1.msra.mxu0 %v8531
    %8553 = vmatprep.subr.mxu0 0.0
    %8554 = vmatpush1.msra.mxu0 %v8532
    %8555 = vmatprep.subr.mxu0 0.0
    %8556 = vmatpush1.msra.mxu0 %v8533
    %8557 = vmatprep.subr.mxu0 0.0
    %8558 = vmatpush1.msra.mxu0 %v8534
    %8559 = vmatprep.subr.mxu0 0.0
    %8560 = vmatpush1.msra.mxu0 %v8535
    %8561 = vmatprep.subr.mxu0 0.0
    %8562 = vmatpush1.msra.mxu0 %v8536
    %8563 = vmatprep.subr.mxu0 0.0
    %8564 = vmatpush1.msra.mxu0 %v8537
    %8565 = vmatprep.subr.mxu0 0.0
    %8566 = vmatpush1.msra.mxu0 %v8538
    %8567 = vmatprep.subr.mxu0 0.0
    %8568 = vmatpush1.msra.mxu0 %v8539
    %8569 = vmatprep.subr.mxu0 0.0
    %8570 = vmatpush1.msra.mxu0 %v8540
    %8571 = vmatprep.subr.mxu0 0.0
    %8572 = vmatpush1.msra.mxu0 %v8541
    %8573 = vmatprep.subr.mxu0 0.0
    %8574 = vmatpush1.msra.mxu0 %v8542
    %8575 = vmatprep.subr.mxu0 0.0
    %8576 = vmatpush1.msra.mxu0 0.0
    %8577 = vmatprep.subr.mxu0 0.0
    %8578 = vmatpush1.msra.mxu0 0.0
    %8579 = vmatprep.subr.mxu0 0.0
    %8580 = vmatpush1.msra.mxu0 0.0
    %8581 = vmatprep.subr.mxu0 0.0
    %8582 = vmatpush1.msra.mxu0 0.0
    %8583 = vmatprep.subr.mxu0 0.0
    %8584 = vmatpush1.msra.mxu0 0.0
    %8585 = vmatprep.subr.mxu0 0.0
    %8586 = vmatpush1.msra.mxu0 0.0
    %8587 = vmatprep.subr.mxu0 0.0
    %8588 = vmatpush1.msra.mxu0 0.0
    %8589 = vmatprep.subr.mxu0 0.0
    %8590 = vmatpush1.msra.mxu0 0.0
    %8591 = vmatprep.subr.mxu0 0.0
    %8592 = vmatpush1.msra.mxu0 0.0
    %8593 = vmatprep.subr.mxu0 0.0
    %8594 = vmatpush1.msra.mxu0 0.0
    %8595 = vmatprep.subr.mxu0 0.0
    %8596 = vmatpush1.msra.mxu0 0.0
    %8597 = vmatprep.subr.mxu0 0.0
    %8598 = vmatpush1.msra.mxu0 0.0
    %8599 = vmatprep.subr.mxu0 0.0
    %8600 = vmatpush1.msra.mxu0 0.0
    %8601 = vmatprep.subr.mxu0 0.0
    %8602 = vmatpush1.msra.mxu0 0.0
    %8603 = vmatprep.subr.mxu0 0.0
    %8604 = vmatpush1.msra.mxu0 0.0
    %8605 = vmatprep.subr.mxu0 0.0
    %8606 = vmatpush1.msra.mxu0 0.0
    %8607 = vmatprep.mubr.f32.mxu0 0.0
    %8608 = vmatmul.mubr.f32.gmra.mrb[0].mxu0 %v8320
    %v8609 = vpop.f32.mrb[0].mxu0
    %v8610 = vadd.f32 0.0, %v8609
    %v8611 = vpop.f32.mrb[0].mxu0
    %8612 = vdwg.mxu0
    %v8613 = vadd.f32 %v8523, %v8610
    %s8614 = scalar_lea.vmem %s22, 384
    %v8615 = vld [vmem:[%s8614] sm:$0xff]
    %v8616 = vld [vmem:[%s8614 + $0x8] sm:$0xff]
    %v8617 = vld [vmem:[%s8614 + $0x10] sm:$0xff]
    %v8618 = vld [vmem:[%s8614 + $0x18] sm:$0xff]
    %v8619 = vld [vmem:[%s8614 + $0x20] sm:$0xff]
    %v8620 = vld [vmem:[%s8614 + $0x28] sm:$0xff]
    %v8621 = vld [vmem:[%s8614 + $0x30] sm:$0xff]
    %v8622 = vld [vmem:[%s8614 + $0x38] sm:$0xff]
    %v8623 = vld [vmem:[%s8614 + $0x40] sm:$0xff]
    %v8624 = vld [vmem:[%s8614 + $0x48] sm:$0xff]
    %v8625 = vld [vmem:[%s8614 + $0x50] sm:$0xff]
    %v8626 = vld [vmem:[%s8614 + $0x58] sm:$0xff]
    %v8627 = vld [vmem:[%s8614 + $0x60] sm:$0xff]
    %v8628 = vld [vmem:[%s8614 + $0x68] sm:$0xff]
    %v8629 = vld [vmem:[%s8614 + $0x70] sm:$0xff]
    %v8630 = vld [vmem:[%s8614 + $0x78] sm:$0xff]
    %8631 = vmatprep.subr.mxu0 0.0
    %8632 = vmatpush1.msra.mxu0 %v8615
    %8633 = vmatprep.subr.mxu0 0.0
    %8634 = vmatpush1.msra.mxu0 %v8616
    %8635 = vmatprep.subr.mxu0 0.0
    %8636 = vmatpush1.msra.mxu0 %v8617
    %8637 = vmatprep.subr.mxu0 0.0
    %8638 = vmatpush1.msra.mxu0 %v8618
    %8639 = vmatprep.subr.mxu0 0.0
    %8640 = vmatpush1.msra.mxu0 %v8619
    %8641 = vmatprep.subr.mxu0 0.0
    %8642 = vmatpush1.msra.mxu0 %v8620
    %8643 = vmatprep.subr.mxu0 0.0
    %8644 = vmatpush1.msra.mxu0 %v8621
    %8645 = vmatprep.subr.mxu0 0.0
    %8646 = vmatpush1.msra.mxu0 %v8622
    %8647 = vmatprep.subr.mxu0 0.0
    %8648 = vmatpush1.msra.mxu0 %v8623
    %8649 = vmatprep.subr.mxu0 0.0
    %8650 = vmatpush1.msra.mxu0 %v8624
    %8651 = vmatprep.subr.mxu0 0.0
    %8652 = vmatpush1.msra.mxu0 %v8625
    %8653 = vmatprep.subr.mxu0 0.0
    %8654 = vmatpush1.msra.mxu0 %v8626
    %8655 = vmatprep.subr.mxu0 0.0
    %8656 = vmatpush1.msra.mxu0 %v8627
    %8657 = vmatprep.subr.mxu0 0.0
    %8658 = vmatpush1.msra.mxu0 %v8628
    %8659 = vmatprep.subr.mxu0 0.0
    %8660 = vmatpush1.msra.mxu0 %v8629
    %8661 = vmatprep.subr.mxu0 0.0
    %8662 = vmatpush1.msra.mxu0 %v8630
    %8663 = vmatprep.subr.mxu0 0.0
    %8664 = vmatpush1.msra.mxu0 0.0
    %8665 = vmatprep.subr.mxu0 0.0
    %8666 = vmatpush1.msra.mxu0 0.0
    %8667 = vmatprep.subr.mxu0 0.0
    %8668 = vmatpush1.msra.mxu0 0.0
    %8669 = vmatprep.subr.mxu0 0.0
    %8670 = vmatpush1.msra.mxu0 0.0
    %8671 = vmatprep.subr.mxu0 0.0
    %8672 = vmatpush1.msra.mxu0 0.0
    %8673 = vmatprep.subr.mxu0 0.0
    %8674 = vmatpush1.msra.mxu0 0.0
    %8675 = vmatprep.subr.mxu0 0.0
    %8676 = vmatpush1.msra.mxu0 0.0
    %8677 = vmatprep.subr.mxu0 0.0
    %8678 = vmatpush1.msra.mxu0 0.0
    %8679 = vmatprep.subr.mxu0 0.0
    %8680 = vmatpush1.msra.mxu0 0.0
    %8681 = vmatprep.subr.mxu0 0.0
    %8682 = vmatpush1.msra.mxu0 0.0
    %8683 = vmatprep.subr.mxu0 0.0
    %8684 = vmatpush1.msra.mxu0 0.0
    %8685 = vmatprep.subr.mxu0 0.0
    %8686 = vmatpush1.msra.mxu0 0.0
    %8687 = vmatprep.subr.mxu0 0.0
    %8688 = vmatpush1.msra.mxu0 0.0
    %8689 = vmatprep.subr.mxu0 0.0
    %8690 = vmatpush1.msra.mxu0 0.0
    %8691 = vmatprep.subr.mxu0 0.0
    %8692 = vmatpush1.msra.mxu0 0.0
    %8693 = vmatprep.subr.mxu0 0.0
    %8694 = vmatpush1.msra.mxu0 0.0
    %8695 = vmatprep.mubr.f32.mxu0 0.0
    %8696 = vmatmul.mubr.f32.gmra.mrb[0].mxu0 %v8325
    %v8697 = vpop.f32.mrb[0].mxu0
    %v8698 = vadd.f32 0.0, %v8697
    %v8699 = vpop.f32.mrb[0].mxu0
    %8700 = vdwg.mxu0
    %v8701 = vadd.f32 %v8613, %v8698
    %s8702 = scalar_lea.vmem %s22, 512
    %v8703 = vld [vmem:[%s8702] sm:$0xff]
    %v8704 = vld [vmem:[%s8702 + $0x8] sm:$0xff]
    %v8705 = vld [vmem:[%s8702 + $0x10] sm:$0xff]
    %v8706 = vld [vmem:[%s8702 + $0x18] sm:$0xff]
    %v8707 = vld [vmem:[%s8702 + $0x20] sm:$0xff]
    %v8708 = vld [vmem:[%s8702 + $0x28] sm:$0xff]
    %v8709 = vld [vmem:[%s8702 + $0x30] sm:$0xff]
    %v8710 = vld [vmem:[%s8702 + $0x38] sm:$0xff]
    %v8711 = vld [vmem:[%s8702 + $0x40] sm:$0xff]
    %v8712 = vld [vmem:[%s8702 + $0x48] sm:$0xff]
    %v8713 = vld [vmem:[%s8702 + $0x50] sm:$0xff]
    %v8714 = vld [vmem:[%s8702 + $0x58] sm:$0xff]
    %v8715 = vld [vmem:[%s8702 + $0x60] sm:$0xff]
    %v8716 = vld [vmem:[%s8702 + $0x68] sm:$0xff]
    %v8717 = vld [vmem:[%s8702 + $0x70] sm:$0xff]
    %v8718 = vld [vmem:[%s8702 + $0x78] sm:$0xff]
    %8719 = vmatprep.subr.mxu0 0.0
    %8720 = vmatpush1.msra.mxu0 %v8703
    %8721 = vmatprep.subr.mxu0 0.0
    %8722 = vmatpush1.msra.mxu0 %v8704
    %8723 = vmatprep.subr.mxu0 0.0
    %8724 = vmatpush1.msra.mxu0 %v8705
    %8725 = vmatprep.subr.mxu0 0.0
    %8726 = vmatpush1.msra.mxu0 %v8706
    %8727 = vmatprep.subr.mxu0 0.0
    %8728 = vmatpush1.msra.mxu0 %v8707
    %8729 = vmatprep.subr.mxu0 0.0
    %8730 = vmatpush1.msra.mxu0 %v8708
    %8731 = vmatprep.subr.mxu0 0.0
    %8732 = vmatpush1.msra.mxu0 %v8709
    %8733 = vmatprep.subr.mxu0 0.0
    %8734 = vmatpush1.msra.mxu0 %v8710
    %8735 = vmatprep.subr.mxu0 0.0
    %8736 = vmatpush1.msra.mxu0 %v8711
    %8737 = vmatprep.subr.mxu0 0.0
    %8738 = vmatpush1.msra.mxu0 %v8712
    %8739 = vmatprep.subr.mxu0 0.0
    %8740 = vmatpush1.msra.mxu0 %v8713
    %8741 = vmatprep.subr.mxu0 0.0
    %8742 = vmatpush1.msra.mxu0 %v8714
    %8743 = vmatprep.subr.mxu0 0.0
    %8744 = vmatpush1.msra.mxu0 %v8715
    %8745 = vmatprep.subr.mxu0 0.0
    %8746 = vmatpush1.msra.mxu0 %v8716
    %8747 = vmatprep.subr.mxu0 0.0
    %8748 = vmatpush1.msra.mxu0 %v8717
    %8749 = vmatprep.subr.mxu0 0.0
    %8750 = vmatpush1.msra.mxu0 %v8718
    %8751 = vmatprep.subr.mxu0 0.0
    %8752 = vmatpush1.msra.mxu0 0.0
    %8753 = vmatprep.subr.mxu0 0.0
    %8754 = vmatpush1.msra.mxu0 0.0
    %8755 = vmatprep.subr.mxu0 0.0
    %8756 = vmatpush1.msra.mxu0 0.0
    %8757 = vmatprep.subr.mxu0 0.0
    %8758 = vmatpush1.msra.mxu0 0.0
    %8759 = vmatprep.subr.mxu0 0.0
    %8760 = vmatpush1.msra.mxu0 0.0
    %8761 = vmatprep.subr.mxu0 0.0
    %8762 = vmatpush1.msra.mxu0 0.0
    %8763 = vmatprep.subr.mxu0 0.0
    %8764 = vmatpush1.msra.mxu0 0.0
    %8765 = vmatprep.subr.mxu0 0.0
    %8766 = vmatpush1.msra.mxu0 0.0
    %8767 = vmatprep.subr.mxu0 0.0
    %8768 = vmatpush1.msra.mxu0 0.0
    %8769 = vmatprep.subr.mxu0 0.0
    %8770 = vmatpush1.msra.mxu0 0.0
    %8771 = vmatprep.subr.mxu0 0.0
    %8772 = vmatpush1.msra.mxu0 0.0
    %8773 = vmatprep.subr.mxu0 0.0
    %8774 = vmatpush1.msra.mxu0 0.0
    %8775 = vmatprep.subr.mxu0 0.0
    %8776 = vmatpush1.msra.mxu0 0.0
    %8777 = vmatprep.subr.mxu0 0.0
    %8778 = vmatpush1.msra.mxu0 0.0
    %8779 = vmatprep.subr.mxu0 0.0
    %8780 = vmatpush1.msra.mxu0 0.0
    %8781 = vmatprep.subr.mxu0 0.0
    %8782 = vmatpush1.msra.mxu0 0.0
    %8783 = vmatprep.mubr.f32.mxu0 0.0
    %8784 = vmatmul.mubr.f32.gmra.mrb[0].mxu0 %v8330
    %v8785 = vpop.f32.mrb[0].mxu0
    %v8786 = vadd.f32 0.0, %v8785
    %v8787 = vpop.f32.mrb[0].mxu0
    %8788 = vdwg.mxu0
    %v8789 = vadd.f32 %v8701, %v8786
    %s8790 = scalar_lea.vmem %s22, 640
    %v8791 = vld [vmem:[%s8790] sm:$0xff]
    %v8792 = vld [vmem:[%s8790 + $0x8] sm:$0xff]
    %v8793 = vld [vmem:[%s8790 + $0x10] sm:$0xff]
    %v8794 = vld [vmem:[%s8790 + $0x18] sm:$0xff]
    %v8795 = vld [vmem:[%s8790 + $0x20] sm:$0xff]
    %v8796 = vld [vmem:[%s8790 + $0x28] sm:$0xff]
    %v8797 = vld [vmem:[%s8790 + $0x30] sm:$0xff]
    %v8798 = vld [vmem:[%s8790 + $0x38] sm:$0xff]
    %v8799 = vld [vmem:[%s8790 + $0x40] sm:$0xff]
    %v8800 = vld [vmem:[%s8790 + $0x48] sm:$0xff]
    %v8801 = vld [vmem:[%s8790 + $0x50] sm:$0xff]
    %v8802 = vld [vmem:[%s8790 + $0x58] sm:$0xff]
    %v8803 = vld [vmem:[%s8790 + $0x60] sm:$0xff]
    %v8804 = vld [vmem:[%s8790 + $0x68] sm:$0xff]
    %v8805 = vld [vmem:[%s8790 + $0x70] sm:$0xff]
    %v8806 = vld [vmem:[%s8790 + $0x78] sm:$0xff]
    %8807 = vmatprep.subr.mxu0 0.0
    %8808 = vmatpush1.msra.mxu0 %v8791
    %8809 = vmatprep.subr.mxu0 0.0
    %8810 = vmatpush1.msra.mxu0 %v8792
    %8811 = vmatprep.subr.mxu0 0.0
    %8812 = vmatpush1.msra.mxu0 %v8793
    %8813 = vmatprep.subr.mxu0 0.0
    %8814 = vmatpush1.msra.mxu0 %v8794
    %8815 = vmatprep.subr.mxu0 0.0
    %8816 = vmatpush1.msra.mxu0 %v8795
    %8817 = vmatprep.subr.mxu0 0.0
    %8818 = vmatpush1.msra.mxu0 %v8796
    %8819 = vmatprep.subr.mxu0 0.0
    %8820 = vmatpush1.msra.mxu0 %v8797
    %8821 = vmatprep.subr.mxu0 0.0
    %8822 = vmatpush1.msra.mxu0 %v8798
    %8823 = vmatprep.subr.mxu0 0.0
    %8824 = vmatpush1.msra.mxu0 %v8799
    %8825 = vmatprep.subr.mxu0 0.0
    %8826 = vmatpush1.msra.mxu0 %v8800
    %8827 = vmatprep.subr.mxu0 0.0
    %8828 = vmatpush1.msra.mxu0 %v8801
    %8829 = vmatprep.subr.mxu0 0.0
    %8830 = vmatpush1.msra.mxu0 %v8802
    %8831 = vmatprep.subr.mxu0 0.0
    %8832 = vmatpush1.msra.mxu0 %v8803
    %8833 = vmatprep.subr.mxu0 0.0
    %8834 = vmatpush1.msra.mxu0 %v8804
    %8835 = vmatprep.subr.mxu0 0.0
    %8836 = vmatpush1.msra.mxu0 %v8805
    %8837 = vmatprep.subr.mxu0 0.0
    %8838 = vmatpush1.msra.mxu0 %v8806
    %8839 = vmatprep.subr.mxu0 0.0
    %8840 = vmatpush1.msra.mxu0 0.0
    %8841 = vmatprep.subr.mxu0 0.0
    %8842 = vmatpush1.msra.mxu0 0.0
    %8843 = vmatprep.subr.mxu0 0.0
    %8844 = vmatpush1.msra.mxu0 0.0
    %8845 = vmatprep.subr.mxu0 0.0
    %8846 = vmatpush1.msra.mxu0 0.0
    %8847 = vmatprep.subr.mxu0 0.0
    %8848 = vmatpush1.msra.mxu0 0.0
    %8849 = vmatprep.subr.mxu0 0.0
    %8850 = vmatpush1.msra.mxu0 0.0
    %8851 = vmatprep.subr.mxu0 0.0
    %8852 = vmatpush1.msra.mxu0 0.0
    %8853 = vmatprep.subr.mxu0 0.0
    %8854 = vmatpush1.msra.mxu0 0.0
    %8855 = vmatprep.subr.mxu0 0.0
    %8856 = vmatpush1.msra.mxu0 0.0
    %8857 = vmatprep.subr.mxu0 0.0
    %8858 = vmatpush1.msra.mxu0 0.0
    %8859 = vmatprep.subr.mxu0 0.0
    %8860 = vmatpush1.msra.mxu0 0.0
    %8861 = vmatprep.subr.mxu0 0.0
    %8862 = vmatpush1.msra.mxu0 0.0
    %8863 = vmatprep.subr.mxu0 0.0
    %8864 = vmatpush1.msra.mxu0 0.0
    %8865 = vmatprep.subr.mxu0 0.0
    %8866 = vmatpush1.msra.mxu0 0.0
    %8867 = vmatprep.subr.mxu0 0.0
    %8868 = vmatpush1.msra.mxu0 0.0
    %8869 = vmatprep.subr.mxu0 0.0
    %8870 = vmatpush1.msra.mxu0 0.0
    %8871 = vmatprep.mubr.f32.mxu0 0.0
    %8872 = vmatmul.mubr.f32.gmra.mrb[0].mxu0 %v8335
    %v8873 = vpop.f32.mrb[0].mxu0
    %v8874 = vadd.f32 0.0, %v8873
    %v8875 = vpop.f32.mrb[0].mxu0
    %8876 = vdwg.mxu0
    %v8877 = vadd.f32 %v8789, %v8874
    %s8878 = scalar_lea.vmem %s22, 768
    %v8879 = vld [vmem:[%s8878] sm:$0xff]
    %v8880 = vld [vmem:[%s8878 + $0x8] sm:$0xff]
    %v8881 = vld [vmem:[%s8878 + $0x10] sm:$0xff]
    %v8882 = vld [vmem:[%s8878 + $0x18] sm:$0xff]
    %v8883 = vld [vmem:[%s8878 + $0x20] sm:$0xff]
    %v8884 = vld [vmem:[%s8878 + $0x28] sm:$0xff]
    %v8885 = vld [vmem:[%s8878 + $0x30] sm:$0xff]
    %v8886 = vld [vmem:[%s8878 + $0x38] sm:$0xff]
    %v8887 = vld [vmem:[%s8878 + $0x40] sm:$0xff]
    %v8888 = vld [vmem:[%s8878 + $0x48] sm:$0xff]
    %v8889 = vld [vmem:[%s8878 + $0x50] sm:$0xff]
    %v8890 = vld [vmem:[%s8878 + $0x58] sm:$0xff]
    %v8891 = vld [vmem:[%s8878 + $0x60] sm:$0xff]
    %v8892 = vld [vmem:[%s8878 + $0x68] sm:$0xff]
    %v8893 = vld [vmem:[%s8878 + $0x70] sm:$0xff]
    %v8894 = vld [vmem:[%s8878 + $0x78] sm:$0xff]
    %8895 = vmatprep.subr.mxu0 0.0
    %8896 = vmatpush1.msra.mxu0 %v8879
    %8897 = vmatprep.subr.mxu0 0.0
    %8898 = vmatpush1.msra.mxu0 %v8880
    %8899 = vmatprep.subr.mxu0 0.0
    %8900 = vmatpush1.msra.mxu0 %v8881
    %8901 = vmatprep.subr.mxu0 0.0
    %8902 = vmatpush1.msra.mxu0 %v8882
    %8903 = vmatprep.subr.mxu0 0.0
    %8904 = vmatpush1.msra.mxu0 %v8883
    %8905 = vmatprep.subr.mxu0 0.0
    %8906 = vmatpush1.msra.mxu0 %v8884
    %8907 = vmatprep.subr.mxu0 0.0
    %8908 = vmatpush1.msra.mxu0 %v8885
    %8909 = vmatprep.subr.mxu0 0.0
    %8910 = vmatpush1.msra.mxu0 %v8886
    %8911 = vmatprep.subr.mxu0 0.0
    %8912 = vmatpush1.msra.mxu0 %v8887
    %8913 = vmatprep.subr.mxu0 0.0
    %8914 = vmatpush1.msra.mxu0 %v8888
    %8915 = vmatprep.subr.mxu0 0.0
    %8916 = vmatpush1.msra.mxu0 %v8889
    %8917 = vmatprep.subr.mxu0 0.0
    %8918 = vmatpush1.msra.mxu0 %v8890
    %8919 = vmatprep.subr.mxu0 0.0
    %8920 = vmatpush1.msra.mxu0 %v8891
    %8921 = vmatprep.subr.mxu0 0.0
    %8922 = vmatpush1.msra.mxu0 %v8892
    %8923 = vmatprep.subr.mxu0 0.0
    %8924 = vmatpush1.msra.mxu0 %v8893
    %8925 = vmatprep.subr.mxu0 0.0
    %8926 = vmatpush1.msra.mxu0 %v8894
    %8927 = vmatprep.subr.mxu0 0.0
    %8928 = vmatpush1.msra.mxu0 0.0
    %8929 = vmatprep.subr.mxu0 0.0
    %8930 = vmatpush1.msra.mxu0 0.0
    %8931 = vmatprep.subr.mxu0 0.0
    %8932 = vmatpush1.msra.mxu0 0.0
    %8933 = vmatprep.subr.mxu0 0.0
    %8934 = vmatpush1.msra.mxu0 0.0
    %8935 = vmatprep.subr.mxu0 0.0
    %8936 = vmatpush1.msra.mxu0 0.0
    %8937 = vmatprep.subr.mxu0 0.0
    %8938 = vmatpush1.msra.mxu0 0.0
    %8939 = vmatprep.subr.mxu0 0.0
    %8940 = vmatpush1.msra.mxu0 0.0
    %8941 = vmatprep.subr.mxu0 0.0
    %8942 = vmatpush1.msra.mxu0 0.0
    %8943 = vmatprep.subr.mxu0 0.0
    %8944 = vmatpush1.msra.mxu0 0.0
    %8945 = vmatprep.subr.mxu0 0.0
    %8946 = vmatpush1.msra.mxu0 0.0
    %8947 = vmatprep.subr.mxu0 0.0
    %8948 = vmatpush1.msra.mxu0 0.0
    %8949 = vmatprep.subr.mxu0 0.0
    %8950 = vmatpush1.msra.mxu0 0.0
    %8951 = vmatprep.subr.mxu0 0.0
    %8952 = vmatpush1.msra.mxu0 0.0
    %8953 = vmatprep.subr.mxu0 0.0
    %8954 = vmatpush1.msra.mxu0 0.0
    %8955 = vmatprep.subr.mxu0 0.0
    %8956 = vmatpush1.msra.mxu0 0.0
    %8957 = vmatprep.subr.mxu0 0.0
    %8958 = vmatpush1.msra.mxu0 0.0
    %8959 = vmatprep.mubr.f32.mxu0 0.0
    %8960 = vmatmul.mubr.f32.gmra.mrb[0].mxu0 %v8340
    %v8961 = vpop.f32.mrb[0].mxu0
    %v8962 = vadd.f32 0.0, %v8961
    %v8963 = vpop.f32.mrb[0].mxu0
    %8964 = vdwg.mxu0
    %v8965 = vadd.f32 %v8877, %v8962
    %s8966 = scalar_lea.vmem %s22, 896
    %v8967 = vld [vmem:[%s8966] sm:$0xff]
    %v8968 = vld [vmem:[%s8966 + $0x8] sm:$0xff]
    %v8969 = vld [vmem:[%s8966 + $0x10] sm:$0xff]
    %v8970 = vld [vmem:[%s8966 + $0x18] sm:$0xff]
    %v8971 = vld [vmem:[%s8966 + $0x20] sm:$0xff]
    %v8972 = vld [vmem:[%s8966 + $0x28] sm:$0xff]
    %v8973 = vld [vmem:[%s8966 + $0x30] sm:$0xff]
    %v8974 = vld [vmem:[%s8966 + $0x38] sm:$0xff]
    %v8975 = vld [vmem:[%s8966 + $0x40] sm:$0xff]
    %v8976 = vld [vmem:[%s8966 + $0x48] sm:$0xff]
    %v8977 = vld [vmem:[%s8966 + $0x50] sm:$0xff]
    %v8978 = vld [vmem:[%s8966 + $0x58] sm:$0xff]
    %v8979 = vld [vmem:[%s8966 + $0x60] sm:$0xff]
    %v8980 = vld [vmem:[%s8966 + $0x68] sm:$0xff]
    %v8981 = vld [vmem:[%s8966 + $0x70] sm:$0xff]
    %v8982 = vld [vmem:[%s8966 + $0x78] sm:$0xff]
    %8983 = vmatprep.subr.mxu0 0.0
    %8984 = vmatpush1.msra.mxu0 %v8967
    %8985 = vmatprep.subr.mxu0 0.0
    %8986 = vmatpush1.msra.mxu0 %v8968
    %8987 = vmatprep.subr.mxu0 0.0
    %8988 = vmatpush1.msra.mxu0 %v8969
    %8989 = vmatprep.subr.mxu0 0.0
    %8990 = vmatpush1.msra.mxu0 %v8970
    %8991 = vmatprep.subr.mxu0 0.0
    %8992 = vmatpush1.msra.mxu0 %v8971
    %8993 = vmatprep.subr.mxu0 0.0
    %8994 = vmatpush1.msra.mxu0 %v8972
    %8995 = vmatprep.subr.mxu0 0.0
    %8996 = vmatpush1.msra.mxu0 %v8973
    %8997 = vmatprep.subr.mxu0 0.0
    %8998 = vmatpush1.msra.mxu0 %v8974
    %8999 = vmatprep.subr.mxu0 0.0
    %9000 = vmatpush1.msra.mxu0 %v8975
    %9001 = vmatprep.subr.mxu0 0.0
    %9002 = vmatpush1.msra.mxu0 %v8976
    %9003 = vmatprep.subr.mxu0 0.0
    %9004 = vmatpush1.msra.mxu0 %v8977
    %9005 = vmatprep.subr.mxu0 0.0
    %9006 = vmatpush1.msra.mxu0 %v8978
    %9007 = vmatprep.subr.mxu0 0.0
    %9008 = vmatpush1.msra.mxu0 %v8979
    %9009 = vmatprep.subr.mxu0 0.0
    %9010 = vmatpush1.msra.mxu0 %v8980
    %9011 = vmatprep.subr.mxu0 0.0
    %9012 = vmatpush1.msra.mxu0 %v8981
    %9013 = vmatprep.subr.mxu0 0.0
    %9014 = vmatpush1.msra.mxu0 %v8982
    %9015 = vmatprep.subr.mxu0 0.0
    %9016 = vmatpush1.msra.mxu0 0.0
    %9017 = vmatprep.subr.mxu0 0.0
    %9018 = vmatpush1.msra.mxu0 0.0
    %9019 = vmatprep.subr.mxu0 0.0
    %9020 = vmatpush1.msra.mxu0 0.0
    %9021 = vmatprep.subr.mxu0 0.0
    %9022 = vmatpush1.msra.mxu0 0.0
    %9023 = vmatprep.subr.mxu0 0.0
    %9024 = vmatpush1.msra.mxu0 0.0
    %9025 = vmatprep.subr.mxu0 0.0
    %9026 = vmatpush1.msra.mxu0 0.0
    %9027 = vmatprep.subr.mxu0 0.0
    %9028 = vmatpush1.msra.mxu0 0.0
    %9029 = vmatprep.subr.mxu0 0.0
    %9030 = vmatpush1.msra.mxu0 0.0
    %9031 = vmatprep.subr.mxu0 0.0
    %9032 = vmatpush1.msra.mxu0 0.0
    %9033 = vmatprep.subr.mxu0 0.0
    %9034 = vmatpush1.msra.mxu0 0.0
    %9035 = vmatprep.subr.mxu0 0.0
    %9036 = vmatpush1.msra.mxu0 0.0
    %9037 = vmatprep.subr.mxu0 0.0
    %9038 = vmatpush1.msra.mxu0 0.0
    %9039 = vmatprep.subr.mxu0 0.0
    %9040 = vmatpush1.msra.mxu0 0.0
    %9041 = vmatprep.subr.mxu0 0.0
    %9042 = vmatpush1.msra.mxu0 0.0
    %9043 = vmatprep.subr.mxu0 0.0
    %9044 = vmatpush1.msra.mxu0 0.0
    %9045 = vmatprep.subr.mxu0 0.0
    %9046 = vmatpush1.msra.mxu0 0.0
    %9047 = vmatprep.mubr.f32.mxu0 0.0
    %9048 = vmatmul.mubr.f32.gmra.mrb[0].mxu0 %v8345
    %v9049 = vpop.f32.mrb[0].mxu0
    %v9050 = vadd.f32 0.0, %v9049
    %v9051 = vpop.f32.mrb[0].mxu0
    %9052 = vdwg.mxu0
    %v9053 = vadd.f32 %v8965, %v9050
    %s9054 = scalar_lea.vmem %s22, 1024
    %v9055 = vld [vmem:[%s9054] sm:$0xff]
    %v9056 = vld [vmem:[%s9054 + $0x8] sm:$0xff]
    %v9057 = vld [vmem:[%s9054 + $0x10] sm:$0xff]
    %v9058 = vld [vmem:[%s9054 + $0x18] sm:$0xff]
    %v9059 = vld [vmem:[%s9054 + $0x20] sm:$0xff]
    %v9060 = vld [vmem:[%s9054 + $0x28] sm:$0xff]
    %v9061 = vld [vmem:[%s9054 + $0x30] sm:$0xff]
    %v9062 = vld [vmem:[%s9054 + $0x38] sm:$0xff]
    %v9063 = vld [vmem:[%s9054 + $0x40] sm:$0xff]
    %v9064 = vld [vmem:[%s9054 + $0x48] sm:$0xff]
    %v9065 = vld [vmem:[%s9054 + $0x50] sm:$0xff]
    %v9066 = vld [vmem:[%s9054 + $0x58] sm:$0xff]
    %v9067 = vld [vmem:[%s9054 + $0x60] sm:$0xff]
    %v9068 = vld [vmem:[%s9054 + $0x68] sm:$0xff]
    %v9069 = vld [vmem:[%s9054 + $0x70] sm:$0xff]
    %v9070 = vld [vmem:[%s9054 + $0x78] sm:$0xff]
    %9071 = vmatprep.subr.mxu0 0.0
    %9072 = vmatpush1.msra.mxu0 %v9055
    %9073 = vmatprep.subr.mxu0 0.0
    %9074 = vmatpush1.msra.mxu0 %v9056
    %9075 = vmatprep.subr.mxu0 0.0
    %9076 = vmatpush1.msra.mxu0 %v9057
    %9077 = vmatprep.subr.mxu0 0.0
    %9078 = vmatpush1.msra.mxu0 %v9058
    %9079 = vmatprep.subr.mxu0 0.0
    %9080 = vmatpush1.msra.mxu0 %v9059
    %9081 = vmatprep.subr.mxu0 0.0
    %9082 = vmatpush1.msra.mxu0 %v9060
    %9083 = vmatprep.subr.mxu0 0.0
    %9084 = vmatpush1.msra.mxu0 %v9061
    %9085 = vmatprep.subr.mxu0 0.0
    %9086 = vmatpush1.msra.mxu0 %v9062
    %9087 = vmatprep.subr.mxu0 0.0
    %9088 = vmatpush1.msra.mxu0 %v9063
    %9089 = vmatprep.subr.mxu0 0.0
    %9090 = vmatpush1.msra.mxu0 %v9064
    %9091 = vmatprep.subr.mxu0 0.0
    %9092 = vmatpush1.msra.mxu0 %v9065
    %9093 = vmatprep.subr.mxu0 0.0
    %9094 = vmatpush1.msra.mxu0 %v9066
    %9095 = vmatprep.subr.mxu0 0.0
    %9096 = vmatpush1.msra.mxu0 %v9067
    %9097 = vmatprep.subr.mxu0 0.0
    %9098 = vmatpush1.msra.mxu0 %v9068
    %9099 = vmatprep.subr.mxu0 0.0
    %9100 = vmatpush1.msra.mxu0 %v9069
    %9101 = vmatprep.subr.mxu0 0.0
    %9102 = vmatpush1.msra.mxu0 %v9070
    %9103 = vmatprep.subr.mxu0 0.0
    %9104 = vmatpush1.msra.mxu0 0.0
    %9105 = vmatprep.subr.mxu0 0.0
    %9106 = vmatpush1.msra.mxu0 0.0
    %9107 = vmatprep.subr.mxu0 0.0
    %9108 = vmatpush1.msra.mxu0 0.0
    %9109 = vmatprep.subr.mxu0 0.0
    %9110 = vmatpush1.msra.mxu0 0.0
    %9111 = vmatprep.subr.mxu0 0.0
    %9112 = vmatpush1.msra.mxu0 0.0
    %9113 = vmatprep.subr.mxu0 0.0
    %9114 = vmatpush1.msra.mxu0 0.0
    %9115 = vmatprep.subr.mxu0 0.0
    %9116 = vmatpush1.msra.mxu0 0.0
    %9117 = vmatprep.subr.mxu0 0.0
    %9118 = vmatpush1.msra.mxu0 0.0
    %9119 = vmatprep.subr.mxu0 0.0
    %9120 = vmatpush1.msra.mxu0 0.0
    %9121 = vmatprep.subr.mxu0 0.0
    %9122 = vmatpush1.msra.mxu0 0.0
    %9123 = vmatprep.subr.mxu0 0.0
    %9124 = vmatpush1.msra.mxu0 0.0
    %9125 = vmatprep.subr.mxu0 0.0
    %9126 = vmatpush1.msra.mxu0 0.0
    %9127 = vmatprep.subr.mxu0 0.0
    %9128 = vmatpush1.msra.mxu0 0.0
    %9129 = vmatprep.subr.mxu0 0.0
    %9130 = vmatpush1.msra.mxu0 0.0
    %9131 = vmatprep.subr.mxu0 0.0
    %9132 = vmatpush1.msra.mxu0 0.0
    %9133 = vmatprep.subr.mxu0 0.0
    %9134 = vmatpush1.msra.mxu0 0.0
    %9135 = vmatprep.mubr.f32.mxu0 0.0
    %9136 = vmatmul.mubr.f32.gmra.mrb[0].mxu0 %v8350
    %v9137 = vpop.f32.mrb[0].mxu0
    %v9138 = vadd.f32 0.0, %v9137
    %v9139 = vpop.f32.mrb[0].mxu0
    %9140 = vdwg.mxu0
    %v9141 = vadd.f32 %v9053, %v9138
    %v9142 = vrot.slane %v9141, 4
    %v9143 = vadd.f32 %v9141, %v9142
    %v9144 = vrot.slane %v9143, 2
    %v9145 = vadd.f32 %v9143, %v9144
    %v9146 = vrot.slane %v9145, 1
    %v9147 = vadd.f32 %v9145, %v9146
    %v9148 = vld [vmem:[%s23] sm:$0xff]
    %v9149 = vld [vmem:[%s23 + $0x8] sm:$0xff]
    %v9150 = vld [vmem:[%s23 + $0x10] sm:$0xff]
    %v9151 = vld [vmem:[%s23 + $0x18] sm:$0xff]
    %v9152 = vld [vmem:[%s23 + $0x20] sm:$0xff]
    %v9153 = vld [vmem:[%s23 + $0x28] sm:$0xff]
    %v9154 = vld [vmem:[%s23 + $0x30] sm:$0xff]
    %v9155 = vld [vmem:[%s23 + $0x38] sm:$0xff]
    %v9156 = vld [vmem:[%s23 + $0x40] sm:$0xff]
    %v9157 = vld [vmem:[%s23 + $0x48] sm:$0xff]
    %v9158 = vld [vmem:[%s23 + $0x50] sm:$0xff]
    %v9159 = vld [vmem:[%s23 + $0x58] sm:$0xff]
    %v9160 = vld [vmem:[%s23 + $0x60] sm:$0xff]
    %v9161 = vld [vmem:[%s23 + $0x68] sm:$0xff]
    %v9162 = vld [vmem:[%s23 + $0x70] sm:$0xff]
    %v9163 = vld [vmem:[%s23 + $0x78] sm:$0xff]
    %9164 = vmatprep.subr.mxu0 0.0
    %9165 = vmatpush1.msra.mxu0 %v9148
    %9166 = vmatprep.subr.mxu0 0.0
    %9167 = vmatpush1.msra.mxu0 %v9149
    %9168 = vmatprep.subr.mxu0 0.0
    %9169 = vmatpush1.msra.mxu0 %v9150
    %9170 = vmatprep.subr.mxu0 0.0
    %9171 = vmatpush1.msra.mxu0 %v9151
    %9172 = vmatprep.subr.mxu0 0.0
    %9173 = vmatpush1.msra.mxu0 %v9152
    %9174 = vmatprep.subr.mxu0 0.0
    %9175 = vmatpush1.msra.mxu0 %v9153
    %9176 = vmatprep.subr.mxu0 0.0
    %9177 = vmatpush1.msra.mxu0 %v9154
    %9178 = vmatprep.subr.mxu0 0.0
    %9179 = vmatpush1.msra.mxu0 %v9155
    %9180 = vmatprep.subr.mxu0 0.0
    %9181 = vmatpush1.msra.mxu0 %v9156
    %9182 = vmatprep.subr.mxu0 0.0
    %9183 = vmatpush1.msra.mxu0 %v9157
    %9184 = vmatprep.subr.mxu0 0.0
    %9185 = vmatpush1.msra.mxu0 %v9158
    %9186 = vmatprep.subr.mxu0 0.0
    %9187 = vmatpush1.msra.mxu0 %v9159
    %9188 = vmatprep.subr.mxu0 0.0
    %9189 = vmatpush1.msra.mxu0 %v9160
    %9190 = vmatprep.subr.mxu0 0.0
    %9191 = vmatpush1.msra.mxu0 %v9161
    %9192 = vmatprep.subr.mxu0 0.0
    %9193 = vmatpush1.msra.mxu0 %v9162
    %9194 = vmatprep.subr.mxu0 0.0
    %9195 = vmatpush1.msra.mxu0 %v9163
    %9196 = vmatprep.subr.mxu0 0.0
    %9197 = vmatpush1.msra.mxu0 0.0
    %9198 = vmatprep.subr.mxu0 0.0
    %9199 = vmatpush1.msra.mxu0 0.0
    %9200 = vmatprep.subr.mxu0 0.0
    %9201 = vmatpush1.msra.mxu0 0.0
    %9202 = vmatprep.subr.mxu0 0.0
    %9203 = vmatpush1.msra.mxu0 0.0
    %9204 = vmatprep.subr.mxu0 0.0
    %9205 = vmatpush1.msra.mxu0 0.0
    %9206 = vmatprep.subr.mxu0 0.0
    %9207 = vmatpush1.msra.mxu0 0.0
    %9208 = vmatprep.subr.mxu0 0.0
    %9209 = vmatpush1.msra.mxu0 0.0
    %9210 = vmatprep.subr.mxu0 0.0
    %9211 = vmatpush1.msra.mxu0 0.0
    %9212 = vmatprep.subr.mxu0 0.0
    %9213 = vmatpush1.msra.mxu0 0.0
    %9214 = vmatprep.subr.mxu0 0.0
    %9215 = vmatpush1.msra.mxu0 0.0
    %9216 = vmatprep.subr.mxu0 0.0
    %9217 = vmatpush1.msra.mxu0 0.0
    %9218 = vmatprep.subr.mxu0 0.0
    %9219 = vmatpush1.msra.mxu0 0.0
    %9220 = vmatprep.subr.mxu0 0.0
    %9221 = vmatpush1.msra.mxu0 0.0
    %9222 = vmatprep.subr.mxu0 0.0
    %9223 = vmatpush1.msra.mxu0 0.0
    %9224 = vmatprep.subr.mxu0 0.0
    %9225 = vmatpush1.msra.mxu0 0.0
    %9226 = vmatprep.subr.mxu0 0.0
    %9227 = vmatpush1.msra.mxu0 0.0
    %9228 = vmatprep.mubr.f32.mxu0 0.0
    %9229 = vmatmul.mubr.f32.gmra.mrb[0].mxu0 %v9147
    %v9230 = vpop.f32.mrb[0].mxu0
    %v9231 = vadd.f32 0.0, %v9230
    %v9232 = vpop.f32.mrb[0].mxu0
    %9233 = vdwg.mxu0
    %v9234 = vmul.f32 %v9231, 0.0625
    %v9235 = vlaneseq
    %v9236 = vshrl.u32 %v9235, 7
    %v9237 = vsub.s32 0, %v9236
    %v9238 = vrot.slane %v9234, %v9237
    %v9239 = vsub.f32 %v9141, %v9238
    %v9240 = vmul.f32 %v9239, %v9239
    %v9241 = vrot.slane %v9240, 4
    %v9242 = vadd.f32 %v9240, %v9241
    %v9243 = vrot.slane %v9242, 2
    %v9244 = vadd.f32 %v9242, %v9243
    %v9245 = vrot.slane %v9244, 1
    %v9246 = vadd.f32 %v9244, %v9245
    %9247 = vmatprep.subr.mxu0 0.0
    %9248 = vmatpush1.msra.mxu0 %v9148
    %9249 = vmatprep.subr.mxu0 0.0
    %9250 = vmatpush1.msra.mxu0 %v9149
    %9251 = vmatprep.subr.mxu0 0.0
    %9252 = vmatpush1.msra.mxu0 %v9150
    %9253 = vmatprep.subr.mxu0 0.0
    %9254 = vmatpush1.msra.mxu0 %v9151
    %9255 = vmatprep.subr.mxu0 0.0
    %9256 = vmatpush1.msra.mxu0 %v9152
    %9257 = vmatprep.subr.mxu0 0.0
    %9258 = vmatpush1.msra.mxu0 %v9153
    %9259 = vmatprep.subr.mxu0 0.0
    %9260 = vmatpush1.msra.mxu0 %v9154
    %9261 = vmatprep.subr.mxu0 0.0
    %9262 = vmatpush1.msra.mxu0 %v9155
    %9263 = vmatprep.subr.mxu0 0.0
    %9264 = vmatpush1.msra.mxu0 %v9156
    %9265 = vmatprep.subr.mxu0 0.0
    %9266 = vmatpush1.msra.mxu0 %v9157
    %9267 = vmatprep.subr.mxu0 0.0
    %9268 = vmatpush1.msra.mxu0 %v9158
    %9269 = vmatprep.subr.mxu0 0.0
    %9270 = vmatpush1.msra.mxu0 %v9159
    %9271 = vmatprep.subr.mxu0 0.0
    %9272 = vmatpush1.msra.mxu0 %v9160
    %9273 = vmatprep.subr.mxu0 0.0
    %9274 = vmatpush1.msra.mxu0 %v9161
    %9275 = vmatprep.subr.mxu0 0.0
    %9276 = vmatpush1.msra.mxu0 %v9162
    %9277 = vmatprep.subr.mxu0 0.0
    %9278 = vmatpush1.msra.mxu0 %v9163
    %9279 = vmatprep.subr.mxu0 0.0
    %9280 = vmatpush1.msra.mxu0 0.0
    %9281 = vmatprep.subr.mxu0 0.0
    %9282 = vmatpush1.msra.mxu0 0.0
    %9283 = vmatprep.subr.mxu0 0.0
    %9284 = vmatpush1.msra.mxu0 0.0
    %9285 = vmatprep.subr.mxu0 0.0
    %9286 = vmatpush1.msra.mxu0 0.0
    %9287 = vmatprep.subr.mxu0 0.0
    %9288 = vmatpush1.msra.mxu0 0.0
    %9289 = vmatprep.subr.mxu0 0.0
    %9290 = vmatpush1.msra.mxu0 0.0
    %9291 = vmatprep.subr.mxu0 0.0
    %9292 = vmatpush1.msra.mxu0 0.0
    %9293 = vmatprep.subr.mxu0 0.0
    %9294 = vmatpush1.msra.mxu0 0.0
    %9295 = vmatprep.subr.mxu0 0.0
    %9296 = vmatpush1.msra.mxu0 0.0
    %9297 = vmatprep.subr.mxu0 0.0
    %9298 = vmatpush1.msra.mxu0 0.0
    %9299 = vmatprep.subr.mxu0 0.0
    %9300 = vmatpush1.msra.mxu0 0.0
    %9301 = vmatprep.subr.mxu0 0.0
    %9302 = vmatpush1.msra.mxu0 0.0
    %9303 = vmatprep.subr.mxu0 0.0
    %9304 = vmatpush1.msra.mxu0 0.0
    %9305 = vmatprep.subr.mxu0 0.0
    %9306 = vmatpush1.msra.mxu0 0.0
    %9307 = vmatprep.subr.mxu0 0.0
    %9308 = vmatpush1.msra.mxu0 0.0
    %9309 = vmatprep.subr.mxu0 0.0
    %9310 = vmatpush1.msra.mxu0 0.0
    %9311 = vmatprep.mubr.f32.mxu0 0.0
    %9312 = vmatmul.mubr.f32.gmra.mrb[0].mxu0 %v9246
    %v9313 = vpop.f32.mrb[0].mxu0
    %v9314 = vadd.f32 0.0, %v9313
    %v9315 = vpop.f32.mrb[0].mxu0
    %9316 = vdwg.mxu0
    %v9317 = vmul.f32 %v9314, 0.0625
    %v9318 = vld [vmem:[%s24] sm:$0x1]
    %v9319 = vadd.f32 %v9317, 1e-05
    %v9320 = vrsqrt.pop %v9319
    %v9321 = vmul.f32 %v9318, %v9320
    %v9322 = vld [vmem:[%s25] sm:$0x1]
    %v9323 = vmul.f32 %v9234, %v9321
    %v9324 = vsub.f32 %v9322, %v9323
    %v9326 = vlaneseq
    %v9327 = vshrl.u32 %v9326, 7
    %v9328 = vsub.s32 0, %v9327
    %v9329 = vrot.slane %v9321, %v9328
    %v9331 = vmul.f32 %v9141, %v9329
    %v9333 = vlaneseq
    %v9334 = vshrl.u32 %v9333, 7
    %v9335 = vsub.s32 0, %v9334
    %v9336 = vrot.slane %v9324, %v9335
    %v9338 = vadd.f32 %v9331, %v9336
    %v9339 = vmax.f32 %v9338, 0.0
    %v9340 = vld [vmem:[%s26] sm:$0x3]
    %v9341 = vld [vmem:[%s27] sm:$0xff]
    %v9342 = vld [vmem:[%s27 + $0x8] sm:$0xff]
    %v9343 = vld [vmem:[%s27 + $0x10] sm:$0xff]
    %v9344 = vld [vmem:[%s27 + $0x18] sm:$0xff]
    %v9345 = vld [vmem:[%s27 + $0x20] sm:$0xff]
    %v9346 = vld [vmem:[%s27 + $0x28] sm:$0xff]
    %v9347 = vld [vmem:[%s27 + $0x30] sm:$0xff]
    %v9348 = vld [vmem:[%s27 + $0x38] sm:$0xff]
    %v9349 = vld [vmem:[%s27 + $0x40] sm:$0xff]
    %v9350 = vld [vmem:[%s27 + $0x48] sm:$0xff]
    %v9351 = vld [vmem:[%s27 + $0x50] sm:$0xff]
    %v9352 = vld [vmem:[%s27 + $0x58] sm:$0xff]
    %v9353 = vld [vmem:[%s27 + $0x60] sm:$0xff]
    %v9354 = vld [vmem:[%s27 + $0x68] sm:$0xff]
    %v9355 = vld [vmem:[%s27 + $0x70] sm:$0xff]
    %v9356 = vld [vmem:[%s27 + $0x78] sm:$0xff]
    %9357 = vmatprep.subr.mxu0 0.0
    %9358 = vmatpush1.msra.mxu0 %v9341
    %9359 = vmatprep.subr.mxu0 0.0
    %9360 = vmatpush1.msra.mxu0 %v9342
    %9361 = vmatprep.subr.mxu0 0.0
    %9362 = vmatpush1.msra.mxu0 %v9343
    %9363 = vmatprep.subr.mxu0 0.0
    %9364 = vmatpush1.msra.mxu0 %v9344
    %9365 = vmatprep.subr.mxu0 0.0
    %9366 = vmatpush1.msra.mxu0 %v9345
    %9367 = vmatprep.subr.mxu0 0.0
    %9368 = vmatpush1.msra.mxu0 %v9346
    %9369 = vmatprep.subr.mxu0 0.0
    %9370 = vmatpush1.msra.mxu0 %v9347
    %9371 = vmatprep.subr.mxu0 0.0
    %9372 = vmatpush1.msra.mxu0 %v9348
    %9373 = vmatprep.subr.mxu0 0.0
    %9374 = vmatpush1.msra.mxu0 %v9349
    %9375 = vmatprep.subr.mxu0 0.0
    %9376 = vmatpush1.msra.mxu0 %v9350
    %9377 = vmatprep.subr.mxu0 0.0
    %9378 = vmatpush1.msra.mxu0 %v9351
    %9379 = vmatprep.subr.mxu0 0.0
    %9380 = vmatpush1.msra.mxu0 %v9352
    %9381 = vmatprep.subr.mxu0 0.0
    %9382 = vmatpush1.msra.mxu0 %v9353
    %9383 = vmatprep.subr.mxu0 0.0
    %9384 = vmatpush1.msra.mxu0 %v9354
    %9385 = vmatprep.subr.mxu0 0.0
    %9386 = vmatpush1.msra.mxu0 %v9355
    %9387 = vmatprep.subr.mxu0 0.0
    %9388 = vmatpush1.msra.mxu0 %v9356
    %9389 = vmatprep.subr.mxu0 0.0
    %9390 = vmatpush1.msra.mxu0 0.0
    %9391 = vmatprep.subr.mxu0 0.0
    %9392 = vmatpush1.msra.mxu0 0.0
    %9393 = vmatprep.subr.mxu0 0.0
    %9394 = vmatpush1.msra.mxu0 0.0
    %9395 = vmatprep.subr.mxu0 0.0
    %9396 = vmatpush1.msra.mxu0 0.0
    %9397 = vmatprep.subr.mxu0 0.0
    %9398 = vmatpush1.msra.mxu0 0.0
    %9399 = vmatprep.subr.mxu0 0.0
    %9400 = vmatpush1.msra.mxu0 0.0
    %9401 = vmatprep.subr.mxu0 0.0
    %9402 = vmatpush1.msra.mxu0 0.0
    %9403 = vmatprep.subr.mxu0 0.0
    %9404 = vmatpush1.msra.mxu0 0.0
    %9405 = vmatprep.subr.mxu0 0.0
    %9406 = vmatpush1.msra.mxu0 0.0
    %9407 = vmatprep.subr.mxu0 0.0
    %9408 = vmatpush1.msra.mxu0 0.0
    %9409 = vmatprep.subr.mxu0 0.0
    %9410 = vmatpush1.msra.mxu0 0.0
    %9411 = vmatprep.subr.mxu0 0.0
    %9412 = vmatpush1.msra.mxu0 0.0
    %9413 = vmatprep.subr.mxu0 0.0
    %9414 = vmatpush1.msra.mxu0 0.0
    %9415 = vmatprep.subr.mxu0 0.0
    %9416 = vmatpush1.msra.mxu0 0.0
    %9417 = vmatprep.subr.mxu0 0.0
    %9418 = vmatpush1.msra.mxu0 0.0
    %9419 = vmatprep.subr.mxu0 0.0
    %9420 = vmatpush1.msra.mxu0 0.0
    %9421 = vmatprep.mubr.f32.mxu0 0.0
    %9422 = vmatmul.mubr.f32.gmra.mrb[0].mxu0 %v9339
    %v9423 = vpop.f32.mrb[0].mxu0
    %v9424 = vadd.f32 0.0, %v9423
    %v9425 = vpop.f32.mrb[0].mxu0
    %9426 = vdwg.mxu0
    %vm9427 = vcmask 64512
    %v9429 = vsel %vm9427, %v9340, 0
    %9431 = vmatprep.subr.mxu0 0.0
    %9432 = vmatpush1.msra.mxu0 %v9424
    %9433 = vmatprep.subr.mxu0 0.0
    %9434 = vmatpush1.msra.mxu0 0.0
    %9435 = vmatprep.subr.mxu0 0.0
    %9436 = vmatpush1.msra.mxu0 0.0
    %9437 = vmatprep.subr.mxu0 0.0
    %9438 = vmatpush1.msra.mxu0 0.0
    %9439 = vmatprep.subr.mxu0 0.0
    %9440 = vmatpush1.msra.mxu0 0.0
    %9441 = vmatprep.subr.mxu0 0.0
    %9442 = vmatpush1.msra.mxu0 0.0
    %9443 = vmatprep.subr.mxu0 0.0
    %9444 = vmatpush1.msra.mxu0 0.0
    %9445 = vmatprep.subr.mxu0 0.0
    %9446 = vmatpush1.msra.mxu0 0.0
    %9447 = vmatprep.subr.mxu0 0.0
    %9448 = vmatpush1.msra.mxu0 0.0
    %9449 = vmatprep.subr.mxu0 0.0
    %9450 = vmatpush1.msra.mxu0 0.0
    %9451 = vmatprep.subr.mxu0 0.0
    %9452 = vmatpush1.msra.mxu0 0.0
    %9453 = vmatprep.subr.mxu0 0.0
    %9454 = vmatpush1.msra.mxu0 0.0
    %9455 = vmatprep.subr.mxu0 0.0
    %9456 = vmatpush1.msra.mxu0 0.0
    %9457 = vmatprep.subr.mxu0 0.0
    %9458 = vmatpush1.msra.mxu0 0.0
    %9459 = vmatprep.subr.mxu0 0.0
    %9460 = vmatpush1.msra.mxu0 0.0
    %9461 = vmatprep.subr.mxu0 0.0
    %9462 = vmatpush1.msra.mxu0 0.0
    %9463 = vmatprep.subr.mxu0 0.0
    %9464 = vmatpush1.msra.mxu0 0.0
    %9465 = vmatprep.subr.mxu0 0.0
    %9466 = vmatpush1.msra.mxu0 0.0
    %9467 = vmatprep.subr.mxu0 0.0
    %9468 = vmatpush1.msra.mxu0 0.0
    %9469 = vmatprep.subr.mxu0 0.0
    %9470 = vmatpush1.msra.mxu0 0.0
    %9471 = vmatprep.subr.mxu0 0.0
    %9472 = vmatpush1.msra.mxu0 0.0
    %9473 = vmatprep.subr.mxu0 0.0
    %9474 = vmatpush1.msra.mxu0 0.0
    %9475 = vmatprep.subr.mxu0 0.0
    %9476 = vmatpush1.msra.mxu0 0.0
    %9477 = vmatprep.subr.mxu0 0.0
    %9478 = vmatpush1.msra.mxu0 0.0
    %9479 = vmatprep.subr.mxu0 0.0
    %9480 = vmatpush1.msra.mxu0 0.0
    %9481 = vmatprep.subr.mxu0 0.0
    %9482 = vmatpush1.msra.mxu0 0.0
    %9483 = vmatprep.subr.mxu0 0.0
    %9484 = vmatpush1.msra.mxu0 0.0
    %9485 = vmatprep.subr.mxu0 0.0
    %9486 = vmatpush1.msra.mxu0 0.0
    %9487 = vmatprep.subr.mxu0 0.0
    %9488 = vmatpush1.msra.mxu0 0.0
    %9489 = vmatprep.subr.mxu0 0.0
    %9490 = vmatpush1.msra.mxu0 0.0
    %9491 = vmatprep.subr.mxu0 0.0
    %9492 = vmatpush1.msra.mxu0 0.0
    %9493 = vmatprep.subr.mxu0 0.0
    %9494 = vmatpush1.msra.mxu0 0.0
    %9495 = vmatprep.mubr.f32.mxu0 0.0
    %9496 = vmatmul.mubr.f32.gmra.mrb[0].mxu0 %v9429
    %v9497 = vpop.f32.mrb[0].mxu0
    %v9498 = vadd.f32 0.0, %v9497
    %v9499 = vpop.f32.mrb[0].mxu0
    %9500 = vdwg.mxu0
    %vm9501 = vcmask 517120
    %9502 = vst.msk [vmem:[#allocation2] sm:$0x3] %vm9501, %v9498
    // Predicated region
    $region114: #{forward.1} parent=1 // pred_check
      _
    $region115: #{forward.1} parent=1 // pred_check_branch
      %9504 = sbr.rel (0) target = $region117
    $region116: #{forward.1} parent=1 // pred_region
      %s9506 = ssub.s32 32, 32
      %9507 = vsyncadd [#allocation3], %s9506
      %s9509 = sshll.u32 [#allocation2], 4
      %s9510 = int_to_ptr.vmem [resolvable:$true] %s9509
      %9512 = dma.vmem_to_hbm [thread:$0]  %s9510, 32, %s28, [#allocation3]
    $region117: #{forward.1} parent=1 // pred_fallthru
      _
    // Predicated region
    $region118: #{forward.1} parent=1 // pred_check
      _
    $region119: #{forward.1} parent=1 // pred_check_branch
      %9514 = sbr.rel (0) target = $region121
    $region120: #{forward.1} parent=1 // pred_region
      %9515 = dma.done [#allocation3], 32
    $region121: #{forward.1} parent=1 // pred_fallthru
      _
    %9516 = vsyncpa [#allocation3], 1

</llo_original>
